<compile_context>
chip_gen: v5e
topology: v5e:2x2
jax: 0.10.0
libtpu: 0.0.40
codegen_flags: <defaults>
</compile_context>

<pallas_src>
import functools

import jax
import jax.numpy as jnp
from jax.experimental import pallas as pl
from jax.experimental.pallas import tpu as pltpu


def cnn_kernel(ids_ref, emb_ref, w_ref, b_ref, mask_ref, wf_ref, bf_ref,
               out_ref, xbuf, *, s_len):
    """One batch tile of the CNN forward.

    ids_ref  : SMEM (B*S,) int32        token ids (whole array, batch-major)
    emb_ref  : VMEM (V, D) f32          embedding table (resident, constant map)
    w_ref    : VMEM (max_fs*D, 2NF) bf16  packed conv weights, both branches
    b_ref    : VMEM (1, 2NF) f32        packed conv bias
    mask_ref : VMEM (1, L_pad, 2NF) f32 valid-time 0/1 mask (precomputed)
    wf_ref   : VMEM (1, 2NF) f32        fc weight as a row
    bf_ref   : SMEM (1, 1) f32          fc bias (scalar)
    out_ref  : VMEM (1, 1, tb) f32      lane-dense output row
    xbuf     : VMEM (tb, S_pad, D) f32  gathered embedding rows (scratch)
    """
    tb, s_pad, d = xbuf.shape
    l_pad = mask_ref.shape[1]
    max_fs = w_ref.shape[0] // d
    nf2 = w_ref.shape[1]

    # ---- fused embedding gather: VMEM->VMEM row copies (table is resident) -
    # Pad rows must be exact zeros (zero-weight taps still multiply them).
    xbuf[...] = jnp.zeros_like(xbuf)
    base = pl.program_id(0) * (tb * s_len)
    for b in range(tb):                    # static unroll: back-to-back loads,
        for s in range(s_len):             # all offsets static except `tok`
            tok = ids_ref[base + b * s_len + s]
            xbuf[b, s:s + 1, :] = emb_ref[pl.ds(tok, 1), :]

    x = xbuf[...].astype(jnp.bfloat16)                      # (tb, S_pad, D)

    # ---- im2col: max_fs shifted STATIC slices, lane-concatenated -----------
    xw = jnp.concatenate([x[:, k:k + l_pad, :] for k in range(max_fs)],
                         axis=-1).reshape(tb * l_pad, max_fs * d)

    # ---- ONE lane-dense MXU matmul for BOTH conv branches (K = max_fs*D) ---
    acc = jnp.dot(xw, w_ref[...], preferred_element_type=jnp.float32)
    acc = jnp.maximum(acc + b_ref[...], 0.0).reshape(tb, l_pad, nf2)

    # ---- mask invalid time positions (constant mask) + max-over-time -------
    pooled = jnp.max(acc * mask_ref[...], axis=1)           # (tb, 2NF)

    # ---- Linear(2NF -> 1) as VPU multiply + lane reduce, then sigmoid ------
    logits = jnp.sum(pooled * wf_ref[...], axis=-1) + bf_ref[0, 0]   # (tb,)
    out_ref[...] = jax.nn.sigmoid(logits).reshape(1, 1, tb)


def pack_params(embedding, w1, b1, w2, b2, wfc, bfc, *, filter_sizes, n_filters):
    """Pack PyTorch-layout params for the fused kernel.

    embedding (V, D); w1 (NF, fs1, D); w2 (NF, fs2, D) (Conv2d unit in-channel
    dropped); b1/b2 (NF,); wfc (1, 2NF); bfc (1,).
    """
    fs1, fs2 = filter_sizes
    max_fs = max(fs1, fs2)
    d = embedding.shape[1]

    def taps(w, fs):
        wt = jnp.transpose(w, (1, 2, 0))                    # (fs, D, NF)
        if max_fs > fs:                                     # zero-pad extra taps
            wt = jnp.concatenate(
                [wt, jnp.zeros((max_fs - fs, d, n_filters), wt.dtype)], axis=0)
        return wt

    w_conv = jnp.concatenate([taps(w1, fs1), taps(w2, fs2)], axis=-1)
    return {
        # f32 table: dynamic-row loads stay on an unpacked 32-bit dtype (safe
        # sublane-offset addressing); the MXU operands are still cast to bf16.
        "embedding": embedding.astype(jnp.float32),                       # (V, D)
        "w_conv": w_conv.reshape(max_fs * d, 2 * n_filters).astype(jnp.bfloat16),
        "b_conv": jnp.concatenate([b1, b2]).reshape(1, 2 * n_filters).astype(jnp.float32),
        "wf_row": wfc.reshape(1, 2 * n_filters).astype(jnp.float32),
        "bf": bfc.reshape(1, 1).astype(jnp.float32),
        "filter_sizes": (int(fs1), int(fs2)),
        "n_filters": int(n_filters),
    }


def cnn_forward(tokens, lengths, params, *, batch_tile=None):
    """tokens: (S, B) int32 (seq-major, matching the PyTorch call); lengths unused."""
    del lengths
    s_len, batch = tokens.shape
    fs1, fs2 = params["filter_sizes"]
    nf = params["n_filters"]
    emb = params["embedding"]                               # (V, D) f32
    v, d = emb.shape
    max_fs = max(fs1, fs2)
    l_valid = s_len - min(fs1, fs2) + 1
    l_pad = ((l_valid + 7) // 8) * 8                        # sublane-aligned time
    s_pad = max_fs - 1 + l_pad                              # padded gather buffer

    table_bytes = emb.size * emb.dtype.itemsize
    # TODO(synk): for vocabularies whose table exceeds ~40 MiB (v7x has only
    # 64 MiB physical VMEM) fall back to an HBM table with a double-buffered
    # DMA row gather instead of refusing VMEM residency here.
    if table_bytes > 40 * 2**20:
        raise NotImplementedError("embedding table too large for VMEM residency")

    if batch_tile is None:
        # Largest MXU-friendly tile that divides the batch, is a multiple of 8
        # and still leaves >= 2 grid steps for megacore / 2-TC sharding.
        cands = [c for c in (128, 64, 32, 16, 8)
                 if batch % c == 0 and batch // c >= 2]
        if cands:
            reach = [c for c in sorted(cands) if c * l_pad >= 256]
            batch_tile = reach[0] if reach else max(cands)
        else:
            batch_tile = batch          # tiny / odd batch: single grid step
    tb = batch_tile
    assert batch % tb == 0, "pad the batch to a multiple of batch_tile"
    num_blocks = batch // tb

    ids = tokens.T.reshape(-1).astype(jnp.int32)            # (B*S,) batch-major
    # TODO(synk): at production B*S sizes switch ids to a blocked per-tile SMEM
    # input so only one tile of ids is resident per grid step.

    # Valid-time 0/1 mask, reused by every grid step: (1, L_pad, 2NF) f32.
    t_idx = jnp.arange(l_pad)[:, None]
    limit = jnp.where(jnp.arange(2 * nf)[None, :] < nf,
                      s_len - fs1 + 1, s_len - fs2 + 1)
    mask = (t_idx < limit).astype(jnp.float32)[None]

    vmem_limit = int(min(100 * 2**20,
                         max(32 * 2**20, 2 * table_bytes + 16 * 2**20)))

    grid_spec = pltpu.PrefetchScalarGridSpec(
        num_scalar_prefetch=0,
        grid=(num_blocks,),
        in_specs=[
            pl.BlockSpec(memory_space=pltpu.MemorySpace.SMEM),        # ids
            pl.BlockSpec((v, d), lambda b: (0, 0)),                   # emb (resident)
            pl.BlockSpec((max_fs * d, 2 * nf), lambda b: (0, 0)),     # conv W
            pl.BlockSpec((1, 2 * nf), lambda b: (0, 0)),              # conv b
            pl.BlockSpec((1, l_pad, 2 * nf), lambda b: (0, 0, 0)),    # time mask
            pl.BlockSpec((1, 2 * nf), lambda b: (0, 0)),              # fc W row
            pl.BlockSpec(memory_space=pltpu.MemorySpace.SMEM),        # fc bias
        ],
        out_specs=pl.BlockSpec((1, 1, tb), lambda b: (b, 0, 0)),      # lane-dense
        scratch_shapes=[pltpu.VMEM((tb, s_pad, d), jnp.float32)],
    )

    kernel = functools.partial(cnn_kernel, s_len=s_len)
    out = pl.pallas_call(
        kernel,
        out_shape=jax.ShapeDtypeStruct((num_blocks, 1, tb), jnp.float32),
        grid_spec=grid_spec,
        compiler_params=pltpu.CompilerParams(
            dimension_semantics=("parallel",),
            vmem_limit_bytes=vmem_limit),
    )(ids, emb, params["w_conv"], params["b_conv"], mask,
      params["wf_row"], params["bf"])
    return out.reshape(batch, 1)


def cnn_reference(tokens, embedding, w1, b1, w2, b2, wfc, bfc):
    """Pure-JAX f32 reference of the PyTorch forward."""
    emb = jnp.take(embedding, tokens.T, axis=0)             # (B, S, D)

    def branch(w, b):                                       # w: (NF, fs, D)
        fs = w.shape[1]
        L = emb.shape[1] - fs + 1
        outs = jnp.stack(
            [jnp.einsum("bfd,nfd->bn", emb[:, t:t + fs, :], w) for t in range(L)],
            axis=1)                                         # (B, L, NF)
        return jnp.max(jnp.maximum(outs + b, 0.0), axis=1)

    cat = jnp.concatenate([branch(w1, b1), branch(w2, b2)], axis=1)
    return jax.nn.sigmoid(cat @ wfc.T + bfc)


if __name__ == "__main__":
    V, D = 50, 32          # vocab size, embedding_dim
    NF = 8                 # n_filters
    FS = (3, 4)            # filter_sizes
    S, B = 8, 64           # seq_len, batch -> tb=32, grid=(2,), matmul M=256

    key = jax.random.PRNGKey(0)
    ks = jax.random.split(key, 8)

    emb_table = jax.random.normal(ks[0], (V, D), jnp.float32)
    # torch Conv2d weight (NF, 1, fs, D) with the unit in-channel dropped
    w1 = jax.random.normal(ks[1], (NF, FS[0], D), jnp.float32) * 0.1
    w2 = jax.random.normal(ks[2], (NF, FS[1], D), jnp.float32) * 0.1
    b1 = jax.random.normal(ks[3], (NF,), jnp.float32) * 0.1
    b2 = jax.random.normal(ks[4], (NF,), jnp.float32) * 0.1
    # torch Linear(2*NF, 1): weight (1, 2*NF), bias (1,)
    wfc = jax.random.normal(ks[5], (1, 2 * NF), jnp.float32) * 0.1
    bfc = jax.random.normal(ks[6], (1,), jnp.float32) * 0.1

    params = pack_params(emb_table, w1, b1, w2, b2, wfc, bfc,
                         filter_sizes=FS, n_filters=NF)

    tokens = jax.random.randint(ks[7], (S, B), 0, V, dtype=jnp.int32)
    lengths = jnp.full((B,), S, dtype=jnp.int32)            # unused by forward

    fwd = jax.jit(functools.partial(cnn_forward, params=params))
    y = jax.block_until_ready(fwd(tokens, lengths))
    assert y.shape == (B, 1), y.shape

    y_ref = cnn_reference(tokens, emb_table, w1, b1, w2, b2, wfc, bfc)
    # bf16 MXU inputs with f32 accumulation -> slightly loosened tolerance
    assert jnp.allclose(y, y_ref, rtol=2e-2, atol=2e-2), (y, y_ref)

    print("KERNEL_OK")
</pallas_src>

<mosaic_0001>
module attributes {stable_mosaic.version = 11 : i64} {
  func.func @cnn_kernel(%arg0: i32, %arg1: memref<512xi32, #tpu.memory_space<smem>>, %arg2: memref<50x32xf32, #tpu.memory_space<vmem>>, %arg3: memref<128x16xbf16, #tpu.memory_space<vmem>>, %arg4: memref<1x16xf32, #tpu.memory_space<vmem>>, %arg5: memref<1x8x16xf32, #tpu.memory_space<vmem>>, %arg6: memref<1x16xf32, #tpu.memory_space<vmem>>, %arg7: memref<1x1xf32, #tpu.memory_space<smem>>, %arg8: memref<1x1x32xf32, #tpu.memory_space<vmem>>, %arg9: memref<32x11x32xf32, #tpu.memory_space<vmem>>) attributes {dimension_semantics = [#tpu.dimension_semantics<parallel>], iteration_bounds = array<i64: 2>, scalar_prefetch = 0 : i64, scratch_operands = 1 : i64, tpu.core_type = #tpu.core_type<tc>, window_params = [{transform_indices = @transform_0, window_bounds = array<i64: 512>}, {pipeline_mode = #tpu.pipeline_mode<synchronous>, transform_indices = @transform_1, window_bounds = array<i64: 50, 32>}, {pipeline_mode = #tpu.pipeline_mode<synchronous>, transform_indices = @transform_2, window_bounds = array<i64: 128, 16>}, {pipeline_mode = #tpu.pipeline_mode<synchronous>, transform_indices = @transform_3, window_bounds = array<i64: 1, 16>}, {pipeline_mode = #tpu.pipeline_mode<synchronous>, transform_indices = @transform_4, window_bounds = array<i64: 1, 8, 16>}, {pipeline_mode = #tpu.pipeline_mode<synchronous>, transform_indices = @transform_5, window_bounds = array<i64: 1, 16>}, {transform_indices = @transform_6, window_bounds = array<i64: 1, 1>}, {transform_indices = @transform_7, window_bounds = array<i64: 1, 1, 32>}]} {
    %cst = arith.constant 0.000000e+00 : f32
    %0 = vector.broadcast %cst : f32 to vector<32x11x32xf32>
    %c0 = arith.constant 0 : index
    %c0_0 = arith.constant 0 : index
    %c0_1 = arith.constant 0 : index
    %1 = vector.load %arg9[%c0, %c0_0, %c0_1] : memref<32x11x32xf32, #tpu.memory_space<vmem>>, vector<32x11x32xf32>
    tpu.vector_store %arg9[%c0, %c0_0, %c0_1], %0 {strides = array<i32>} : memref<32x11x32xf32, #tpu.memory_space<vmem>>, vector<32x11x32xf32>,
    %c256_i32 = arith.constant 256 : i32
    %2 = arith.muli %arg0, %c256_i32 : i32
    %c0_i32 = arith.constant 0 : i32
    %3 = arith.addi %2, %c0_i32 : i32
    %c0_i32_2 = arith.constant 0 : i32
    %4 = arith.addi %3, %c0_i32_2 : i32
    %5 = arith.index_cast %4 : i32 to index
    %6 = memref.load %arg1[%5] : memref<512xi32, #tpu.memory_space<smem>>
    %7 = arith.index_cast %6 : i32 to index
    %c0_3 = arith.constant 0 : index
    %8 = vector.load %arg2[%7, %c0_3] : memref<50x32xf32, #tpu.memory_space<vmem>>, vector<1x32xf32>
    %c0_4 = arith.constant 0 : index
    %c0_5 = arith.constant 0 : index
    %c0_6 = arith.constant 0 : index
    %9 = vector.load %arg9[%c0_4, %c0_5, %c0_6] : memref<32x11x32xf32, #tpu.memory_space<vmem>>, vector<1x1x32xf32>
    %10 = vector.shape_cast %9 : vector<1x1x32xf32> to vector<1x32xf32>
    %11 = vector.shape_cast %8 : vector<1x32xf32> to vector<1x1x32xf32>
    tpu.vector_store %arg9[%c0_4, %c0_5, %c0_6], %11 {strides = array<i32>} : memref<32x11x32xf32, #tpu.memory_space<vmem>>, vector<1x1x32xf32>,
    %c0_i32_7 = arith.constant 0 : i32
    %12 = arith.addi %2, %c0_i32_7 : i32
    %c1_i32 = arith.constant 1 : i32
    %13 = arith.addi %12, %c1_i32 : i32
    %14 = arith.index_cast %13 : i32 to index
    %15 = memref.load %arg1[%14] : memref<512xi32, #tpu.memory_space<smem>>
    %16 = arith.index_cast %15 : i32 to index
    %c0_8 = arith.constant 0 : index
    %17 = vector.load %arg2[%16, %c0_8] : memref<50x32xf32, #tpu.memory_space<vmem>>, vector<1x32xf32>
    %c0_9 = arith.constant 0 : index
    %c1 = arith.constant 1 : index
    %c0_10 = arith.constant 0 : index
    %18 = vector.load %arg9[%c0_9, %c1, %c0_10] : memref<32x11x32xf32, #tpu.memory_space<vmem>>, vector<1x1x32xf32>
    %19 = vector.shape_cast %18 : vector<1x1x32xf32> to vector<1x32xf32>
    %20 = vector.shape_cast %17 : vector<1x32xf32> to vector<1x1x32xf32>
    tpu.vector_store %arg9[%c0_9, %c1, %c0_10], %20 {strides = array<i32>} : memref<32x11x32xf32, #tpu.memory_space<vmem>>, vector<1x1x32xf32>,
    %c0_i32_11 = arith.constant 0 : i32
    %21 = arith.addi %2, %c0_i32_11 : i32
    %c2_i32 = arith.constant 2 : i32
    %22 = arith.addi %21, %c2_i32 : i32
    %23 = arith.index_cast %22 : i32 to index
    %24 = memref.load %arg1[%23] : memref<512xi32, #tpu.memory_space<smem>>
    %25 = arith.index_cast %24 : i32 to index
    %c0_12 = arith.constant 0 : index
    %26 = vector.load %arg2[%25, %c0_12] : memref<50x32xf32, #tpu.memory_space<vmem>>, vector<1x32xf32>
    %c0_13 = arith.constant 0 : index
    %c2 = arith.constant 2 : index
    %c0_14 = arith.constant 0 : index
    %27 = vector.load %arg9[%c0_13, %c2, %c0_14] : memref<32x11x32xf32, #tpu.memory_space<vmem>>, vector<1x1x32xf32>
    %28 = vector.shape_cast %27 : vector<1x1x32xf32> to vector<1x32xf32>
    %29 = vector.shape_cast %26 : vector<1x32xf32> to vector<1x1x32xf32>
    tpu.vector_store %arg9[%c0_13, %c2, %c0_14], %29 {strides = array<i32>} : memref<32x11x32xf32, #tpu.memory_space<vmem>>, vector<1x1x32xf32>,
    %c0_i32_15 = arith.constant 0 : i32
    %30 = arith.addi %2, %c0_i32_15 : i32
    %c3_i32 = arith.constant 3 : i32
    %31 = arith.addi %30, %c3_i32 : i32
    %32 = arith.index_cast %31 : i32 to index
    %33 = memref.load %arg1[%32] : memref<512xi32, #tpu.memory_space<smem>>
    %34 = arith.index_cast %33 : i32 to index
    %c0_16 = arith.constant 0 : index
    %35 = vector.load %arg2[%34, %c0_16] : memref<50x32xf32, #tpu.memory_space<vmem>>, vector<1x32xf32>
    %c0_17 = arith.constant 0 : index
    %c3 = arith.constant 3 : index
    %c0_18 = arith.constant 0 : index
    %36 = vector.load %arg9[%c0_17, %c3, %c0_18] : memref<32x11x32xf32, #tpu.memory_space<vmem>>, vector<1x1x32xf32>
    %37 = vector.shape_cast %36 : vector<1x1x32xf32> to vector<1x32xf32>
    %38 = vector.shape_cast %35 : vector<1x32xf32> to vector<1x1x32xf32>
    tpu.vector_store %arg9[%c0_17, %c3, %c0_18], %38 {strides = array<i32>} : memref<32x11x32xf32, #tpu.memory_space<vmem>>, vector<1x1x32xf32>,
    %c0_i32_19 = arith.constant 0 : i32
    %39 = arith.addi %2, %c0_i32_19 : i32
    %c4_i32 = arith.constant 4 : i32
    %40 = arith.addi %39, %c4_i32 : i32
    %41 = arith.index_cast %40 : i32 to index
    %42 = memref.load %arg1[%41] : memref<512xi32, #tpu.memory_space<smem>>
    %43 = arith.index_cast %42 : i32 to index
    %c0_20 = arith.constant 0 : index
    %44 = vector.load %arg2[%43, %c0_20] : memref<50x32xf32, #tpu.memory_space<vmem>>, vector<1x32xf32>
    %c0_21 = arith.constant 0 : index
    %c4 = arith.constant 4 : index
    %c0_22 = arith.constant 0 : index
    %45 = vector.load %arg9[%c0_21, %c4, %c0_22] : memref<32x11x32xf32, #tpu.memory_space<vmem>>, vector<1x1x32xf32>
    %46 = vector.shape_cast %45 : vector<1x1x32xf32> to vector<1x32xf32>
    %47 = vector.shape_cast %44 : vector<1x32xf32> to vector<1x1x32xf32>
    tpu.vector_store %arg9[%c0_21, %c4, %c0_22], %47 {strides = array<i32>} : memref<32x11x32xf32, #tpu.memory_space<vmem>>, vector<1x1x32xf32>,
    %c0_i32_23 = arith.constant 0 : i32
    %48 = arith.addi %2, %c0_i32_23 : i32
    %c5_i32 = arith.constant 5 : i32
    %49 = arith.addi %48, %c5_i32 : i32
    %50 = arith.index_cast %49 : i32 to index
    %51 = memref.load %arg1[%50] : memref<512xi32, #tpu.memory_space<smem>>
    %52 = arith.index_cast %51 : i32 to index
    %c0_24 = arith.constant 0 : index
    %53 = vector.load %arg2[%52, %c0_24] : memref<50x32xf32, #tpu.memory_space<vmem>>, vector<1x32xf32>
    %c0_25 = arith.constant 0 : index
    %c5 = arith.constant 5 : index
    %c0_26 = arith.constant 0 : index
    %54 = vector.load %arg9[%c0_25, %c5, %c0_26] : memref<32x11x32xf32, #tpu.memory_space<vmem>>, vector<1x1x32xf32>
    %55 = vector.shape_cast %54 : vector<1x1x32xf32> to vector<1x32xf32>
    %56 = vector.shape_cast %53 : vector<1x32xf32> to vector<1x1x32xf32>
    tpu.vector_store %arg9[%c0_25, %c5, %c0_26], %56 {strides = array<i32>} : memref<32x11x32xf32, #tpu.memory_space<vmem>>, vector<1x1x32xf32>,
    %c0_i32_27 = arith.constant 0 : i32
    %57 = arith.addi %2, %c0_i32_27 : i32
    %c6_i32 = arith.constant 6 : i32
    %58 = arith.addi %57, %c6_i32 : i32
    %59 = arith.index_cast %58 : i32 to index
    %60 = memref.load %arg1[%59] : memref<512xi32, #tpu.memory_space<smem>>
    %61 = arith.index_cast %60 : i32 to index
    %c0_28 = arith.constant 0 : index
    %62 = vector.load %arg2[%61, %c0_28] : memref<50x32xf32, #tpu.memory_space<vmem>>, vector<1x32xf32>
    %c0_29 = arith.constant 0 : index
    %c6 = arith.constant 6 : index
    %c0_30 = arith.constant 0 : index
    %63 = vector.load %arg9[%c0_29, %c6, %c0_30] : memref<32x11x32xf32, #tpu.memory_space<vmem>>, vector<1x1x32xf32>
    %64 = vector.shape_cast %63 : vector<1x1x32xf32> to vector<1x32xf32>
    %65 = vector.shape_cast %62 : vector<1x32xf32> to vector<1x1x32xf32>
    tpu.vector_store %arg9[%c0_29, %c6, %c0_30], %65 {strides = array<i32>} : memref<32x11x32xf32, #tpu.memory_space<vmem>>, vector<1x1x32xf32>,
    %c0_i32_31 = arith.constant 0 : i32
    %66 = arith.addi %2, %c0_i32_31 : i32
    %c7_i32 = arith.constant 7 : i32
    %67 = arith.addi %66, %c7_i32 : i32
    %68 = arith.index_cast %67 : i32 to index
    %69 = memref.load %arg1[%68] : memref<512xi32, #tpu.memory_space<smem>>
    %70 = arith.index_cast %69 : i32 to index
    %c0_32 = arith.constant 0 : index
    %71 = vector.load %arg2[%70, %c0_32] : memref<50x32xf32, #tpu.memory_space<vmem>>, vector<1x32xf32>
    %c0_33 = arith.constant 0 : index
    %c7 = arith.constant 7 : index
    %c0_34 = arith.constant 0 : index
    %72 = vector.load %arg9[%c0_33, %c7, %c0_34] : memref<32x11x32xf32, #tpu.memory_space<vmem>>, vector<1x1x32xf32>
    %73 = vector.shape_cast %72 : vector<1x1x32xf32> to vector<1x32xf32>
    %74 = vector.shape_cast %71 : vector<1x32xf32> to vector<1x1x32xf32>
    tpu.vector_store %arg9[%c0_33, %c7, %c0_34], %74 {strides = array<i32>} : memref<32x11x32xf32, #tpu.memory_space<vmem>>, vector<1x1x32xf32>,
    %c8_i32 = arith.constant 8 : i32
    %75 = arith.addi %2, %c8_i32 : i32
    %c0_i32_35 = arith.constant 0 : i32
    %76 = arith.addi %75, %c0_i32_35 : i32
    %77 = arith.index_cast %76 : i32 to index
    %78 = memref.load %arg1[%77] : memref<512xi32, #tpu.memory_space<smem>>
    %79 = arith.index_cast %78 : i32 to index
    %c0_36 = arith.constant 0 : index
    %80 = vector.load %arg2[%79, %c0_36] : memref<50x32xf32, #tpu.memory_space<vmem>>, vector<1x32xf32>
    %c1_37 = arith.constant 1 : index
    %c0_38 = arith.constant 0 : index
    %c0_39 = arith.constant 0 : index
    %81 = vector.load %arg9[%c1_37, %c0_38, %c0_39] : memref<32x11x32xf32, #tpu.memory_space<vmem>>, vector<1x1x32xf32>
    %82 = vector.shape_cast %81 : vector<1x1x32xf32> to vector<1x32xf32>
    %83 = vector.shape_cast %80 : vector<1x32xf32> to vector<1x1x32xf32>
    tpu.vector_store %arg9[%c1_37, %c0_38, %c0_39], %83 {strides = array<i32>} : memref<32x11x32xf32, #tpu.memory_space<vmem>>, vector<1x1x32xf32>,
    %c8_i32_40 = arith.constant 8 : i32
    %84 = arith.addi %2, %c8_i32_40 : i32
    %c1_i32_41 = arith.constant 1 : i32
    %85 = arith.addi %84, %c1_i32_41 : i32
    %86 = arith.index_cast %85 : i32 to index
    %87 = memref.load %arg1[%86] : memref<512xi32, #tpu.memory_space<smem>>
    %88 = arith.index_cast %87 : i32 to index
    %c0_42 = arith.constant 0 : index
    %89 = vector.load %arg2[%88, %c0_42] : memref<50x32xf32, #tpu.memory_space<vmem>>, vector<1x32xf32>
    %c1_43 = arith.constant 1 : index
    %c1_44 = arith.constant 1 : index
    %c0_45 = arith.constant 0 : index
    %90 = vector.load %arg9[%c1_43, %c1_44, %c0_45] : memref<32x11x32xf32, #tpu.memory_space<vmem>>, vector<1x1x32xf32>
    %91 = vector.shape_cast %90 : vector<1x1x32xf32> to vector<1x32xf32>
    %92 = vector.shape_cast %89 : vector<1x32xf32> to vector<1x1x32xf32>
    tpu.vector_store %arg9[%c1_43, %c1_44, %c0_45], %92 {strides = array<i32>} : memref<32x11x32xf32, #tpu.memory_space<vmem>>, vector<1x1x32xf32>,
    %c8_i32_46 = arith.constant 8 : i32
    %93 = arith.addi %2, %c8_i32_46 : i32
    %c2_i32_47 = arith.constant 2 : i32
    %94 = arith.addi %93, %c2_i32_47 : i32
    %95 = arith.index_cast %94 : i32 to index
    %96 = memref.load %arg1[%95] : memref<512xi32, #tpu.memory_space<smem>>
    %97 = arith.index_cast %96 : i32 to index
    %c0_48 = arith.constant 0 : index
    %98 = vector.load %arg2[%97, %c0_48] : memref<50x32xf32, #tpu.memory_space<vmem>>, vector<1x32xf32>
    %c1_49 = arith.constant 1 : index
    %c2_50 = arith.constant 2 : index
    %c0_51 = arith.constant 0 : index
    %99 = vector.load %arg9[%c1_49, %c2_50, %c0_51] : memref<32x11x32xf32, #tpu.memory_space<vmem>>, vector<1x1x32xf32>
    %100 = vector.shape_cast %99 : vector<1x1x32xf32> to vector<1x32xf32>
    %101 = vector.shape_cast %98 : vector<1x32xf32> to vector<1x1x32xf32>
    tpu.vector_store %arg9[%c1_49, %c2_50, %c0_51], %101 {strides = array<i32>} : memref<32x11x32xf32, #tpu.memory_space<vmem>>, vector<1x1x32xf32>,
    %c8_i32_52 = arith.constant 8 : i32
    %102 = arith.addi %2, %c8_i32_52 : i32
    %c3_i32_53 = arith.constant 3 : i32
    %103 = arith.addi %102, %c3_i32_53 : i32
    %104 = arith.index_cast %103 : i32 to index
    %105 = memref.load %arg1[%104] : memref<512xi32, #tpu.memory_space<smem>>
    %106 = arith.index_cast %105 : i32 to index
    %c0_54 = arith.constant 0 : index
    %107 = vector.load %arg2[%106, %c0_54] : memref<50x32xf32, #tpu.memory_space<vmem>>, vector<1x32xf32>
    %c1_55 = arith.constant 1 : index
    %c3_56 = arith.constant 3 : index
    %c0_57 = arith.constant 0 : index
    %108 = vector.load %arg9[%c1_55, %c3_56, %c0_57] : memref<32x11x32xf32, #tpu.memory_space<vmem>>, vector<1x1x32xf32>
    %109 = vector.shape_cast %108 : vector<1x1x32xf32> to vector<1x32xf32>
    %110 = vector.shape_cast %107 : vector<1x32xf32> to vector<1x1x32xf32>
    tpu.vector_store %arg9[%c1_55, %c3_56, %c0_57], %110 {strides = array<i32>} : memref<32x11x32xf32, #tpu.memory_space<vmem>>, vector<1x1x32xf32>,
    %c8_i32_58 = arith.constant 8 : i32
    %111 = arith.addi %2, %c8_i32_58 : i32
    %c4_i32_59 = arith.constant 4 : i32
    %112 = arith.addi %111, %c4_i32_59 : i32
    %113 = arith.index_cast %112 : i32 to index
    %114 = memref.load %arg1[%113] : memref<512xi32, #tpu.memory_space<smem>>
    %115 = arith.index_cast %114 : i32 to index
    %c0_60 = arith.constant 0 : index
    %116 = vector.load %arg2[%115, %c0_60] : memref<50x32xf32, #tpu.memory_space<vmem>>, vector<1x32xf32>
    %c1_61 = arith.constant 1 : index
    %c4_62 = arith.constant 4 : index
    %c0_63 = arith.constant 0 : index
    %117 = vector.load %arg9[%c1_61, %c4_62, %c0_63] : memref<32x11x32xf32, #tpu.memory_space<vmem>>, vector<1x1x32xf32>
    %118 = vector.shape_cast %117 : vector<1x1x32xf32> to vector<1x32xf32>
    %119 = vector.shape_cast %116 : vector<1x32xf32> to vector<1x1x32xf32>
    tpu.vector_store %arg9[%c1_61, %c4_62, %c0_63], %119 {strides = array<i32>} : memref<32x11x32xf32, #tpu.memory_space<vmem>>, vector<1x1x32xf32>,
    %c8_i32_64 = arith.constant 8 : i32
    %120 = arith.addi %2, %c8_i32_64 : i32
    %c5_i32_65 = arith.constant 5 : i32
    %121 = arith.addi %120, %c5_i32_65 : i32
    %122 = arith.index_cast %121 : i32 to index
    %123 = memref.load %arg1[%122] : memref<512xi32, #tpu.memory_space<smem>>
    %124 = arith.index_cast %123 : i32 to index
    %c0_66 = arith.constant 0 : index
    %125 = vector.load %arg2[%124, %c0_66] : memref<50x32xf32, #tpu.memory_space<vmem>>, vector<1x32xf32>
    %c1_67 = arith.constant 1 : index
    %c5_68 = arith.constant 5 : index
    %c0_69 = arith.constant 0 : index
    %126 = vector.load %arg9[%c1_67, %c5_68, %c0_69] : memref<32x11x32xf32, #tpu.memory_space<vmem>>, vector<1x1x32xf32>
    %127 = vector.shape_cast %126 : vector<1x1x32xf32> to vector<1x32xf32>
    %128 = vector.shape_cast %125 : vector<1x32xf32> to vector<1x1x32xf32>
    tpu.vector_store %arg9[%c1_67, %c5_68, %c0_69], %128 {strides = array<i32>} : memref<32x11x32xf32, #tpu.memory_space<vmem>>, vector<1x1x32xf32>,
    %c8_i32_70 = arith.constant 8 : i32
    %129 = arith.addi %2, %c8_i32_70 : i32
    %c6_i32_71 = arith.constant 6 : i32
    %130 = arith.addi %129, %c6_i32_71 : i32
    %131 = arith.index_cast %130 : i32 to index
    %132 = memref.load %arg1[%131] : memref<512xi32, #tpu.memory_space<smem>>
    %133 = arith.index_cast %132 : i32 to index
    %c0_72 = arith.constant 0 : index
    %134 = vector.load %arg2[%133, %c0_72] : memref<50x32xf32, #tpu.memory_space<vmem>>, vector<1x32xf32>
    %c1_73 = arith.constant 1 : index
    %c6_74 = arith.constant 6 : index
    %c0_75 = arith.constant 0 : index
    %135 = vector.load %arg9[%c1_73, %c6_74, %c0_75] : memref<32x11x32xf32, #tpu.memory_space<vmem>>, vector<1x1x32xf32>
    %136 = vector.shape_cast %135 : vector<1x1x32xf32> to vector<1x32xf32>
    %137 = vector.shape_cast %134 : vector<1x32xf32> to vector<1x1x32xf32>
    tpu.vector_store %arg9[%c1_73, %c6_74, %c0_75], %137 {strides = array<i32>} : memref<32x11x32xf32, #tpu.memory_space<vmem>>, vector<1x1x32xf32>,
    %c8_i32_76 = arith.constant 8 : i32
    %138 = arith.addi %2, %c8_i32_76 : i32
    %c7_i32_77 = arith.constant 7 : i32
    %139 = arith.addi %138, %c7_i32_77 : i32
    %140 = arith.index_cast %139 : i32 to index
    %141 = memref.load %arg1[%140] : memref<512xi32, #tpu.memory_space<smem>>
    %142 = arith.index_cast %141 : i32 to index
    %c0_78 = arith.constant 0 : index
    %143 = vector.load %arg2[%142, %c0_78] : memref<50x32xf32, #tpu.memory_space<vmem>>, vector<1x32xf32>
    %c1_79 = arith.constant 1 : index
    %c7_80 = arith.constant 7 : index
    %c0_81 = arith.constant 0 : index
    %144 = vector.load %arg9[%c1_79, %c7_80, %c0_81] : memref<32x11x32xf32, #tpu.memory_space<vmem>>, vector<1x1x32xf32>
    %145 = vector.shape_cast %144 : vector<1x1x32xf32> to vector<1x32xf32>
    %146 = vector.shape_cast %143 : vector<1x32xf32> to vector<1x1x32xf32>
    tpu.vector_store %arg9[%c1_79, %c7_80, %c0_81], %146 {strides = array<i32>} : memref<32x11x32xf32, #tpu.memory_space<vmem>>, vector<1x1x32xf32>,
    %c16_i32 = arith.constant 16 : i32
    %147 = arith.addi %2, %c16_i32 : i32
    %c0_i32_82 = arith.constant 0 : i32
    %148 = arith.addi %147, %c0_i32_82 : i32
    %149 = arith.index_cast %148 : i32 to index
    %150 = memref.load %arg1[%149] : memref<512xi32, #tpu.memory_space<smem>>
    %151 = arith.index_cast %150 : i32 to index
    %c0_83 = arith.constant 0 : index
    %152 = vector.load %arg2[%151, %c0_83] : memref<50x32xf32, #tpu.memory_space<vmem>>, vector<1x32xf32>
    %c2_84 = arith.constant 2 : index
    %c0_85 = arith.constant 0 : index
    %c0_86 = arith.constant 0 : index
    %153 = vector.load %arg9[%c2_84, %c0_85, %c0_86] : memref<32x11x32xf32, #tpu.memory_space<vmem>>, vector<1x1x32xf32>
    %154 = vector.shape_cast %153 : vector<1x1x32xf32> to vector<1x32xf32>
    %155 = vector.shape_cast %152 : vector<1x32xf32> to vector<1x1x32xf32>
    tpu.vector_store %arg9[%c2_84, %c0_85, %c0_86], %155 {strides = array<i32>} : memref<32x11x32xf32, #tpu.memory_space<vmem>>, vector<1x1x32xf32>,
    %c16_i32_87 = arith.constant 16 : i32
    %156 = arith.addi %2, %c16_i32_87 : i32
    %c1_i32_88 = arith.constant 1 : i32
    %157 = arith.addi %156, %c1_i32_88 : i32
    %158 = arith.index_cast %157 : i32 to index
    %159 = memref.load %arg1[%158] : memref<512xi32, #tpu.memory_space<smem>>
    %160 = arith.index_cast %159 : i32 to index
    %c0_89 = arith.constant 0 : index
    %161 = vector.load %arg2[%160, %c0_89] : memref<50x32xf32, #tpu.memory_space<vmem>>, vector<1x32xf32>
    %c2_90 = arith.constant 2 : index
    %c1_91 = arith.constant 1 : index
    %c0_92 = arith.constant 0 : index
    %162 = vector.load %arg9[%c2_90, %c1_91, %c0_92] : memref<32x11x32xf32, #tpu.memory_space<vmem>>, vector<1x1x32xf32>
    %163 = vector.shape_cast %162 : vector<1x1x32xf32> to vector<1x32xf32>
    %164 = vector.shape_cast %161 : vector<1x32xf32> to vector<1x1x32xf32>
    tpu.vector_store %arg9[%c2_90, %c1_91, %c0_92], %164 {strides = array<i32>} : memref<32x11x32xf32, #tpu.memory_space<vmem>>, vector<1x1x32xf32>,
    %c16_i32_93 = arith.constant 16 : i32
    %165 = arith.addi %2, %c16_i32_93 : i32
    %c2_i32_94 = arith.constant 2 : i32
    %166 = arith.addi %165, %c2_i32_94 : i32
    %167 = arith.index_cast %166 : i32 to index
    %168 = memref.load %arg1[%167] : memref<512xi32, #tpu.memory_space<smem>>
    %169 = arith.index_cast %168 : i32 to index
    %c0_95 = arith.constant 0 : index
    %170 = vector.load %arg2[%169, %c0_95] : memref<50x32xf32, #tpu.memory_space<vmem>>, vector<1x32xf32>
    %c2_96 = arith.constant 2 : index
    %c2_97 = arith.constant 2 : index
    %c0_98 = arith.constant 0 : index
    %171 = vector.load %arg9[%c2_96, %c2_97, %c0_98] : memref<32x11x32xf32, #tpu.memory_space<vmem>>, vector<1x1x32xf32>
    %172 = vector.shape_cast %171 : vector<1x1x32xf32> to vector<1x32xf32>
    %173 = vector.shape_cast %170 : vector<1x32xf32> to vector<1x1x32xf32>
    tpu.vector_store %arg9[%c2_96, %c2_97, %c0_98], %173 {strides = array<i32>} : memref<32x11x32xf32, #tpu.memory_space<vmem>>, vector<1x1x32xf32>,
    %c16_i32_99 = arith.constant 16 : i32
    %174 = arith.addi %2, %c16_i32_99 : i32
    %c3_i32_100 = arith.constant 3 : i32
    %175 = arith.addi %174, %c3_i32_100 : i32
    %176 = arith.index_cast %175 : i32 to index
    %177 = memref.load %arg1[%176] : memref<512xi32, #tpu.memory_space<smem>>
    %178 = arith.index_cast %177 : i32 to index
    %c0_101 = arith.constant 0 : index
    %179 = vector.load %arg2[%178, %c0_101] : memref<50x32xf32, #tpu.memory_space<vmem>>, vector<1x32xf32>
    %c2_102 = arith.constant 2 : index
    %c3_103 = arith.constant 3 : index
    %c0_104 = arith.constant 0 : index
    %180 = vector.load %arg9[%c2_102, %c3_103, %c0_104] : memref<32x11x32xf32, #tpu.memory_space<vmem>>, vector<1x1x32xf32>
    %181 = vector.shape_cast %180 : vector<1x1x32xf32> to vector<1x32xf32>
    %182 = vector.shape_cast %179 : vector<1x32xf32> to vector<1x1x32xf32>
    tpu.vector_store %arg9[%c2_102, %c3_103, %c0_104], %182 {strides = array<i32>} : memref<32x11x32xf32, #tpu.memory_space<vmem>>, vector<1x1x32xf32>,
    %c16_i32_105 = arith.constant 16 : i32
    %183 = arith.addi %2, %c16_i32_105 : i32
    %c4_i32_106 = arith.constant 4 : i32
    %184 = arith.addi %183, %c4_i32_106 : i32
    %185 = arith.index_cast %184 : i32 to index
    %186 = memref.load %arg1[%185] : memref<512xi32, #tpu.memory_space<smem>>
    %187 = arith.index_cast %186 : i32 to index
    %c0_107 = arith.constant 0 : index
    %188 = vector.load %arg2[%187, %c0_107] : memref<50x32xf32, #tpu.memory_space<vmem>>, vector<1x32xf32>
    %c2_108 = arith.constant 2 : index
    %c4_109 = arith.constant 4 : index
    %c0_110 = arith.constant 0 : index
    %189 = vector.load %arg9[%c2_108, %c4_109, %c0_110] : memref<32x11x32xf32, #tpu.memory_space<vmem>>, vector<1x1x32xf32>
    %190 = vector.shape_cast %189 : vector<1x1x32xf32> to vector<1x32xf32>
    %191 = vector.shape_cast %188 : vector<1x32xf32> to vector<1x1x32xf32>
    tpu.vector_store %arg9[%c2_108, %c4_109, %c0_110], %191 {strides = array<i32>} : memref<32x11x32xf32, #tpu.memory_space<vmem>>, vector<1x1x32xf32>,
    %c16_i32_111 = arith.constant 16 : i32
    %192 = arith.addi %2, %c16_i32_111 : i32
    %c5_i32_112 = arith.constant 5 : i32
    %193 = arith.addi %192, %c5_i32_112 : i32
    %194 = arith.index_cast %193 : i32 to index
    %195 = memref.load %arg1[%194] : memref<512xi32, #tpu.memory_space<smem>>
    %196 = arith.index_cast %195 : i32 to index
    %c0_113 = arith.constant 0 : index
    %197 = vector.load %arg2[%196, %c0_113] : memref<50x32xf32, #tpu.memory_space<vmem>>, vector<1x32xf32>
    %c2_114 = arith.constant 2 : index
    %c5_115 = arith.constant 5 : index
    %c0_116 = arith.constant 0 : index
    %198 = vector.load %arg9[%c2_114, %c5_115, %c0_116] : memref<32x11x32xf32, #tpu.memory_space<vmem>>, vector<1x1x32xf32>
    %199 = vector.shape_cast %198 : vector<1x1x32xf32> to vector<1x32xf32>
    %200 = vector.shape_cast %197 : vector<1x32xf32> to vector<1x1x32xf32>
    tpu.vector_store %arg9[%c2_114, %c5_115, %c0_116], %200 {strides = array<i32>} : memref<32x11x32xf32, #tpu.memory_space<vmem>>, vector<1x1x32xf32>,
    %c16_i32_117 = arith.constant 16 : i32
    %201 = arith.addi %2, %c16_i32_117 : i32
    %c6_i32_118 = arith.constant 6 : i32
    %202 = arith.addi %201, %c6_i32_118 : i32
    %203 = arith.index_cast %202 : i32 to index
    %204 = memref.load %arg1[%203] : memref<512xi32, #tpu.memory_space<smem>>
    %205 = arith.index_cast %204 : i32 to index
    %c0_119 = arith.constant 0 : index
    %206 = vector.load %arg2[%205, %c0_119] : memref<50x32xf32, #tpu.memory_space<vmem>>, vector<1x32xf32>
    %c2_120 = arith.constant 2 : index
    %c6_121 = arith.constant 6 : index
    %c0_122 = arith.constant 0 : index
    %207 = vector.load %arg9[%c2_120, %c6_121, %c0_122] : memref<32x11x32xf32, #tpu.memory_space<vmem>>, vector<1x1x32xf32>
    %208 = vector.shape_cast %207 : vector<1x1x32xf32> to vector<1x32xf32>
    %209 = vector.shape_cast %206 : vector<1x32xf32> to vector<1x1x32xf32>
    tpu.vector_store %arg9[%c2_120, %c6_121, %c0_122], %209 {strides = array<i32>} : memref<32x11x32xf32, #tpu.memory_space<vmem>>, vector<1x1x32xf32>,
    %c16_i32_123 = arith.constant 16 : i32
    %210 = arith.addi %2, %c16_i32_123 : i32
    %c7_i32_124 = arith.constant 7 : i32
    %211 = arith.addi %210, %c7_i32_124 : i32
    %212 = arith.index_cast %211 : i32 to index
    %213 = memref.load %arg1[%212] : memref<512xi32, #tpu.memory_space<smem>>
    %214 = arith.index_cast %213 : i32 to index
    %c0_125 = arith.constant 0 : index
    %215 = vector.load %arg2[%214, %c0_125] : memref<50x32xf32, #tpu.memory_space<vmem>>, vector<1x32xf32>
    %c2_126 = arith.constant 2 : index
    %c7_127 = arith.constant 7 : index
    %c0_128 = arith.constant 0 : index
    %216 = vector.load %arg9[%c2_126, %c7_127, %c0_128] : memref<32x11x32xf32, #tpu.memory_space<vmem>>, vector<1x1x32xf32>
    %217 = vector.shape_cast %216 : vector<1x1x32xf32> to vector<1x32xf32>
    %218 = vector.shape_cast %215 : vector<1x32xf32> to vector<1x1x32xf32>
    tpu.vector_store %arg9[%c2_126, %c7_127, %c0_128], %218 {strides = array<i32>} : memref<32x11x32xf32, #tpu.memory_space<vmem>>, vector<1x1x32xf32>,
    %c24_i32 = arith.constant 24 : i32
    %219 = arith.addi %2, %c24_i32 : i32
    %c0_i32_129 = arith.constant 0 : i32
    %220 = arith.addi %219, %c0_i32_129 : i32
    %221 = arith.index_cast %220 : i32 to index
    %222 = memref.load %arg1[%221] : memref<512xi32, #tpu.memory_space<smem>>
    %223 = arith.index_cast %222 : i32 to index
    %c0_130 = arith.constant 0 : index
    %224 = vector.load %arg2[%223, %c0_130] : memref<50x32xf32, #tpu.memory_space<vmem>>, vector<1x32xf32>
    %c3_131 = arith.constant 3 : index
    %c0_132 = arith.constant 0 : index
    %c0_133 = arith.constant 0 : index
    %225 = vector.load %arg9[%c3_131, %c0_132, %c0_133] : memref<32x11x32xf32, #tpu.memory_space<vmem>>, vector<1x1x32xf32>
    %226 = vector.shape_cast %225 : vector<1x1x32xf32> to vector<1x32xf32>
    %227 = vector.shape_cast %224 : vector<1x32xf32> to vector<1x1x32xf32>
    tpu.vector_store %arg9[%c3_131, %c0_132, %c0_133], %227 {strides = array<i32>} : memref<32x11x32xf32, #tpu.memory_space<vmem>>, vector<1x1x32xf32>,
    %c24_i32_134 = arith.constant 24 : i32
    %228 = arith.addi %2, %c24_i32_134 : i32
    %c1_i32_135 = arith.constant 1 : i32
    %229 = arith.addi %228, %c1_i32_135 : i32
    %230 = arith.index_cast %229 : i32 to index
    %231 = memref.load %arg1[%230] : memref<512xi32, #tpu.memory_space<smem>>
    %232 = arith.index_cast %231 : i32 to index
    %c0_136 = arith.constant 0 : index
    %233 = vector.load %arg2[%232, %c0_136] : memref<50x32xf32, #tpu.memory_space<vmem>>, vector<1x32xf32>
    %c3_137 = arith.constant 3 : index
    %c1_138 = arith.constant 1 : index
    %c0_139 = arith.constant 0 : index
    %234 = vector.load %arg9[%c3_137, %c1_138, %c0_139] : memref<32x11x32xf32, #tpu.memory_space<vmem>>, vector<1x1x32xf32>
    %235 = vector.shape_cast %234 : vector<1x1x32xf32> to vector<1x32xf32>
    %236 = vector.shape_cast %233 : vector<1x32xf32> to vector<1x1x32xf32>
    tpu.vector_store %arg9[%c3_137, %c1_138, %c0_139], %236 {strides = array<i32>} : memref<32x11x32xf32, #tpu.memory_space<vmem>>, vector<1x1x32xf32>,
    %c24_i32_140 = arith.constant 24 : i32
    %237 = arith.addi %2, %c24_i32_140 : i32
    %c2_i32_141 = arith.constant 2 : i32
    %238 = arith.addi %237, %c2_i32_141 : i32
    %239 = arith.index_cast %238 : i32 to index
    %240 = memref.load %arg1[%239] : memref<512xi32, #tpu.memory_space<smem>>
    %241 = arith.index_cast %240 : i32 to index
    %c0_142 = arith.constant 0 : index
    %242 = vector.load %arg2[%241, %c0_142] : memref<50x32xf32, #tpu.memory_space<vmem>>, vector<1x32xf32>
    %c3_143 = arith.constant 3 : index
    %c2_144 = arith.constant 2 : index
    %c0_145 = arith.constant 0 : index
    %243 = vector.load %arg9[%c3_143, %c2_144, %c0_145] : memref<32x11x32xf32, #tpu.memory_space<vmem>>, vector<1x1x32xf32>
    %244 = vector.shape_cast %243 : vector<1x1x32xf32> to vector<1x32xf32>
    %245 = vector.shape_cast %242 : vector<1x32xf32> to vector<1x1x32xf32>
    tpu.vector_store %arg9[%c3_143, %c2_144, %c0_145], %245 {strides = array<i32>} : memref<32x11x32xf32, #tpu.memory_space<vmem>>, vector<1x1x32xf32>,
    %c24_i32_146 = arith.constant 24 : i32
    %246 = arith.addi %2, %c24_i32_146 : i32
    %c3_i32_147 = arith.constant 3 : i32
    %247 = arith.addi %246, %c3_i32_147 : i32
    %248 = arith.index_cast %247 : i32 to index
    %249 = memref.load %arg1[%248] : memref<512xi32, #tpu.memory_space<smem>>
    %250 = arith.index_cast %249 : i32 to index
    %c0_148 = arith.constant 0 : index
    %251 = vector.load %arg2[%250, %c0_148] : memref<50x32xf32, #tpu.memory_space<vmem>>, vector<1x32xf32>
    %c3_149 = arith.constant 3 : index
    %c3_150 = arith.constant 3 : index
    %c0_151 = arith.constant 0 : index
    %252 = vector.load %arg9[%c3_149, %c3_150, %c0_151] : memref<32x11x32xf32, #tpu.memory_space<vmem>>, vector<1x1x32xf32>
    %253 = vector.shape_cast %252 : vector<1x1x32xf32> to vector<1x32xf32>
    %254 = vector.shape_cast %251 : vector<1x32xf32> to vector<1x1x32xf32>
    tpu.vector_store %arg9[%c3_149, %c3_150, %c0_151], %254 {strides = array<i32>} : memref<32x11x32xf32, #tpu.memory_space<vmem>>, vector<1x1x32xf32>,
    %c24_i32_152 = arith.constant 24 : i32
    %255 = arith.addi %2, %c24_i32_152 : i32
    %c4_i32_153 = arith.constant 4 : i32
    %256 = arith.addi %255, %c4_i32_153 : i32
    %257 = arith.index_cast %256 : i32 to index
    %258 = memref.load %arg1[%257] : memref<512xi32, #tpu.memory_space<smem>>
    %259 = arith.index_cast %258 : i32 to index
    %c0_154 = arith.constant 0 : index
    %260 = vector.load %arg2[%259, %c0_154] : memref<50x32xf32, #tpu.memory_space<vmem>>, vector<1x32xf32>
    %c3_155 = arith.constant 3 : index
    %c4_156 = arith.constant 4 : index
    %c0_157 = arith.constant 0 : index
    %261 = vector.load %arg9[%c3_155, %c4_156, %c0_157] : memref<32x11x32xf32, #tpu.memory_space<vmem>>, vector<1x1x32xf32>
    %262 = vector.shape_cast %261 : vector<1x1x32xf32> to vector<1x32xf32>
    %263 = vector.shape_cast %260 : vector<1x32xf32> to vector<1x1x32xf32>
    tpu.vector_store %arg9[%c3_155, %c4_156, %c0_157], %263 {strides = array<i32>} : memref<32x11x32xf32, #tpu.memory_space<vmem>>, vector<1x1x32xf32>,
    %c24_i32_158 = arith.constant 24 : i32
    %264 = arith.addi %2, %c24_i32_158 : i32
    %c5_i32_159 = arith.constant 5 : i32
    %265 = arith.addi %264, %c5_i32_159 : i32
    %266 = arith.index_cast %265 : i32 to index
    %267 = memref.load %arg1[%266] : memref<512xi32, #tpu.memory_space<smem>>
    %268 = arith.index_cast %267 : i32 to index
    %c0_160 = arith.constant 0 : index
    %269 = vector.load %arg2[%268, %c0_160] : memref<50x32xf32, #tpu.memory_space<vmem>>, vector<1x32xf32>
    %c3_161 = arith.constant 3 : index
    %c5_162 = arith.constant 5 : index
    %c0_163 = arith.constant 0 : index
    %270 = vector.load %arg9[%c3_161, %c5_162, %c0_163] : memref<32x11x32xf32, #tpu.memory_space<vmem>>, vector<1x1x32xf32>
    %271 = vector.shape_cast %270 : vector<1x1x32xf32> to vector<1x32xf32>
    %272 = vector.shape_cast %269 : vector<1x32xf32> to vector<1x1x32xf32>
    tpu.vector_store %arg9[%c3_161, %c5_162, %c0_163], %272 {strides = array<i32>} : memref<32x11x32xf32, #tpu.memory_space<vmem>>, vector<1x1x32xf32>,
    %c24_i32_164 = arith.constant 24 : i32
    %273 = arith.addi %2, %c24_i32_164 : i32
    %c6_i32_165 = arith.constant 6 : i32
    %274 = arith.addi %273, %c6_i32_165 : i32
    %275 = arith.index_cast %274 : i32 to index
    %276 = memref.load %arg1[%275] : memref<512xi32, #tpu.memory_space<smem>>
    %277 = arith.index_cast %276 : i32 to index
    %c0_166 = arith.constant 0 : index
    %278 = vector.load %arg2[%277, %c0_166] : memref<50x32xf32, #tpu.memory_space<vmem>>, vector<1x32xf32>
    %c3_167 = arith.constant 3 : index
    %c6_168 = arith.constant 6 : index
    %c0_169 = arith.constant 0 : index
    %279 = vector.load %arg9[%c3_167, %c6_168, %c0_169] : memref<32x11x32xf32, #tpu.memory_space<vmem>>, vector<1x1x32xf32>
    %280 = vector.shape_cast %279 : vector<1x1x32xf32> to vector<1x32xf32>
    %281 = vector.shape_cast %278 : vector<1x32xf32> to vector<1x1x32xf32>
    tpu.vector_store %arg9[%c3_167, %c6_168, %c0_169], %281 {strides = array<i32>} : memref<32x11x32xf32, #tpu.memory_space<vmem>>, vector<1x1x32xf32>,
    %c24_i32_170 = arith.constant 24 : i32
    %282 = arith.addi %2, %c24_i32_170 : i32
    %c7_i32_171 = arith.constant 7 : i32
    %283 = arith.addi %282, %c7_i32_171 : i32
    %284 = arith.index_cast %283 : i32 to index
    %285 = memref.load %arg1[%284] : memref<512xi32, #tpu.memory_space<smem>>
    %286 = arith.index_cast %285 : i32 to index
    %c0_172 = arith.constant 0 : index
    %287 = vector.load %arg2[%286, %c0_172] : memref<50x32xf32, #tpu.memory_space<vmem>>, vector<1x32xf32>
    %c3_173 = arith.constant 3 : index
    %c7_174 = arith.constant 7 : index
    %c0_175 = arith.constant 0 : index
    %288 = vector.load %arg9[%c3_173, %c7_174, %c0_175] : memref<32x11x32xf32, #tpu.memory_space<vmem>>, vector<1x1x32xf32>
    %289 = vector.shape_cast %288 : vector<1x1x32xf32> to vector<1x32xf32>
    %290 = vector.shape_cast %287 : vector<1x32xf32> to vector<1x1x32xf32>
    tpu.vector_store %arg9[%c3_173, %c7_174, %c0_175], %290 {strides = array<i32>} : memref<32x11x32xf32, #tpu.memory_space<vmem>>, vector<1x1x32xf32>,
    %c32_i32 = arith.constant 32 : i32
    %291 = arith.addi %2, %c32_i32 : i32
    %c0_i32_176 = arith.constant 0 : i32
    %292 = arith.addi %291, %c0_i32_176 : i32
    %293 = arith.index_cast %292 : i32 to index
    %294 = memref.load %arg1[%293] : memref<512xi32, #tpu.memory_space<smem>>
    %295 = arith.index_cast %294 : i32 to index
    %c0_177 = arith.constant 0 : index
    %296 = vector.load %arg2[%295, %c0_177] : memref<50x32xf32, #tpu.memory_space<vmem>>, vector<1x32xf32>
    %c4_178 = arith.constant 4 : index
    %c0_179 = arith.constant 0 : index
    %c0_180 = arith.constant 0 : index
    %297 = vector.load %arg9[%c4_178, %c0_179, %c0_180] : memref<32x11x32xf32, #tpu.memory_space<vmem>>, vector<1x1x32xf32>
    %298 = vector.shape_cast %297 : vector<1x1x32xf32> to vector<1x32xf32>
    %299 = vector.shape_cast %296 : vector<1x32xf32> to vector<1x1x32xf32>
    tpu.vector_store %arg9[%c4_178, %c0_179, %c0_180], %299 {strides = array<i32>} : memref<32x11x32xf32, #tpu.memory_space<vmem>>, vector<1x1x32xf32>,
    %c32_i32_181 = arith.constant 32 : i32
    %300 = arith.addi %2, %c32_i32_181 : i32
    %c1_i32_182 = arith.constant 1 : i32
    %301 = arith.addi %300, %c1_i32_182 : i32
    %302 = arith.index_cast %301 : i32 to index
    %303 = memref.load %arg1[%302] : memref<512xi32, #tpu.memory_space<smem>>
    %304 = arith.index_cast %303 : i32 to index
    %c0_183 = arith.constant 0 : index
    %305 = vector.load %arg2[%304, %c0_183] : memref<50x32xf32, #tpu.memory_space<vmem>>, vector<1x32xf32>
    %c4_184 = arith.constant 4 : index
    %c1_185 = arith.constant 1 : index
    %c0_186 = arith.constant 0 : index
    %306 = vector.load %arg9[%c4_184, %c1_185, %c0_186] : memref<32x11x32xf32, #tpu.memory_space<vmem>>, vector<1x1x32xf32>
    %307 = vector.shape_cast %306 : vector<1x1x32xf32> to vector<1x32xf32>
    %308 = vector.shape_cast %305 : vector<1x32xf32> to vector<1x1x32xf32>
    tpu.vector_store %arg9[%c4_184, %c1_185, %c0_186], %308 {strides = array<i32>} : memref<32x11x32xf32, #tpu.memory_space<vmem>>, vector<1x1x32xf32>,
    %c32_i32_187 = arith.constant 32 : i32
    %309 = arith.addi %2, %c32_i32_187 : i32
    %c2_i32_188 = arith.constant 2 : i32
    %310 = arith.addi %309, %c2_i32_188 : i32
    %311 = arith.index_cast %310 : i32 to index
    %312 = memref.load %arg1[%311] : memref<512xi32, #tpu.memory_space<smem>>
    %313 = arith.index_cast %312 : i32 to index
    %c0_189 = arith.constant 0 : index
    %314 = vector.load %arg2[%313, %c0_189] : memref<50x32xf32, #tpu.memory_space<vmem>>, vector<1x32xf32>
    %c4_190 = arith.constant 4 : index
    %c2_191 = arith.constant 2 : index
    %c0_192 = arith.constant 0 : index
    %315 = vector.load %arg9[%c4_190, %c2_191, %c0_192] : memref<32x11x32xf32, #tpu.memory_space<vmem>>, vector<1x1x32xf32>
    %316 = vector.shape_cast %315 : vector<1x1x32xf32> to vector<1x32xf32>
    %317 = vector.shape_cast %314 : vector<1x32xf32> to vector<1x1x32xf32>
    tpu.vector_store %arg9[%c4_190, %c2_191, %c0_192], %317 {strides = array<i32>} : memref<32x11x32xf32, #tpu.memory_space<vmem>>, vector<1x1x32xf32>,
    %c32_i32_193 = arith.constant 32 : i32
    %318 = arith.addi %2, %c32_i32_193 : i32
    %c3_i32_194 = arith.constant 3 : i32
    %319 = arith.addi %318, %c3_i32_194 : i32
    %320 = arith.index_cast %319 : i32 to index
    %321 = memref.load %arg1[%320] : memref<512xi32, #tpu.memory_space<smem>>
    %322 = arith.index_cast %321 : i32 to index
    %c0_195 = arith.constant 0 : index
    %323 = vector.load %arg2[%322, %c0_195] : memref<50x32xf32, #tpu.memory_space<vmem>>, vector<1x32xf32>
    %c4_196 = arith.constant 4 : index
    %c3_197 = arith.constant 3 : index
    %c0_198 = arith.constant 0 : index
    %324 = vector.load %arg9[%c4_196, %c3_197, %c0_198] : memref<32x11x32xf32, #tpu.memory_space<vmem>>, vector<1x1x32xf32>
    %325 = vector.shape_cast %324 : vector<1x1x32xf32> to vector<1x32xf32>
    %326 = vector.shape_cast %323 : vector<1x32xf32> to vector<1x1x32xf32>
    tpu.vector_store %arg9[%c4_196, %c3_197, %c0_198], %326 {strides = array<i32>} : memref<32x11x32xf32, #tpu.memory_space<vmem>>, vector<1x1x32xf32>,
    %c32_i32_199 = arith.constant 32 : i32
    %327 = arith.addi %2, %c32_i32_199 : i32
    %c4_i32_200 = arith.constant 4 : i32
    %328 = arith.addi %327, %c4_i32_200 : i32
    %329 = arith.index_cast %328 : i32 to index
    %330 = memref.load %arg1[%329] : memref<512xi32, #tpu.memory_space<smem>>
    %331 = arith.index_cast %330 : i32 to index
    %c0_201 = arith.constant 0 : index
    %332 = vector.load %arg2[%331, %c0_201] : memref<50x32xf32, #tpu.memory_space<vmem>>, vector<1x32xf32>
    %c4_202 = arith.constant 4 : index
    %c4_203 = arith.constant 4 : index
    %c0_204 = arith.constant 0 : index
    %333 = vector.load %arg9[%c4_202, %c4_203, %c0_204] : memref<32x11x32xf32, #tpu.memory_space<vmem>>, vector<1x1x32xf32>
    %334 = vector.shape_cast %333 : vector<1x1x32xf32> to vector<1x32xf32>
    %335 = vector.shape_cast %332 : vector<1x32xf32> to vector<1x1x32xf32>
    tpu.vector_store %arg9[%c4_202, %c4_203, %c0_204], %335 {strides = array<i32>} : memref<32x11x32xf32, #tpu.memory_space<vmem>>, vector<1x1x32xf32>,
    %c32_i32_205 = arith.constant 32 : i32
    %336 = arith.addi %2, %c32_i32_205 : i32
    %c5_i32_206 = arith.constant 5 : i32
    %337 = arith.addi %336, %c5_i32_206 : i32
    %338 = arith.index_cast %337 : i32 to index
    %339 = memref.load %arg1[%338] : memref<512xi32, #tpu.memory_space<smem>>
    %340 = arith.index_cast %339 : i32 to index
    %c0_207 = arith.constant 0 : index
    %341 = vector.load %arg2[%340, %c0_207] : memref<50x32xf32, #tpu.memory_space<vmem>>, vector<1x32xf32>
    %c4_208 = arith.constant 4 : index
    %c5_209 = arith.constant 5 : index
    %c0_210 = arith.constant 0 : index
    %342 = vector.load %arg9[%c4_208, %c5_209, %c0_210] : memref<32x11x32xf32, #tpu.memory_space<vmem>>, vector<1x1x32xf32>
    %343 = vector.shape_cast %342 : vector<1x1x32xf32> to vector<1x32xf32>
    %344 = vector.shape_cast %341 : vector<1x32xf32> to vector<1x1x32xf32>
    tpu.vector_store %arg9[%c4_208, %c5_209, %c0_210], %344 {strides = array<i32>} : memref<32x11x32xf32, #tpu.memory_space<vmem>>, vector<1x1x32xf32>,
    %c32_i32_211 = arith.constant 32 : i32
    %345 = arith.addi %2, %c32_i32_211 : i32
    %c6_i32_212 = arith.constant 6 : i32
    %346 = arith.addi %345, %c6_i32_212 : i32
    %347 = arith.index_cast %346 : i32 to index
    %348 = memref.load %arg1[%347] : memref<512xi32, #tpu.memory_space<smem>>
    %349 = arith.index_cast %348 : i32 to index
    %c0_213 = arith.constant 0 : index
    %350 = vector.load %arg2[%349, %c0_213] : memref<50x32xf32, #tpu.memory_space<vmem>>, vector<1x32xf32>
    %c4_214 = arith.constant 4 : index
    %c6_215 = arith.constant 6 : index
    %c0_216 = arith.constant 0 : index
    %351 = vector.load %arg9[%c4_214, %c6_215, %c0_216] : memref<32x11x32xf32, #tpu.memory_space<vmem>>, vector<1x1x32xf32>
    %352 = vector.shape_cast %351 : vector<1x1x32xf32> to vector<1x32xf32>
    %353 = vector.shape_cast %350 : vector<1x32xf32> to vector<1x1x32xf32>
    tpu.vector_store %arg9[%c4_214, %c6_215, %c0_216], %353 {strides = array<i32>} : memref<32x11x32xf32, #tpu.memory_space<vmem>>, vector<1x1x32xf32>,
    %c32_i32_217 = arith.constant 32 : i32
    %354 = arith.addi %2, %c32_i32_217 : i32
    %c7_i32_218 = arith.constant 7 : i32
    %355 = arith.addi %354, %c7_i32_218 : i32
    %356 = arith.index_cast %355 : i32 to index
    %357 = memref.load %arg1[%356] : memref<512xi32, #tpu.memory_space<smem>>
    %358 = arith.index_cast %357 : i32 to index
    %c0_219 = arith.constant 0 : index
    %359 = vector.load %arg2[%358, %c0_219] : memref<50x32xf32, #tpu.memory_space<vmem>>, vector<1x32xf32>
    %c4_220 = arith.constant 4 : index
    %c7_221 = arith.constant 7 : index
    %c0_222 = arith.constant 0 : index
    %360 = vector.load %arg9[%c4_220, %c7_221, %c0_222] : memref<32x11x32xf32, #tpu.memory_space<vmem>>, vector<1x1x32xf32>
    %361 = vector.shape_cast %360 : vector<1x1x32xf32> to vector<1x32xf32>
    %362 = vector.shape_cast %359 : vector<1x32xf32> to vector<1x1x32xf32>
    tpu.vector_store %arg9[%c4_220, %c7_221, %c0_222], %362 {strides = array<i32>} : memref<32x11x32xf32, #tpu.memory_space<vmem>>, vector<1x1x32xf32>,
    %c40_i32 = arith.constant 40 : i32
    %363 = arith.addi %2, %c40_i32 : i32
    %c0_i32_223 = arith.constant 0 : i32
    %364 = arith.addi %363, %c0_i32_223 : i32
    %365 = arith.index_cast %364 : i32 to index
    %366 = memref.load %arg1[%365] : memref<512xi32, #tpu.memory_space<smem>>
    %367 = arith.index_cast %366 : i32 to index
    %c0_224 = arith.constant 0 : index
    %368 = vector.load %arg2[%367, %c0_224] : memref<50x32xf32, #tpu.memory_space<vmem>>, vector<1x32xf32>
    %c5_225 = arith.constant 5 : index
    %c0_226 = arith.constant 0 : index
    %c0_227 = arith.constant 0 : index
    %369 = vector.load %arg9[%c5_225, %c0_226, %c0_227] : memref<32x11x32xf32, #tpu.memory_space<vmem>>, vector<1x1x32xf32>
    %370 = vector.shape_cast %369 : vector<1x1x32xf32> to vector<1x32xf32>
    %371 = vector.shape_cast %368 : vector<1x32xf32> to vector<1x1x32xf32>
    tpu.vector_store %arg9[%c5_225, %c0_226, %c0_227], %371 {strides = array<i32>} : memref<32x11x32xf32, #tpu.memory_space<vmem>>, vector<1x1x32xf32>,
    %c40_i32_228 = arith.constant 40 : i32
    %372 = arith.addi %2, %c40_i32_228 : i32
    %c1_i32_229 = arith.constant 1 : i32
    %373 = arith.addi %372, %c1_i32_229 : i32
    %374 = arith.index_cast %373 : i32 to index
    %375 = memref.load %arg1[%374] : memref<512xi32, #tpu.memory_space<smem>>
    %376 = arith.index_cast %375 : i32 to index
    %c0_230 = arith.constant 0 : index
    %377 = vector.load %arg2[%376, %c0_230] : memref<50x32xf32, #tpu.memory_space<vmem>>, vector<1x32xf32>
    %c5_231 = arith.constant 5 : index
    %c1_232 = arith.constant 1 : index
    %c0_233 = arith.constant 0 : index
    %378 = vector.load %arg9[%c5_231, %c1_232, %c0_233] : memref<32x11x32xf32, #tpu.memory_space<vmem>>, vector<1x1x32xf32>
    %379 = vector.shape_cast %378 : vector<1x1x32xf32> to vector<1x32xf32>
    %380 = vector.shape_cast %377 : vector<1x32xf32> to vector<1x1x32xf32>
    tpu.vector_store %arg9[%c5_231, %c1_232, %c0_233], %380 {strides = array<i32>} : memref<32x11x32xf32, #tpu.memory_space<vmem>>, vector<1x1x32xf32>,
    %c40_i32_234 = arith.constant 40 : i32
    %381 = arith.addi %2, %c40_i32_234 : i32
    %c2_i32_235 = arith.constant 2 : i32
    %382 = arith.addi %381, %c2_i32_235 : i32
    %383 = arith.index_cast %382 : i32 to index
    %384 = memref.load %arg1[%383] : memref<512xi32, #tpu.memory_space<smem>>
    %385 = arith.index_cast %384 : i32 to index
    %c0_236 = arith.constant 0 : index
    %386 = vector.load %arg2[%385, %c0_236] : memref<50x32xf32, #tpu.memory_space<vmem>>, vector<1x32xf32>
    %c5_237 = arith.constant 5 : index
    %c2_238 = arith.constant 2 : index
    %c0_239 = arith.constant 0 : index
    %387 = vector.load %arg9[%c5_237, %c2_238, %c0_239] : memref<32x11x32xf32, #tpu.memory_space<vmem>>, vector<1x1x32xf32>
    %388 = vector.shape_cast %387 : vector<1x1x32xf32> to vector<1x32xf32>
    %389 = vector.shape_cast %386 : vector<1x32xf32> to vector<1x1x32xf32>
    tpu.vector_store %arg9[%c5_237, %c2_238, %c0_239], %389 {strides = array<i32>} : memref<32x11x32xf32, #tpu.memory_space<vmem>>, vector<1x1x32xf32>,
    %c40_i32_240 = arith.constant 40 : i32
    %390 = arith.addi %2, %c40_i32_240 : i32
    %c3_i32_241 = arith.constant 3 : i32
    %391 = arith.addi %390, %c3_i32_241 : i32
    %392 = arith.index_cast %391 : i32 to index
    %393 = memref.load %arg1[%392] : memref<512xi32, #tpu.memory_space<smem>>
    %394 = arith.index_cast %393 : i32 to index
    %c0_242 = arith.constant 0 : index
    %395 = vector.load %arg2[%394, %c0_242] : memref<50x32xf32, #tpu.memory_space<vmem>>, vector<1x32xf32>
    %c5_243 = arith.constant 5 : index
    %c3_244 = arith.constant 3 : index
    %c0_245 = arith.constant 0 : index
    %396 = vector.load %arg9[%c5_243, %c3_244, %c0_245] : memref<32x11x32xf32, #tpu.memory_space<vmem>>, vector<1x1x32xf32>
    %397 = vector.shape_cast %396 : vector<1x1x32xf32> to vector<1x32xf32>
    %398 = vector.shape_cast %395 : vector<1x32xf32> to vector<1x1x32xf32>
    tpu.vector_store %arg9[%c5_243, %c3_244, %c0_245], %398 {strides = array<i32>} : memref<32x11x32xf32, #tpu.memory_space<vmem>>, vector<1x1x32xf32>,
    %c40_i32_246 = arith.constant 40 : i32
    %399 = arith.addi %2, %c40_i32_246 : i32
    %c4_i32_247 = arith.constant 4 : i32
    %400 = arith.addi %399, %c4_i32_247 : i32
    %401 = arith.index_cast %400 : i32 to index
    %402 = memref.load %arg1[%401] : memref<512xi32, #tpu.memory_space<smem>>
    %403 = arith.index_cast %402 : i32 to index
    %c0_248 = arith.constant 0 : index
    %404 = vector.load %arg2[%403, %c0_248] : memref<50x32xf32, #tpu.memory_space<vmem>>, vector<1x32xf32>
    %c5_249 = arith.constant 5 : index
    %c4_250 = arith.constant 4 : index
    %c0_251 = arith.constant 0 : index
    %405 = vector.load %arg9[%c5_249, %c4_250, %c0_251] : memref<32x11x32xf32, #tpu.memory_space<vmem>>, vector<1x1x32xf32>
    %406 = vector.shape_cast %405 : vector<1x1x32xf32> to vector<1x32xf32>
    %407 = vector.shape_cast %404 : vector<1x32xf32> to vector<1x1x32xf32>
    tpu.vector_store %arg9[%c5_249, %c4_250, %c0_251], %407 {strides = array<i32>} : memref<32x11x32xf32, #tpu.memory_space<vmem>>, vector<1x1x32xf32>,
    %c40_i32_252 = arith.constant 40 : i32
    %408 = arith.addi %2, %c40_i32_252 : i32
    %c5_i32_253 = arith.constant 5 : i32
    %409 = arith.addi %408, %c5_i32_253 : i32
    %410 = arith.index_cast %409 : i32 to index
    %411 = memref.load %arg1[%410] : memref<512xi32, #tpu.memory_space<smem>>
    %412 = arith.index_cast %411 : i32 to index
    %c0_254 = arith.constant 0 : index
    %413 = vector.load %arg2[%412, %c0_254] : memref<50x32xf32, #tpu.memory_space<vmem>>, vector<1x32xf32>
    %c5_255 = arith.constant 5 : index
    %c5_256 = arith.constant 5 : index
    %c0_257 = arith.constant 0 : index
    %414 = vector.load %arg9[%c5_255, %c5_256, %c0_257] : memref<32x11x32xf32, #tpu.memory_space<vmem>>, vector<1x1x32xf32>
    %415 = vector.shape_cast %414 : vector<1x1x32xf32> to vector<1x32xf32>
    %416 = vector.shape_cast %413 : vector<1x32xf32> to vector<1x1x32xf32>
    tpu.vector_store %arg9[%c5_255, %c5_256, %c0_257], %416 {strides = array<i32>} : memref<32x11x32xf32, #tpu.memory_space<vmem>>, vector<1x1x32xf32>,
    %c40_i32_258 = arith.constant 40 : i32
    %417 = arith.addi %2, %c40_i32_258 : i32
    %c6_i32_259 = arith.constant 6 : i32
    %418 = arith.addi %417, %c6_i32_259 : i32
    %419 = arith.index_cast %418 : i32 to index
    %420 = memref.load %arg1[%419] : memref<512xi32, #tpu.memory_space<smem>>
    %421 = arith.index_cast %420 : i32 to index
    %c0_260 = arith.constant 0 : index
    %422 = vector.load %arg2[%421, %c0_260] : memref<50x32xf32, #tpu.memory_space<vmem>>, vector<1x32xf32>
    %c5_261 = arith.constant 5 : index
    %c6_262 = arith.constant 6 : index
    %c0_263 = arith.constant 0 : index
    %423 = vector.load %arg9[%c5_261, %c6_262, %c0_263] : memref<32x11x32xf32, #tpu.memory_space<vmem>>, vector<1x1x32xf32>
    %424 = vector.shape_cast %423 : vector<1x1x32xf32> to vector<1x32xf32>
    %425 = vector.shape_cast %422 : vector<1x32xf32> to vector<1x1x32xf32>
    tpu.vector_store %arg9[%c5_261, %c6_262, %c0_263], %425 {strides = array<i32>} : memref<32x11x32xf32, #tpu.memory_space<vmem>>, vector<1x1x32xf32>,
    %c40_i32_264 = arith.constant 40 : i32
    %426 = arith.addi %2, %c40_i32_264 : i32
    %c7_i32_265 = arith.constant 7 : i32
    %427 = arith.addi %426, %c7_i32_265 : i32
    %428 = arith.index_cast %427 : i32 to index
    %429 = memref.load %arg1[%428] : memref<512xi32, #tpu.memory_space<smem>>
    %430 = arith.index_cast %429 : i32 to index
    %c0_266 = arith.constant 0 : index
    %431 = vector.load %arg2[%430, %c0_266] : memref<50x32xf32, #tpu.memory_space<vmem>>, vector<1x32xf32>
    %c5_267 = arith.constant 5 : index
    %c7_268 = arith.constant 7 : index
    %c0_269 = arith.constant 0 : index
    %432 = vector.load %arg9[%c5_267, %c7_268, %c0_269] : memref<32x11x32xf32, #tpu.memory_space<vmem>>, vector<1x1x32xf32>
    %433 = vector.shape_cast %432 : vector<1x1x32xf32> to vector<1x32xf32>
    %434 = vector.shape_cast %431 : vector<1x32xf32> to vector<1x1x32xf32>
    tpu.vector_store %arg9[%c5_267, %c7_268, %c0_269], %434 {strides = array<i32>} : memref<32x11x32xf32, #tpu.memory_space<vmem>>, vector<1x1x32xf32>,
    %c48_i32 = arith.constant 48 : i32
    %435 = arith.addi %2, %c48_i32 : i32
    %c0_i32_270 = arith.constant 0 : i32
    %436 = arith.addi %435, %c0_i32_270 : i32
    %437 = arith.index_cast %436 : i32 to index
    %438 = memref.load %arg1[%437] : memref<512xi32, #tpu.memory_space<smem>>
    %439 = arith.index_cast %438 : i32 to index
    %c0_271 = arith.constant 0 : index
    %440 = vector.load %arg2[%439, %c0_271] : memref<50x32xf32, #tpu.memory_space<vmem>>, vector<1x32xf32>
    %c6_272 = arith.constant 6 : index
    %c0_273 = arith.constant 0 : index
    %c0_274 = arith.constant 0 : index
    %441 = vector.load %arg9[%c6_272, %c0_273, %c0_274] : memref<32x11x32xf32, #tpu.memory_space<vmem>>, vector<1x1x32xf32>
    %442 = vector.shape_cast %441 : vector<1x1x32xf32> to vector<1x32xf32>
    %443 = vector.shape_cast %440 : vector<1x32xf32> to vector<1x1x32xf32>
    tpu.vector_store %arg9[%c6_272, %c0_273, %c0_274], %443 {strides = array<i32>} : memref<32x11x32xf32, #tpu.memory_space<vmem>>, vector<1x1x32xf32>,
    %c48_i32_275 = arith.constant 48 : i32
    %444 = arith.addi %2, %c48_i32_275 : i32
    %c1_i32_276 = arith.constant 1 : i32
    %445 = arith.addi %444, %c1_i32_276 : i32
    %446 = arith.index_cast %445 : i32 to index
    %447 = memref.load %arg1[%446] : memref<512xi32, #tpu.memory_space<smem>>
    %448 = arith.index_cast %447 : i32 to index
    %c0_277 = arith.constant 0 : index
    %449 = vector.load %arg2[%448, %c0_277] : memref<50x32xf32, #tpu.memory_space<vmem>>, vector<1x32xf32>
    %c6_278 = arith.constant 6 : index
    %c1_279 = arith.constant 1 : index
    %c0_280 = arith.constant 0 : index
    %450 = vector.load %arg9[%c6_278, %c1_279, %c0_280] : memref<32x11x32xf32, #tpu.memory_space<vmem>>, vector<1x1x32xf32>
    %451 = vector.shape_cast %450 : vector<1x1x32xf32> to vector<1x32xf32>
    %452 = vector.shape_cast %449 : vector<1x32xf32> to vector<1x1x32xf32>
    tpu.vector_store %arg9[%c6_278, %c1_279, %c0_280], %452 {strides = array<i32>} : memref<32x11x32xf32, #tpu.memory_space<vmem>>, vector<1x1x32xf32>,
    %c48_i32_281 = arith.constant 48 : i32
    %453 = arith.addi %2, %c48_i32_281 : i32
    %c2_i32_282 = arith.constant 2 : i32
    %454 = arith.addi %453, %c2_i32_282 : i32
    %455 = arith.index_cast %454 : i32 to index
    %456 = memref.load %arg1[%455] : memref<512xi32, #tpu.memory_space<smem>>
    %457 = arith.index_cast %456 : i32 to index
    %c0_283 = arith.constant 0 : index
    %458 = vector.load %arg2[%457, %c0_283] : memref<50x32xf32, #tpu.memory_space<vmem>>, vector<1x32xf32>
    %c6_284 = arith.constant 6 : index
    %c2_285 = arith.constant 2 : index
    %c0_286 = arith.constant 0 : index
    %459 = vector.load %arg9[%c6_284, %c2_285, %c0_286] : memref<32x11x32xf32, #tpu.memory_space<vmem>>, vector<1x1x32xf32>
    %460 = vector.shape_cast %459 : vector<1x1x32xf32> to vector<1x32xf32>
    %461 = vector.shape_cast %458 : vector<1x32xf32> to vector<1x1x32xf32>
    tpu.vector_store %arg9[%c6_284, %c2_285, %c0_286], %461 {strides = array<i32>} : memref<32x11x32xf32, #tpu.memory_space<vmem>>, vector<1x1x32xf32>,
    %c48_i32_287 = arith.constant 48 : i32
    %462 = arith.addi %2, %c48_i32_287 : i32
    %c3_i32_288 = arith.constant 3 : i32
    %463 = arith.addi %462, %c3_i32_288 : i32
    %464 = arith.index_cast %463 : i32 to index
    %465 = memref.load %arg1[%464] : memref<512xi32, #tpu.memory_space<smem>>
    %466 = arith.index_cast %465 : i32 to index
    %c0_289 = arith.constant 0 : index
    %467 = vector.load %arg2[%466, %c0_289] : memref<50x32xf32, #tpu.memory_space<vmem>>, vector<1x32xf32>
    %c6_290 = arith.constant 6 : index
    %c3_291 = arith.constant 3 : index
    %c0_292 = arith.constant 0 : index
    %468 = vector.load %arg9[%c6_290, %c3_291, %c0_292] : memref<32x11x32xf32, #tpu.memory_space<vmem>>, vector<1x1x32xf32>
    %469 = vector.shape_cast %468 : vector<1x1x32xf32> to vector<1x32xf32>
    %470 = vector.shape_cast %467 : vector<1x32xf32> to vector<1x1x32xf32>
    tpu.vector_store %arg9[%c6_290, %c3_291, %c0_292], %470 {strides = array<i32>} : memref<32x11x32xf32, #tpu.memory_space<vmem>>, vector<1x1x32xf32>,
    %c48_i32_293 = arith.constant 48 : i32
    %471 = arith.addi %2, %c48_i32_293 : i32
    %c4_i32_294 = arith.constant 4 : i32
    %472 = arith.addi %471, %c4_i32_294 : i32
    %473 = arith.index_cast %472 : i32 to index
    %474 = memref.load %arg1[%473] : memref<512xi32, #tpu.memory_space<smem>>
    %475 = arith.index_cast %474 : i32 to index
    %c0_295 = arith.constant 0 : index
    %476 = vector.load %arg2[%475, %c0_295] : memref<50x32xf32, #tpu.memory_space<vmem>>, vector<1x32xf32>
    %c6_296 = arith.constant 6 : index
    %c4_297 = arith.constant 4 : index
    %c0_298 = arith.constant 0 : index
    %477 = vector.load %arg9[%c6_296, %c4_297, %c0_298] : memref<32x11x32xf32, #tpu.memory_space<vmem>>, vector<1x1x32xf32>
    %478 = vector.shape_cast %477 : vector<1x1x32xf32> to vector<1x32xf32>
    %479 = vector.shape_cast %476 : vector<1x32xf32> to vector<1x1x32xf32>
    tpu.vector_store %arg9[%c6_296, %c4_297, %c0_298], %479 {strides = array<i32>} : memref<32x11x32xf32, #tpu.memory_space<vmem>>, vector<1x1x32xf32>,
    %c48_i32_299 = arith.constant 48 : i32
    %480 = arith.addi %2, %c48_i32_299 : i32
    %c5_i32_300 = arith.constant 5 : i32
    %481 = arith.addi %480, %c5_i32_300 : i32
    %482 = arith.index_cast %481 : i32 to index
    %483 = memref.load %arg1[%482] : memref<512xi32, #tpu.memory_space<smem>>
    %484 = arith.index_cast %483 : i32 to index
    %c0_301 = arith.constant 0 : index
    %485 = vector.load %arg2[%484, %c0_301] : memref<50x32xf32, #tpu.memory_space<vmem>>, vector<1x32xf32>
    %c6_302 = arith.constant 6 : index
    %c5_303 = arith.constant 5 : index
    %c0_304 = arith.constant 0 : index
    %486 = vector.load %arg9[%c6_302, %c5_303, %c0_304] : memref<32x11x32xf32, #tpu.memory_space<vmem>>, vector<1x1x32xf32>
    %487 = vector.shape_cast %486 : vector<1x1x32xf32> to vector<1x32xf32>
    %488 = vector.shape_cast %485 : vector<1x32xf32> to vector<1x1x32xf32>
    tpu.vector_store %arg9[%c6_302, %c5_303, %c0_304], %488 {strides = array<i32>} : memref<32x11x32xf32, #tpu.memory_space<vmem>>, vector<1x1x32xf32>,
    %c48_i32_305 = arith.constant 48 : i32
    %489 = arith.addi %2, %c48_i32_305 : i32
    %c6_i32_306 = arith.constant 6 : i32
    %490 = arith.addi %489, %c6_i32_306 : i32
    %491 = arith.index_cast %490 : i32 to index
    %492 = memref.load %arg1[%491] : memref<512xi32, #tpu.memory_space<smem>>
    %493 = arith.index_cast %492 : i32 to index
    %c0_307 = arith.constant 0 : index
    %494 = vector.load %arg2[%493, %c0_307] : memref<50x32xf32, #tpu.memory_space<vmem>>, vector<1x32xf32>
    %c6_308 = arith.constant 6 : index
    %c6_309 = arith.constant 6 : index
    %c0_310 = arith.constant 0 : index
    %495 = vector.load %arg9[%c6_308, %c6_309, %c0_310] : memref<32x11x32xf32, #tpu.memory_space<vmem>>, vector<1x1x32xf32>
    %496 = vector.shape_cast %495 : vector<1x1x32xf32> to vector<1x32xf32>
    %497 = vector.shape_cast %494 : vector<1x32xf32> to vector<1x1x32xf32>
    tpu.vector_store %arg9[%c6_308, %c6_309, %c0_310], %497 {strides = array<i32>} : memref<32x11x32xf32, #tpu.memory_space<vmem>>, vector<1x1x32xf32>,
    %c48_i32_311 = arith.constant 48 : i32
    %498 = arith.addi %2, %c48_i32_311 : i32
    %c7_i32_312 = arith.constant 7 : i32
    %499 = arith.addi %498, %c7_i32_312 : i32
    %500 = arith.index_cast %499 : i32 to index
    %501 = memref.load %arg1[%500] : memref<512xi32, #tpu.memory_space<smem>>
    %502 = arith.index_cast %501 : i32 to index
    %c0_313 = arith.constant 0 : index
    %503 = vector.load %arg2[%502, %c0_313] : memref<50x32xf32, #tpu.memory_space<vmem>>, vector<1x32xf32>
    %c6_314 = arith.constant 6 : index
    %c7_315 = arith.constant 7 : index
    %c0_316 = arith.constant 0 : index
    %504 = vector.load %arg9[%c6_314, %c7_315, %c0_316] : memref<32x11x32xf32, #tpu.memory_space<vmem>>, vector<1x1x32xf32>
    %505 = vector.shape_cast %504 : vector<1x1x32xf32> to vector<1x32xf32>
    %506 = vector.shape_cast %503 : vector<1x32xf32> to vector<1x1x32xf32>
    tpu.vector_store %arg9[%c6_314, %c7_315, %c0_316], %506 {strides = array<i32>} : memref<32x11x32xf32, #tpu.memory_space<vmem>>, vector<1x1x32xf32>,
    %c56_i32 = arith.constant 56 : i32
    %507 = arith.addi %2, %c56_i32 : i32
    %c0_i32_317 = arith.constant 0 : i32
    %508 = arith.addi %507, %c0_i32_317 : i32
    %509 = arith.index_cast %508 : i32 to index
    %510 = memref.load %arg1[%509] : memref<512xi32, #tpu.memory_space<smem>>
    %511 = arith.index_cast %510 : i32 to index
    %c0_318 = arith.constant 0 : index
    %512 = vector.load %arg2[%511, %c0_318] : memref<50x32xf32, #tpu.memory_space<vmem>>, vector<1x32xf32>
    %c7_319 = arith.constant 7 : index
    %c0_320 = arith.constant 0 : index
    %c0_321 = arith.constant 0 : index
    %513 = vector.load %arg9[%c7_319, %c0_320, %c0_321] : memref<32x11x32xf32, #tpu.memory_space<vmem>>, vector<1x1x32xf32>
    %514 = vector.shape_cast %513 : vector<1x1x32xf32> to vector<1x32xf32>
    %515 = vector.shape_cast %512 : vector<1x32xf32> to vector<1x1x32xf32>
    tpu.vector_store %arg9[%c7_319, %c0_320, %c0_321], %515 {strides = array<i32>} : memref<32x11x32xf32, #tpu.memory_space<vmem>>, vector<1x1x32xf32>,
    %c56_i32_322 = arith.constant 56 : i32
    %516 = arith.addi %2, %c56_i32_322 : i32
    %c1_i32_323 = arith.constant 1 : i32
    %517 = arith.addi %516, %c1_i32_323 : i32
    %518 = arith.index_cast %517 : i32 to index
    %519 = memref.load %arg1[%518] : memref<512xi32, #tpu.memory_space<smem>>
    %520 = arith.index_cast %519 : i32 to index
    %c0_324 = arith.constant 0 : index
    %521 = vector.load %arg2[%520, %c0_324] : memref<50x32xf32, #tpu.memory_space<vmem>>, vector<1x32xf32>
    %c7_325 = arith.constant 7 : index
    %c1_326 = arith.constant 1 : index
    %c0_327 = arith.constant 0 : index
    %522 = vector.load %arg9[%c7_325, %c1_326, %c0_327] : memref<32x11x32xf32, #tpu.memory_space<vmem>>, vector<1x1x32xf32>
    %523 = vector.shape_cast %522 : vector<1x1x32xf32> to vector<1x32xf32>
    %524 = vector.shape_cast %521 : vector<1x32xf32> to vector<1x1x32xf32>
    tpu.vector_store %arg9[%c7_325, %c1_326, %c0_327], %524 {strides = array<i32>} : memref<32x11x32xf32, #tpu.memory_space<vmem>>, vector<1x1x32xf32>,
    %c56_i32_328 = arith.constant 56 : i32
    %525 = arith.addi %2, %c56_i32_328 : i32
    %c2_i32_329 = arith.constant 2 : i32
    %526 = arith.addi %525, %c2_i32_329 : i32
    %527 = arith.index_cast %526 : i32 to index
    %528 = memref.load %arg1[%527] : memref<512xi32, #tpu.memory_space<smem>>
    %529 = arith.index_cast %528 : i32 to index
    %c0_330 = arith.constant 0 : index
    %530 = vector.load %arg2[%529, %c0_330] : memref<50x32xf32, #tpu.memory_space<vmem>>, vector<1x32xf32>
    %c7_331 = arith.constant 7 : index
    %c2_332 = arith.constant 2 : index
    %c0_333 = arith.constant 0 : index
    %531 = vector.load %arg9[%c7_331, %c2_332, %c0_333] : memref<32x11x32xf32, #tpu.memory_space<vmem>>, vector<1x1x32xf32>
    %532 = vector.shape_cast %531 : vector<1x1x32xf32> to vector<1x32xf32>
    %533 = vector.shape_cast %530 : vector<1x32xf32> to vector<1x1x32xf32>
    tpu.vector_store %arg9[%c7_331, %c2_332, %c0_333], %533 {strides = array<i32>} : memref<32x11x32xf32, #tpu.memory_space<vmem>>, vector<1x1x32xf32>,
    %c56_i32_334 = arith.constant 56 : i32
    %534 = arith.addi %2, %c56_i32_334 : i32
    %c3_i32_335 = arith.constant 3 : i32
    %535 = arith.addi %534, %c3_i32_335 : i32
    %536 = arith.index_cast %535 : i32 to index
    %537 = memref.load %arg1[%536] : memref<512xi32, #tpu.memory_space<smem>>
    %538 = arith.index_cast %537 : i32 to index
    %c0_336 = arith.constant 0 : index
    %539 = vector.load %arg2[%538, %c0_336] : memref<50x32xf32, #tpu.memory_space<vmem>>, vector<1x32xf32>
    %c7_337 = arith.constant 7 : index
    %c3_338 = arith.constant 3 : index
    %c0_339 = arith.constant 0 : index
    %540 = vector.load %arg9[%c7_337, %c3_338, %c0_339] : memref<32x11x32xf32, #tpu.memory_space<vmem>>, vector<1x1x32xf32>
    %541 = vector.shape_cast %540 : vector<1x1x32xf32> to vector<1x32xf32>
    %542 = vector.shape_cast %539 : vector<1x32xf32> to vector<1x1x32xf32>
    tpu.vector_store %arg9[%c7_337, %c3_338, %c0_339], %542 {strides = array<i32>} : memref<32x11x32xf32, #tpu.memory_space<vmem>>, vector<1x1x32xf32>,
    %c56_i32_340 = arith.constant 56 : i32
    %543 = arith.addi %2, %c56_i32_340 : i32
    %c4_i32_341 = arith.constant 4 : i32
    %544 = arith.addi %543, %c4_i32_341 : i32
    %545 = arith.index_cast %544 : i32 to index
    %546 = memref.load %arg1[%545] : memref<512xi32, #tpu.memory_space<smem>>
    %547 = arith.index_cast %546 : i32 to index
    %c0_342 = arith.constant 0 : index
    %548 = vector.load %arg2[%547, %c0_342] : memref<50x32xf32, #tpu.memory_space<vmem>>, vector<1x32xf32>
    %c7_343 = arith.constant 7 : index
    %c4_344 = arith.constant 4 : index
    %c0_345 = arith.constant 0 : index
    %549 = vector.load %arg9[%c7_343, %c4_344, %c0_345] : memref<32x11x32xf32, #tpu.memory_space<vmem>>, vector<1x1x32xf32>
    %550 = vector.shape_cast %549 : vector<1x1x32xf32> to vector<1x32xf32>
    %551 = vector.shape_cast %548 : vector<1x32xf32> to vector<1x1x32xf32>
    tpu.vector_store %arg9[%c7_343, %c4_344, %c0_345], %551 {strides = array<i32>} : memref<32x11x32xf32, #tpu.memory_space<vmem>>, vector<1x1x32xf32>,
    %c56_i32_346 = arith.constant 56 : i32
    %552 = arith.addi %2, %c56_i32_346 : i32
    %c5_i32_347 = arith.constant 5 : i32
    %553 = arith.addi %552, %c5_i32_347 : i32
    %554 = arith.index_cast %553 : i32 to index
    %555 = memref.load %arg1[%554] : memref<512xi32, #tpu.memory_space<smem>>
    %556 = arith.index_cast %555 : i32 to index
    %c0_348 = arith.constant 0 : index
    %557 = vector.load %arg2[%556, %c0_348] : memref<50x32xf32, #tpu.memory_space<vmem>>, vector<1x32xf32>
    %c7_349 = arith.constant 7 : index
    %c5_350 = arith.constant 5 : index
    %c0_351 = arith.constant 0 : index
    %558 = vector.load %arg9[%c7_349, %c5_350, %c0_351] : memref<32x11x32xf32, #tpu.memory_space<vmem>>, vector<1x1x32xf32>
    %559 = vector.shape_cast %558 : vector<1x1x32xf32> to vector<1x32xf32>
    %560 = vector.shape_cast %557 : vector<1x32xf32> to vector<1x1x32xf32>
    tpu.vector_store %arg9[%c7_349, %c5_350, %c0_351], %560 {strides = array<i32>} : memref<32x11x32xf32, #tpu.memory_space<vmem>>, vector<1x1x32xf32>,
    %c56_i32_352 = arith.constant 56 : i32
    %561 = arith.addi %2, %c56_i32_352 : i32
    %c6_i32_353 = arith.constant 6 : i32
    %562 = arith.addi %561, %c6_i32_353 : i32
    %563 = arith.index_cast %562 : i32 to index
    %564 = memref.load %arg1[%563] : memref<512xi32, #tpu.memory_space<smem>>
    %565 = arith.index_cast %564 : i32 to index
    %c0_354 = arith.constant 0 : index
    %566 = vector.load %arg2[%565, %c0_354] : memref<50x32xf32, #tpu.memory_space<vmem>>, vector<1x32xf32>
    %c7_355 = arith.constant 7 : index
    %c6_356 = arith.constant 6 : index
    %c0_357 = arith.constant 0 : index
    %567 = vector.load %arg9[%c7_355, %c6_356, %c0_357] : memref<32x11x32xf32, #tpu.memory_space<vmem>>, vector<1x1x32xf32>
    %568 = vector.shape_cast %567 : vector<1x1x32xf32> to vector<1x32xf32>
    %569 = vector.shape_cast %566 : vector<1x32xf32> to vector<1x1x32xf32>
    tpu.vector_store %arg9[%c7_355, %c6_356, %c0_357], %569 {strides = array<i32>} : memref<32x11x32xf32, #tpu.memory_space<vmem>>, vector<1x1x32xf32>,
    %c56_i32_358 = arith.constant 56 : i32
    %570 = arith.addi %2, %c56_i32_358 : i32
    %c7_i32_359 = arith.constant 7 : i32
    %571 = arith.addi %570, %c7_i32_359 : i32
    %572 = arith.index_cast %571 : i32 to index
    %573 = memref.load %arg1[%572] : memref<512xi32, #tpu.memory_space<smem>>
    %574 = arith.index_cast %573 : i32 to index
    %c0_360 = arith.constant 0 : index
    %575 = vector.load %arg2[%574, %c0_360] : memref<50x32xf32, #tpu.memory_space<vmem>>, vector<1x32xf32>
    %c7_361 = arith.constant 7 : index
    %c7_362 = arith.constant 7 : index
    %c0_363 = arith.constant 0 : index
    %576 = vector.load %arg9[%c7_361, %c7_362, %c0_363] : memref<32x11x32xf32, #tpu.memory_space<vmem>>, vector<1x1x32xf32>
    %577 = vector.shape_cast %576 : vector<1x1x32xf32> to vector<1x32xf32>
    %578 = vector.shape_cast %575 : vector<1x32xf32> to vector<1x1x32xf32>
    tpu.vector_store %arg9[%c7_361, %c7_362, %c0_363], %578 {strides = array<i32>} : memref<32x11x32xf32, #tpu.memory_space<vmem>>, vector<1x1x32xf32>,
    %c64_i32 = arith.constant 64 : i32
    %579 = arith.addi %2, %c64_i32 : i32
    %c0_i32_364 = arith.constant 0 : i32
    %580 = arith.addi %579, %c0_i32_364 : i32
    %581 = arith.index_cast %580 : i32 to index
    %582 = memref.load %arg1[%581] : memref<512xi32, #tpu.memory_space<smem>>
    %583 = arith.index_cast %582 : i32 to index
    %c0_365 = arith.constant 0 : index
    %584 = vector.load %arg2[%583, %c0_365] : memref<50x32xf32, #tpu.memory_space<vmem>>, vector<1x32xf32>
    %c8 = arith.constant 8 : index
    %c0_366 = arith.constant 0 : index
    %c0_367 = arith.constant 0 : index
    %585 = vector.load %arg9[%c8, %c0_366, %c0_367] : memref<32x11x32xf32, #tpu.memory_space<vmem>>, vector<1x1x32xf32>
    %586 = vector.shape_cast %585 : vector<1x1x32xf32> to vector<1x32xf32>
    %587 = vector.shape_cast %584 : vector<1x32xf32> to vector<1x1x32xf32>
    tpu.vector_store %arg9[%c8, %c0_366, %c0_367], %587 {strides = array<i32>} : memref<32x11x32xf32, #tpu.memory_space<vmem>>, vector<1x1x32xf32>,
    %c64_i32_368 = arith.constant 64 : i32
    %588 = arith.addi %2, %c64_i32_368 : i32
    %c1_i32_369 = arith.constant 1 : i32
    %589 = arith.addi %588, %c1_i32_369 : i32
    %590 = arith.index_cast %589 : i32 to index
    %591 = memref.load %arg1[%590] : memref<512xi32, #tpu.memory_space<smem>>
    %592 = arith.index_cast %591 : i32 to index
    %c0_370 = arith.constant 0 : index
    %593 = vector.load %arg2[%592, %c0_370] : memref<50x32xf32, #tpu.memory_space<vmem>>, vector<1x32xf32>
    %c8_371 = arith.constant 8 : index
    %c1_372 = arith.constant 1 : index
    %c0_373 = arith.constant 0 : index
    %594 = vector.load %arg9[%c8_371, %c1_372, %c0_373] : memref<32x11x32xf32, #tpu.memory_space<vmem>>, vector<1x1x32xf32>
    %595 = vector.shape_cast %594 : vector<1x1x32xf32> to vector<1x32xf32>
    %596 = vector.shape_cast %593 : vector<1x32xf32> to vector<1x1x32xf32>
    tpu.vector_store %arg9[%c8_371, %c1_372, %c0_373], %596 {strides = array<i32>} : memref<32x11x32xf32, #tpu.memory_space<vmem>>, vector<1x1x32xf32>,
    %c64_i32_374 = arith.constant 64 : i32
    %597 = arith.addi %2, %c64_i32_374 : i32
    %c2_i32_375 = arith.constant 2 : i32
    %598 = arith.addi %597, %c2_i32_375 : i32
    %599 = arith.index_cast %598 : i32 to index
    %600 = memref.load %arg1[%599] : memref<512xi32, #tpu.memory_space<smem>>
    %601 = arith.index_cast %600 : i32 to index
    %c0_376 = arith.constant 0 : index
    %602 = vector.load %arg2[%601, %c0_376] : memref<50x32xf32, #tpu.memory_space<vmem>>, vector<1x32xf32>
    %c8_377 = arith.constant 8 : index
    %c2_378 = arith.constant 2 : index
    %c0_379 = arith.constant 0 : index
    %603 = vector.load %arg9[%c8_377, %c2_378, %c0_379] : memref<32x11x32xf32, #tpu.memory_space<vmem>>, vector<1x1x32xf32>
    %604 = vector.shape_cast %603 : vector<1x1x32xf32> to vector<1x32xf32>
    %605 = vector.shape_cast %602 : vector<1x32xf32> to vector<1x1x32xf32>
    tpu.vector_store %arg9[%c8_377, %c2_378, %c0_379], %605 {strides = array<i32>} : memref<32x11x32xf32, #tpu.memory_space<vmem>>, vector<1x1x32xf32>,
    %c64_i32_380 = arith.constant 64 : i32
    %606 = arith.addi %2, %c64_i32_380 : i32
    %c3_i32_381 = arith.constant 3 : i32
    %607 = arith.addi %606, %c3_i32_381 : i32
    %608 = arith.index_cast %607 : i32 to index
    %609 = memref.load %arg1[%608] : memref<512xi32, #tpu.memory_space<smem>>
    %610 = arith.index_cast %609 : i32 to index
    %c0_382 = arith.constant 0 : index
    %611 = vector.load %arg2[%610, %c0_382] : memref<50x32xf32, #tpu.memory_space<vmem>>, vector<1x32xf32>
    %c8_383 = arith.constant 8 : index
    %c3_384 = arith.constant 3 : index
    %c0_385 = arith.constant 0 : index
    %612 = vector.load %arg9[%c8_383, %c3_384, %c0_385] : memref<32x11x32xf32, #tpu.memory_space<vmem>>, vector<1x1x32xf32>
    %613 = vector.shape_cast %612 : vector<1x1x32xf32> to vector<1x32xf32>
    %614 = vector.shape_cast %611 : vector<1x32xf32> to vector<1x1x32xf32>
    tpu.vector_store %arg9[%c8_383, %c3_384, %c0_385], %614 {strides = array<i32>} : memref<32x11x32xf32, #tpu.memory_space<vmem>>, vector<1x1x32xf32>,
    %c64_i32_386 = arith.constant 64 : i32
    %615 = arith.addi %2, %c64_i32_386 : i32
    %c4_i32_387 = arith.constant 4 : i32
    %616 = arith.addi %615, %c4_i32_387 : i32
    %617 = arith.index_cast %616 : i32 to index
    %618 = memref.load %arg1[%617] : memref<512xi32, #tpu.memory_space<smem>>
    %619 = arith.index_cast %618 : i32 to index
    %c0_388 = arith.constant 0 : index
    %620 = vector.load %arg2[%619, %c0_388] : memref<50x32xf32, #tpu.memory_space<vmem>>, vector<1x32xf32>
    %c8_389 = arith.constant 8 : index
    %c4_390 = arith.constant 4 : index
    %c0_391 = arith.constant 0 : index
    %621 = vector.load %arg9[%c8_389, %c4_390, %c0_391] : memref<32x11x32xf32, #tpu.memory_space<vmem>>, vector<1x1x32xf32>
    %622 = vector.shape_cast %621 : vector<1x1x32xf32> to vector<1x32xf32>
    %623 = vector.shape_cast %620 : vector<1x32xf32> to vector<1x1x32xf32>
    tpu.vector_store %arg9[%c8_389, %c4_390, %c0_391], %623 {strides = array<i32>} : memref<32x11x32xf32, #tpu.memory_space<vmem>>, vector<1x1x32xf32>,
    %c64_i32_392 = arith.constant 64 : i32
    %624 = arith.addi %2, %c64_i32_392 : i32
    %c5_i32_393 = arith.constant 5 : i32
    %625 = arith.addi %624, %c5_i32_393 : i32
    %626 = arith.index_cast %625 : i32 to index
    %627 = memref.load %arg1[%626] : memref<512xi32, #tpu.memory_space<smem>>
    %628 = arith.index_cast %627 : i32 to index
    %c0_394 = arith.constant 0 : index
    %629 = vector.load %arg2[%628, %c0_394] : memref<50x32xf32, #tpu.memory_space<vmem>>, vector<1x32xf32>
    %c8_395 = arith.constant 8 : index
    %c5_396 = arith.constant 5 : index
    %c0_397 = arith.constant 0 : index
    %630 = vector.load %arg9[%c8_395, %c5_396, %c0_397] : memref<32x11x32xf32, #tpu.memory_space<vmem>>, vector<1x1x32xf32>
    %631 = vector.shape_cast %630 : vector<1x1x32xf32> to vector<1x32xf32>
    %632 = vector.shape_cast %629 : vector<1x32xf32> to vector<1x1x32xf32>
    tpu.vector_store %arg9[%c8_395, %c5_396, %c0_397], %632 {strides = array<i32>} : memref<32x11x32xf32, #tpu.memory_space<vmem>>, vector<1x1x32xf32>,
    %c64_i32_398 = arith.constant 64 : i32
    %633 = arith.addi %2, %c64_i32_398 : i32
    %c6_i32_399 = arith.constant 6 : i32
    %634 = arith.addi %633, %c6_i32_399 : i32
    %635 = arith.index_cast %634 : i32 to index
    %636 = memref.load %arg1[%635] : memref<512xi32, #tpu.memory_space<smem>>
    %637 = arith.index_cast %636 : i32 to index
    %c0_400 = arith.constant 0 : index
    %638 = vector.load %arg2[%637, %c0_400] : memref<50x32xf32, #tpu.memory_space<vmem>>, vector<1x32xf32>
    %c8_401 = arith.constant 8 : index
    %c6_402 = arith.constant 6 : index
    %c0_403 = arith.constant 0 : index
    %639 = vector.load %arg9[%c8_401, %c6_402, %c0_403] : memref<32x11x32xf32, #tpu.memory_space<vmem>>, vector<1x1x32xf32>
    %640 = vector.shape_cast %639 : vector<1x1x32xf32> to vector<1x32xf32>
    %641 = vector.shape_cast %638 : vector<1x32xf32> to vector<1x1x32xf32>
    tpu.vector_store %arg9[%c8_401, %c6_402, %c0_403], %641 {strides = array<i32>} : memref<32x11x32xf32, #tpu.memory_space<vmem>>, vector<1x1x32xf32>,
    %c64_i32_404 = arith.constant 64 : i32
    %642 = arith.addi %2, %c64_i32_404 : i32
    %c7_i32_405 = arith.constant 7 : i32
    %643 = arith.addi %642, %c7_i32_405 : i32
    %644 = arith.index_cast %643 : i32 to index
    %645 = memref.load %arg1[%644] : memref<512xi32, #tpu.memory_space<smem>>
    %646 = arith.index_cast %645 : i32 to index
    %c0_406 = arith.constant 0 : index
    %647 = vector.load %arg2[%646, %c0_406] : memref<50x32xf32, #tpu.memory_space<vmem>>, vector<1x32xf32>
    %c8_407 = arith.constant 8 : index
    %c7_408 = arith.constant 7 : index
    %c0_409 = arith.constant 0 : index
    %648 = vector.load %arg9[%c8_407, %c7_408, %c0_409] : memref<32x11x32xf32, #tpu.memory_space<vmem>>, vector<1x1x32xf32>
    %649 = vector.shape_cast %648 : vector<1x1x32xf32> to vector<1x32xf32>
    %650 = vector.shape_cast %647 : vector<1x32xf32> to vector<1x1x32xf32>
    tpu.vector_store %arg9[%c8_407, %c7_408, %c0_409], %650 {strides = array<i32>} : memref<32x11x32xf32, #tpu.memory_space<vmem>>, vector<1x1x32xf32>,
    %c72_i32 = arith.constant 72 : i32
    %651 = arith.addi %2, %c72_i32 : i32
    %c0_i32_410 = arith.constant 0 : i32
    %652 = arith.addi %651, %c0_i32_410 : i32
    %653 = arith.index_cast %652 : i32 to index
    %654 = memref.load %arg1[%653] : memref<512xi32, #tpu.memory_space<smem>>
    %655 = arith.index_cast %654 : i32 to index
    %c0_411 = arith.constant 0 : index
    %656 = vector.load %arg2[%655, %c0_411] : memref<50x32xf32, #tpu.memory_space<vmem>>, vector<1x32xf32>
    %c9 = arith.constant 9 : index
    %c0_412 = arith.constant 0 : index
    %c0_413 = arith.constant 0 : index
    %657 = vector.load %arg9[%c9, %c0_412, %c0_413] : memref<32x11x32xf32, #tpu.memory_space<vmem>>, vector<1x1x32xf32>
    %658 = vector.shape_cast %657 : vector<1x1x32xf32> to vector<1x32xf32>
    %659 = vector.shape_cast %656 : vector<1x32xf32> to vector<1x1x32xf32>
    tpu.vector_store %arg9[%c9, %c0_412, %c0_413], %659 {strides = array<i32>} : memref<32x11x32xf32, #tpu.memory_space<vmem>>, vector<1x1x32xf32>,
    %c72_i32_414 = arith.constant 72 : i32
    %660 = arith.addi %2, %c72_i32_414 : i32
    %c1_i32_415 = arith.constant 1 : i32
    %661 = arith.addi %660, %c1_i32_415 : i32
    %662 = arith.index_cast %661 : i32 to index
    %663 = memref.load %arg1[%662] : memref<512xi32, #tpu.memory_space<smem>>
    %664 = arith.index_cast %663 : i32 to index
    %c0_416 = arith.constant 0 : index
    %665 = vector.load %arg2[%664, %c0_416] : memref<50x32xf32, #tpu.memory_space<vmem>>, vector<1x32xf32>
    %c9_417 = arith.constant 9 : index
    %c1_418 = arith.constant 1 : index
    %c0_419 = arith.constant 0 : index
    %666 = vector.load %arg9[%c9_417, %c1_418, %c0_419] : memref<32x11x32xf32, #tpu.memory_space<vmem>>, vector<1x1x32xf32>
    %667 = vector.shape_cast %666 : vector<1x1x32xf32> to vector<1x32xf32>
    %668 = vector.shape_cast %665 : vector<1x32xf32> to vector<1x1x32xf32>
    tpu.vector_store %arg9[%c9_417, %c1_418, %c0_419], %668 {strides = array<i32>} : memref<32x11x32xf32, #tpu.memory_space<vmem>>, vector<1x1x32xf32>,
    %c72_i32_420 = arith.constant 72 : i32
    %669 = arith.addi %2, %c72_i32_420 : i32
    %c2_i32_421 = arith.constant 2 : i32
    %670 = arith.addi %669, %c2_i32_421 : i32
    %671 = arith.index_cast %670 : i32 to index
    %672 = memref.load %arg1[%671] : memref<512xi32, #tpu.memory_space<smem>>
    %673 = arith.index_cast %672 : i32 to index
    %c0_422 = arith.constant 0 : index
    %674 = vector.load %arg2[%673, %c0_422] : memref<50x32xf32, #tpu.memory_space<vmem>>, vector<1x32xf32>
    %c9_423 = arith.constant 9 : index
    %c2_424 = arith.constant 2 : index
    %c0_425 = arith.constant 0 : index
    %675 = vector.load %arg9[%c9_423, %c2_424, %c0_425] : memref<32x11x32xf32, #tpu.memory_space<vmem>>, vector<1x1x32xf32>
    %676 = vector.shape_cast %675 : vector<1x1x32xf32> to vector<1x32xf32>
    %677 = vector.shape_cast %674 : vector<1x32xf32> to vector<1x1x32xf32>
    tpu.vector_store %arg9[%c9_423, %c2_424, %c0_425], %677 {strides = array<i32>} : memref<32x11x32xf32, #tpu.memory_space<vmem>>, vector<1x1x32xf32>,
    %c72_i32_426 = arith.constant 72 : i32
    %678 = arith.addi %2, %c72_i32_426 : i32
    %c3_i32_427 = arith.constant 3 : i32
    %679 = arith.addi %678, %c3_i32_427 : i32
    %680 = arith.index_cast %679 : i32 to index
    %681 = memref.load %arg1[%680] : memref<512xi32, #tpu.memory_space<smem>>
    %682 = arith.index_cast %681 : i32 to index
    %c0_428 = arith.constant 0 : index
    %683 = vector.load %arg2[%682, %c0_428] : memref<50x32xf32, #tpu.memory_space<vmem>>, vector<1x32xf32>
    %c9_429 = arith.constant 9 : index
    %c3_430 = arith.constant 3 : index
    %c0_431 = arith.constant 0 : index
    %684 = vector.load %arg9[%c9_429, %c3_430, %c0_431] : memref<32x11x32xf32, #tpu.memory_space<vmem>>, vector<1x1x32xf32>
    %685 = vector.shape_cast %684 : vector<1x1x32xf32> to vector<1x32xf32>
    %686 = vector.shape_cast %683 : vector<1x32xf32> to vector<1x1x32xf32>
    tpu.vector_store %arg9[%c9_429, %c3_430, %c0_431], %686 {strides = array<i32>} : memref<32x11x32xf32, #tpu.memory_space<vmem>>, vector<1x1x32xf32>,
    %c72_i32_432 = arith.constant 72 : i32
    %687 = arith.addi %2, %c72_i32_432 : i32
    %c4_i32_433 = arith.constant 4 : i32
    %688 = arith.addi %687, %c4_i32_433 : i32
    %689 = arith.index_cast %688 : i32 to index
    %690 = memref.load %arg1[%689] : memref<512xi32, #tpu.memory_space<smem>>
    %691 = arith.index_cast %690 : i32 to index
    %c0_434 = arith.constant 0 : index
    %692 = vector.load %arg2[%691, %c0_434] : memref<50x32xf32, #tpu.memory_space<vmem>>, vector<1x32xf32>
    %c9_435 = arith.constant 9 : index
    %c4_436 = arith.constant 4 : index
    %c0_437 = arith.constant 0 : index
    %693 = vector.load %arg9[%c9_435, %c4_436, %c0_437] : memref<32x11x32xf32, #tpu.memory_space<vmem>>, vector<1x1x32xf32>
    %694 = vector.shape_cast %693 : vector<1x1x32xf32> to vector<1x32xf32>
    %695 = vector.shape_cast %692 : vector<1x32xf32> to vector<1x1x32xf32>
    tpu.vector_store %arg9[%c9_435, %c4_436, %c0_437], %695 {strides = array<i32>} : memref<32x11x32xf32, #tpu.memory_space<vmem>>, vector<1x1x32xf32>,
    %c72_i32_438 = arith.constant 72 : i32
    %696 = arith.addi %2, %c72_i32_438 : i32
    %c5_i32_439 = arith.constant 5 : i32
    %697 = arith.addi %696, %c5_i32_439 : i32
    %698 = arith.index_cast %697 : i32 to index
    %699 = memref.load %arg1[%698] : memref<512xi32, #tpu.memory_space<smem>>
    %700 = arith.index_cast %699 : i32 to index
    %c0_440 = arith.constant 0 : index
    %701 = vector.load %arg2[%700, %c0_440] : memref<50x32xf32, #tpu.memory_space<vmem>>, vector<1x32xf32>
    %c9_441 = arith.constant 9 : index
    %c5_442 = arith.constant 5 : index
    %c0_443 = arith.constant 0 : index
    %702 = vector.load %arg9[%c9_441, %c5_442, %c0_443] : memref<32x11x32xf32, #tpu.memory_space<vmem>>, vector<1x1x32xf32>
    %703 = vector.shape_cast %702 : vector<1x1x32xf32> to vector<1x32xf32>
    %704 = vector.shape_cast %701 : vector<1x32xf32> to vector<1x1x32xf32>
    tpu.vector_store %arg9[%c9_441, %c5_442, %c0_443], %704 {strides = array<i32>} : memref<32x11x32xf32, #tpu.memory_space<vmem>>, vector<1x1x32xf32>,
    %c72_i32_444 = arith.constant 72 : i32
    %705 = arith.addi %2, %c72_i32_444 : i32
    %c6_i32_445 = arith.constant 6 : i32
    %706 = arith.addi %705, %c6_i32_445 : i32
    %707 = arith.index_cast %706 : i32 to index
    %708 = memref.load %arg1[%707] : memref<512xi32, #tpu.memory_space<smem>>
    %709 = arith.index_cast %708 : i32 to index
    %c0_446 = arith.constant 0 : index
    %710 = vector.load %arg2[%709, %c0_446] : memref<50x32xf32, #tpu.memory_space<vmem>>, vector<1x32xf32>
    %c9_447 = arith.constant 9 : index
    %c6_448 = arith.constant 6 : index
    %c0_449 = arith.constant 0 : index
    %711 = vector.load %arg9[%c9_447, %c6_448, %c0_449] : memref<32x11x32xf32, #tpu.memory_space<vmem>>, vector<1x1x32xf32>
    %712 = vector.shape_cast %711 : vector<1x1x32xf32> to vector<1x32xf32>
    %713 = vector.shape_cast %710 : vector<1x32xf32> to vector<1x1x32xf32>
    tpu.vector_store %arg9[%c9_447, %c6_448, %c0_449], %713 {strides = array<i32>} : memref<32x11x32xf32, #tpu.memory_space<vmem>>, vector<1x1x32xf32>,
    %c72_i32_450 = arith.constant 72 : i32
    %714 = arith.addi %2, %c72_i32_450 : i32
    %c7_i32_451 = arith.constant 7 : i32
    %715 = arith.addi %714, %c7_i32_451 : i32
    %716 = arith.index_cast %715 : i32 to index
    %717 = memref.load %arg1[%716] : memref<512xi32, #tpu.memory_space<smem>>
    %718 = arith.index_cast %717 : i32 to index
    %c0_452 = arith.constant 0 : index
    %719 = vector.load %arg2[%718, %c0_452] : memref<50x32xf32, #tpu.memory_space<vmem>>, vector<1x32xf32>
    %c9_453 = arith.constant 9 : index
    %c7_454 = arith.constant 7 : index
    %c0_455 = arith.constant 0 : index
    %720 = vector.load %arg9[%c9_453, %c7_454, %c0_455] : memref<32x11x32xf32, #tpu.memory_space<vmem>>, vector<1x1x32xf32>
    %721 = vector.shape_cast %720 : vector<1x1x32xf32> to vector<1x32xf32>
    %722 = vector.shape_cast %719 : vector<1x32xf32> to vector<1x1x32xf32>
    tpu.vector_store %arg9[%c9_453, %c7_454, %c0_455], %722 {strides = array<i32>} : memref<32x11x32xf32, #tpu.memory_space<vmem>>, vector<1x1x32xf32>,
    %c80_i32 = arith.constant 80 : i32
    %723 = arith.addi %2, %c80_i32 : i32
    %c0_i32_456 = arith.constant 0 : i32
    %724 = arith.addi %723, %c0_i32_456 : i32
    %725 = arith.index_cast %724 : i32 to index
    %726 = memref.load %arg1[%725] : memref<512xi32, #tpu.memory_space<smem>>
    %727 = arith.index_cast %726 : i32 to index
    %c0_457 = arith.constant 0 : index
    %728 = vector.load %arg2[%727, %c0_457] : memref<50x32xf32, #tpu.memory_space<vmem>>, vector<1x32xf32>
    %c10 = arith.constant 10 : index
    %c0_458 = arith.constant 0 : index
    %c0_459 = arith.constant 0 : index
    %729 = vector.load %arg9[%c10, %c0_458, %c0_459] : memref<32x11x32xf32, #tpu.memory_space<vmem>>, vector<1x1x32xf32>
    %730 = vector.shape_cast %729 : vector<1x1x32xf32> to vector<1x32xf32>
    %731 = vector.shape_cast %728 : vector<1x32xf32> to vector<1x1x32xf32>
    tpu.vector_store %arg9[%c10, %c0_458, %c0_459], %731 {strides = array<i32>} : memref<32x11x32xf32, #tpu.memory_space<vmem>>, vector<1x1x32xf32>,
    %c80_i32_460 = arith.constant 80 : i32
    %732 = arith.addi %2, %c80_i32_460 : i32
    %c1_i32_461 = arith.constant 1 : i32
    %733 = arith.addi %732, %c1_i32_461 : i32
    %734 = arith.index_cast %733 : i32 to index
    %735 = memref.load %arg1[%734] : memref<512xi32, #tpu.memory_space<smem>>
    %736 = arith.index_cast %735 : i32 to index
    %c0_462 = arith.constant 0 : index
    %737 = vector.load %arg2[%736, %c0_462] : memref<50x32xf32, #tpu.memory_space<vmem>>, vector<1x32xf32>
    %c10_463 = arith.constant 10 : index
    %c1_464 = arith.constant 1 : index
    %c0_465 = arith.constant 0 : index
    %738 = vector.load %arg9[%c10_463, %c1_464, %c0_465] : memref<32x11x32xf32, #tpu.memory_space<vmem>>, vector<1x1x32xf32>
    %739 = vector.shape_cast %738 : vector<1x1x32xf32> to vector<1x32xf32>
    %740 = vector.shape_cast %737 : vector<1x32xf32> to vector<1x1x32xf32>
    tpu.vector_store %arg9[%c10_463, %c1_464, %c0_465], %740 {strides = array<i32>} : memref<32x11x32xf32, #tpu.memory_space<vmem>>, vector<1x1x32xf32>,
    %c80_i32_466 = arith.constant 80 : i32
    %741 = arith.addi %2, %c80_i32_466 : i32
    %c2_i32_467 = arith.constant 2 : i32
    %742 = arith.addi %741, %c2_i32_467 : i32
    %743 = arith.index_cast %742 : i32 to index
    %744 = memref.load %arg1[%743] : memref<512xi32, #tpu.memory_space<smem>>
    %745 = arith.index_cast %744 : i32 to index
    %c0_468 = arith.constant 0 : index
    %746 = vector.load %arg2[%745, %c0_468] : memref<50x32xf32, #tpu.memory_space<vmem>>, vector<1x32xf32>
    %c10_469 = arith.constant 10 : index
    %c2_470 = arith.constant 2 : index
    %c0_471 = arith.constant 0 : index
    %747 = vector.load %arg9[%c10_469, %c2_470, %c0_471] : memref<32x11x32xf32, #tpu.memory_space<vmem>>, vector<1x1x32xf32>
    %748 = vector.shape_cast %747 : vector<1x1x32xf32> to vector<1x32xf32>
    %749 = vector.shape_cast %746 : vector<1x32xf32> to vector<1x1x32xf32>
    tpu.vector_store %arg9[%c10_469, %c2_470, %c0_471], %749 {strides = array<i32>} : memref<32x11x32xf32, #tpu.memory_space<vmem>>, vector<1x1x32xf32>,
    %c80_i32_472 = arith.constant 80 : i32
    %750 = arith.addi %2, %c80_i32_472 : i32
    %c3_i32_473 = arith.constant 3 : i32
    %751 = arith.addi %750, %c3_i32_473 : i32
    %752 = arith.index_cast %751 : i32 to index
    %753 = memref.load %arg1[%752] : memref<512xi32, #tpu.memory_space<smem>>
    %754 = arith.index_cast %753 : i32 to index
    %c0_474 = arith.constant 0 : index
    %755 = vector.load %arg2[%754, %c0_474] : memref<50x32xf32, #tpu.memory_space<vmem>>, vector<1x32xf32>
    %c10_475 = arith.constant 10 : index
    %c3_476 = arith.constant 3 : index
    %c0_477 = arith.constant 0 : index
    %756 = vector.load %arg9[%c10_475, %c3_476, %c0_477] : memref<32x11x32xf32, #tpu.memory_space<vmem>>, vector<1x1x32xf32>
    %757 = vector.shape_cast %756 : vector<1x1x32xf32> to vector<1x32xf32>
    %758 = vector.shape_cast %755 : vector<1x32xf32> to vector<1x1x32xf32>
    tpu.vector_store %arg9[%c10_475, %c3_476, %c0_477], %758 {strides = array<i32>} : memref<32x11x32xf32, #tpu.memory_space<vmem>>, vector<1x1x32xf32>,
    %c80_i32_478 = arith.constant 80 : i32
    %759 = arith.addi %2, %c80_i32_478 : i32
    %c4_i32_479 = arith.constant 4 : i32
    %760 = arith.addi %759, %c4_i32_479 : i32
    %761 = arith.index_cast %760 : i32 to index
    %762 = memref.load %arg1[%761] : memref<512xi32, #tpu.memory_space<smem>>
    %763 = arith.index_cast %762 : i32 to index
    %c0_480 = arith.constant 0 : index
    %764 = vector.load %arg2[%763, %c0_480] : memref<50x32xf32, #tpu.memory_space<vmem>>, vector<1x32xf32>
    %c10_481 = arith.constant 10 : index
    %c4_482 = arith.constant 4 : index
    %c0_483 = arith.constant 0 : index
    %765 = vector.load %arg9[%c10_481, %c4_482, %c0_483] : memref<32x11x32xf32, #tpu.memory_space<vmem>>, vector<1x1x32xf32>
    %766 = vector.shape_cast %765 : vector<1x1x32xf32> to vector<1x32xf32>
    %767 = vector.shape_cast %764 : vector<1x32xf32> to vector<1x1x32xf32>
    tpu.vector_store %arg9[%c10_481, %c4_482, %c0_483], %767 {strides = array<i32>} : memref<32x11x32xf32, #tpu.memory_space<vmem>>, vector<1x1x32xf32>,
    %c80_i32_484 = arith.constant 80 : i32
    %768 = arith.addi %2, %c80_i32_484 : i32
    %c5_i32_485 = arith.constant 5 : i32
    %769 = arith.addi %768, %c5_i32_485 : i32
    %770 = arith.index_cast %769 : i32 to index
    %771 = memref.load %arg1[%770] : memref<512xi32, #tpu.memory_space<smem>>
    %772 = arith.index_cast %771 : i32 to index
    %c0_486 = arith.constant 0 : index
    %773 = vector.load %arg2[%772, %c0_486] : memref<50x32xf32, #tpu.memory_space<vmem>>, vector<1x32xf32>
    %c10_487 = arith.constant 10 : index
    %c5_488 = arith.constant 5 : index
    %c0_489 = arith.constant 0 : index
    %774 = vector.load %arg9[%c10_487, %c5_488, %c0_489] : memref<32x11x32xf32, #tpu.memory_space<vmem>>, vector<1x1x32xf32>
    %775 = vector.shape_cast %774 : vector<1x1x32xf32> to vector<1x32xf32>
    %776 = vector.shape_cast %773 : vector<1x32xf32> to vector<1x1x32xf32>
    tpu.vector_store %arg9[%c10_487, %c5_488, %c0_489], %776 {strides = array<i32>} : memref<32x11x32xf32, #tpu.memory_space<vmem>>, vector<1x1x32xf32>,
    %c80_i32_490 = arith.constant 80 : i32
    %777 = arith.addi %2, %c80_i32_490 : i32
    %c6_i32_491 = arith.constant 6 : i32
    %778 = arith.addi %777, %c6_i32_491 : i32
    %779 = arith.index_cast %778 : i32 to index
    %780 = memref.load %arg1[%779] : memref<512xi32, #tpu.memory_space<smem>>
    %781 = arith.index_cast %780 : i32 to index
    %c0_492 = arith.constant 0 : index
    %782 = vector.load %arg2[%781, %c0_492] : memref<50x32xf32, #tpu.memory_space<vmem>>, vector<1x32xf32>
    %c10_493 = arith.constant 10 : index
    %c6_494 = arith.constant 6 : index
    %c0_495 = arith.constant 0 : index
    %783 = vector.load %arg9[%c10_493, %c6_494, %c0_495] : memref<32x11x32xf32, #tpu.memory_space<vmem>>, vector<1x1x32xf32>
    %784 = vector.shape_cast %783 : vector<1x1x32xf32> to vector<1x32xf32>
    %785 = vector.shape_cast %782 : vector<1x32xf32> to vector<1x1x32xf32>
    tpu.vector_store %arg9[%c10_493, %c6_494, %c0_495], %785 {strides = array<i32>} : memref<32x11x32xf32, #tpu.memory_space<vmem>>, vector<1x1x32xf32>,
    %c80_i32_496 = arith.constant 80 : i32
    %786 = arith.addi %2, %c80_i32_496 : i32
    %c7_i32_497 = arith.constant 7 : i32
    %787 = arith.addi %786, %c7_i32_497 : i32
    %788 = arith.index_cast %787 : i32 to index
    %789 = memref.load %arg1[%788] : memref<512xi32, #tpu.memory_space<smem>>
    %790 = arith.index_cast %789 : i32 to index
    %c0_498 = arith.constant 0 : index
    %791 = vector.load %arg2[%790, %c0_498] : memref<50x32xf32, #tpu.memory_space<vmem>>, vector<1x32xf32>
    %c10_499 = arith.constant 10 : index
    %c7_500 = arith.constant 7 : index
    %c0_501 = arith.constant 0 : index
    %792 = vector.load %arg9[%c10_499, %c7_500, %c0_501] : memref<32x11x32xf32, #tpu.memory_space<vmem>>, vector<1x1x32xf32>
    %793 = vector.shape_cast %792 : vector<1x1x32xf32> to vector<1x32xf32>
    %794 = vector.shape_cast %791 : vector<1x32xf32> to vector<1x1x32xf32>
    tpu.vector_store %arg9[%c10_499, %c7_500, %c0_501], %794 {strides = array<i32>} : memref<32x11x32xf32, #tpu.memory_space<vmem>>, vector<1x1x32xf32>,
    %c88_i32 = arith.constant 88 : i32
    %795 = arith.addi %2, %c88_i32 : i32
    %c0_i32_502 = arith.constant 0 : i32
    %796 = arith.addi %795, %c0_i32_502 : i32
    %797 = arith.index_cast %796 : i32 to index
    %798 = memref.load %arg1[%797] : memref<512xi32, #tpu.memory_space<smem>>
    %799 = arith.index_cast %798 : i32 to index
    %c0_503 = arith.constant 0 : index
    %800 = vector.load %arg2[%799, %c0_503] : memref<50x32xf32, #tpu.memory_space<vmem>>, vector<1x32xf32>
    %c11 = arith.constant 11 : index
    %c0_504 = arith.constant 0 : index
    %c0_505 = arith.constant 0 : index
    %801 = vector.load %arg9[%c11, %c0_504, %c0_505] : memref<32x11x32xf32, #tpu.memory_space<vmem>>, vector<1x1x32xf32>
    %802 = vector.shape_cast %801 : vector<1x1x32xf32> to vector<1x32xf32>
    %803 = vector.shape_cast %800 : vector<1x32xf32> to vector<1x1x32xf32>
    tpu.vector_store %arg9[%c11, %c0_504, %c0_505], %803 {strides = array<i32>} : memref<32x11x32xf32, #tpu.memory_space<vmem>>, vector<1x1x32xf32>,
    %c88_i32_506 = arith.constant 88 : i32
    %804 = arith.addi %2, %c88_i32_506 : i32
    %c1_i32_507 = arith.constant 1 : i32
    %805 = arith.addi %804, %c1_i32_507 : i32
    %806 = arith.index_cast %805 : i32 to index
    %807 = memref.load %arg1[%806] : memref<512xi32, #tpu.memory_space<smem>>
    %808 = arith.index_cast %807 : i32 to index
    %c0_508 = arith.constant 0 : index
    %809 = vector.load %arg2[%808, %c0_508] : memref<50x32xf32, #tpu.memory_space<vmem>>, vector<1x32xf32>
    %c11_509 = arith.constant 11 : index
    %c1_510 = arith.constant 1 : index
    %c0_511 = arith.constant 0 : index
    %810 = vector.load %arg9[%c11_509, %c1_510, %c0_511] : memref<32x11x32xf32, #tpu.memory_space<vmem>>, vector<1x1x32xf32>
    %811 = vector.shape_cast %810 : vector<1x1x32xf32> to vector<1x32xf32>
    %812 = vector.shape_cast %809 : vector<1x32xf32> to vector<1x1x32xf32>
    tpu.vector_store %arg9[%c11_509, %c1_510, %c0_511], %812 {strides = array<i32>} : memref<32x11x32xf32, #tpu.memory_space<vmem>>, vector<1x1x32xf32>,
    %c88_i32_512 = arith.constant 88 : i32
    %813 = arith.addi %2, %c88_i32_512 : i32
    %c2_i32_513 = arith.constant 2 : i32
    %814 = arith.addi %813, %c2_i32_513 : i32
    %815 = arith.index_cast %814 : i32 to index
    %816 = memref.load %arg1[%815] : memref<512xi32, #tpu.memory_space<smem>>
    %817 = arith.index_cast %816 : i32 to index
    %c0_514 = arith.constant 0 : index
    %818 = vector.load %arg2[%817, %c0_514] : memref<50x32xf32, #tpu.memory_space<vmem>>, vector<1x32xf32>
    %c11_515 = arith.constant 11 : index
    %c2_516 = arith.constant 2 : index
    %c0_517 = arith.constant 0 : index
    %819 = vector.load %arg9[%c11_515, %c2_516, %c0_517] : memref<32x11x32xf32, #tpu.memory_space<vmem>>, vector<1x1x32xf32>
    %820 = vector.shape_cast %819 : vector<1x1x32xf32> to vector<1x32xf32>
    %821 = vector.shape_cast %818 : vector<1x32xf32> to vector<1x1x32xf32>
    tpu.vector_store %arg9[%c11_515, %c2_516, %c0_517], %821 {strides = array<i32>} : memref<32x11x32xf32, #tpu.memory_space<vmem>>, vector<1x1x32xf32>,
    %c88_i32_518 = arith.constant 88 : i32
    %822 = arith.addi %2, %c88_i32_518 : i32
    %c3_i32_519 = arith.constant 3 : i32
    %823 = arith.addi %822, %c3_i32_519 : i32
    %824 = arith.index_cast %823 : i32 to index
    %825 = memref.load %arg1[%824] : memref<512xi32, #tpu.memory_space<smem>>
    %826 = arith.index_cast %825 : i32 to index
    %c0_520 = arith.constant 0 : index
    %827 = vector.load %arg2[%826, %c0_520] : memref<50x32xf32, #tpu.memory_space<vmem>>, vector<1x32xf32>
    %c11_521 = arith.constant 11 : index
    %c3_522 = arith.constant 3 : index
    %c0_523 = arith.constant 0 : index
    %828 = vector.load %arg9[%c11_521, %c3_522, %c0_523] : memref<32x11x32xf32, #tpu.memory_space<vmem>>, vector<1x1x32xf32>
    %829 = vector.shape_cast %828 : vector<1x1x32xf32> to vector<1x32xf32>
    %830 = vector.shape_cast %827 : vector<1x32xf32> to vector<1x1x32xf32>
    tpu.vector_store %arg9[%c11_521, %c3_522, %c0_523], %830 {strides = array<i32>} : memref<32x11x32xf32, #tpu.memory_space<vmem>>, vector<1x1x32xf32>,
    %c88_i32_524 = arith.constant 88 : i32
    %831 = arith.addi %2, %c88_i32_524 : i32
    %c4_i32_525 = arith.constant 4 : i32
    %832 = arith.addi %831, %c4_i32_525 : i32
    %833 = arith.index_cast %832 : i32 to index
    %834 = memref.load %arg1[%833] : memref<512xi32, #tpu.memory_space<smem>>
    %835 = arith.index_cast %834 : i32 to index
    %c0_526 = arith.constant 0 : index
    %836 = vector.load %arg2[%835, %c0_526] : memref<50x32xf32, #tpu.memory_space<vmem>>, vector<1x32xf32>
    %c11_527 = arith.constant 11 : index
    %c4_528 = arith.constant 4 : index
    %c0_529 = arith.constant 0 : index
    %837 = vector.load %arg9[%c11_527, %c4_528, %c0_529] : memref<32x11x32xf32, #tpu.memory_space<vmem>>, vector<1x1x32xf32>
    %838 = vector.shape_cast %837 : vector<1x1x32xf32> to vector<1x32xf32>
    %839 = vector.shape_cast %836 : vector<1x32xf32> to vector<1x1x32xf32>
    tpu.vector_store %arg9[%c11_527, %c4_528, %c0_529], %839 {strides = array<i32>} : memref<32x11x32xf32, #tpu.memory_space<vmem>>, vector<1x1x32xf32>,
    %c88_i32_530 = arith.constant 88 : i32
    %840 = arith.addi %2, %c88_i32_530 : i32
    %c5_i32_531 = arith.constant 5 : i32
    %841 = arith.addi %840, %c5_i32_531 : i32
    %842 = arith.index_cast %841 : i32 to index
    %843 = memref.load %arg1[%842] : memref<512xi32, #tpu.memory_space<smem>>
    %844 = arith.index_cast %843 : i32 to index
    %c0_532 = arith.constant 0 : index
    %845 = vector.load %arg2[%844, %c0_532] : memref<50x32xf32, #tpu.memory_space<vmem>>, vector<1x32xf32>
    %c11_533 = arith.constant 11 : index
    %c5_534 = arith.constant 5 : index
    %c0_535 = arith.constant 0 : index
    %846 = vector.load %arg9[%c11_533, %c5_534, %c0_535] : memref<32x11x32xf32, #tpu.memory_space<vmem>>, vector<1x1x32xf32>
    %847 = vector.shape_cast %846 : vector<1x1x32xf32> to vector<1x32xf32>
    %848 = vector.shape_cast %845 : vector<1x32xf32> to vector<1x1x32xf32>
    tpu.vector_store %arg9[%c11_533, %c5_534, %c0_535], %848 {strides = array<i32>} : memref<32x11x32xf32, #tpu.memory_space<vmem>>, vector<1x1x32xf32>,
    %c88_i32_536 = arith.constant 88 : i32
    %849 = arith.addi %2, %c88_i32_536 : i32
    %c6_i32_537 = arith.constant 6 : i32
    %850 = arith.addi %849, %c6_i32_537 : i32
    %851 = arith.index_cast %850 : i32 to index
    %852 = memref.load %arg1[%851] : memref<512xi32, #tpu.memory_space<smem>>
    %853 = arith.index_cast %852 : i32 to index
    %c0_538 = arith.constant 0 : index
    %854 = vector.load %arg2[%853, %c0_538] : memref<50x32xf32, #tpu.memory_space<vmem>>, vector<1x32xf32>
    %c11_539 = arith.constant 11 : index
    %c6_540 = arith.constant 6 : index
    %c0_541 = arith.constant 0 : index
    %855 = vector.load %arg9[%c11_539, %c6_540, %c0_541] : memref<32x11x32xf32, #tpu.memory_space<vmem>>, vector<1x1x32xf32>
    %856 = vector.shape_cast %855 : vector<1x1x32xf32> to vector<1x32xf32>
    %857 = vector.shape_cast %854 : vector<1x32xf32> to vector<1x1x32xf32>
    tpu.vector_store %arg9[%c11_539, %c6_540, %c0_541], %857 {strides = array<i32>} : memref<32x11x32xf32, #tpu.memory_space<vmem>>, vector<1x1x32xf32>,
    %c88_i32_542 = arith.constant 88 : i32
    %858 = arith.addi %2, %c88_i32_542 : i32
    %c7_i32_543 = arith.constant 7 : i32
    %859 = arith.addi %858, %c7_i32_543 : i32
    %860 = arith.index_cast %859 : i32 to index
    %861 = memref.load %arg1[%860] : memref<512xi32, #tpu.memory_space<smem>>
    %862 = arith.index_cast %861 : i32 to index
    %c0_544 = arith.constant 0 : index
    %863 = vector.load %arg2[%862, %c0_544] : memref<50x32xf32, #tpu.memory_space<vmem>>, vector<1x32xf32>
    %c11_545 = arith.constant 11 : index
    %c7_546 = arith.constant 7 : index
    %c0_547 = arith.constant 0 : index
    %864 = vector.load %arg9[%c11_545, %c7_546, %c0_547] : memref<32x11x32xf32, #tpu.memory_space<vmem>>, vector<1x1x32xf32>
    %865 = vector.shape_cast %864 : vector<1x1x32xf32> to vector<1x32xf32>
    %866 = vector.shape_cast %863 : vector<1x32xf32> to vector<1x1x32xf32>
    tpu.vector_store %arg9[%c11_545, %c7_546, %c0_547], %866 {strides = array<i32>} : memref<32x11x32xf32, #tpu.memory_space<vmem>>, vector<1x1x32xf32>,
    %c96_i32 = arith.constant 96 : i32
    %867 = arith.addi %2, %c96_i32 : i32
    %c0_i32_548 = arith.constant 0 : i32
    %868 = arith.addi %867, %c0_i32_548 : i32
    %869 = arith.index_cast %868 : i32 to index
    %870 = memref.load %arg1[%869] : memref<512xi32, #tpu.memory_space<smem>>
    %871 = arith.index_cast %870 : i32 to index
    %c0_549 = arith.constant 0 : index
    %872 = vector.load %arg2[%871, %c0_549] : memref<50x32xf32, #tpu.memory_space<vmem>>, vector<1x32xf32>
    %c12 = arith.constant 12 : index
    %c0_550 = arith.constant 0 : index
    %c0_551 = arith.constant 0 : index
    %873 = vector.load %arg9[%c12, %c0_550, %c0_551] : memref<32x11x32xf32, #tpu.memory_space<vmem>>, vector<1x1x32xf32>
    %874 = vector.shape_cast %873 : vector<1x1x32xf32> to vector<1x32xf32>
    %875 = vector.shape_cast %872 : vector<1x32xf32> to vector<1x1x32xf32>
    tpu.vector_store %arg9[%c12, %c0_550, %c0_551], %875 {strides = array<i32>} : memref<32x11x32xf32, #tpu.memory_space<vmem>>, vector<1x1x32xf32>,
    %c96_i32_552 = arith.constant 96 : i32
    %876 = arith.addi %2, %c96_i32_552 : i32
    %c1_i32_553 = arith.constant 1 : i32
    %877 = arith.addi %876, %c1_i32_553 : i32
    %878 = arith.index_cast %877 : i32 to index
    %879 = memref.load %arg1[%878] : memref<512xi32, #tpu.memory_space<smem>>
    %880 = arith.index_cast %879 : i32 to index
    %c0_554 = arith.constant 0 : index
    %881 = vector.load %arg2[%880, %c0_554] : memref<50x32xf32, #tpu.memory_space<vmem>>, vector<1x32xf32>
    %c12_555 = arith.constant 12 : index
    %c1_556 = arith.constant 1 : index
    %c0_557 = arith.constant 0 : index
    %882 = vector.load %arg9[%c12_555, %c1_556, %c0_557] : memref<32x11x32xf32, #tpu.memory_space<vmem>>, vector<1x1x32xf32>
    %883 = vector.shape_cast %882 : vector<1x1x32xf32> to vector<1x32xf32>
    %884 = vector.shape_cast %881 : vector<1x32xf32> to vector<1x1x32xf32>
    tpu.vector_store %arg9[%c12_555, %c1_556, %c0_557], %884 {strides = array<i32>} : memref<32x11x32xf32, #tpu.memory_space<vmem>>, vector<1x1x32xf32>,
    %c96_i32_558 = arith.constant 96 : i32
    %885 = arith.addi %2, %c96_i32_558 : i32
    %c2_i32_559 = arith.constant 2 : i32
    %886 = arith.addi %885, %c2_i32_559 : i32
    %887 = arith.index_cast %886 : i32 to index
    %888 = memref.load %arg1[%887] : memref<512xi32, #tpu.memory_space<smem>>
    %889 = arith.index_cast %888 : i32 to index
    %c0_560 = arith.constant 0 : index
    %890 = vector.load %arg2[%889, %c0_560] : memref<50x32xf32, #tpu.memory_space<vmem>>, vector<1x32xf32>
    %c12_561 = arith.constant 12 : index
    %c2_562 = arith.constant 2 : index
    %c0_563 = arith.constant 0 : index
    %891 = vector.load %arg9[%c12_561, %c2_562, %c0_563] : memref<32x11x32xf32, #tpu.memory_space<vmem>>, vector<1x1x32xf32>
    %892 = vector.shape_cast %891 : vector<1x1x32xf32> to vector<1x32xf32>
    %893 = vector.shape_cast %890 : vector<1x32xf32> to vector<1x1x32xf32>
    tpu.vector_store %arg9[%c12_561, %c2_562, %c0_563], %893 {strides = array<i32>} : memref<32x11x32xf32, #tpu.memory_space<vmem>>, vector<1x1x32xf32>,
    %c96_i32_564 = arith.constant 96 : i32
    %894 = arith.addi %2, %c96_i32_564 : i32
    %c3_i32_565 = arith.constant 3 : i32
    %895 = arith.addi %894, %c3_i32_565 : i32
    %896 = arith.index_cast %895 : i32 to index
    %897 = memref.load %arg1[%896] : memref<512xi32, #tpu.memory_space<smem>>
    %898 = arith.index_cast %897 : i32 to index
    %c0_566 = arith.constant 0 : index
    %899 = vector.load %arg2[%898, %c0_566] : memref<50x32xf32, #tpu.memory_space<vmem>>, vector<1x32xf32>
    %c12_567 = arith.constant 12 : index
    %c3_568 = arith.constant 3 : index
    %c0_569 = arith.constant 0 : index
    %900 = vector.load %arg9[%c12_567, %c3_568, %c0_569] : memref<32x11x32xf32, #tpu.memory_space<vmem>>, vector<1x1x32xf32>
    %901 = vector.shape_cast %900 : vector<1x1x32xf32> to vector<1x32xf32>
    %902 = vector.shape_cast %899 : vector<1x32xf32> to vector<1x1x32xf32>
    tpu.vector_store %arg9[%c12_567, %c3_568, %c0_569], %902 {strides = array<i32>} : memref<32x11x32xf32, #tpu.memory_space<vmem>>, vector<1x1x32xf32>,
    %c96_i32_570 = arith.constant 96 : i32
    %903 = arith.addi %2, %c96_i32_570 : i32
    %c4_i32_571 = arith.constant 4 : i32
    %904 = arith.addi %903, %c4_i32_571 : i32
    %905 = arith.index_cast %904 : i32 to index
    %906 = memref.load %arg1[%905] : memref<512xi32, #tpu.memory_space<smem>>
    %907 = arith.index_cast %906 : i32 to index
    %c0_572 = arith.constant 0 : index
    %908 = vector.load %arg2[%907, %c0_572] : memref<50x32xf32, #tpu.memory_space<vmem>>, vector<1x32xf32>
    %c12_573 = arith.constant 12 : index
    %c4_574 = arith.constant 4 : index
    %c0_575 = arith.constant 0 : index
    %909 = vector.load %arg9[%c12_573, %c4_574, %c0_575] : memref<32x11x32xf32, #tpu.memory_space<vmem>>, vector<1x1x32xf32>
    %910 = vector.shape_cast %909 : vector<1x1x32xf32> to vector<1x32xf32>
    %911 = vector.shape_cast %908 : vector<1x32xf32> to vector<1x1x32xf32>
    tpu.vector_store %arg9[%c12_573, %c4_574, %c0_575], %911 {strides = array<i32>} : memref<32x11x32xf32, #tpu.memory_space<vmem>>, vector<1x1x32xf32>,
    %c96_i32_576 = arith.constant 96 : i32
    %912 = arith.addi %2, %c96_i32_576 : i32
    %c5_i32_577 = arith.constant 5 : i32
    %913 = arith.addi %912, %c5_i32_577 : i32
    %914 = arith.index_cast %913 : i32 to index
    %915 = memref.load %arg1[%914] : memref<512xi32, #tpu.memory_space<smem>>
    %916 = arith.index_cast %915 : i32 to index
    %c0_578 = arith.constant 0 : index
    %917 = vector.load %arg2[%916, %c0_578] : memref<50x32xf32, #tpu.memory_space<vmem>>, vector<1x32xf32>
    %c12_579 = arith.constant 12 : index
    %c5_580 = arith.constant 5 : index
    %c0_581 = arith.constant 0 : index
    %918 = vector.load %arg9[%c12_579, %c5_580, %c0_581] : memref<32x11x32xf32, #tpu.memory_space<vmem>>, vector<1x1x32xf32>
    %919 = vector.shape_cast %918 : vector<1x1x32xf32> to vector<1x32xf32>
    %920 = vector.shape_cast %917 : vector<1x32xf32> to vector<1x1x32xf32>
    tpu.vector_store %arg9[%c12_579, %c5_580, %c0_581], %920 {strides = array<i32>} : memref<32x11x32xf32, #tpu.memory_space<vmem>>, vector<1x1x32xf32>,
    %c96_i32_582 = arith.constant 96 : i32
    %921 = arith.addi %2, %c96_i32_582 : i32
    %c6_i32_583 = arith.constant 6 : i32
    %922 = arith.addi %921, %c6_i32_583 : i32
    %923 = arith.index_cast %922 : i32 to index
    %924 = memref.load %arg1[%923] : memref<512xi32, #tpu.memory_space<smem>>
    %925 = arith.index_cast %924 : i32 to index
    %c0_584 = arith.constant 0 : index
    %926 = vector.load %arg2[%925, %c0_584] : memref<50x32xf32, #tpu.memory_space<vmem>>, vector<1x32xf32>
    %c12_585 = arith.constant 12 : index
    %c6_586 = arith.constant 6 : index
    %c0_587 = arith.constant 0 : index
    %927 = vector.load %arg9[%c12_585, %c6_586, %c0_587] : memref<32x11x32xf32, #tpu.memory_space<vmem>>, vector<1x1x32xf32>
    %928 = vector.shape_cast %927 : vector<1x1x32xf32> to vector<1x32xf32>
    %929 = vector.shape_cast %926 : vector<1x32xf32> to vector<1x1x32xf32>
    tpu.vector_store %arg9[%c12_585, %c6_586, %c0_587], %929 {strides = array<i32>} : memref<32x11x32xf32, #tpu.memory_space<vmem>>, vector<1x1x32xf32>,
    %c96_i32_588 = arith.constant 96 : i32
    %930 = arith.addi %2, %c96_i32_588 : i32
    %c7_i32_589 = arith.constant 7 : i32
    %931 = arith.addi %930, %c7_i32_589 : i32
    %932 = arith.index_cast %931 : i32 to index
    %933 = memref.load %arg1[%932] : memref<512xi32, #tpu.memory_space<smem>>
    %934 = arith.index_cast %933 : i32 to index
    %c0_590 = arith.constant 0 : index
    %935 = vector.load %arg2[%934, %c0_590] : memref<50x32xf32, #tpu.memory_space<vmem>>, vector<1x32xf32>
    %c12_591 = arith.constant 12 : index
    %c7_592 = arith.constant 7 : index
    %c0_593 = arith.constant 0 : index
    %936 = vector.load %arg9[%c12_591, %c7_592, %c0_593] : memref<32x11x32xf32, #tpu.memory_space<vmem>>, vector<1x1x32xf32>
    %937 = vector.shape_cast %936 : vector<1x1x32xf32> to vector<1x32xf32>
    %938 = vector.shape_cast %935 : vector<1x32xf32> to vector<1x1x32xf32>
    tpu.vector_store %arg9[%c12_591, %c7_592, %c0_593], %938 {strides = array<i32>} : memref<32x11x32xf32, #tpu.memory_space<vmem>>, vector<1x1x32xf32>,
    %c104_i32 = arith.constant 104 : i32
    %939 = arith.addi %2, %c104_i32 : i32
    %c0_i32_594 = arith.constant 0 : i32
    %940 = arith.addi %939, %c0_i32_594 : i32
    %941 = arith.index_cast %940 : i32 to index
    %942 = memref.load %arg1[%941] : memref<512xi32, #tpu.memory_space<smem>>
    %943 = arith.index_cast %942 : i32 to index
    %c0_595 = arith.constant 0 : index
    %944 = vector.load %arg2[%943, %c0_595] : memref<50x32xf32, #tpu.memory_space<vmem>>, vector<1x32xf32>
    %c13 = arith.constant 13 : index
    %c0_596 = arith.constant 0 : index
    %c0_597 = arith.constant 0 : index
    %945 = vector.load %arg9[%c13, %c0_596, %c0_597] : memref<32x11x32xf32, #tpu.memory_space<vmem>>, vector<1x1x32xf32>
    %946 = vector.shape_cast %945 : vector<1x1x32xf32> to vector<1x32xf32>
    %947 = vector.shape_cast %944 : vector<1x32xf32> to vector<1x1x32xf32>
    tpu.vector_store %arg9[%c13, %c0_596, %c0_597], %947 {strides = array<i32>} : memref<32x11x32xf32, #tpu.memory_space<vmem>>, vector<1x1x32xf32>,
    %c104_i32_598 = arith.constant 104 : i32
    %948 = arith.addi %2, %c104_i32_598 : i32
    %c1_i32_599 = arith.constant 1 : i32
    %949 = arith.addi %948, %c1_i32_599 : i32
    %950 = arith.index_cast %949 : i32 to index
    %951 = memref.load %arg1[%950] : memref<512xi32, #tpu.memory_space<smem>>
    %952 = arith.index_cast %951 : i32 to index
    %c0_600 = arith.constant 0 : index
    %953 = vector.load %arg2[%952, %c0_600] : memref<50x32xf32, #tpu.memory_space<vmem>>, vector<1x32xf32>
    %c13_601 = arith.constant 13 : index
    %c1_602 = arith.constant 1 : index
    %c0_603 = arith.constant 0 : index
    %954 = vector.load %arg9[%c13_601, %c1_602, %c0_603] : memref<32x11x32xf32, #tpu.memory_space<vmem>>, vector<1x1x32xf32>
    %955 = vector.shape_cast %954 : vector<1x1x32xf32> to vector<1x32xf32>
    %956 = vector.shape_cast %953 : vector<1x32xf32> to vector<1x1x32xf32>
    tpu.vector_store %arg9[%c13_601, %c1_602, %c0_603], %956 {strides = array<i32>} : memref<32x11x32xf32, #tpu.memory_space<vmem>>, vector<1x1x32xf32>,
    %c104_i32_604 = arith.constant 104 : i32
    %957 = arith.addi %2, %c104_i32_604 : i32
    %c2_i32_605 = arith.constant 2 : i32
    %958 = arith.addi %957, %c2_i32_605 : i32
    %959 = arith.index_cast %958 : i32 to index
    %960 = memref.load %arg1[%959] : memref<512xi32, #tpu.memory_space<smem>>
    %961 = arith.index_cast %960 : i32 to index
    %c0_606 = arith.constant 0 : index
    %962 = vector.load %arg2[%961, %c0_606] : memref<50x32xf32, #tpu.memory_space<vmem>>, vector<1x32xf32>
    %c13_607 = arith.constant 13 : index
    %c2_608 = arith.constant 2 : index
    %c0_609 = arith.constant 0 : index
    %963 = vector.load %arg9[%c13_607, %c2_608, %c0_609] : memref<32x11x32xf32, #tpu.memory_space<vmem>>, vector<1x1x32xf32>
    %964 = vector.shape_cast %963 : vector<1x1x32xf32> to vector<1x32xf32>
    %965 = vector.shape_cast %962 : vector<1x32xf32> to vector<1x1x32xf32>
    tpu.vector_store %arg9[%c13_607, %c2_608, %c0_609], %965 {strides = array<i32>} : memref<32x11x32xf32, #tpu.memory_space<vmem>>, vector<1x1x32xf32>,
    %c104_i32_610 = arith.constant 104 : i32
    %966 = arith.addi %2, %c104_i32_610 : i32
    %c3_i32_611 = arith.constant 3 : i32
    %967 = arith.addi %966, %c3_i32_611 : i32
    %968 = arith.index_cast %967 : i32 to index
    %969 = memref.load %arg1[%968] : memref<512xi32, #tpu.memory_space<smem>>
    %970 = arith.index_cast %969 : i32 to index
    %c0_612 = arith.constant 0 : index
    %971 = vector.load %arg2[%970, %c0_612] : memref<50x32xf32, #tpu.memory_space<vmem>>, vector<1x32xf32>
    %c13_613 = arith.constant 13 : index
    %c3_614 = arith.constant 3 : index
    %c0_615 = arith.constant 0 : index
    %972 = vector.load %arg9[%c13_613, %c3_614, %c0_615] : memref<32x11x32xf32, #tpu.memory_space<vmem>>, vector<1x1x32xf32>
    %973 = vector.shape_cast %972 : vector<1x1x32xf32> to vector<1x32xf32>
    %974 = vector.shape_cast %971 : vector<1x32xf32> to vector<1x1x32xf32>
    tpu.vector_store %arg9[%c13_613, %c3_614, %c0_615], %974 {strides = array<i32>} : memref<32x11x32xf32, #tpu.memory_space<vmem>>, vector<1x1x32xf32>,
    %c104_i32_616 = arith.constant 104 : i32
    %975 = arith.addi %2, %c104_i32_616 : i32
    %c4_i32_617 = arith.constant 4 : i32
    %976 = arith.addi %975, %c4_i32_617 : i32
    %977 = arith.index_cast %976 : i32 to index
    %978 = memref.load %arg1[%977] : memref<512xi32, #tpu.memory_space<smem>>
    %979 = arith.index_cast %978 : i32 to index
    %c0_618 = arith.constant 0 : index
    %980 = vector.load %arg2[%979, %c0_618] : memref<50x32xf32, #tpu.memory_space<vmem>>, vector<1x32xf32>
    %c13_619 = arith.constant 13 : index
    %c4_620 = arith.constant 4 : index
    %c0_621 = arith.constant 0 : index
    %981 = vector.load %arg9[%c13_619, %c4_620, %c0_621] : memref<32x11x32xf32, #tpu.memory_space<vmem>>, vector<1x1x32xf32>
    %982 = vector.shape_cast %981 : vector<1x1x32xf32> to vector<1x32xf32>
    %983 = vector.shape_cast %980 : vector<1x32xf32> to vector<1x1x32xf32>
    tpu.vector_store %arg9[%c13_619, %c4_620, %c0_621], %983 {strides = array<i32>} : memref<32x11x32xf32, #tpu.memory_space<vmem>>, vector<1x1x32xf32>,
    %c104_i32_622 = arith.constant 104 : i32
    %984 = arith.addi %2, %c104_i32_622 : i32
    %c5_i32_623 = arith.constant 5 : i32
    %985 = arith.addi %984, %c5_i32_623 : i32
    %986 = arith.index_cast %985 : i32 to index
    %987 = memref.load %arg1[%986] : memref<512xi32, #tpu.memory_space<smem>>
    %988 = arith.index_cast %987 : i32 to index
    %c0_624 = arith.constant 0 : index
    %989 = vector.load %arg2[%988, %c0_624] : memref<50x32xf32, #tpu.memory_space<vmem>>, vector<1x32xf32>
    %c13_625 = arith.constant 13 : index
    %c5_626 = arith.constant 5 : index
    %c0_627 = arith.constant 0 : index
    %990 = vector.load %arg9[%c13_625, %c5_626, %c0_627] : memref<32x11x32xf32, #tpu.memory_space<vmem>>, vector<1x1x32xf32>
    %991 = vector.shape_cast %990 : vector<1x1x32xf32> to vector<1x32xf32>
    %992 = vector.shape_cast %989 : vector<1x32xf32> to vector<1x1x32xf32>
    tpu.vector_store %arg9[%c13_625, %c5_626, %c0_627], %992 {strides = array<i32>} : memref<32x11x32xf32, #tpu.memory_space<vmem>>, vector<1x1x32xf32>,
    %c104_i32_628 = arith.constant 104 : i32
    %993 = arith.addi %2, %c104_i32_628 : i32
    %c6_i32_629 = arith.constant 6 : i32
    %994 = arith.addi %993, %c6_i32_629 : i32
    %995 = arith.index_cast %994 : i32 to index
    %996 = memref.load %arg1[%995] : memref<512xi32, #tpu.memory_space<smem>>
    %997 = arith.index_cast %996 : i32 to index
    %c0_630 = arith.constant 0 : index
    %998 = vector.load %arg2[%997, %c0_630] : memref<50x32xf32, #tpu.memory_space<vmem>>, vector<1x32xf32>
    %c13_631 = arith.constant 13 : index
    %c6_632 = arith.constant 6 : index
    %c0_633 = arith.constant 0 : index
    %999 = vector.load %arg9[%c13_631, %c6_632, %c0_633] : memref<32x11x32xf32, #tpu.memory_space<vmem>>, vector<1x1x32xf32>
    %1000 = vector.shape_cast %999 : vector<1x1x32xf32> to vector<1x32xf32>
    %1001 = vector.shape_cast %998 : vector<1x32xf32> to vector<1x1x32xf32>
    tpu.vector_store %arg9[%c13_631, %c6_632, %c0_633], %1001 {strides = array<i32>} : memref<32x11x32xf32, #tpu.memory_space<vmem>>, vector<1x1x32xf32>,
    %c104_i32_634 = arith.constant 104 : i32
    %1002 = arith.addi %2, %c104_i32_634 : i32
    %c7_i32_635 = arith.constant 7 : i32
    %1003 = arith.addi %1002, %c7_i32_635 : i32
    %1004 = arith.index_cast %1003 : i32 to index
    %1005 = memref.load %arg1[%1004] : memref<512xi32, #tpu.memory_space<smem>>
    %1006 = arith.index_cast %1005 : i32 to index
    %c0_636 = arith.constant 0 : index
    %1007 = vector.load %arg2[%1006, %c0_636] : memref<50x32xf32, #tpu.memory_space<vmem>>, vector<1x32xf32>
    %c13_637 = arith.constant 13 : index
    %c7_638 = arith.constant 7 : index
    %c0_639 = arith.constant 0 : index
    %1008 = vector.load %arg9[%c13_637, %c7_638, %c0_639] : memref<32x11x32xf32, #tpu.memory_space<vmem>>, vector<1x1x32xf32>
    %1009 = vector.shape_cast %1008 : vector<1x1x32xf32> to vector<1x32xf32>
    %1010 = vector.shape_cast %1007 : vector<1x32xf32> to vector<1x1x32xf32>
    tpu.vector_store %arg9[%c13_637, %c7_638, %c0_639], %1010 {strides = array<i32>} : memref<32x11x32xf32, #tpu.memory_space<vmem>>, vector<1x1x32xf32>,
    %c112_i32 = arith.constant 112 : i32
    %1011 = arith.addi %2, %c112_i32 : i32
    %c0_i32_640 = arith.constant 0 : i32
    %1012 = arith.addi %1011, %c0_i32_640 : i32
    %1013 = arith.index_cast %1012 : i32 to index
    %1014 = memref.load %arg1[%1013] : memref<512xi32, #tpu.memory_space<smem>>
    %1015 = arith.index_cast %1014 : i32 to index
    %c0_641 = arith.constant 0 : index
    %1016 = vector.load %arg2[%1015, %c0_641] : memref<50x32xf32, #tpu.memory_space<vmem>>, vector<1x32xf32>
    %c14 = arith.constant 14 : index
    %c0_642 = arith.constant 0 : index
    %c0_643 = arith.constant 0 : index
    %1017 = vector.load %arg9[%c14, %c0_642, %c0_643] : memref<32x11x32xf32, #tpu.memory_space<vmem>>, vector<1x1x32xf32>
    %1018 = vector.shape_cast %1017 : vector<1x1x32xf32> to vector<1x32xf32>
    %1019 = vector.shape_cast %1016 : vector<1x32xf32> to vector<1x1x32xf32>
    tpu.vector_store %arg9[%c14, %c0_642, %c0_643], %1019 {strides = array<i32>} : memref<32x11x32xf32, #tpu.memory_space<vmem>>, vector<1x1x32xf32>,
    %c112_i32_644 = arith.constant 112 : i32
    %1020 = arith.addi %2, %c112_i32_644 : i32
    %c1_i32_645 = arith.constant 1 : i32
    %1021 = arith.addi %1020, %c1_i32_645 : i32
    %1022 = arith.index_cast %1021 : i32 to index
    %1023 = memref.load %arg1[%1022] : memref<512xi32, #tpu.memory_space<smem>>
    %1024 = arith.index_cast %1023 : i32 to index
    %c0_646 = arith.constant 0 : index
    %1025 = vector.load %arg2[%1024, %c0_646] : memref<50x32xf32, #tpu.memory_space<vmem>>, vector<1x32xf32>
    %c14_647 = arith.constant 14 : index
    %c1_648 = arith.constant 1 : index
    %c0_649 = arith.constant 0 : index
    %1026 = vector.load %arg9[%c14_647, %c1_648, %c0_649] : memref<32x11x32xf32, #tpu.memory_space<vmem>>, vector<1x1x32xf32>
    %1027 = vector.shape_cast %1026 : vector<1x1x32xf32> to vector<1x32xf32>
    %1028 = vector.shape_cast %1025 : vector<1x32xf32> to vector<1x1x32xf32>
    tpu.vector_store %arg9[%c14_647, %c1_648, %c0_649], %1028 {strides = array<i32>} : memref<32x11x32xf32, #tpu.memory_space<vmem>>, vector<1x1x32xf32>,
    %c112_i32_650 = arith.constant 112 : i32
    %1029 = arith.addi %2, %c112_i32_650 : i32
    %c2_i32_651 = arith.constant 2 : i32
    %1030 = arith.addi %1029, %c2_i32_651 : i32
    %1031 = arith.index_cast %1030 : i32 to index
    %1032 = memref.load %arg1[%1031] : memref<512xi32, #tpu.memory_space<smem>>
    %1033 = arith.index_cast %1032 : i32 to index
    %c0_652 = arith.constant 0 : index
    %1034 = vector.load %arg2[%1033, %c0_652] : memref<50x32xf32, #tpu.memory_space<vmem>>, vector<1x32xf32>
    %c14_653 = arith.constant 14 : index
    %c2_654 = arith.constant 2 : index
    %c0_655 = arith.constant 0 : index
    %1035 = vector.load %arg9[%c14_653, %c2_654, %c0_655] : memref<32x11x32xf32, #tpu.memory_space<vmem>>, vector<1x1x32xf32>
    %1036 = vector.shape_cast %1035 : vector<1x1x32xf32> to vector<1x32xf32>
    %1037 = vector.shape_cast %1034 : vector<1x32xf32> to vector<1x1x32xf32>
    tpu.vector_store %arg9[%c14_653, %c2_654, %c0_655], %1037 {strides = array<i32>} : memref<32x11x32xf32, #tpu.memory_space<vmem>>, vector<1x1x32xf32>,
    %c112_i32_656 = arith.constant 112 : i32
    %1038 = arith.addi %2, %c112_i32_656 : i32
    %c3_i32_657 = arith.constant 3 : i32
    %1039 = arith.addi %1038, %c3_i32_657 : i32
    %1040 = arith.index_cast %1039 : i32 to index
    %1041 = memref.load %arg1[%1040] : memref<512xi32, #tpu.memory_space<smem>>
    %1042 = arith.index_cast %1041 : i32 to index
    %c0_658 = arith.constant 0 : index
    %1043 = vector.load %arg2[%1042, %c0_658] : memref<50x32xf32, #tpu.memory_space<vmem>>, vector<1x32xf32>
    %c14_659 = arith.constant 14 : index
    %c3_660 = arith.constant 3 : index
    %c0_661 = arith.constant 0 : index
    %1044 = vector.load %arg9[%c14_659, %c3_660, %c0_661] : memref<32x11x32xf32, #tpu.memory_space<vmem>>, vector<1x1x32xf32>
    %1045 = vector.shape_cast %1044 : vector<1x1x32xf32> to vector<1x32xf32>
    %1046 = vector.shape_cast %1043 : vector<1x32xf32> to vector<1x1x32xf32>
    tpu.vector_store %arg9[%c14_659, %c3_660, %c0_661], %1046 {strides = array<i32>} : memref<32x11x32xf32, #tpu.memory_space<vmem>>, vector<1x1x32xf32>,
    %c112_i32_662 = arith.constant 112 : i32
    %1047 = arith.addi %2, %c112_i32_662 : i32
    %c4_i32_663 = arith.constant 4 : i32
    %1048 = arith.addi %1047, %c4_i32_663 : i32
    %1049 = arith.index_cast %1048 : i32 to index
    %1050 = memref.load %arg1[%1049] : memref<512xi32, #tpu.memory_space<smem>>
    %1051 = arith.index_cast %1050 : i32 to index
    %c0_664 = arith.constant 0 : index
    %1052 = vector.load %arg2[%1051, %c0_664] : memref<50x32xf32, #tpu.memory_space<vmem>>, vector<1x32xf32>
    %c14_665 = arith.constant 14 : index
    %c4_666 = arith.constant 4 : index
    %c0_667 = arith.constant 0 : index
    %1053 = vector.load %arg9[%c14_665, %c4_666, %c0_667] : memref<32x11x32xf32, #tpu.memory_space<vmem>>, vector<1x1x32xf32>
    %1054 = vector.shape_cast %1053 : vector<1x1x32xf32> to vector<1x32xf32>
    %1055 = vector.shape_cast %1052 : vector<1x32xf32> to vector<1x1x32xf32>
    tpu.vector_store %arg9[%c14_665, %c4_666, %c0_667], %1055 {strides = array<i32>} : memref<32x11x32xf32, #tpu.memory_space<vmem>>, vector<1x1x32xf32>,
    %c112_i32_668 = arith.constant 112 : i32
    %1056 = arith.addi %2, %c112_i32_668 : i32
    %c5_i32_669 = arith.constant 5 : i32
    %1057 = arith.addi %1056, %c5_i32_669 : i32
    %1058 = arith.index_cast %1057 : i32 to index
    %1059 = memref.load %arg1[%1058] : memref<512xi32, #tpu.memory_space<smem>>
    %1060 = arith.index_cast %1059 : i32 to index
    %c0_670 = arith.constant 0 : index
    %1061 = vector.load %arg2[%1060, %c0_670] : memref<50x32xf32, #tpu.memory_space<vmem>>, vector<1x32xf32>
    %c14_671 = arith.constant 14 : index
    %c5_672 = arith.constant 5 : index
    %c0_673 = arith.constant 0 : index
    %1062 = vector.load %arg9[%c14_671, %c5_672, %c0_673] : memref<32x11x32xf32, #tpu.memory_space<vmem>>, vector<1x1x32xf32>
    %1063 = vector.shape_cast %1062 : vector<1x1x32xf32> to vector<1x32xf32>
    %1064 = vector.shape_cast %1061 : vector<1x32xf32> to vector<1x1x32xf32>
    tpu.vector_store %arg9[%c14_671, %c5_672, %c0_673], %1064 {strides = array<i32>} : memref<32x11x32xf32, #tpu.memory_space<vmem>>, vector<1x1x32xf32>,
    %c112_i32_674 = arith.constant 112 : i32
    %1065 = arith.addi %2, %c112_i32_674 : i32
    %c6_i32_675 = arith.constant 6 : i32
    %1066 = arith.addi %1065, %c6_i32_675 : i32
    %1067 = arith.index_cast %1066 : i32 to index
    %1068 = memref.load %arg1[%1067] : memref<512xi32, #tpu.memory_space<smem>>
    %1069 = arith.index_cast %1068 : i32 to index
    %c0_676 = arith.constant 0 : index
    %1070 = vector.load %arg2[%1069, %c0_676] : memref<50x32xf32, #tpu.memory_space<vmem>>, vector<1x32xf32>
    %c14_677 = arith.constant 14 : index
    %c6_678 = arith.constant 6 : index
    %c0_679 = arith.constant 0 : index
    %1071 = vector.load %arg9[%c14_677, %c6_678, %c0_679] : memref<32x11x32xf32, #tpu.memory_space<vmem>>, vector<1x1x32xf32>
    %1072 = vector.shape_cast %1071 : vector<1x1x32xf32> to vector<1x32xf32>
    %1073 = vector.shape_cast %1070 : vector<1x32xf32> to vector<1x1x32xf32>
    tpu.vector_store %arg9[%c14_677, %c6_678, %c0_679], %1073 {strides = array<i32>} : memref<32x11x32xf32, #tpu.memory_space<vmem>>, vector<1x1x32xf32>,
    %c112_i32_680 = arith.constant 112 : i32
    %1074 = arith.addi %2, %c112_i32_680 : i32
    %c7_i32_681 = arith.constant 7 : i32
    %1075 = arith.addi %1074, %c7_i32_681 : i32
    %1076 = arith.index_cast %1075 : i32 to index
    %1077 = memref.load %arg1[%1076] : memref<512xi32, #tpu.memory_space<smem>>
    %1078 = arith.index_cast %1077 : i32 to index
    %c0_682 = arith.constant 0 : index
    %1079 = vector.load %arg2[%1078, %c0_682] : memref<50x32xf32, #tpu.memory_space<vmem>>, vector<1x32xf32>
    %c14_683 = arith.constant 14 : index
    %c7_684 = arith.constant 7 : index
    %c0_685 = arith.constant 0 : index
    %1080 = vector.load %arg9[%c14_683, %c7_684, %c0_685] : memref<32x11x32xf32, #tpu.memory_space<vmem>>, vector<1x1x32xf32>
    %1081 = vector.shape_cast %1080 : vector<1x1x32xf32> to vector<1x32xf32>
    %1082 = vector.shape_cast %1079 : vector<1x32xf32> to vector<1x1x32xf32>
    tpu.vector_store %arg9[%c14_683, %c7_684, %c0_685], %1082 {strides = array<i32>} : memref<32x11x32xf32, #tpu.memory_space<vmem>>, vector<1x1x32xf32>,
    %c120_i32 = arith.constant 120 : i32
    %1083 = arith.addi %2, %c120_i32 : i32
    %c0_i32_686 = arith.constant 0 : i32
    %1084 = arith.addi %1083, %c0_i32_686 : i32
    %1085 = arith.index_cast %1084 : i32 to index
    %1086 = memref.load %arg1[%1085] : memref<512xi32, #tpu.memory_space<smem>>
    %1087 = arith.index_cast %1086 : i32 to index
    %c0_687 = arith.constant 0 : index
    %1088 = vector.load %arg2[%1087, %c0_687] : memref<50x32xf32, #tpu.memory_space<vmem>>, vector<1x32xf32>
    %c15 = arith.constant 15 : index
    %c0_688 = arith.constant 0 : index
    %c0_689 = arith.constant 0 : index
    %1089 = vector.load %arg9[%c15, %c0_688, %c0_689] : memref<32x11x32xf32, #tpu.memory_space<vmem>>, vector<1x1x32xf32>
    %1090 = vector.shape_cast %1089 : vector<1x1x32xf32> to vector<1x32xf32>
    %1091 = vector.shape_cast %1088 : vector<1x32xf32> to vector<1x1x32xf32>
    tpu.vector_store %arg9[%c15, %c0_688, %c0_689], %1091 {strides = array<i32>} : memref<32x11x32xf32, #tpu.memory_space<vmem>>, vector<1x1x32xf32>,
    %c120_i32_690 = arith.constant 120 : i32
    %1092 = arith.addi %2, %c120_i32_690 : i32
    %c1_i32_691 = arith.constant 1 : i32
    %1093 = arith.addi %1092, %c1_i32_691 : i32
    %1094 = arith.index_cast %1093 : i32 to index
    %1095 = memref.load %arg1[%1094] : memref<512xi32, #tpu.memory_space<smem>>
    %1096 = arith.index_cast %1095 : i32 to index
    %c0_692 = arith.constant 0 : index
    %1097 = vector.load %arg2[%1096, %c0_692] : memref<50x32xf32, #tpu.memory_space<vmem>>, vector<1x32xf32>
    %c15_693 = arith.constant 15 : index
    %c1_694 = arith.constant 1 : index
    %c0_695 = arith.constant 0 : index
    %1098 = vector.load %arg9[%c15_693, %c1_694, %c0_695] : memref<32x11x32xf32, #tpu.memory_space<vmem>>, vector<1x1x32xf32>
    %1099 = vector.shape_cast %1098 : vector<1x1x32xf32> to vector<1x32xf32>
    %1100 = vector.shape_cast %1097 : vector<1x32xf32> to vector<1x1x32xf32>
    tpu.vector_store %arg9[%c15_693, %c1_694, %c0_695], %1100 {strides = array<i32>} : memref<32x11x32xf32, #tpu.memory_space<vmem>>, vector<1x1x32xf32>,
    %c120_i32_696 = arith.constant 120 : i32
    %1101 = arith.addi %2, %c120_i32_696 : i32
    %c2_i32_697 = arith.constant 2 : i32
    %1102 = arith.addi %1101, %c2_i32_697 : i32
    %1103 = arith.index_cast %1102 : i32 to index
    %1104 = memref.load %arg1[%1103] : memref<512xi32, #tpu.memory_space<smem>>
    %1105 = arith.index_cast %1104 : i32 to index
    %c0_698 = arith.constant 0 : index
    %1106 = vector.load %arg2[%1105, %c0_698] : memref<50x32xf32, #tpu.memory_space<vmem>>, vector<1x32xf32>
    %c15_699 = arith.constant 15 : index
    %c2_700 = arith.constant 2 : index
    %c0_701 = arith.constant 0 : index
    %1107 = vector.load %arg9[%c15_699, %c2_700, %c0_701] : memref<32x11x32xf32, #tpu.memory_space<vmem>>, vector<1x1x32xf32>
    %1108 = vector.shape_cast %1107 : vector<1x1x32xf32> to vector<1x32xf32>
    %1109 = vector.shape_cast %1106 : vector<1x32xf32> to vector<1x1x32xf32>
    tpu.vector_store %arg9[%c15_699, %c2_700, %c0_701], %1109 {strides = array<i32>} : memref<32x11x32xf32, #tpu.memory_space<vmem>>, vector<1x1x32xf32>,
    %c120_i32_702 = arith.constant 120 : i32
    %1110 = arith.addi %2, %c120_i32_702 : i32
    %c3_i32_703 = arith.constant 3 : i32
    %1111 = arith.addi %1110, %c3_i32_703 : i32
    %1112 = arith.index_cast %1111 : i32 to index
    %1113 = memref.load %arg1[%1112] : memref<512xi32, #tpu.memory_space<smem>>
    %1114 = arith.index_cast %1113 : i32 to index
    %c0_704 = arith.constant 0 : index
    %1115 = vector.load %arg2[%1114, %c0_704] : memref<50x32xf32, #tpu.memory_space<vmem>>, vector<1x32xf32>
    %c15_705 = arith.constant 15 : index
    %c3_706 = arith.constant 3 : index
    %c0_707 = arith.constant 0 : index
    %1116 = vector.load %arg9[%c15_705, %c3_706, %c0_707] : memref<32x11x32xf32, #tpu.memory_space<vmem>>, vector<1x1x32xf32>
    %1117 = vector.shape_cast %1116 : vector<1x1x32xf32> to vector<1x32xf32>
    %1118 = vector.shape_cast %1115 : vector<1x32xf32> to vector<1x1x32xf32>
    tpu.vector_store %arg9[%c15_705, %c3_706, %c0_707], %1118 {strides = array<i32>} : memref<32x11x32xf32, #tpu.memory_space<vmem>>, vector<1x1x32xf32>,
    %c120_i32_708 = arith.constant 120 : i32
    %1119 = arith.addi %2, %c120_i32_708 : i32
    %c4_i32_709 = arith.constant 4 : i32
    %1120 = arith.addi %1119, %c4_i32_709 : i32
    %1121 = arith.index_cast %1120 : i32 to index
    %1122 = memref.load %arg1[%1121] : memref<512xi32, #tpu.memory_space<smem>>
    %1123 = arith.index_cast %1122 : i32 to index
    %c0_710 = arith.constant 0 : index
    %1124 = vector.load %arg2[%1123, %c0_710] : memref<50x32xf32, #tpu.memory_space<vmem>>, vector<1x32xf32>
    %c15_711 = arith.constant 15 : index
    %c4_712 = arith.constant 4 : index
    %c0_713 = arith.constant 0 : index
    %1125 = vector.load %arg9[%c15_711, %c4_712, %c0_713] : memref<32x11x32xf32, #tpu.memory_space<vmem>>, vector<1x1x32xf32>
    %1126 = vector.shape_cast %1125 : vector<1x1x32xf32> to vector<1x32xf32>
    %1127 = vector.shape_cast %1124 : vector<1x32xf32> to vector<1x1x32xf32>
    tpu.vector_store %arg9[%c15_711, %c4_712, %c0_713], %1127 {strides = array<i32>} : memref<32x11x32xf32, #tpu.memory_space<vmem>>, vector<1x1x32xf32>,
    %c120_i32_714 = arith.constant 120 : i32
    %1128 = arith.addi %2, %c120_i32_714 : i32
    %c5_i32_715 = arith.constant 5 : i32
    %1129 = arith.addi %1128, %c5_i32_715 : i32
    %1130 = arith.index_cast %1129 : i32 to index
    %1131 = memref.load %arg1[%1130] : memref<512xi32, #tpu.memory_space<smem>>
    %1132 = arith.index_cast %1131 : i32 to index
    %c0_716 = arith.constant 0 : index
    %1133 = vector.load %arg2[%1132, %c0_716] : memref<50x32xf32, #tpu.memory_space<vmem>>, vector<1x32xf32>
    %c15_717 = arith.constant 15 : index
    %c5_718 = arith.constant 5 : index
    %c0_719 = arith.constant 0 : index
    %1134 = vector.load %arg9[%c15_717, %c5_718, %c0_719] : memref<32x11x32xf32, #tpu.memory_space<vmem>>, vector<1x1x32xf32>
    %1135 = vector.shape_cast %1134 : vector<1x1x32xf32> to vector<1x32xf32>
    %1136 = vector.shape_cast %1133 : vector<1x32xf32> to vector<1x1x32xf32>
    tpu.vector_store %arg9[%c15_717, %c5_718, %c0_719], %1136 {strides = array<i32>} : memref<32x11x32xf32, #tpu.memory_space<vmem>>, vector<1x1x32xf32>,
    %c120_i32_720 = arith.constant 120 : i32
    %1137 = arith.addi %2, %c120_i32_720 : i32
    %c6_i32_721 = arith.constant 6 : i32
    %1138 = arith.addi %1137, %c6_i32_721 : i32
    %1139 = arith.index_cast %1138 : i32 to index
    %1140 = memref.load %arg1[%1139] : memref<512xi32, #tpu.memory_space<smem>>
    %1141 = arith.index_cast %1140 : i32 to index
    %c0_722 = arith.constant 0 : index
    %1142 = vector.load %arg2[%1141, %c0_722] : memref<50x32xf32, #tpu.memory_space<vmem>>, vector<1x32xf32>
    %c15_723 = arith.constant 15 : index
    %c6_724 = arith.constant 6 : index
    %c0_725 = arith.constant 0 : index
    %1143 = vector.load %arg9[%c15_723, %c6_724, %c0_725] : memref<32x11x32xf32, #tpu.memory_space<vmem>>, vector<1x1x32xf32>
    %1144 = vector.shape_cast %1143 : vector<1x1x32xf32> to vector<1x32xf32>
    %1145 = vector.shape_cast %1142 : vector<1x32xf32> to vector<1x1x32xf32>
    tpu.vector_store %arg9[%c15_723, %c6_724, %c0_725], %1145 {strides = array<i32>} : memref<32x11x32xf32, #tpu.memory_space<vmem>>, vector<1x1x32xf32>,
    %c120_i32_726 = arith.constant 120 : i32
    %1146 = arith.addi %2, %c120_i32_726 : i32
    %c7_i32_727 = arith.constant 7 : i32
    %1147 = arith.addi %1146, %c7_i32_727 : i32
    %1148 = arith.index_cast %1147 : i32 to index
    %1149 = memref.load %arg1[%1148] : memref<512xi32, #tpu.memory_space<smem>>
    %1150 = arith.index_cast %1149 : i32 to index
    %c0_728 = arith.constant 0 : index
    %1151 = vector.load %arg2[%1150, %c0_728] : memref<50x32xf32, #tpu.memory_space<vmem>>, vector<1x32xf32>
    %c15_729 = arith.constant 15 : index
    %c7_730 = arith.constant 7 : index
    %c0_731 = arith.constant 0 : index
    %1152 = vector.load %arg9[%c15_729, %c7_730, %c0_731] : memref<32x11x32xf32, #tpu.memory_space<vmem>>, vector<1x1x32xf32>
    %1153 = vector.shape_cast %1152 : vector<1x1x32xf32> to vector<1x32xf32>
    %1154 = vector.shape_cast %1151 : vector<1x32xf32> to vector<1x1x32xf32>
    tpu.vector_store %arg9[%c15_729, %c7_730, %c0_731], %1154 {strides = array<i32>} : memref<32x11x32xf32, #tpu.memory_space<vmem>>, vector<1x1x32xf32>,
    %c128_i32 = arith.constant 128 : i32
    %1155 = arith.addi %2, %c128_i32 : i32
    %c0_i32_732 = arith.constant 0 : i32
    %1156 = arith.addi %1155, %c0_i32_732 : i32
    %1157 = arith.index_cast %1156 : i32 to index
    %1158 = memref.load %arg1[%1157] : memref<512xi32, #tpu.memory_space<smem>>
    %1159 = arith.index_cast %1158 : i32 to index
    %c0_733 = arith.constant 0 : index
    %1160 = vector.load %arg2[%1159, %c0_733] : memref<50x32xf32, #tpu.memory_space<vmem>>, vector<1x32xf32>
    %c16 = arith.constant 16 : index
    %c0_734 = arith.constant 0 : index
    %c0_735 = arith.constant 0 : index
    %1161 = vector.load %arg9[%c16, %c0_734, %c0_735] : memref<32x11x32xf32, #tpu.memory_space<vmem>>, vector<1x1x32xf32>
    %1162 = vector.shape_cast %1161 : vector<1x1x32xf32> to vector<1x32xf32>
    %1163 = vector.shape_cast %1160 : vector<1x32xf32> to vector<1x1x32xf32>
    tpu.vector_store %arg9[%c16, %c0_734, %c0_735], %1163 {strides = array<i32>} : memref<32x11x32xf32, #tpu.memory_space<vmem>>, vector<1x1x32xf32>,
    %c128_i32_736 = arith.constant 128 : i32
    %1164 = arith.addi %2, %c128_i32_736 : i32
    %c1_i32_737 = arith.constant 1 : i32
    %1165 = arith.addi %1164, %c1_i32_737 : i32
    %1166 = arith.index_cast %1165 : i32 to index
    %1167 = memref.load %arg1[%1166] : memref<512xi32, #tpu.memory_space<smem>>
    %1168 = arith.index_cast %1167 : i32 to index
    %c0_738 = arith.constant 0 : index
    %1169 = vector.load %arg2[%1168, %c0_738] : memref<50x32xf32, #tpu.memory_space<vmem>>, vector<1x32xf32>
    %c16_739 = arith.constant 16 : index
    %c1_740 = arith.constant 1 : index
    %c0_741 = arith.constant 0 : index
    %1170 = vector.load %arg9[%c16_739, %c1_740, %c0_741] : memref<32x11x32xf32, #tpu.memory_space<vmem>>, vector<1x1x32xf32>
    %1171 = vector.shape_cast %1170 : vector<1x1x32xf32> to vector<1x32xf32>
    %1172 = vector.shape_cast %1169 : vector<1x32xf32> to vector<1x1x32xf32>
    tpu.vector_store %arg9[%c16_739, %c1_740, %c0_741], %1172 {strides = array<i32>} : memref<32x11x32xf32, #tpu.memory_space<vmem>>, vector<1x1x32xf32>,
    %c128_i32_742 = arith.constant 128 : i32
    %1173 = arith.addi %2, %c128_i32_742 : i32
    %c2_i32_743 = arith.constant 2 : i32
    %1174 = arith.addi %1173, %c2_i32_743 : i32
    %1175 = arith.index_cast %1174 : i32 to index
    %1176 = memref.load %arg1[%1175] : memref<512xi32, #tpu.memory_space<smem>>
    %1177 = arith.index_cast %1176 : i32 to index
    %c0_744 = arith.constant 0 : index
    %1178 = vector.load %arg2[%1177, %c0_744] : memref<50x32xf32, #tpu.memory_space<vmem>>, vector<1x32xf32>
    %c16_745 = arith.constant 16 : index
    %c2_746 = arith.constant 2 : index
    %c0_747 = arith.constant 0 : index
    %1179 = vector.load %arg9[%c16_745, %c2_746, %c0_747] : memref<32x11x32xf32, #tpu.memory_space<vmem>>, vector<1x1x32xf32>
    %1180 = vector.shape_cast %1179 : vector<1x1x32xf32> to vector<1x32xf32>
    %1181 = vector.shape_cast %1178 : vector<1x32xf32> to vector<1x1x32xf32>
    tpu.vector_store %arg9[%c16_745, %c2_746, %c0_747], %1181 {strides = array<i32>} : memref<32x11x32xf32, #tpu.memory_space<vmem>>, vector<1x1x32xf32>,
    %c128_i32_748 = arith.constant 128 : i32
    %1182 = arith.addi %2, %c128_i32_748 : i32
    %c3_i32_749 = arith.constant 3 : i32
    %1183 = arith.addi %1182, %c3_i32_749 : i32
    %1184 = arith.index_cast %1183 : i32 to index
    %1185 = memref.load %arg1[%1184] : memref<512xi32, #tpu.memory_space<smem>>
    %1186 = arith.index_cast %1185 : i32 to index
    %c0_750 = arith.constant 0 : index
    %1187 = vector.load %arg2[%1186, %c0_750] : memref<50x32xf32, #tpu.memory_space<vmem>>, vector<1x32xf32>
    %c16_751 = arith.constant 16 : index
    %c3_752 = arith.constant 3 : index
    %c0_753 = arith.constant 0 : index
    %1188 = vector.load %arg9[%c16_751, %c3_752, %c0_753] : memref<32x11x32xf32, #tpu.memory_space<vmem>>, vector<1x1x32xf32>
    %1189 = vector.shape_cast %1188 : vector<1x1x32xf32> to vector<1x32xf32>
    %1190 = vector.shape_cast %1187 : vector<1x32xf32> to vector<1x1x32xf32>
    tpu.vector_store %arg9[%c16_751, %c3_752, %c0_753], %1190 {strides = array<i32>} : memref<32x11x32xf32, #tpu.memory_space<vmem>>, vector<1x1x32xf32>,
    %c128_i32_754 = arith.constant 128 : i32
    %1191 = arith.addi %2, %c128_i32_754 : i32
    %c4_i32_755 = arith.constant 4 : i32
    %1192 = arith.addi %1191, %c4_i32_755 : i32
    %1193 = arith.index_cast %1192 : i32 to index
    %1194 = memref.load %arg1[%1193] : memref<512xi32, #tpu.memory_space<smem>>
    %1195 = arith.index_cast %1194 : i32 to index
    %c0_756 = arith.constant 0 : index
    %1196 = vector.load %arg2[%1195, %c0_756] : memref<50x32xf32, #tpu.memory_space<vmem>>, vector<1x32xf32>
    %c16_757 = arith.constant 16 : index
    %c4_758 = arith.constant 4 : index
    %c0_759 = arith.constant 0 : index
    %1197 = vector.load %arg9[%c16_757, %c4_758, %c0_759] : memref<32x11x32xf32, #tpu.memory_space<vmem>>, vector<1x1x32xf32>
    %1198 = vector.shape_cast %1197 : vector<1x1x32xf32> to vector<1x32xf32>
    %1199 = vector.shape_cast %1196 : vector<1x32xf32> to vector<1x1x32xf32>
    tpu.vector_store %arg9[%c16_757, %c4_758, %c0_759], %1199 {strides = array<i32>} : memref<32x11x32xf32, #tpu.memory_space<vmem>>, vector<1x1x32xf32>,
    %c128_i32_760 = arith.constant 128 : i32
    %1200 = arith.addi %2, %c128_i32_760 : i32
    %c5_i32_761 = arith.constant 5 : i32
    %1201 = arith.addi %1200, %c5_i32_761 : i32
    %1202 = arith.index_cast %1201 : i32 to index
    %1203 = memref.load %arg1[%1202] : memref<512xi32, #tpu.memory_space<smem>>
    %1204 = arith.index_cast %1203 : i32 to index
    %c0_762 = arith.constant 0 : index
    %1205 = vector.load %arg2[%1204, %c0_762] : memref<50x32xf32, #tpu.memory_space<vmem>>, vector<1x32xf32>
    %c16_763 = arith.constant 16 : index
    %c5_764 = arith.constant 5 : index
    %c0_765 = arith.constant 0 : index
    %1206 = vector.load %arg9[%c16_763, %c5_764, %c0_765] : memref<32x11x32xf32, #tpu.memory_space<vmem>>, vector<1x1x32xf32>
    %1207 = vector.shape_cast %1206 : vector<1x1x32xf32> to vector<1x32xf32>
    %1208 = vector.shape_cast %1205 : vector<1x32xf32> to vector<1x1x32xf32>
    tpu.vector_store %arg9[%c16_763, %c5_764, %c0_765], %1208 {strides = array<i32>} : memref<32x11x32xf32, #tpu.memory_space<vmem>>, vector<1x1x32xf32>,
    %c128_i32_766 = arith.constant 128 : i32
    %1209 = arith.addi %2, %c128_i32_766 : i32
    %c6_i32_767 = arith.constant 6 : i32
    %1210 = arith.addi %1209, %c6_i32_767 : i32
    %1211 = arith.index_cast %1210 : i32 to index
    %1212 = memref.load %arg1[%1211] : memref<512xi32, #tpu.memory_space<smem>>
    %1213 = arith.index_cast %1212 : i32 to index
    %c0_768 = arith.constant 0 : index
    %1214 = vector.load %arg2[%1213, %c0_768] : memref<50x32xf32, #tpu.memory_space<vmem>>, vector<1x32xf32>
    %c16_769 = arith.constant 16 : index
    %c6_770 = arith.constant 6 : index
    %c0_771 = arith.constant 0 : index
    %1215 = vector.load %arg9[%c16_769, %c6_770, %c0_771] : memref<32x11x32xf32, #tpu.memory_space<vmem>>, vector<1x1x32xf32>
    %1216 = vector.shape_cast %1215 : vector<1x1x32xf32> to vector<1x32xf32>
    %1217 = vector.shape_cast %1214 : vector<1x32xf32> to vector<1x1x32xf32>
    tpu.vector_store %arg9[%c16_769, %c6_770, %c0_771], %1217 {strides = array<i32>} : memref<32x11x32xf32, #tpu.memory_space<vmem>>, vector<1x1x32xf32>,
    %c128_i32_772 = arith.constant 128 : i32
    %1218 = arith.addi %2, %c128_i32_772 : i32
    %c7_i32_773 = arith.constant 7 : i32
    %1219 = arith.addi %1218, %c7_i32_773 : i32
    %1220 = arith.index_cast %1219 : i32 to index
    %1221 = memref.load %arg1[%1220] : memref<512xi32, #tpu.memory_space<smem>>
    %1222 = arith.index_cast %1221 : i32 to index
    %c0_774 = arith.constant 0 : index
    %1223 = vector.load %arg2[%1222, %c0_774] : memref<50x32xf32, #tpu.memory_space<vmem>>, vector<1x32xf32>
    %c16_775 = arith.constant 16 : index
    %c7_776 = arith.constant 7 : index
    %c0_777 = arith.constant 0 : index
    %1224 = vector.load %arg9[%c16_775, %c7_776, %c0_777] : memref<32x11x32xf32, #tpu.memory_space<vmem>>, vector<1x1x32xf32>
    %1225 = vector.shape_cast %1224 : vector<1x1x32xf32> to vector<1x32xf32>
    %1226 = vector.shape_cast %1223 : vector<1x32xf32> to vector<1x1x32xf32>
    tpu.vector_store %arg9[%c16_775, %c7_776, %c0_777], %1226 {strides = array<i32>} : memref<32x11x32xf32, #tpu.memory_space<vmem>>, vector<1x1x32xf32>,
    %c136_i32 = arith.constant 136 : i32
    %1227 = arith.addi %2, %c136_i32 : i32
    %c0_i32_778 = arith.constant 0 : i32
    %1228 = arith.addi %1227, %c0_i32_778 : i32
    %1229 = arith.index_cast %1228 : i32 to index
    %1230 = memref.load %arg1[%1229] : memref<512xi32, #tpu.memory_space<smem>>
    %1231 = arith.index_cast %1230 : i32 to index
    %c0_779 = arith.constant 0 : index
    %1232 = vector.load %arg2[%1231, %c0_779] : memref<50x32xf32, #tpu.memory_space<vmem>>, vector<1x32xf32>
    %c17 = arith.constant 17 : index
    %c0_780 = arith.constant 0 : index
    %c0_781 = arith.constant 0 : index
    %1233 = vector.load %arg9[%c17, %c0_780, %c0_781] : memref<32x11x32xf32, #tpu.memory_space<vmem>>, vector<1x1x32xf32>
    %1234 = vector.shape_cast %1233 : vector<1x1x32xf32> to vector<1x32xf32>
    %1235 = vector.shape_cast %1232 : vector<1x32xf32> to vector<1x1x32xf32>
    tpu.vector_store %arg9[%c17, %c0_780, %c0_781], %1235 {strides = array<i32>} : memref<32x11x32xf32, #tpu.memory_space<vmem>>, vector<1x1x32xf32>,
    %c136_i32_782 = arith.constant 136 : i32
    %1236 = arith.addi %2, %c136_i32_782 : i32
    %c1_i32_783 = arith.constant 1 : i32
    %1237 = arith.addi %1236, %c1_i32_783 : i32
    %1238 = arith.index_cast %1237 : i32 to index
    %1239 = memref.load %arg1[%1238] : memref<512xi32, #tpu.memory_space<smem>>
    %1240 = arith.index_cast %1239 : i32 to index
    %c0_784 = arith.constant 0 : index
    %1241 = vector.load %arg2[%1240, %c0_784] : memref<50x32xf32, #tpu.memory_space<vmem>>, vector<1x32xf32>
    %c17_785 = arith.constant 17 : index
    %c1_786 = arith.constant 1 : index
    %c0_787 = arith.constant 0 : index
    %1242 = vector.load %arg9[%c17_785, %c1_786, %c0_787] : memref<32x11x32xf32, #tpu.memory_space<vmem>>, vector<1x1x32xf32>
    %1243 = vector.shape_cast %1242 : vector<1x1x32xf32> to vector<1x32xf32>
    %1244 = vector.shape_cast %1241 : vector<1x32xf32> to vector<1x1x32xf32>
    tpu.vector_store %arg9[%c17_785, %c1_786, %c0_787], %1244 {strides = array<i32>} : memref<32x11x32xf32, #tpu.memory_space<vmem>>, vector<1x1x32xf32>,
    %c136_i32_788 = arith.constant 136 : i32
    %1245 = arith.addi %2, %c136_i32_788 : i32
    %c2_i32_789 = arith.constant 2 : i32
    %1246 = arith.addi %1245, %c2_i32_789 : i32
    %1247 = arith.index_cast %1246 : i32 to index
    %1248 = memref.load %arg1[%1247] : memref<512xi32, #tpu.memory_space<smem>>
    %1249 = arith.index_cast %1248 : i32 to index
    %c0_790 = arith.constant 0 : index
    %1250 = vector.load %arg2[%1249, %c0_790] : memref<50x32xf32, #tpu.memory_space<vmem>>, vector<1x32xf32>
    %c17_791 = arith.constant 17 : index
    %c2_792 = arith.constant 2 : index
    %c0_793 = arith.constant 0 : index
    %1251 = vector.load %arg9[%c17_791, %c2_792, %c0_793] : memref<32x11x32xf32, #tpu.memory_space<vmem>>, vector<1x1x32xf32>
    %1252 = vector.shape_cast %1251 : vector<1x1x32xf32> to vector<1x32xf32>
    %1253 = vector.shape_cast %1250 : vector<1x32xf32> to vector<1x1x32xf32>
    tpu.vector_store %arg9[%c17_791, %c2_792, %c0_793], %1253 {strides = array<i32>} : memref<32x11x32xf32, #tpu.memory_space<vmem>>, vector<1x1x32xf32>,
    %c136_i32_794 = arith.constant 136 : i32
    %1254 = arith.addi %2, %c136_i32_794 : i32
    %c3_i32_795 = arith.constant 3 : i32
    %1255 = arith.addi %1254, %c3_i32_795 : i32
    %1256 = arith.index_cast %1255 : i32 to index
    %1257 = memref.load %arg1[%1256] : memref<512xi32, #tpu.memory_space<smem>>
    %1258 = arith.index_cast %1257 : i32 to index
    %c0_796 = arith.constant 0 : index
    %1259 = vector.load %arg2[%1258, %c0_796] : memref<50x32xf32, #tpu.memory_space<vmem>>, vector<1x32xf32>
    %c17_797 = arith.constant 17 : index
    %c3_798 = arith.constant 3 : index
    %c0_799 = arith.constant 0 : index
    %1260 = vector.load %arg9[%c17_797, %c3_798, %c0_799] : memref<32x11x32xf32, #tpu.memory_space<vmem>>, vector<1x1x32xf32>
    %1261 = vector.shape_cast %1260 : vector<1x1x32xf32> to vector<1x32xf32>
    %1262 = vector.shape_cast %1259 : vector<1x32xf32> to vector<1x1x32xf32>
    tpu.vector_store %arg9[%c17_797, %c3_798, %c0_799], %1262 {strides = array<i32>} : memref<32x11x32xf32, #tpu.memory_space<vmem>>, vector<1x1x32xf32>,
    %c136_i32_800 = arith.constant 136 : i32
    %1263 = arith.addi %2, %c136_i32_800 : i32
    %c4_i32_801 = arith.constant 4 : i32
    %1264 = arith.addi %1263, %c4_i32_801 : i32
    %1265 = arith.index_cast %1264 : i32 to index
    %1266 = memref.load %arg1[%1265] : memref<512xi32, #tpu.memory_space<smem>>
    %1267 = arith.index_cast %1266 : i32 to index
    %c0_802 = arith.constant 0 : index
    %1268 = vector.load %arg2[%1267, %c0_802] : memref<50x32xf32, #tpu.memory_space<vmem>>, vector<1x32xf32>
    %c17_803 = arith.constant 17 : index
    %c4_804 = arith.constant 4 : index
    %c0_805 = arith.constant 0 : index
    %1269 = vector.load %arg9[%c17_803, %c4_804, %c0_805] : memref<32x11x32xf32, #tpu.memory_space<vmem>>, vector<1x1x32xf32>
    %1270 = vector.shape_cast %1269 : vector<1x1x32xf32> to vector<1x32xf32>
    %1271 = vector.shape_cast %1268 : vector<1x32xf32> to vector<1x1x32xf32>
    tpu.vector_store %arg9[%c17_803, %c4_804, %c0_805], %1271 {strides = array<i32>} : memref<32x11x32xf32, #tpu.memory_space<vmem>>, vector<1x1x32xf32>,
    %c136_i32_806 = arith.constant 136 : i32
    %1272 = arith.addi %2, %c136_i32_806 : i32
    %c5_i32_807 = arith.constant 5 : i32
    %1273 = arith.addi %1272, %c5_i32_807 : i32
    %1274 = arith.index_cast %1273 : i32 to index
    %1275 = memref.load %arg1[%1274] : memref<512xi32, #tpu.memory_space<smem>>
    %1276 = arith.index_cast %1275 : i32 to index
    %c0_808 = arith.constant 0 : index
    %1277 = vector.load %arg2[%1276, %c0_808] : memref<50x32xf32, #tpu.memory_space<vmem>>, vector<1x32xf32>
    %c17_809 = arith.constant 17 : index
    %c5_810 = arith.constant 5 : index
    %c0_811 = arith.constant 0 : index
    %1278 = vector.load %arg9[%c17_809, %c5_810, %c0_811] : memref<32x11x32xf32, #tpu.memory_space<vmem>>, vector<1x1x32xf32>
    %1279 = vector.shape_cast %1278 : vector<1x1x32xf32> to vector<1x32xf32>
    %1280 = vector.shape_cast %1277 : vector<1x32xf32> to vector<1x1x32xf32>
    tpu.vector_store %arg9[%c17_809, %c5_810, %c0_811], %1280 {strides = array<i32>} : memref<32x11x32xf32, #tpu.memory_space<vmem>>, vector<1x1x32xf32>,
    %c136_i32_812 = arith.constant 136 : i32
    %1281 = arith.addi %2, %c136_i32_812 : i32
    %c6_i32_813 = arith.constant 6 : i32
    %1282 = arith.addi %1281, %c6_i32_813 : i32
    %1283 = arith.index_cast %1282 : i32 to index
    %1284 = memref.load %arg1[%1283] : memref<512xi32, #tpu.memory_space<smem>>
    %1285 = arith.index_cast %1284 : i32 to index
    %c0_814 = arith.constant 0 : index
    %1286 = vector.load %arg2[%1285, %c0_814] : memref<50x32xf32, #tpu.memory_space<vmem>>, vector<1x32xf32>
    %c17_815 = arith.constant 17 : index
    %c6_816 = arith.constant 6 : index
    %c0_817 = arith.constant 0 : index
    %1287 = vector.load %arg9[%c17_815, %c6_816, %c0_817] : memref<32x11x32xf32, #tpu.memory_space<vmem>>, vector<1x1x32xf32>
    %1288 = vector.shape_cast %1287 : vector<1x1x32xf32> to vector<1x32xf32>
    %1289 = vector.shape_cast %1286 : vector<1x32xf32> to vector<1x1x32xf32>
    tpu.vector_store %arg9[%c17_815, %c6_816, %c0_817], %1289 {strides = array<i32>} : memref<32x11x32xf32, #tpu.memory_space<vmem>>, vector<1x1x32xf32>,
    %c136_i32_818 = arith.constant 136 : i32
    %1290 = arith.addi %2, %c136_i32_818 : i32
    %c7_i32_819 = arith.constant 7 : i32
    %1291 = arith.addi %1290, %c7_i32_819 : i32
    %1292 = arith.index_cast %1291 : i32 to index
    %1293 = memref.load %arg1[%1292] : memref<512xi32, #tpu.memory_space<smem>>
    %1294 = arith.index_cast %1293 : i32 to index
    %c0_820 = arith.constant 0 : index
    %1295 = vector.load %arg2[%1294, %c0_820] : memref<50x32xf32, #tpu.memory_space<vmem>>, vector<1x32xf32>
    %c17_821 = arith.constant 17 : index
    %c7_822 = arith.constant 7 : index
    %c0_823 = arith.constant 0 : index
    %1296 = vector.load %arg9[%c17_821, %c7_822, %c0_823] : memref<32x11x32xf32, #tpu.memory_space<vmem>>, vector<1x1x32xf32>
    %1297 = vector.shape_cast %1296 : vector<1x1x32xf32> to vector<1x32xf32>
    %1298 = vector.shape_cast %1295 : vector<1x32xf32> to vector<1x1x32xf32>
    tpu.vector_store %arg9[%c17_821, %c7_822, %c0_823], %1298 {strides = array<i32>} : memref<32x11x32xf32, #tpu.memory_space<vmem>>, vector<1x1x32xf32>,
    %c144_i32 = arith.constant 144 : i32
    %1299 = arith.addi %2, %c144_i32 : i32
    %c0_i32_824 = arith.constant 0 : i32
    %1300 = arith.addi %1299, %c0_i32_824 : i32
    %1301 = arith.index_cast %1300 : i32 to index
    %1302 = memref.load %arg1[%1301] : memref<512xi32, #tpu.memory_space<smem>>
    %1303 = arith.index_cast %1302 : i32 to index
    %c0_825 = arith.constant 0 : index
    %1304 = vector.load %arg2[%1303, %c0_825] : memref<50x32xf32, #tpu.memory_space<vmem>>, vector<1x32xf32>
    %c18 = arith.constant 18 : index
    %c0_826 = arith.constant 0 : index
    %c0_827 = arith.constant 0 : index
    %1305 = vector.load %arg9[%c18, %c0_826, %c0_827] : memref<32x11x32xf32, #tpu.memory_space<vmem>>, vector<1x1x32xf32>
    %1306 = vector.shape_cast %1305 : vector<1x1x32xf32> to vector<1x32xf32>
    %1307 = vector.shape_cast %1304 : vector<1x32xf32> to vector<1x1x32xf32>
    tpu.vector_store %arg9[%c18, %c0_826, %c0_827], %1307 {strides = array<i32>} : memref<32x11x32xf32, #tpu.memory_space<vmem>>, vector<1x1x32xf32>,
    %c144_i32_828 = arith.constant 144 : i32
    %1308 = arith.addi %2, %c144_i32_828 : i32
    %c1_i32_829 = arith.constant 1 : i32
    %1309 = arith.addi %1308, %c1_i32_829 : i32
    %1310 = arith.index_cast %1309 : i32 to index
    %1311 = memref.load %arg1[%1310] : memref<512xi32, #tpu.memory_space<smem>>
    %1312 = arith.index_cast %1311 : i32 to index
    %c0_830 = arith.constant 0 : index
    %1313 = vector.load %arg2[%1312, %c0_830] : memref<50x32xf32, #tpu.memory_space<vmem>>, vector<1x32xf32>
    %c18_831 = arith.constant 18 : index
    %c1_832 = arith.constant 1 : index
    %c0_833 = arith.constant 0 : index
    %1314 = vector.load %arg9[%c18_831, %c1_832, %c0_833] : memref<32x11x32xf32, #tpu.memory_space<vmem>>, vector<1x1x32xf32>
    %1315 = vector.shape_cast %1314 : vector<1x1x32xf32> to vector<1x32xf32>
    %1316 = vector.shape_cast %1313 : vector<1x32xf32> to vector<1x1x32xf32>
    tpu.vector_store %arg9[%c18_831, %c1_832, %c0_833], %1316 {strides = array<i32>} : memref<32x11x32xf32, #tpu.memory_space<vmem>>, vector<1x1x32xf32>,
    %c144_i32_834 = arith.constant 144 : i32
    %1317 = arith.addi %2, %c144_i32_834 : i32
    %c2_i32_835 = arith.constant 2 : i32
    %1318 = arith.addi %1317, %c2_i32_835 : i32
    %1319 = arith.index_cast %1318 : i32 to index
    %1320 = memref.load %arg1[%1319] : memref<512xi32, #tpu.memory_space<smem>>
    %1321 = arith.index_cast %1320 : i32 to index
    %c0_836 = arith.constant 0 : index
    %1322 = vector.load %arg2[%1321, %c0_836] : memref<50x32xf32, #tpu.memory_space<vmem>>, vector<1x32xf32>
    %c18_837 = arith.constant 18 : index
    %c2_838 = arith.constant 2 : index
    %c0_839 = arith.constant 0 : index
    %1323 = vector.load %arg9[%c18_837, %c2_838, %c0_839] : memref<32x11x32xf32, #tpu.memory_space<vmem>>, vector<1x1x32xf32>
    %1324 = vector.shape_cast %1323 : vector<1x1x32xf32> to vector<1x32xf32>
    %1325 = vector.shape_cast %1322 : vector<1x32xf32> to vector<1x1x32xf32>
    tpu.vector_store %arg9[%c18_837, %c2_838, %c0_839], %1325 {strides = array<i32>} : memref<32x11x32xf32, #tpu.memory_space<vmem>>, vector<1x1x32xf32>,
    %c144_i32_840 = arith.constant 144 : i32
    %1326 = arith.addi %2, %c144_i32_840 : i32
    %c3_i32_841 = arith.constant 3 : i32
    %1327 = arith.addi %1326, %c3_i32_841 : i32
    %1328 = arith.index_cast %1327 : i32 to index
    %1329 = memref.load %arg1[%1328] : memref<512xi32, #tpu.memory_space<smem>>
    %1330 = arith.index_cast %1329 : i32 to index
    %c0_842 = arith.constant 0 : index
    %1331 = vector.load %arg2[%1330, %c0_842] : memref<50x32xf32, #tpu.memory_space<vmem>>, vector<1x32xf32>
    %c18_843 = arith.constant 18 : index
    %c3_844 = arith.constant 3 : index
    %c0_845 = arith.constant 0 : index
    %1332 = vector.load %arg9[%c18_843, %c3_844, %c0_845] : memref<32x11x32xf32, #tpu.memory_space<vmem>>, vector<1x1x32xf32>
    %1333 = vector.shape_cast %1332 : vector<1x1x32xf32> to vector<1x32xf32>
    %1334 = vector.shape_cast %1331 : vector<1x32xf32> to vector<1x1x32xf32>
    tpu.vector_store %arg9[%c18_843, %c3_844, %c0_845], %1334 {strides = array<i32>} : memref<32x11x32xf32, #tpu.memory_space<vmem>>, vector<1x1x32xf32>,
    %c144_i32_846 = arith.constant 144 : i32
    %1335 = arith.addi %2, %c144_i32_846 : i32
    %c4_i32_847 = arith.constant 4 : i32
    %1336 = arith.addi %1335, %c4_i32_847 : i32
    %1337 = arith.index_cast %1336 : i32 to index
    %1338 = memref.load %arg1[%1337] : memref<512xi32, #tpu.memory_space<smem>>
    %1339 = arith.index_cast %1338 : i32 to index
    %c0_848 = arith.constant 0 : index
    %1340 = vector.load %arg2[%1339, %c0_848] : memref<50x32xf32, #tpu.memory_space<vmem>>, vector<1x32xf32>
    %c18_849 = arith.constant 18 : index
    %c4_850 = arith.constant 4 : index
    %c0_851 = arith.constant 0 : index
    %1341 = vector.load %arg9[%c18_849, %c4_850, %c0_851] : memref<32x11x32xf32, #tpu.memory_space<vmem>>, vector<1x1x32xf32>
    %1342 = vector.shape_cast %1341 : vector<1x1x32xf32> to vector<1x32xf32>
    %1343 = vector.shape_cast %1340 : vector<1x32xf32> to vector<1x1x32xf32>
    tpu.vector_store %arg9[%c18_849, %c4_850, %c0_851], %1343 {strides = array<i32>} : memref<32x11x32xf32, #tpu.memory_space<vmem>>, vector<1x1x32xf32>,
    %c144_i32_852 = arith.constant 144 : i32
    %1344 = arith.addi %2, %c144_i32_852 : i32
    %c5_i32_853 = arith.constant 5 : i32
    %1345 = arith.addi %1344, %c5_i32_853 : i32
    %1346 = arith.index_cast %1345 : i32 to index
    %1347 = memref.load %arg1[%1346] : memref<512xi32, #tpu.memory_space<smem>>
    %1348 = arith.index_cast %1347 : i32 to index
    %c0_854 = arith.constant 0 : index
    %1349 = vector.load %arg2[%1348, %c0_854] : memref<50x32xf32, #tpu.memory_space<vmem>>, vector<1x32xf32>
    %c18_855 = arith.constant 18 : index
    %c5_856 = arith.constant 5 : index
    %c0_857 = arith.constant 0 : index
    %1350 = vector.load %arg9[%c18_855, %c5_856, %c0_857] : memref<32x11x32xf32, #tpu.memory_space<vmem>>, vector<1x1x32xf32>
    %1351 = vector.shape_cast %1350 : vector<1x1x32xf32> to vector<1x32xf32>
    %1352 = vector.shape_cast %1349 : vector<1x32xf32> to vector<1x1x32xf32>
    tpu.vector_store %arg9[%c18_855, %c5_856, %c0_857], %1352 {strides = array<i32>} : memref<32x11x32xf32, #tpu.memory_space<vmem>>, vector<1x1x32xf32>,
    %c144_i32_858 = arith.constant 144 : i32
    %1353 = arith.addi %2, %c144_i32_858 : i32
    %c6_i32_859 = arith.constant 6 : i32
    %1354 = arith.addi %1353, %c6_i32_859 : i32
    %1355 = arith.index_cast %1354 : i32 to index
    %1356 = memref.load %arg1[%1355] : memref<512xi32, #tpu.memory_space<smem>>
    %1357 = arith.index_cast %1356 : i32 to index
    %c0_860 = arith.constant 0 : index
    %1358 = vector.load %arg2[%1357, %c0_860] : memref<50x32xf32, #tpu.memory_space<vmem>>, vector<1x32xf32>
    %c18_861 = arith.constant 18 : index
    %c6_862 = arith.constant 6 : index
    %c0_863 = arith.constant 0 : index
    %1359 = vector.load %arg9[%c18_861, %c6_862, %c0_863] : memref<32x11x32xf32, #tpu.memory_space<vmem>>, vector<1x1x32xf32>
    %1360 = vector.shape_cast %1359 : vector<1x1x32xf32> to vector<1x32xf32>
    %1361 = vector.shape_cast %1358 : vector<1x32xf32> to vector<1x1x32xf32>
    tpu.vector_store %arg9[%c18_861, %c6_862, %c0_863], %1361 {strides = array<i32>} : memref<32x11x32xf32, #tpu.memory_space<vmem>>, vector<1x1x32xf32>,
    %c144_i32_864 = arith.constant 144 : i32
    %1362 = arith.addi %2, %c144_i32_864 : i32
    %c7_i32_865 = arith.constant 7 : i32
    %1363 = arith.addi %1362, %c7_i32_865 : i32
    %1364 = arith.index_cast %1363 : i32 to index
    %1365 = memref.load %arg1[%1364] : memref<512xi32, #tpu.memory_space<smem>>
    %1366 = arith.index_cast %1365 : i32 to index
    %c0_866 = arith.constant 0 : index
    %1367 = vector.load %arg2[%1366, %c0_866] : memref<50x32xf32, #tpu.memory_space<vmem>>, vector<1x32xf32>
    %c18_867 = arith.constant 18 : index
    %c7_868 = arith.constant 7 : index
    %c0_869 = arith.constant 0 : index
    %1368 = vector.load %arg9[%c18_867, %c7_868, %c0_869] : memref<32x11x32xf32, #tpu.memory_space<vmem>>, vector<1x1x32xf32>
    %1369 = vector.shape_cast %1368 : vector<1x1x32xf32> to vector<1x32xf32>
    %1370 = vector.shape_cast %1367 : vector<1x32xf32> to vector<1x1x32xf32>
    tpu.vector_store %arg9[%c18_867, %c7_868, %c0_869], %1370 {strides = array<i32>} : memref<32x11x32xf32, #tpu.memory_space<vmem>>, vector<1x1x32xf32>,
    %c152_i32 = arith.constant 152 : i32
    %1371 = arith.addi %2, %c152_i32 : i32
    %c0_i32_870 = arith.constant 0 : i32
    %1372 = arith.addi %1371, %c0_i32_870 : i32
    %1373 = arith.index_cast %1372 : i32 to index
    %1374 = memref.load %arg1[%1373] : memref<512xi32, #tpu.memory_space<smem>>
    %1375 = arith.index_cast %1374 : i32 to index
    %c0_871 = arith.constant 0 : index
    %1376 = vector.load %arg2[%1375, %c0_871] : memref<50x32xf32, #tpu.memory_space<vmem>>, vector<1x32xf32>
    %c19 = arith.constant 19 : index
    %c0_872 = arith.constant 0 : index
    %c0_873 = arith.constant 0 : index
    %1377 = vector.load %arg9[%c19, %c0_872, %c0_873] : memref<32x11x32xf32, #tpu.memory_space<vmem>>, vector<1x1x32xf32>
    %1378 = vector.shape_cast %1377 : vector<1x1x32xf32> to vector<1x32xf32>
    %1379 = vector.shape_cast %1376 : vector<1x32xf32> to vector<1x1x32xf32>
    tpu.vector_store %arg9[%c19, %c0_872, %c0_873], %1379 {strides = array<i32>} : memref<32x11x32xf32, #tpu.memory_space<vmem>>, vector<1x1x32xf32>,
    %c152_i32_874 = arith.constant 152 : i32
    %1380 = arith.addi %2, %c152_i32_874 : i32
    %c1_i32_875 = arith.constant 1 : i32
    %1381 = arith.addi %1380, %c1_i32_875 : i32
    %1382 = arith.index_cast %1381 : i32 to index
    %1383 = memref.load %arg1[%1382] : memref<512xi32, #tpu.memory_space<smem>>
    %1384 = arith.index_cast %1383 : i32 to index
    %c0_876 = arith.constant 0 : index
    %1385 = vector.load %arg2[%1384, %c0_876] : memref<50x32xf32, #tpu.memory_space<vmem>>, vector<1x32xf32>
    %c19_877 = arith.constant 19 : index
    %c1_878 = arith.constant 1 : index
    %c0_879 = arith.constant 0 : index
    %1386 = vector.load %arg9[%c19_877, %c1_878, %c0_879] : memref<32x11x32xf32, #tpu.memory_space<vmem>>, vector<1x1x32xf32>
    %1387 = vector.shape_cast %1386 : vector<1x1x32xf32> to vector<1x32xf32>
    %1388 = vector.shape_cast %1385 : vector<1x32xf32> to vector<1x1x32xf32>
    tpu.vector_store %arg9[%c19_877, %c1_878, %c0_879], %1388 {strides = array<i32>} : memref<32x11x32xf32, #tpu.memory_space<vmem>>, vector<1x1x32xf32>,
    %c152_i32_880 = arith.constant 152 : i32
    %1389 = arith.addi %2, %c152_i32_880 : i32
    %c2_i32_881 = arith.constant 2 : i32
    %1390 = arith.addi %1389, %c2_i32_881 : i32
    %1391 = arith.index_cast %1390 : i32 to index
    %1392 = memref.load %arg1[%1391] : memref<512xi32, #tpu.memory_space<smem>>
    %1393 = arith.index_cast %1392 : i32 to index
    %c0_882 = arith.constant 0 : index
    %1394 = vector.load %arg2[%1393, %c0_882] : memref<50x32xf32, #tpu.memory_space<vmem>>, vector<1x32xf32>
    %c19_883 = arith.constant 19 : index
    %c2_884 = arith.constant 2 : index
    %c0_885 = arith.constant 0 : index
    %1395 = vector.load %arg9[%c19_883, %c2_884, %c0_885] : memref<32x11x32xf32, #tpu.memory_space<vmem>>, vector<1x1x32xf32>
    %1396 = vector.shape_cast %1395 : vector<1x1x32xf32> to vector<1x32xf32>
    %1397 = vector.shape_cast %1394 : vector<1x32xf32> to vector<1x1x32xf32>
    tpu.vector_store %arg9[%c19_883, %c2_884, %c0_885], %1397 {strides = array<i32>} : memref<32x11x32xf32, #tpu.memory_space<vmem>>, vector<1x1x32xf32>,
    %c152_i32_886 = arith.constant 152 : i32
    %1398 = arith.addi %2, %c152_i32_886 : i32
    %c3_i32_887 = arith.constant 3 : i32
    %1399 = arith.addi %1398, %c3_i32_887 : i32
    %1400 = arith.index_cast %1399 : i32 to index
    %1401 = memref.load %arg1[%1400] : memref<512xi32, #tpu.memory_space<smem>>
    %1402 = arith.index_cast %1401 : i32 to index
    %c0_888 = arith.constant 0 : index
    %1403 = vector.load %arg2[%1402, %c0_888] : memref<50x32xf32, #tpu.memory_space<vmem>>, vector<1x32xf32>
    %c19_889 = arith.constant 19 : index
    %c3_890 = arith.constant 3 : index
    %c0_891 = arith.constant 0 : index
    %1404 = vector.load %arg9[%c19_889, %c3_890, %c0_891] : memref<32x11x32xf32, #tpu.memory_space<vmem>>, vector<1x1x32xf32>
    %1405 = vector.shape_cast %1404 : vector<1x1x32xf32> to vector<1x32xf32>
    %1406 = vector.shape_cast %1403 : vector<1x32xf32> to vector<1x1x32xf32>
    tpu.vector_store %arg9[%c19_889, %c3_890, %c0_891], %1406 {strides = array<i32>} : memref<32x11x32xf32, #tpu.memory_space<vmem>>, vector<1x1x32xf32>,
    %c152_i32_892 = arith.constant 152 : i32
    %1407 = arith.addi %2, %c152_i32_892 : i32
    %c4_i32_893 = arith.constant 4 : i32
    %1408 = arith.addi %1407, %c4_i32_893 : i32
    %1409 = arith.index_cast %1408 : i32 to index
    %1410 = memref.load %arg1[%1409] : memref<512xi32, #tpu.memory_space<smem>>
    %1411 = arith.index_cast %1410 : i32 to index
    %c0_894 = arith.constant 0 : index
    %1412 = vector.load %arg2[%1411, %c0_894] : memref<50x32xf32, #tpu.memory_space<vmem>>, vector<1x32xf32>
    %c19_895 = arith.constant 19 : index
    %c4_896 = arith.constant 4 : index
    %c0_897 = arith.constant 0 : index
    %1413 = vector.load %arg9[%c19_895, %c4_896, %c0_897] : memref<32x11x32xf32, #tpu.memory_space<vmem>>, vector<1x1x32xf32>
    %1414 = vector.shape_cast %1413 : vector<1x1x32xf32> to vector<1x32xf32>
    %1415 = vector.shape_cast %1412 : vector<1x32xf32> to vector<1x1x32xf32>
    tpu.vector_store %arg9[%c19_895, %c4_896, %c0_897], %1415 {strides = array<i32>} : memref<32x11x32xf32, #tpu.memory_space<vmem>>, vector<1x1x32xf32>,
    %c152_i32_898 = arith.constant 152 : i32
    %1416 = arith.addi %2, %c152_i32_898 : i32
    %c5_i32_899 = arith.constant 5 : i32
    %1417 = arith.addi %1416, %c5_i32_899 : i32
    %1418 = arith.index_cast %1417 : i32 to index
    %1419 = memref.load %arg1[%1418] : memref<512xi32, #tpu.memory_space<smem>>
    %1420 = arith.index_cast %1419 : i32 to index
    %c0_900 = arith.constant 0 : index
    %1421 = vector.load %arg2[%1420, %c0_900] : memref<50x32xf32, #tpu.memory_space<vmem>>, vector<1x32xf32>
    %c19_901 = arith.constant 19 : index
    %c5_902 = arith.constant 5 : index
    %c0_903 = arith.constant 0 : index
    %1422 = vector.load %arg9[%c19_901, %c5_902, %c0_903] : memref<32x11x32xf32, #tpu.memory_space<vmem>>, vector<1x1x32xf32>
    %1423 = vector.shape_cast %1422 : vector<1x1x32xf32> to vector<1x32xf32>
    %1424 = vector.shape_cast %1421 : vector<1x32xf32> to vector<1x1x32xf32>
    tpu.vector_store %arg9[%c19_901, %c5_902, %c0_903], %1424 {strides = array<i32>} : memref<32x11x32xf32, #tpu.memory_space<vmem>>, vector<1x1x32xf32>,
    %c152_i32_904 = arith.constant 152 : i32
    %1425 = arith.addi %2, %c152_i32_904 : i32
    %c6_i32_905 = arith.constant 6 : i32
    %1426 = arith.addi %1425, %c6_i32_905 : i32
    %1427 = arith.index_cast %1426 : i32 to index
    %1428 = memref.load %arg1[%1427] : memref<512xi32, #tpu.memory_space<smem>>
    %1429 = arith.index_cast %1428 : i32 to index
    %c0_906 = arith.constant 0 : index
    %1430 = vector.load %arg2[%1429, %c0_906] : memref<50x32xf32, #tpu.memory_space<vmem>>, vector<1x32xf32>
    %c19_907 = arith.constant 19 : index
    %c6_908 = arith.constant 6 : index
    %c0_909 = arith.constant 0 : index
    %1431 = vector.load %arg9[%c19_907, %c6_908, %c0_909] : memref<32x11x32xf32, #tpu.memory_space<vmem>>, vector<1x1x32xf32>
    %1432 = vector.shape_cast %1431 : vector<1x1x32xf32> to vector<1x32xf32>
    %1433 = vector.shape_cast %1430 : vector<1x32xf32> to vector<1x1x32xf32>
    tpu.vector_store %arg9[%c19_907, %c6_908, %c0_909], %1433 {strides = array<i32>} : memref<32x11x32xf32, #tpu.memory_space<vmem>>, vector<1x1x32xf32>,
    %c152_i32_910 = arith.constant 152 : i32
    %1434 = arith.addi %2, %c152_i32_910 : i32
    %c7_i32_911 = arith.constant 7 : i32
    %1435 = arith.addi %1434, %c7_i32_911 : i32
    %1436 = arith.index_cast %1435 : i32 to index
    %1437 = memref.load %arg1[%1436] : memref<512xi32, #tpu.memory_space<smem>>
    %1438 = arith.index_cast %1437 : i32 to index
    %c0_912 = arith.constant 0 : index
    %1439 = vector.load %arg2[%1438, %c0_912] : memref<50x32xf32, #tpu.memory_space<vmem>>, vector<1x32xf32>
    %c19_913 = arith.constant 19 : index
    %c7_914 = arith.constant 7 : index
    %c0_915 = arith.constant 0 : index
    %1440 = vector.load %arg9[%c19_913, %c7_914, %c0_915] : memref<32x11x32xf32, #tpu.memory_space<vmem>>, vector<1x1x32xf32>
    %1441 = vector.shape_cast %1440 : vector<1x1x32xf32> to vector<1x32xf32>
    %1442 = vector.shape_cast %1439 : vector<1x32xf32> to vector<1x1x32xf32>
    tpu.vector_store %arg9[%c19_913, %c7_914, %c0_915], %1442 {strides = array<i32>} : memref<32x11x32xf32, #tpu.memory_space<vmem>>, vector<1x1x32xf32>,
    %c160_i32 = arith.constant 160 : i32
    %1443 = arith.addi %2, %c160_i32 : i32
    %c0_i32_916 = arith.constant 0 : i32
    %1444 = arith.addi %1443, %c0_i32_916 : i32
    %1445 = arith.index_cast %1444 : i32 to index
    %1446 = memref.load %arg1[%1445] : memref<512xi32, #tpu.memory_space<smem>>
    %1447 = arith.index_cast %1446 : i32 to index
    %c0_917 = arith.constant 0 : index
    %1448 = vector.load %arg2[%1447, %c0_917] : memref<50x32xf32, #tpu.memory_space<vmem>>, vector<1x32xf32>
    %c20 = arith.constant 20 : index
    %c0_918 = arith.constant 0 : index
    %c0_919 = arith.constant 0 : index
    %1449 = vector.load %arg9[%c20, %c0_918, %c0_919] : memref<32x11x32xf32, #tpu.memory_space<vmem>>, vector<1x1x32xf32>
    %1450 = vector.shape_cast %1449 : vector<1x1x32xf32> to vector<1x32xf32>
    %1451 = vector.shape_cast %1448 : vector<1x32xf32> to vector<1x1x32xf32>
    tpu.vector_store %arg9[%c20, %c0_918, %c0_919], %1451 {strides = array<i32>} : memref<32x11x32xf32, #tpu.memory_space<vmem>>, vector<1x1x32xf32>,
    %c160_i32_920 = arith.constant 160 : i32
    %1452 = arith.addi %2, %c160_i32_920 : i32
    %c1_i32_921 = arith.constant 1 : i32
    %1453 = arith.addi %1452, %c1_i32_921 : i32
    %1454 = arith.index_cast %1453 : i32 to index
    %1455 = memref.load %arg1[%1454] : memref<512xi32, #tpu.memory_space<smem>>
    %1456 = arith.index_cast %1455 : i32 to index
    %c0_922 = arith.constant 0 : index
    %1457 = vector.load %arg2[%1456, %c0_922] : memref<50x32xf32, #tpu.memory_space<vmem>>, vector<1x32xf32>
    %c20_923 = arith.constant 20 : index
    %c1_924 = arith.constant 1 : index
    %c0_925 = arith.constant 0 : index
    %1458 = vector.load %arg9[%c20_923, %c1_924, %c0_925] : memref<32x11x32xf32, #tpu.memory_space<vmem>>, vector<1x1x32xf32>
    %1459 = vector.shape_cast %1458 : vector<1x1x32xf32> to vector<1x32xf32>
    %1460 = vector.shape_cast %1457 : vector<1x32xf32> to vector<1x1x32xf32>
    tpu.vector_store %arg9[%c20_923, %c1_924, %c0_925], %1460 {strides = array<i32>} : memref<32x11x32xf32, #tpu.memory_space<vmem>>, vector<1x1x32xf32>,
    %c160_i32_926 = arith.constant 160 : i32
    %1461 = arith.addi %2, %c160_i32_926 : i32
    %c2_i32_927 = arith.constant 2 : i32
    %1462 = arith.addi %1461, %c2_i32_927 : i32
    %1463 = arith.index_cast %1462 : i32 to index
    %1464 = memref.load %arg1[%1463] : memref<512xi32, #tpu.memory_space<smem>>
    %1465 = arith.index_cast %1464 : i32 to index
    %c0_928 = arith.constant 0 : index
    %1466 = vector.load %arg2[%1465, %c0_928] : memref<50x32xf32, #tpu.memory_space<vmem>>, vector<1x32xf32>
    %c20_929 = arith.constant 20 : index
    %c2_930 = arith.constant 2 : index
    %c0_931 = arith.constant 0 : index
    %1467 = vector.load %arg9[%c20_929, %c2_930, %c0_931] : memref<32x11x32xf32, #tpu.memory_space<vmem>>, vector<1x1x32xf32>
    %1468 = vector.shape_cast %1467 : vector<1x1x32xf32> to vector<1x32xf32>
    %1469 = vector.shape_cast %1466 : vector<1x32xf32> to vector<1x1x32xf32>
    tpu.vector_store %arg9[%c20_929, %c2_930, %c0_931], %1469 {strides = array<i32>} : memref<32x11x32xf32, #tpu.memory_space<vmem>>, vector<1x1x32xf32>,
    %c160_i32_932 = arith.constant 160 : i32
    %1470 = arith.addi %2, %c160_i32_932 : i32
    %c3_i32_933 = arith.constant 3 : i32
    %1471 = arith.addi %1470, %c3_i32_933 : i32
    %1472 = arith.index_cast %1471 : i32 to index
    %1473 = memref.load %arg1[%1472] : memref<512xi32, #tpu.memory_space<smem>>
    %1474 = arith.index_cast %1473 : i32 to index
    %c0_934 = arith.constant 0 : index
    %1475 = vector.load %arg2[%1474, %c0_934] : memref<50x32xf32, #tpu.memory_space<vmem>>, vector<1x32xf32>
    %c20_935 = arith.constant 20 : index
    %c3_936 = arith.constant 3 : index
    %c0_937 = arith.constant 0 : index
    %1476 = vector.load %arg9[%c20_935, %c3_936, %c0_937] : memref<32x11x32xf32, #tpu.memory_space<vmem>>, vector<1x1x32xf32>
    %1477 = vector.shape_cast %1476 : vector<1x1x32xf32> to vector<1x32xf32>
    %1478 = vector.shape_cast %1475 : vector<1x32xf32> to vector<1x1x32xf32>
    tpu.vector_store %arg9[%c20_935, %c3_936, %c0_937], %1478 {strides = array<i32>} : memref<32x11x32xf32, #tpu.memory_space<vmem>>, vector<1x1x32xf32>,
    %c160_i32_938 = arith.constant 160 : i32
    %1479 = arith.addi %2, %c160_i32_938 : i32
    %c4_i32_939 = arith.constant 4 : i32
    %1480 = arith.addi %1479, %c4_i32_939 : i32
    %1481 = arith.index_cast %1480 : i32 to index
    %1482 = memref.load %arg1[%1481] : memref<512xi32, #tpu.memory_space<smem>>
    %1483 = arith.index_cast %1482 : i32 to index
    %c0_940 = arith.constant 0 : index
    %1484 = vector.load %arg2[%1483, %c0_940] : memref<50x32xf32, #tpu.memory_space<vmem>>, vector<1x32xf32>
    %c20_941 = arith.constant 20 : index
    %c4_942 = arith.constant 4 : index
    %c0_943 = arith.constant 0 : index
    %1485 = vector.load %arg9[%c20_941, %c4_942, %c0_943] : memref<32x11x32xf32, #tpu.memory_space<vmem>>, vector<1x1x32xf32>
    %1486 = vector.shape_cast %1485 : vector<1x1x32xf32> to vector<1x32xf32>
    %1487 = vector.shape_cast %1484 : vector<1x32xf32> to vector<1x1x32xf32>
    tpu.vector_store %arg9[%c20_941, %c4_942, %c0_943], %1487 {strides = array<i32>} : memref<32x11x32xf32, #tpu.memory_space<vmem>>, vector<1x1x32xf32>,
    %c160_i32_944 = arith.constant 160 : i32
    %1488 = arith.addi %2, %c160_i32_944 : i32
    %c5_i32_945 = arith.constant 5 : i32
    %1489 = arith.addi %1488, %c5_i32_945 : i32
    %1490 = arith.index_cast %1489 : i32 to index
    %1491 = memref.load %arg1[%1490] : memref<512xi32, #tpu.memory_space<smem>>
    %1492 = arith.index_cast %1491 : i32 to index
    %c0_946 = arith.constant 0 : index
    %1493 = vector.load %arg2[%1492, %c0_946] : memref<50x32xf32, #tpu.memory_space<vmem>>, vector<1x32xf32>
    %c20_947 = arith.constant 20 : index
    %c5_948 = arith.constant 5 : index
    %c0_949 = arith.constant 0 : index
    %1494 = vector.load %arg9[%c20_947, %c5_948, %c0_949] : memref<32x11x32xf32, #tpu.memory_space<vmem>>, vector<1x1x32xf32>
    %1495 = vector.shape_cast %1494 : vector<1x1x32xf32> to vector<1x32xf32>
    %1496 = vector.shape_cast %1493 : vector<1x32xf32> to vector<1x1x32xf32>
    tpu.vector_store %arg9[%c20_947, %c5_948, %c0_949], %1496 {strides = array<i32>} : memref<32x11x32xf32, #tpu.memory_space<vmem>>, vector<1x1x32xf32>,
    %c160_i32_950 = arith.constant 160 : i32
    %1497 = arith.addi %2, %c160_i32_950 : i32
    %c6_i32_951 = arith.constant 6 : i32
    %1498 = arith.addi %1497, %c6_i32_951 : i32
    %1499 = arith.index_cast %1498 : i32 to index
    %1500 = memref.load %arg1[%1499] : memref<512xi32, #tpu.memory_space<smem>>
    %1501 = arith.index_cast %1500 : i32 to index
    %c0_952 = arith.constant 0 : index
    %1502 = vector.load %arg2[%1501, %c0_952] : memref<50x32xf32, #tpu.memory_space<vmem>>, vector<1x32xf32>
    %c20_953 = arith.constant 20 : index
    %c6_954 = arith.constant 6 : index
    %c0_955 = arith.constant 0 : index
    %1503 = vector.load %arg9[%c20_953, %c6_954, %c0_955] : memref<32x11x32xf32, #tpu.memory_space<vmem>>, vector<1x1x32xf32>
    %1504 = vector.shape_cast %1503 : vector<1x1x32xf32> to vector<1x32xf32>
    %1505 = vector.shape_cast %1502 : vector<1x32xf32> to vector<1x1x32xf32>
    tpu.vector_store %arg9[%c20_953, %c6_954, %c0_955], %1505 {strides = array<i32>} : memref<32x11x32xf32, #tpu.memory_space<vmem>>, vector<1x1x32xf32>,
    %c160_i32_956 = arith.constant 160 : i32
    %1506 = arith.addi %2, %c160_i32_956 : i32
    %c7_i32_957 = arith.constant 7 : i32
    %1507 = arith.addi %1506, %c7_i32_957 : i32
    %1508 = arith.index_cast %1507 : i32 to index
    %1509 = memref.load %arg1[%1508] : memref<512xi32, #tpu.memory_space<smem>>
    %1510 = arith.index_cast %1509 : i32 to index
    %c0_958 = arith.constant 0 : index
    %1511 = vector.load %arg2[%1510, %c0_958] : memref<50x32xf32, #tpu.memory_space<vmem>>, vector<1x32xf32>
    %c20_959 = arith.constant 20 : index
    %c7_960 = arith.constant 7 : index
    %c0_961 = arith.constant 0 : index
    %1512 = vector.load %arg9[%c20_959, %c7_960, %c0_961] : memref<32x11x32xf32, #tpu.memory_space<vmem>>, vector<1x1x32xf32>
    %1513 = vector.shape_cast %1512 : vector<1x1x32xf32> to vector<1x32xf32>
    %1514 = vector.shape_cast %1511 : vector<1x32xf32> to vector<1x1x32xf32>
    tpu.vector_store %arg9[%c20_959, %c7_960, %c0_961], %1514 {strides = array<i32>} : memref<32x11x32xf32, #tpu.memory_space<vmem>>, vector<1x1x32xf32>,
    %c168_i32 = arith.constant 168 : i32
    %1515 = arith.addi %2, %c168_i32 : i32
    %c0_i32_962 = arith.constant 0 : i32
    %1516 = arith.addi %1515, %c0_i32_962 : i32
    %1517 = arith.index_cast %1516 : i32 to index
    %1518 = memref.load %arg1[%1517] : memref<512xi32, #tpu.memory_space<smem>>
    %1519 = arith.index_cast %1518 : i32 to index
    %c0_963 = arith.constant 0 : index
    %1520 = vector.load %arg2[%1519, %c0_963] : memref<50x32xf32, #tpu.memory_space<vmem>>, vector<1x32xf32>
    %c21 = arith.constant 21 : index
    %c0_964 = arith.constant 0 : index
    %c0_965 = arith.constant 0 : index
    %1521 = vector.load %arg9[%c21, %c0_964, %c0_965] : memref<32x11x32xf32, #tpu.memory_space<vmem>>, vector<1x1x32xf32>
    %1522 = vector.shape_cast %1521 : vector<1x1x32xf32> to vector<1x32xf32>
    %1523 = vector.shape_cast %1520 : vector<1x32xf32> to vector<1x1x32xf32>
    tpu.vector_store %arg9[%c21, %c0_964, %c0_965], %1523 {strides = array<i32>} : memref<32x11x32xf32, #tpu.memory_space<vmem>>, vector<1x1x32xf32>,
    %c168_i32_966 = arith.constant 168 : i32
    %1524 = arith.addi %2, %c168_i32_966 : i32
    %c1_i32_967 = arith.constant 1 : i32
    %1525 = arith.addi %1524, %c1_i32_967 : i32
    %1526 = arith.index_cast %1525 : i32 to index
    %1527 = memref.load %arg1[%1526] : memref<512xi32, #tpu.memory_space<smem>>
    %1528 = arith.index_cast %1527 : i32 to index
    %c0_968 = arith.constant 0 : index
    %1529 = vector.load %arg2[%1528, %c0_968] : memref<50x32xf32, #tpu.memory_space<vmem>>, vector<1x32xf32>
    %c21_969 = arith.constant 21 : index
    %c1_970 = arith.constant 1 : index
    %c0_971 = arith.constant 0 : index
    %1530 = vector.load %arg9[%c21_969, %c1_970, %c0_971] : memref<32x11x32xf32, #tpu.memory_space<vmem>>, vector<1x1x32xf32>
    %1531 = vector.shape_cast %1530 : vector<1x1x32xf32> to vector<1x32xf32>
    %1532 = vector.shape_cast %1529 : vector<1x32xf32> to vector<1x1x32xf32>
    tpu.vector_store %arg9[%c21_969, %c1_970, %c0_971], %1532 {strides = array<i32>} : memref<32x11x32xf32, #tpu.memory_space<vmem>>, vector<1x1x32xf32>,
    %c168_i32_972 = arith.constant 168 : i32
    %1533 = arith.addi %2, %c168_i32_972 : i32
    %c2_i32_973 = arith.constant 2 : i32
    %1534 = arith.addi %1533, %c2_i32_973 : i32
    %1535 = arith.index_cast %1534 : i32 to index
    %1536 = memref.load %arg1[%1535] : memref<512xi32, #tpu.memory_space<smem>>
    %1537 = arith.index_cast %1536 : i32 to index
    %c0_974 = arith.constant 0 : index
    %1538 = vector.load %arg2[%1537, %c0_974] : memref<50x32xf32, #tpu.memory_space<vmem>>, vector<1x32xf32>
    %c21_975 = arith.constant 21 : index
    %c2_976 = arith.constant 2 : index
    %c0_977 = arith.constant 0 : index
    %1539 = vector.load %arg9[%c21_975, %c2_976, %c0_977] : memref<32x11x32xf32, #tpu.memory_space<vmem>>, vector<1x1x32xf32>
    %1540 = vector.shape_cast %1539 : vector<1x1x32xf32> to vector<1x32xf32>
    %1541 = vector.shape_cast %1538 : vector<1x32xf32> to vector<1x1x32xf32>
    tpu.vector_store %arg9[%c21_975, %c2_976, %c0_977], %1541 {strides = array<i32>} : memref<32x11x32xf32, #tpu.memory_space<vmem>>, vector<1x1x32xf32>,
    %c168_i32_978 = arith.constant 168 : i32
    %1542 = arith.addi %2, %c168_i32_978 : i32
    %c3_i32_979 = arith.constant 3 : i32
    %1543 = arith.addi %1542, %c3_i32_979 : i32
    %1544 = arith.index_cast %1543 : i32 to index
    %1545 = memref.load %arg1[%1544] : memref<512xi32, #tpu.memory_space<smem>>
    %1546 = arith.index_cast %1545 : i32 to index
    %c0_980 = arith.constant 0 : index
    %1547 = vector.load %arg2[%1546, %c0_980] : memref<50x32xf32, #tpu.memory_space<vmem>>, vector<1x32xf32>
    %c21_981 = arith.constant 21 : index
    %c3_982 = arith.constant 3 : index
    %c0_983 = arith.constant 0 : index
    %1548 = vector.load %arg9[%c21_981, %c3_982, %c0_983] : memref<32x11x32xf32, #tpu.memory_space<vmem>>, vector<1x1x32xf32>
    %1549 = vector.shape_cast %1548 : vector<1x1x32xf32> to vector<1x32xf32>
    %1550 = vector.shape_cast %1547 : vector<1x32xf32> to vector<1x1x32xf32>
    tpu.vector_store %arg9[%c21_981, %c3_982, %c0_983], %1550 {strides = array<i32>} : memref<32x11x32xf32, #tpu.memory_space<vmem>>, vector<1x1x32xf32>,
    %c168_i32_984 = arith.constant 168 : i32
    %1551 = arith.addi %2, %c168_i32_984 : i32
    %c4_i32_985 = arith.constant 4 : i32
    %1552 = arith.addi %1551, %c4_i32_985 : i32
    %1553 = arith.index_cast %1552 : i32 to index
    %1554 = memref.load %arg1[%1553] : memref<512xi32, #tpu.memory_space<smem>>
    %1555 = arith.index_cast %1554 : i32 to index
    %c0_986 = arith.constant 0 : index
    %1556 = vector.load %arg2[%1555, %c0_986] : memref<50x32xf32, #tpu.memory_space<vmem>>, vector<1x32xf32>
    %c21_987 = arith.constant 21 : index
    %c4_988 = arith.constant 4 : index
    %c0_989 = arith.constant 0 : index
    %1557 = vector.load %arg9[%c21_987, %c4_988, %c0_989] : memref<32x11x32xf32, #tpu.memory_space<vmem>>, vector<1x1x32xf32>
    %1558 = vector.shape_cast %1557 : vector<1x1x32xf32> to vector<1x32xf32>
    %1559 = vector.shape_cast %1556 : vector<1x32xf32> to vector<1x1x32xf32>
    tpu.vector_store %arg9[%c21_987, %c4_988, %c0_989], %1559 {strides = array<i32>} : memref<32x11x32xf32, #tpu.memory_space<vmem>>, vector<1x1x32xf32>,
    %c168_i32_990 = arith.constant 168 : i32
    %1560 = arith.addi %2, %c168_i32_990 : i32
    %c5_i32_991 = arith.constant 5 : i32
    %1561 = arith.addi %1560, %c5_i32_991 : i32
    %1562 = arith.index_cast %1561 : i32 to index
    %1563 = memref.load %arg1[%1562] : memref<512xi32, #tpu.memory_space<smem>>
    %1564 = arith.index_cast %1563 : i32 to index
    %c0_992 = arith.constant 0 : index
    %1565 = vector.load %arg2[%1564, %c0_992] : memref<50x32xf32, #tpu.memory_space<vmem>>, vector<1x32xf32>
    %c21_993 = arith.constant 21 : index
    %c5_994 = arith.constant 5 : index
    %c0_995 = arith.constant 0 : index
    %1566 = vector.load %arg9[%c21_993, %c5_994, %c0_995] : memref<32x11x32xf32, #tpu.memory_space<vmem>>, vector<1x1x32xf32>
    %1567 = vector.shape_cast %1566 : vector<1x1x32xf32> to vector<1x32xf32>
    %1568 = vector.shape_cast %1565 : vector<1x32xf32> to vector<1x1x32xf32>
    tpu.vector_store %arg9[%c21_993, %c5_994, %c0_995], %1568 {strides = array<i32>} : memref<32x11x32xf32, #tpu.memory_space<vmem>>, vector<1x1x32xf32>,
    %c168_i32_996 = arith.constant 168 : i32
    %1569 = arith.addi %2, %c168_i32_996 : i32
    %c6_i32_997 = arith.constant 6 : i32
    %1570 = arith.addi %1569, %c6_i32_997 : i32
    %1571 = arith.index_cast %1570 : i32 to index
    %1572 = memref.load %arg1[%1571] : memref<512xi32, #tpu.memory_space<smem>>
    %1573 = arith.index_cast %1572 : i32 to index
    %c0_998 = arith.constant 0 : index
    %1574 = vector.load %arg2[%1573, %c0_998] : memref<50x32xf32, #tpu.memory_space<vmem>>, vector<1x32xf32>
    %c21_999 = arith.constant 21 : index
    %c6_1000 = arith.constant 6 : index
    %c0_1001 = arith.constant 0 : index
    %1575 = vector.load %arg9[%c21_999, %c6_1000, %c0_1001] : memref<32x11x32xf32, #tpu.memory_space<vmem>>, vector<1x1x32xf32>
    %1576 = vector.shape_cast %1575 : vector<1x1x32xf32> to vector<1x32xf32>
    %1577 = vector.shape_cast %1574 : vector<1x32xf32> to vector<1x1x32xf32>
    tpu.vector_store %arg9[%c21_999, %c6_1000, %c0_1001], %1577 {strides = array<i32>} : memref<32x11x32xf32, #tpu.memory_space<vmem>>, vector<1x1x32xf32>,
    %c168_i32_1002 = arith.constant 168 : i32
    %1578 = arith.addi %2, %c168_i32_1002 : i32
    %c7_i32_1003 = arith.constant 7 : i32
    %1579 = arith.addi %1578, %c7_i32_1003 : i32
    %1580 = arith.index_cast %1579 : i32 to index
    %1581 = memref.load %arg1[%1580] : memref<512xi32, #tpu.memory_space<smem>>
    %1582 = arith.index_cast %1581 : i32 to index
    %c0_1004 = arith.constant 0 : index
    %1583 = vector.load %arg2[%1582, %c0_1004] : memref<50x32xf32, #tpu.memory_space<vmem>>, vector<1x32xf32>
    %c21_1005 = arith.constant 21 : index
    %c7_1006 = arith.constant 7 : index
    %c0_1007 = arith.constant 0 : index
    %1584 = vector.load %arg9[%c21_1005, %c7_1006, %c0_1007] : memref<32x11x32xf32, #tpu.memory_space<vmem>>, vector<1x1x32xf32>
    %1585 = vector.shape_cast %1584 : vector<1x1x32xf32> to vector<1x32xf32>
    %1586 = vector.shape_cast %1583 : vector<1x32xf32> to vector<1x1x32xf32>
    tpu.vector_store %arg9[%c21_1005, %c7_1006, %c0_1007], %1586 {strides = array<i32>} : memref<32x11x32xf32, #tpu.memory_space<vmem>>, vector<1x1x32xf32>,
    %c176_i32 = arith.constant 176 : i32
    %1587 = arith.addi %2, %c176_i32 : i32
    %c0_i32_1008 = arith.constant 0 : i32
    %1588 = arith.addi %1587, %c0_i32_1008 : i32
    %1589 = arith.index_cast %1588 : i32 to index
    %1590 = memref.load %arg1[%1589] : memref<512xi32, #tpu.memory_space<smem>>
    %1591 = arith.index_cast %1590 : i32 to index
    %c0_1009 = arith.constant 0 : index
    %1592 = vector.load %arg2[%1591, %c0_1009] : memref<50x32xf32, #tpu.memory_space<vmem>>, vector<1x32xf32>
    %c22 = arith.constant 22 : index
    %c0_1010 = arith.constant 0 : index
    %c0_1011 = arith.constant 0 : index
    %1593 = vector.load %arg9[%c22, %c0_1010, %c0_1011] : memref<32x11x32xf32, #tpu.memory_space<vmem>>, vector<1x1x32xf32>
    %1594 = vector.shape_cast %1593 : vector<1x1x32xf32> to vector<1x32xf32>
    %1595 = vector.shape_cast %1592 : vector<1x32xf32> to vector<1x1x32xf32>
    tpu.vector_store %arg9[%c22, %c0_1010, %c0_1011], %1595 {strides = array<i32>} : memref<32x11x32xf32, #tpu.memory_space<vmem>>, vector<1x1x32xf32>,
    %c176_i32_1012 = arith.constant 176 : i32
    %1596 = arith.addi %2, %c176_i32_1012 : i32
    %c1_i32_1013 = arith.constant 1 : i32
    %1597 = arith.addi %1596, %c1_i32_1013 : i32
    %1598 = arith.index_cast %1597 : i32 to index
    %1599 = memref.load %arg1[%1598] : memref<512xi32, #tpu.memory_space<smem>>
    %1600 = arith.index_cast %1599 : i32 to index
    %c0_1014 = arith.constant 0 : index
    %1601 = vector.load %arg2[%1600, %c0_1014] : memref<50x32xf32, #tpu.memory_space<vmem>>, vector<1x32xf32>
    %c22_1015 = arith.constant 22 : index
    %c1_1016 = arith.constant 1 : index
    %c0_1017 = arith.constant 0 : index
    %1602 = vector.load %arg9[%c22_1015, %c1_1016, %c0_1017] : memref<32x11x32xf32, #tpu.memory_space<vmem>>, vector<1x1x32xf32>
    %1603 = vector.shape_cast %1602 : vector<1x1x32xf32> to vector<1x32xf32>
    %1604 = vector.shape_cast %1601 : vector<1x32xf32> to vector<1x1x32xf32>
    tpu.vector_store %arg9[%c22_1015, %c1_1016, %c0_1017], %1604 {strides = array<i32>} : memref<32x11x32xf32, #tpu.memory_space<vmem>>, vector<1x1x32xf32>,
    %c176_i32_1018 = arith.constant 176 : i32
    %1605 = arith.addi %2, %c176_i32_1018 : i32
    %c2_i32_1019 = arith.constant 2 : i32
    %1606 = arith.addi %1605, %c2_i32_1019 : i32
    %1607 = arith.index_cast %1606 : i32 to index
    %1608 = memref.load %arg1[%1607] : memref<512xi32, #tpu.memory_space<smem>>
    %1609 = arith.index_cast %1608 : i32 to index
    %c0_1020 = arith.constant 0 : index
    %1610 = vector.load %arg2[%1609, %c0_1020] : memref<50x32xf32, #tpu.memory_space<vmem>>, vector<1x32xf32>
    %c22_1021 = arith.constant 22 : index
    %c2_1022 = arith.constant 2 : index
    %c0_1023 = arith.constant 0 : index
    %1611 = vector.load %arg9[%c22_1021, %c2_1022, %c0_1023] : memref<32x11x32xf32, #tpu.memory_space<vmem>>, vector<1x1x32xf32>
    %1612 = vector.shape_cast %1611 : vector<1x1x32xf32> to vector<1x32xf32>
    %1613 = vector.shape_cast %1610 : vector<1x32xf32> to vector<1x1x32xf32>
    tpu.vector_store %arg9[%c22_1021, %c2_1022, %c0_1023], %1613 {strides = array<i32>} : memref<32x11x32xf32, #tpu.memory_space<vmem>>, vector<1x1x32xf32>,
    %c176_i32_1024 = arith.constant 176 : i32
    %1614 = arith.addi %2, %c176_i32_1024 : i32
    %c3_i32_1025 = arith.constant 3 : i32
    %1615 = arith.addi %1614, %c3_i32_1025 : i32
    %1616 = arith.index_cast %1615 : i32 to index
    %1617 = memref.load %arg1[%1616] : memref<512xi32, #tpu.memory_space<smem>>
    %1618 = arith.index_cast %1617 : i32 to index
    %c0_1026 = arith.constant 0 : index
    %1619 = vector.load %arg2[%1618, %c0_1026] : memref<50x32xf32, #tpu.memory_space<vmem>>, vector<1x32xf32>
    %c22_1027 = arith.constant 22 : index
    %c3_1028 = arith.constant 3 : index
    %c0_1029 = arith.constant 0 : index
    %1620 = vector.load %arg9[%c22_1027, %c3_1028, %c0_1029] : memref<32x11x32xf32, #tpu.memory_space<vmem>>, vector<1x1x32xf32>
    %1621 = vector.shape_cast %1620 : vector<1x1x32xf32> to vector<1x32xf32>
    %1622 = vector.shape_cast %1619 : vector<1x32xf32> to vector<1x1x32xf32>
    tpu.vector_store %arg9[%c22_1027, %c3_1028, %c0_1029], %1622 {strides = array<i32>} : memref<32x11x32xf32, #tpu.memory_space<vmem>>, vector<1x1x32xf32>,
    %c176_i32_1030 = arith.constant 176 : i32
    %1623 = arith.addi %2, %c176_i32_1030 : i32
    %c4_i32_1031 = arith.constant 4 : i32
    %1624 = arith.addi %1623, %c4_i32_1031 : i32
    %1625 = arith.index_cast %1624 : i32 to index
    %1626 = memref.load %arg1[%1625] : memref<512xi32, #tpu.memory_space<smem>>
    %1627 = arith.index_cast %1626 : i32 to index
    %c0_1032 = arith.constant 0 : index
    %1628 = vector.load %arg2[%1627, %c0_1032] : memref<50x32xf32, #tpu.memory_space<vmem>>, vector<1x32xf32>
    %c22_1033 = arith.constant 22 : index
    %c4_1034 = arith.constant 4 : index
    %c0_1035 = arith.constant 0 : index
    %1629 = vector.load %arg9[%c22_1033, %c4_1034, %c0_1035] : memref<32x11x32xf32, #tpu.memory_space<vmem>>, vector<1x1x32xf32>
    %1630 = vector.shape_cast %1629 : vector<1x1x32xf32> to vector<1x32xf32>
    %1631 = vector.shape_cast %1628 : vector<1x32xf32> to vector<1x1x32xf32>
    tpu.vector_store %arg9[%c22_1033, %c4_1034, %c0_1035], %1631 {strides = array<i32>} : memref<32x11x32xf32, #tpu.memory_space<vmem>>, vector<1x1x32xf32>,
    %c176_i32_1036 = arith.constant 176 : i32
    %1632 = arith.addi %2, %c176_i32_1036 : i32
    %c5_i32_1037 = arith.constant 5 : i32
    %1633 = arith.addi %1632, %c5_i32_1037 : i32
    %1634 = arith.index_cast %1633 : i32 to index
    %1635 = memref.load %arg1[%1634] : memref<512xi32, #tpu.memory_space<smem>>
    %1636 = arith.index_cast %1635 : i32 to index
    %c0_1038 = arith.constant 0 : index
    %1637 = vector.load %arg2[%1636, %c0_1038] : memref<50x32xf32, #tpu.memory_space<vmem>>, vector<1x32xf32>
    %c22_1039 = arith.constant 22 : index
    %c5_1040 = arith.constant 5 : index
    %c0_1041 = arith.constant 0 : index
    %1638 = vector.load %arg9[%c22_1039, %c5_1040, %c0_1041] : memref<32x11x32xf32, #tpu.memory_space<vmem>>, vector<1x1x32xf32>
    %1639 = vector.shape_cast %1638 : vector<1x1x32xf32> to vector<1x32xf32>
    %1640 = vector.shape_cast %1637 : vector<1x32xf32> to vector<1x1x32xf32>
    tpu.vector_store %arg9[%c22_1039, %c5_1040, %c0_1041], %1640 {strides = array<i32>} : memref<32x11x32xf32, #tpu.memory_space<vmem>>, vector<1x1x32xf32>,
    %c176_i32_1042 = arith.constant 176 : i32
    %1641 = arith.addi %2, %c176_i32_1042 : i32
    %c6_i32_1043 = arith.constant 6 : i32
    %1642 = arith.addi %1641, %c6_i32_1043 : i32
    %1643 = arith.index_cast %1642 : i32 to index
    %1644 = memref.load %arg1[%1643] : memref<512xi32, #tpu.memory_space<smem>>
    %1645 = arith.index_cast %1644 : i32 to index
    %c0_1044 = arith.constant 0 : index
    %1646 = vector.load %arg2[%1645, %c0_1044] : memref<50x32xf32, #tpu.memory_space<vmem>>, vector<1x32xf32>
    %c22_1045 = arith.constant 22 : index
    %c6_1046 = arith.constant 6 : index
    %c0_1047 = arith.constant 0 : index
    %1647 = vector.load %arg9[%c22_1045, %c6_1046, %c0_1047] : memref<32x11x32xf32, #tpu.memory_space<vmem>>, vector<1x1x32xf32>
    %1648 = vector.shape_cast %1647 : vector<1x1x32xf32> to vector<1x32xf32>
    %1649 = vector.shape_cast %1646 : vector<1x32xf32> to vector<1x1x32xf32>
    tpu.vector_store %arg9[%c22_1045, %c6_1046, %c0_1047], %1649 {strides = array<i32>} : memref<32x11x32xf32, #tpu.memory_space<vmem>>, vector<1x1x32xf32>,
    %c176_i32_1048 = arith.constant 176 : i32
    %1650 = arith.addi %2, %c176_i32_1048 : i32
    %c7_i32_1049 = arith.constant 7 : i32
    %1651 = arith.addi %1650, %c7_i32_1049 : i32
    %1652 = arith.index_cast %1651 : i32 to index
    %1653 = memref.load %arg1[%1652] : memref<512xi32, #tpu.memory_space<smem>>
    %1654 = arith.index_cast %1653 : i32 to index
    %c0_1050 = arith.constant 0 : index
    %1655 = vector.load %arg2[%1654, %c0_1050] : memref<50x32xf32, #tpu.memory_space<vmem>>, vector<1x32xf32>
    %c22_1051 = arith.constant 22 : index
    %c7_1052 = arith.constant 7 : index
    %c0_1053 = arith.constant 0 : index
    %1656 = vector.load %arg9[%c22_1051, %c7_1052, %c0_1053] : memref<32x11x32xf32, #tpu.memory_space<vmem>>, vector<1x1x32xf32>
    %1657 = vector.shape_cast %1656 : vector<1x1x32xf32> to vector<1x32xf32>
    %1658 = vector.shape_cast %1655 : vector<1x32xf32> to vector<1x1x32xf32>
    tpu.vector_store %arg9[%c22_1051, %c7_1052, %c0_1053], %1658 {strides = array<i32>} : memref<32x11x32xf32, #tpu.memory_space<vmem>>, vector<1x1x32xf32>,
    %c184_i32 = arith.constant 184 : i32
    %1659 = arith.addi %2, %c184_i32 : i32
    %c0_i32_1054 = arith.constant 0 : i32
    %1660 = arith.addi %1659, %c0_i32_1054 : i32
    %1661 = arith.index_cast %1660 : i32 to index
    %1662 = memref.load %arg1[%1661] : memref<512xi32, #tpu.memory_space<smem>>
    %1663 = arith.index_cast %1662 : i32 to index
    %c0_1055 = arith.constant 0 : index
    %1664 = vector.load %arg2[%1663, %c0_1055] : memref<50x32xf32, #tpu.memory_space<vmem>>, vector<1x32xf32>
    %c23 = arith.constant 23 : index
    %c0_1056 = arith.constant 0 : index
    %c0_1057 = arith.constant 0 : index
    %1665 = vector.load %arg9[%c23, %c0_1056, %c0_1057] : memref<32x11x32xf32, #tpu.memory_space<vmem>>, vector<1x1x32xf32>
    %1666 = vector.shape_cast %1665 : vector<1x1x32xf32> to vector<1x32xf32>
    %1667 = vector.shape_cast %1664 : vector<1x32xf32> to vector<1x1x32xf32>
    tpu.vector_store %arg9[%c23, %c0_1056, %c0_1057], %1667 {strides = array<i32>} : memref<32x11x32xf32, #tpu.memory_space<vmem>>, vector<1x1x32xf32>,
    %c184_i32_1058 = arith.constant 184 : i32
    %1668 = arith.addi %2, %c184_i32_1058 : i32
    %c1_i32_1059 = arith.constant 1 : i32
    %1669 = arith.addi %1668, %c1_i32_1059 : i32
    %1670 = arith.index_cast %1669 : i32 to index
    %1671 = memref.load %arg1[%1670] : memref<512xi32, #tpu.memory_space<smem>>
    %1672 = arith.index_cast %1671 : i32 to index
    %c0_1060 = arith.constant 0 : index
    %1673 = vector.load %arg2[%1672, %c0_1060] : memref<50x32xf32, #tpu.memory_space<vmem>>, vector<1x32xf32>
    %c23_1061 = arith.constant 23 : index
    %c1_1062 = arith.constant 1 : index
    %c0_1063 = arith.constant 0 : index
    %1674 = vector.load %arg9[%c23_1061, %c1_1062, %c0_1063] : memref<32x11x32xf32, #tpu.memory_space<vmem>>, vector<1x1x32xf32>
    %1675 = vector.shape_cast %1674 : vector<1x1x32xf32> to vector<1x32xf32>
    %1676 = vector.shape_cast %1673 : vector<1x32xf32> to vector<1x1x32xf32>
    tpu.vector_store %arg9[%c23_1061, %c1_1062, %c0_1063], %1676 {strides = array<i32>} : memref<32x11x32xf32, #tpu.memory_space<vmem>>, vector<1x1x32xf32>,
    %c184_i32_1064 = arith.constant 184 : i32
    %1677 = arith.addi %2, %c184_i32_1064 : i32
    %c2_i32_1065 = arith.constant 2 : i32
    %1678 = arith.addi %1677, %c2_i32_1065 : i32
    %1679 = arith.index_cast %1678 : i32 to index
    %1680 = memref.load %arg1[%1679] : memref<512xi32, #tpu.memory_space<smem>>
    %1681 = arith.index_cast %1680 : i32 to index
    %c0_1066 = arith.constant 0 : index
    %1682 = vector.load %arg2[%1681, %c0_1066] : memref<50x32xf32, #tpu.memory_space<vmem>>, vector<1x32xf32>
    %c23_1067 = arith.constant 23 : index
    %c2_1068 = arith.constant 2 : index
    %c0_1069 = arith.constant 0 : index
    %1683 = vector.load %arg9[%c23_1067, %c2_1068, %c0_1069] : memref<32x11x32xf32, #tpu.memory_space<vmem>>, vector<1x1x32xf32>
    %1684 = vector.shape_cast %1683 : vector<1x1x32xf32> to vector<1x32xf32>
    %1685 = vector.shape_cast %1682 : vector<1x32xf32> to vector<1x1x32xf32>
    tpu.vector_store %arg9[%c23_1067, %c2_1068, %c0_1069], %1685 {strides = array<i32>} : memref<32x11x32xf32, #tpu.memory_space<vmem>>, vector<1x1x32xf32>,
    %c184_i32_1070 = arith.constant 184 : i32
    %1686 = arith.addi %2, %c184_i32_1070 : i32
    %c3_i32_1071 = arith.constant 3 : i32
    %1687 = arith.addi %1686, %c3_i32_1071 : i32
    %1688 = arith.index_cast %1687 : i32 to index
    %1689 = memref.load %arg1[%1688] : memref<512xi32, #tpu.memory_space<smem>>
    %1690 = arith.index_cast %1689 : i32 to index
    %c0_1072 = arith.constant 0 : index
    %1691 = vector.load %arg2[%1690, %c0_1072] : memref<50x32xf32, #tpu.memory_space<vmem>>, vector<1x32xf32>
    %c23_1073 = arith.constant 23 : index
    %c3_1074 = arith.constant 3 : index
    %c0_1075 = arith.constant 0 : index
    %1692 = vector.load %arg9[%c23_1073, %c3_1074, %c0_1075] : memref<32x11x32xf32, #tpu.memory_space<vmem>>, vector<1x1x32xf32>
    %1693 = vector.shape_cast %1692 : vector<1x1x32xf32> to vector<1x32xf32>
    %1694 = vector.shape_cast %1691 : vector<1x32xf32> to vector<1x1x32xf32>
    tpu.vector_store %arg9[%c23_1073, %c3_1074, %c0_1075], %1694 {strides = array<i32>} : memref<32x11x32xf32, #tpu.memory_space<vmem>>, vector<1x1x32xf32>,
    %c184_i32_1076 = arith.constant 184 : i32
    %1695 = arith.addi %2, %c184_i32_1076 : i32
    %c4_i32_1077 = arith.constant 4 : i32
    %1696 = arith.addi %1695, %c4_i32_1077 : i32
    %1697 = arith.index_cast %1696 : i32 to index
    %1698 = memref.load %arg1[%1697] : memref<512xi32, #tpu.memory_space<smem>>
    %1699 = arith.index_cast %1698 : i32 to index
    %c0_1078 = arith.constant 0 : index
    %1700 = vector.load %arg2[%1699, %c0_1078] : memref<50x32xf32, #tpu.memory_space<vmem>>, vector<1x32xf32>
    %c23_1079 = arith.constant 23 : index
    %c4_1080 = arith.constant 4 : index
    %c0_1081 = arith.constant 0 : index
    %1701 = vector.load %arg9[%c23_1079, %c4_1080, %c0_1081] : memref<32x11x32xf32, #tpu.memory_space<vmem>>, vector<1x1x32xf32>
    %1702 = vector.shape_cast %1701 : vector<1x1x32xf32> to vector<1x32xf32>
    %1703 = vector.shape_cast %1700 : vector<1x32xf32> to vector<1x1x32xf32>
    tpu.vector_store %arg9[%c23_1079, %c4_1080, %c0_1081], %1703 {strides = array<i32>} : memref<32x11x32xf32, #tpu.memory_space<vmem>>, vector<1x1x32xf32>,
    %c184_i32_1082 = arith.constant 184 : i32
    %1704 = arith.addi %2, %c184_i32_1082 : i32
    %c5_i32_1083 = arith.constant 5 : i32
    %1705 = arith.addi %1704, %c5_i32_1083 : i32
    %1706 = arith.index_cast %1705 : i32 to index
    %1707 = memref.load %arg1[%1706] : memref<512xi32, #tpu.memory_space<smem>>
    %1708 = arith.index_cast %1707 : i32 to index
    %c0_1084 = arith.constant 0 : index
    %1709 = vector.load %arg2[%1708, %c0_1084] : memref<50x32xf32, #tpu.memory_space<vmem>>, vector<1x32xf32>
    %c23_1085 = arith.constant 23 : index
    %c5_1086 = arith.constant 5 : index
    %c0_1087 = arith.constant 0 : index
    %1710 = vector.load %arg9[%c23_1085, %c5_1086, %c0_1087] : memref<32x11x32xf32, #tpu.memory_space<vmem>>, vector<1x1x32xf32>
    %1711 = vector.shape_cast %1710 : vector<1x1x32xf32> to vector<1x32xf32>
    %1712 = vector.shape_cast %1709 : vector<1x32xf32> to vector<1x1x32xf32>
    tpu.vector_store %arg9[%c23_1085, %c5_1086, %c0_1087], %1712 {strides = array<i32>} : memref<32x11x32xf32, #tpu.memory_space<vmem>>, vector<1x1x32xf32>,
    %c184_i32_1088 = arith.constant 184 : i32
    %1713 = arith.addi %2, %c184_i32_1088 : i32
    %c6_i32_1089 = arith.constant 6 : i32
    %1714 = arith.addi %1713, %c6_i32_1089 : i32
    %1715 = arith.index_cast %1714 : i32 to index
    %1716 = memref.load %arg1[%1715] : memref<512xi32, #tpu.memory_space<smem>>
    %1717 = arith.index_cast %1716 : i32 to index
    %c0_1090 = arith.constant 0 : index
    %1718 = vector.load %arg2[%1717, %c0_1090] : memref<50x32xf32, #tpu.memory_space<vmem>>, vector<1x32xf32>
    %c23_1091 = arith.constant 23 : index
    %c6_1092 = arith.constant 6 : index
    %c0_1093 = arith.constant 0 : index
    %1719 = vector.load %arg9[%c23_1091, %c6_1092, %c0_1093] : memref<32x11x32xf32, #tpu.memory_space<vmem>>, vector<1x1x32xf32>
    %1720 = vector.shape_cast %1719 : vector<1x1x32xf32> to vector<1x32xf32>
    %1721 = vector.shape_cast %1718 : vector<1x32xf32> to vector<1x1x32xf32>
    tpu.vector_store %arg9[%c23_1091, %c6_1092, %c0_1093], %1721 {strides = array<i32>} : memref<32x11x32xf32, #tpu.memory_space<vmem>>, vector<1x1x32xf32>,
    %c184_i32_1094 = arith.constant 184 : i32
    %1722 = arith.addi %2, %c184_i32_1094 : i32
    %c7_i32_1095 = arith.constant 7 : i32
    %1723 = arith.addi %1722, %c7_i32_1095 : i32
    %1724 = arith.index_cast %1723 : i32 to index
    %1725 = memref.load %arg1[%1724] : memref<512xi32, #tpu.memory_space<smem>>
    %1726 = arith.index_cast %1725 : i32 to index
    %c0_1096 = arith.constant 0 : index
    %1727 = vector.load %arg2[%1726, %c0_1096] : memref<50x32xf32, #tpu.memory_space<vmem>>, vector<1x32xf32>
    %c23_1097 = arith.constant 23 : index
    %c7_1098 = arith.constant 7 : index
    %c0_1099 = arith.constant 0 : index
    %1728 = vector.load %arg9[%c23_1097, %c7_1098, %c0_1099] : memref<32x11x32xf32, #tpu.memory_space<vmem>>, vector<1x1x32xf32>
    %1729 = vector.shape_cast %1728 : vector<1x1x32xf32> to vector<1x32xf32>
    %1730 = vector.shape_cast %1727 : vector<1x32xf32> to vector<1x1x32xf32>
    tpu.vector_store %arg9[%c23_1097, %c7_1098, %c0_1099], %1730 {strides = array<i32>} : memref<32x11x32xf32, #tpu.memory_space<vmem>>, vector<1x1x32xf32>,
    %c192_i32 = arith.constant 192 : i32
    %1731 = arith.addi %2, %c192_i32 : i32
    %c0_i32_1100 = arith.constant 0 : i32
    %1732 = arith.addi %1731, %c0_i32_1100 : i32
    %1733 = arith.index_cast %1732 : i32 to index
    %1734 = memref.load %arg1[%1733] : memref<512xi32, #tpu.memory_space<smem>>
    %1735 = arith.index_cast %1734 : i32 to index
    %c0_1101 = arith.constant 0 : index
    %1736 = vector.load %arg2[%1735, %c0_1101] : memref<50x32xf32, #tpu.memory_space<vmem>>, vector<1x32xf32>
    %c24 = arith.constant 24 : index
    %c0_1102 = arith.constant 0 : index
    %c0_1103 = arith.constant 0 : index
    %1737 = vector.load %arg9[%c24, %c0_1102, %c0_1103] : memref<32x11x32xf32, #tpu.memory_space<vmem>>, vector<1x1x32xf32>
    %1738 = vector.shape_cast %1737 : vector<1x1x32xf32> to vector<1x32xf32>
    %1739 = vector.shape_cast %1736 : vector<1x32xf32> to vector<1x1x32xf32>
    tpu.vector_store %arg9[%c24, %c0_1102, %c0_1103], %1739 {strides = array<i32>} : memref<32x11x32xf32, #tpu.memory_space<vmem>>, vector<1x1x32xf32>,
    %c192_i32_1104 = arith.constant 192 : i32
    %1740 = arith.addi %2, %c192_i32_1104 : i32
    %c1_i32_1105 = arith.constant 1 : i32
    %1741 = arith.addi %1740, %c1_i32_1105 : i32
    %1742 = arith.index_cast %1741 : i32 to index
    %1743 = memref.load %arg1[%1742] : memref<512xi32, #tpu.memory_space<smem>>
    %1744 = arith.index_cast %1743 : i32 to index
    %c0_1106 = arith.constant 0 : index
    %1745 = vector.load %arg2[%1744, %c0_1106] : memref<50x32xf32, #tpu.memory_space<vmem>>, vector<1x32xf32>
    %c24_1107 = arith.constant 24 : index
    %c1_1108 = arith.constant 1 : index
    %c0_1109 = arith.constant 0 : index
    %1746 = vector.load %arg9[%c24_1107, %c1_1108, %c0_1109] : memref<32x11x32xf32, #tpu.memory_space<vmem>>, vector<1x1x32xf32>
    %1747 = vector.shape_cast %1746 : vector<1x1x32xf32> to vector<1x32xf32>
    %1748 = vector.shape_cast %1745 : vector<1x32xf32> to vector<1x1x32xf32>
    tpu.vector_store %arg9[%c24_1107, %c1_1108, %c0_1109], %1748 {strides = array<i32>} : memref<32x11x32xf32, #tpu.memory_space<vmem>>, vector<1x1x32xf32>,
    %c192_i32_1110 = arith.constant 192 : i32
    %1749 = arith.addi %2, %c192_i32_1110 : i32
    %c2_i32_1111 = arith.constant 2 : i32
    %1750 = arith.addi %1749, %c2_i32_1111 : i32
    %1751 = arith.index_cast %1750 : i32 to index
    %1752 = memref.load %arg1[%1751] : memref<512xi32, #tpu.memory_space<smem>>
    %1753 = arith.index_cast %1752 : i32 to index
    %c0_1112 = arith.constant 0 : index
    %1754 = vector.load %arg2[%1753, %c0_1112] : memref<50x32xf32, #tpu.memory_space<vmem>>, vector<1x32xf32>
    %c24_1113 = arith.constant 24 : index
    %c2_1114 = arith.constant 2 : index
    %c0_1115 = arith.constant 0 : index
    %1755 = vector.load %arg9[%c24_1113, %c2_1114, %c0_1115] : memref<32x11x32xf32, #tpu.memory_space<vmem>>, vector<1x1x32xf32>
    %1756 = vector.shape_cast %1755 : vector<1x1x32xf32> to vector<1x32xf32>
    %1757 = vector.shape_cast %1754 : vector<1x32xf32> to vector<1x1x32xf32>
    tpu.vector_store %arg9[%c24_1113, %c2_1114, %c0_1115], %1757 {strides = array<i32>} : memref<32x11x32xf32, #tpu.memory_space<vmem>>, vector<1x1x32xf32>,
    %c192_i32_1116 = arith.constant 192 : i32
    %1758 = arith.addi %2, %c192_i32_1116 : i32
    %c3_i32_1117 = arith.constant 3 : i32
    %1759 = arith.addi %1758, %c3_i32_1117 : i32
    %1760 = arith.index_cast %1759 : i32 to index
    %1761 = memref.load %arg1[%1760] : memref<512xi32, #tpu.memory_space<smem>>
    %1762 = arith.index_cast %1761 : i32 to index
    %c0_1118 = arith.constant 0 : index
    %1763 = vector.load %arg2[%1762, %c0_1118] : memref<50x32xf32, #tpu.memory_space<vmem>>, vector<1x32xf32>
    %c24_1119 = arith.constant 24 : index
    %c3_1120 = arith.constant 3 : index
    %c0_1121 = arith.constant 0 : index
    %1764 = vector.load %arg9[%c24_1119, %c3_1120, %c0_1121] : memref<32x11x32xf32, #tpu.memory_space<vmem>>, vector<1x1x32xf32>
    %1765 = vector.shape_cast %1764 : vector<1x1x32xf32> to vector<1x32xf32>
    %1766 = vector.shape_cast %1763 : vector<1x32xf32> to vector<1x1x32xf32>
    tpu.vector_store %arg9[%c24_1119, %c3_1120, %c0_1121], %1766 {strides = array<i32>} : memref<32x11x32xf32, #tpu.memory_space<vmem>>, vector<1x1x32xf32>,
    %c192_i32_1122 = arith.constant 192 : i32
    %1767 = arith.addi %2, %c192_i32_1122 : i32
    %c4_i32_1123 = arith.constant 4 : i32
    %1768 = arith.addi %1767, %c4_i32_1123 : i32
    %1769 = arith.index_cast %1768 : i32 to index
    %1770 = memref.load %arg1[%1769] : memref<512xi32, #tpu.memory_space<smem>>
    %1771 = arith.index_cast %1770 : i32 to index
    %c0_1124 = arith.constant 0 : index
    %1772 = vector.load %arg2[%1771, %c0_1124] : memref<50x32xf32, #tpu.memory_space<vmem>>, vector<1x32xf32>
    %c24_1125 = arith.constant 24 : index
    %c4_1126 = arith.constant 4 : index
    %c0_1127 = arith.constant 0 : index
    %1773 = vector.load %arg9[%c24_1125, %c4_1126, %c0_1127] : memref<32x11x32xf32, #tpu.memory_space<vmem>>, vector<1x1x32xf32>
    %1774 = vector.shape_cast %1773 : vector<1x1x32xf32> to vector<1x32xf32>
    %1775 = vector.shape_cast %1772 : vector<1x32xf32> to vector<1x1x32xf32>
    tpu.vector_store %arg9[%c24_1125, %c4_1126, %c0_1127], %1775 {strides = array<i32>} : memref<32x11x32xf32, #tpu.memory_space<vmem>>, vector<1x1x32xf32>,
    %c192_i32_1128 = arith.constant 192 : i32
    %1776 = arith.addi %2, %c192_i32_1128 : i32
    %c5_i32_1129 = arith.constant 5 : i32
    %1777 = arith.addi %1776, %c5_i32_1129 : i32
    %1778 = arith.index_cast %1777 : i32 to index
    %1779 = memref.load %arg1[%1778] : memref<512xi32, #tpu.memory_space<smem>>
    %1780 = arith.index_cast %1779 : i32 to index
    %c0_1130 = arith.constant 0 : index
    %1781 = vector.load %arg2[%1780, %c0_1130] : memref<50x32xf32, #tpu.memory_space<vmem>>, vector<1x32xf32>
    %c24_1131 = arith.constant 24 : index
    %c5_1132 = arith.constant 5 : index
    %c0_1133 = arith.constant 0 : index
    %1782 = vector.load %arg9[%c24_1131, %c5_1132, %c0_1133] : memref<32x11x32xf32, #tpu.memory_space<vmem>>, vector<1x1x32xf32>
    %1783 = vector.shape_cast %1782 : vector<1x1x32xf32> to vector<1x32xf32>
    %1784 = vector.shape_cast %1781 : vector<1x32xf32> to vector<1x1x32xf32>
    tpu.vector_store %arg9[%c24_1131, %c5_1132, %c0_1133], %1784 {strides = array<i32>} : memref<32x11x32xf32, #tpu.memory_space<vmem>>, vector<1x1x32xf32>,
    %c192_i32_1134 = arith.constant 192 : i32
    %1785 = arith.addi %2, %c192_i32_1134 : i32
    %c6_i32_1135 = arith.constant 6 : i32
    %1786 = arith.addi %1785, %c6_i32_1135 : i32
    %1787 = arith.index_cast %1786 : i32 to index
    %1788 = memref.load %arg1[%1787] : memref<512xi32, #tpu.memory_space<smem>>
    %1789 = arith.index_cast %1788 : i32 to index
    %c0_1136 = arith.constant 0 : index
    %1790 = vector.load %arg2[%1789, %c0_1136] : memref<50x32xf32, #tpu.memory_space<vmem>>, vector<1x32xf32>
    %c24_1137 = arith.constant 24 : index
    %c6_1138 = arith.constant 6 : index
    %c0_1139 = arith.constant 0 : index
    %1791 = vector.load %arg9[%c24_1137, %c6_1138, %c0_1139] : memref<32x11x32xf32, #tpu.memory_space<vmem>>, vector<1x1x32xf32>
    %1792 = vector.shape_cast %1791 : vector<1x1x32xf32> to vector<1x32xf32>
    %1793 = vector.shape_cast %1790 : vector<1x32xf32> to vector<1x1x32xf32>
    tpu.vector_store %arg9[%c24_1137, %c6_1138, %c0_1139], %1793 {strides = array<i32>} : memref<32x11x32xf32, #tpu.memory_space<vmem>>, vector<1x1x32xf32>,
    %c192_i32_1140 = arith.constant 192 : i32
    %1794 = arith.addi %2, %c192_i32_1140 : i32
    %c7_i32_1141 = arith.constant 7 : i32
    %1795 = arith.addi %1794, %c7_i32_1141 : i32
    %1796 = arith.index_cast %1795 : i32 to index
    %1797 = memref.load %arg1[%1796] : memref<512xi32, #tpu.memory_space<smem>>
    %1798 = arith.index_cast %1797 : i32 to index
    %c0_1142 = arith.constant 0 : index
    %1799 = vector.load %arg2[%1798, %c0_1142] : memref<50x32xf32, #tpu.memory_space<vmem>>, vector<1x32xf32>
    %c24_1143 = arith.constant 24 : index
    %c7_1144 = arith.constant 7 : index
    %c0_1145 = arith.constant 0 : index
    %1800 = vector.load %arg9[%c24_1143, %c7_1144, %c0_1145] : memref<32x11x32xf32, #tpu.memory_space<vmem>>, vector<1x1x32xf32>
    %1801 = vector.shape_cast %1800 : vector<1x1x32xf32> to vector<1x32xf32>
    %1802 = vector.shape_cast %1799 : vector<1x32xf32> to vector<1x1x32xf32>
    tpu.vector_store %arg9[%c24_1143, %c7_1144, %c0_1145], %1802 {strides = array<i32>} : memref<32x11x32xf32, #tpu.memory_space<vmem>>, vector<1x1x32xf32>,
    %c200_i32 = arith.constant 200 : i32
    %1803 = arith.addi %2, %c200_i32 : i32
    %c0_i32_1146 = arith.constant 0 : i32
    %1804 = arith.addi %1803, %c0_i32_1146 : i32
    %1805 = arith.index_cast %1804 : i32 to index
    %1806 = memref.load %arg1[%1805] : memref<512xi32, #tpu.memory_space<smem>>
    %1807 = arith.index_cast %1806 : i32 to index
    %c0_1147 = arith.constant 0 : index
    %1808 = vector.load %arg2[%1807, %c0_1147] : memref<50x32xf32, #tpu.memory_space<vmem>>, vector<1x32xf32>
    %c25 = arith.constant 25 : index
    %c0_1148 = arith.constant 0 : index
    %c0_1149 = arith.constant 0 : index
    %1809 = vector.load %arg9[%c25, %c0_1148, %c0_1149] : memref<32x11x32xf32, #tpu.memory_space<vmem>>, vector<1x1x32xf32>
    %1810 = vector.shape_cast %1809 : vector<1x1x32xf32> to vector<1x32xf32>
    %1811 = vector.shape_cast %1808 : vector<1x32xf32> to vector<1x1x32xf32>
    tpu.vector_store %arg9[%c25, %c0_1148, %c0_1149], %1811 {strides = array<i32>} : memref<32x11x32xf32, #tpu.memory_space<vmem>>, vector<1x1x32xf32>,
    %c200_i32_1150 = arith.constant 200 : i32
    %1812 = arith.addi %2, %c200_i32_1150 : i32
    %c1_i32_1151 = arith.constant 1 : i32
    %1813 = arith.addi %1812, %c1_i32_1151 : i32
    %1814 = arith.index_cast %1813 : i32 to index
    %1815 = memref.load %arg1[%1814] : memref<512xi32, #tpu.memory_space<smem>>
    %1816 = arith.index_cast %1815 : i32 to index
    %c0_1152 = arith.constant 0 : index
    %1817 = vector.load %arg2[%1816, %c0_1152] : memref<50x32xf32, #tpu.memory_space<vmem>>, vector<1x32xf32>
    %c25_1153 = arith.constant 25 : index
    %c1_1154 = arith.constant 1 : index
    %c0_1155 = arith.constant 0 : index
    %1818 = vector.load %arg9[%c25_1153, %c1_1154, %c0_1155] : memref<32x11x32xf32, #tpu.memory_space<vmem>>, vector<1x1x32xf32>
    %1819 = vector.shape_cast %1818 : vector<1x1x32xf32> to vector<1x32xf32>
    %1820 = vector.shape_cast %1817 : vector<1x32xf32> to vector<1x1x32xf32>
    tpu.vector_store %arg9[%c25_1153, %c1_1154, %c0_1155], %1820 {strides = array<i32>} : memref<32x11x32xf32, #tpu.memory_space<vmem>>, vector<1x1x32xf32>,
    %c200_i32_1156 = arith.constant 200 : i32
    %1821 = arith.addi %2, %c200_i32_1156 : i32
    %c2_i32_1157 = arith.constant 2 : i32
    %1822 = arith.addi %1821, %c2_i32_1157 : i32
    %1823 = arith.index_cast %1822 : i32 to index
    %1824 = memref.load %arg1[%1823] : memref<512xi32, #tpu.memory_space<smem>>
    %1825 = arith.index_cast %1824 : i32 to index
    %c0_1158 = arith.constant 0 : index
    %1826 = vector.load %arg2[%1825, %c0_1158] : memref<50x32xf32, #tpu.memory_space<vmem>>, vector<1x32xf32>
    %c25_1159 = arith.constant 25 : index
    %c2_1160 = arith.constant 2 : index
    %c0_1161 = arith.constant 0 : index
    %1827 = vector.load %arg9[%c25_1159, %c2_1160, %c0_1161] : memref<32x11x32xf32, #tpu.memory_space<vmem>>, vector<1x1x32xf32>
    %1828 = vector.shape_cast %1827 : vector<1x1x32xf32> to vector<1x32xf32>
    %1829 = vector.shape_cast %1826 : vector<1x32xf32> to vector<1x1x32xf32>
    tpu.vector_store %arg9[%c25_1159, %c2_1160, %c0_1161], %1829 {strides = array<i32>} : memref<32x11x32xf32, #tpu.memory_space<vmem>>, vector<1x1x32xf32>,
    %c200_i32_1162 = arith.constant 200 : i32
    %1830 = arith.addi %2, %c200_i32_1162 : i32
    %c3_i32_1163 = arith.constant 3 : i32
    %1831 = arith.addi %1830, %c3_i32_1163 : i32
    %1832 = arith.index_cast %1831 : i32 to index
    %1833 = memref.load %arg1[%1832] : memref<512xi32, #tpu.memory_space<smem>>
    %1834 = arith.index_cast %1833 : i32 to index
    %c0_1164 = arith.constant 0 : index
    %1835 = vector.load %arg2[%1834, %c0_1164] : memref<50x32xf32, #tpu.memory_space<vmem>>, vector<1x32xf32>
    %c25_1165 = arith.constant 25 : index
    %c3_1166 = arith.constant 3 : index
    %c0_1167 = arith.constant 0 : index
    %1836 = vector.load %arg9[%c25_1165, %c3_1166, %c0_1167] : memref<32x11x32xf32, #tpu.memory_space<vmem>>, vector<1x1x32xf32>
    %1837 = vector.shape_cast %1836 : vector<1x1x32xf32> to vector<1x32xf32>
    %1838 = vector.shape_cast %1835 : vector<1x32xf32> to vector<1x1x32xf32>
    tpu.vector_store %arg9[%c25_1165, %c3_1166, %c0_1167], %1838 {strides = array<i32>} : memref<32x11x32xf32, #tpu.memory_space<vmem>>, vector<1x1x32xf32>,
    %c200_i32_1168 = arith.constant 200 : i32
    %1839 = arith.addi %2, %c200_i32_1168 : i32
    %c4_i32_1169 = arith.constant 4 : i32
    %1840 = arith.addi %1839, %c4_i32_1169 : i32
    %1841 = arith.index_cast %1840 : i32 to index
    %1842 = memref.load %arg1[%1841] : memref<512xi32, #tpu.memory_space<smem>>
    %1843 = arith.index_cast %1842 : i32 to index
    %c0_1170 = arith.constant 0 : index
    %1844 = vector.load %arg2[%1843, %c0_1170] : memref<50x32xf32, #tpu.memory_space<vmem>>, vector<1x32xf32>
    %c25_1171 = arith.constant 25 : index
    %c4_1172 = arith.constant 4 : index
    %c0_1173 = arith.constant 0 : index
    %1845 = vector.load %arg9[%c25_1171, %c4_1172, %c0_1173] : memref<32x11x32xf32, #tpu.memory_space<vmem>>, vector<1x1x32xf32>
    %1846 = vector.shape_cast %1845 : vector<1x1x32xf32> to vector<1x32xf32>
    %1847 = vector.shape_cast %1844 : vector<1x32xf32> to vector<1x1x32xf32>
    tpu.vector_store %arg9[%c25_1171, %c4_1172, %c0_1173], %1847 {strides = array<i32>} : memref<32x11x32xf32, #tpu.memory_space<vmem>>, vector<1x1x32xf32>,
    %c200_i32_1174 = arith.constant 200 : i32
    %1848 = arith.addi %2, %c200_i32_1174 : i32
    %c5_i32_1175 = arith.constant 5 : i32
    %1849 = arith.addi %1848, %c5_i32_1175 : i32
    %1850 = arith.index_cast %1849 : i32 to index
    %1851 = memref.load %arg1[%1850] : memref<512xi32, #tpu.memory_space<smem>>
    %1852 = arith.index_cast %1851 : i32 to index
    %c0_1176 = arith.constant 0 : index
    %1853 = vector.load %arg2[%1852, %c0_1176] : memref<50x32xf32, #tpu.memory_space<vmem>>, vector<1x32xf32>
    %c25_1177 = arith.constant 25 : index
    %c5_1178 = arith.constant 5 : index
    %c0_1179 = arith.constant 0 : index
    %1854 = vector.load %arg9[%c25_1177, %c5_1178, %c0_1179] : memref<32x11x32xf32, #tpu.memory_space<vmem>>, vector<1x1x32xf32>
    %1855 = vector.shape_cast %1854 : vector<1x1x32xf32> to vector<1x32xf32>
    %1856 = vector.shape_cast %1853 : vector<1x32xf32> to vector<1x1x32xf32>
    tpu.vector_store %arg9[%c25_1177, %c5_1178, %c0_1179], %1856 {strides = array<i32>} : memref<32x11x32xf32, #tpu.memory_space<vmem>>, vector<1x1x32xf32>,
    %c200_i32_1180 = arith.constant 200 : i32
    %1857 = arith.addi %2, %c200_i32_1180 : i32
    %c6_i32_1181 = arith.constant 6 : i32
    %1858 = arith.addi %1857, %c6_i32_1181 : i32
    %1859 = arith.index_cast %1858 : i32 to index
    %1860 = memref.load %arg1[%1859] : memref<512xi32, #tpu.memory_space<smem>>
    %1861 = arith.index_cast %1860 : i32 to index
    %c0_1182 = arith.constant 0 : index
    %1862 = vector.load %arg2[%1861, %c0_1182] : memref<50x32xf32, #tpu.memory_space<vmem>>, vector<1x32xf32>
    %c25_1183 = arith.constant 25 : index
    %c6_1184 = arith.constant 6 : index
    %c0_1185 = arith.constant 0 : index
    %1863 = vector.load %arg9[%c25_1183, %c6_1184, %c0_1185] : memref<32x11x32xf32, #tpu.memory_space<vmem>>, vector<1x1x32xf32>
    %1864 = vector.shape_cast %1863 : vector<1x1x32xf32> to vector<1x32xf32>
    %1865 = vector.shape_cast %1862 : vector<1x32xf32> to vector<1x1x32xf32>
    tpu.vector_store %arg9[%c25_1183, %c6_1184, %c0_1185], %1865 {strides = array<i32>} : memref<32x11x32xf32, #tpu.memory_space<vmem>>, vector<1x1x32xf32>,
    %c200_i32_1186 = arith.constant 200 : i32
    %1866 = arith.addi %2, %c200_i32_1186 : i32
    %c7_i32_1187 = arith.constant 7 : i32
    %1867 = arith.addi %1866, %c7_i32_1187 : i32
    %1868 = arith.index_cast %1867 : i32 to index
    %1869 = memref.load %arg1[%1868] : memref<512xi32, #tpu.memory_space<smem>>
    %1870 = arith.index_cast %1869 : i32 to index
    %c0_1188 = arith.constant 0 : index
    %1871 = vector.load %arg2[%1870, %c0_1188] : memref<50x32xf32, #tpu.memory_space<vmem>>, vector<1x32xf32>
    %c25_1189 = arith.constant 25 : index
    %c7_1190 = arith.constant 7 : index
    %c0_1191 = arith.constant 0 : index
    %1872 = vector.load %arg9[%c25_1189, %c7_1190, %c0_1191] : memref<32x11x32xf32, #tpu.memory_space<vmem>>, vector<1x1x32xf32>
    %1873 = vector.shape_cast %1872 : vector<1x1x32xf32> to vector<1x32xf32>
    %1874 = vector.shape_cast %1871 : vector<1x32xf32> to vector<1x1x32xf32>
    tpu.vector_store %arg9[%c25_1189, %c7_1190, %c0_1191], %1874 {strides = array<i32>} : memref<32x11x32xf32, #tpu.memory_space<vmem>>, vector<1x1x32xf32>,
    %c208_i32 = arith.constant 208 : i32
    %1875 = arith.addi %2, %c208_i32 : i32
    %c0_i32_1192 = arith.constant 0 : i32
    %1876 = arith.addi %1875, %c0_i32_1192 : i32
    %1877 = arith.index_cast %1876 : i32 to index
    %1878 = memref.load %arg1[%1877] : memref<512xi32, #tpu.memory_space<smem>>
    %1879 = arith.index_cast %1878 : i32 to index
    %c0_1193 = arith.constant 0 : index
    %1880 = vector.load %arg2[%1879, %c0_1193] : memref<50x32xf32, #tpu.memory_space<vmem>>, vector<1x32xf32>
    %c26 = arith.constant 26 : index
    %c0_1194 = arith.constant 0 : index
    %c0_1195 = arith.constant 0 : index
    %1881 = vector.load %arg9[%c26, %c0_1194, %c0_1195] : memref<32x11x32xf32, #tpu.memory_space<vmem>>, vector<1x1x32xf32>
    %1882 = vector.shape_cast %1881 : vector<1x1x32xf32> to vector<1x32xf32>
    %1883 = vector.shape_cast %1880 : vector<1x32xf32> to vector<1x1x32xf32>
    tpu.vector_store %arg9[%c26, %c0_1194, %c0_1195], %1883 {strides = array<i32>} : memref<32x11x32xf32, #tpu.memory_space<vmem>>, vector<1x1x32xf32>,
    %c208_i32_1196 = arith.constant 208 : i32
    %1884 = arith.addi %2, %c208_i32_1196 : i32
    %c1_i32_1197 = arith.constant 1 : i32
    %1885 = arith.addi %1884, %c1_i32_1197 : i32
    %1886 = arith.index_cast %1885 : i32 to index
    %1887 = memref.load %arg1[%1886] : memref<512xi32, #tpu.memory_space<smem>>
    %1888 = arith.index_cast %1887 : i32 to index
    %c0_1198 = arith.constant 0 : index
    %1889 = vector.load %arg2[%1888, %c0_1198] : memref<50x32xf32, #tpu.memory_space<vmem>>, vector<1x32xf32>
    %c26_1199 = arith.constant 26 : index
    %c1_1200 = arith.constant 1 : index
    %c0_1201 = arith.constant 0 : index
    %1890 = vector.load %arg9[%c26_1199, %c1_1200, %c0_1201] : memref<32x11x32xf32, #tpu.memory_space<vmem>>, vector<1x1x32xf32>
    %1891 = vector.shape_cast %1890 : vector<1x1x32xf32> to vector<1x32xf32>
    %1892 = vector.shape_cast %1889 : vector<1x32xf32> to vector<1x1x32xf32>
    tpu.vector_store %arg9[%c26_1199, %c1_1200, %c0_1201], %1892 {strides = array<i32>} : memref<32x11x32xf32, #tpu.memory_space<vmem>>, vector<1x1x32xf32>,
    %c208_i32_1202 = arith.constant 208 : i32
    %1893 = arith.addi %2, %c208_i32_1202 : i32
    %c2_i32_1203 = arith.constant 2 : i32
    %1894 = arith.addi %1893, %c2_i32_1203 : i32
    %1895 = arith.index_cast %1894 : i32 to index
    %1896 = memref.load %arg1[%1895] : memref<512xi32, #tpu.memory_space<smem>>
    %1897 = arith.index_cast %1896 : i32 to index
    %c0_1204 = arith.constant 0 : index
    %1898 = vector.load %arg2[%1897, %c0_1204] : memref<50x32xf32, #tpu.memory_space<vmem>>, vector<1x32xf32>
    %c26_1205 = arith.constant 26 : index
    %c2_1206 = arith.constant 2 : index
    %c0_1207 = arith.constant 0 : index
    %1899 = vector.load %arg9[%c26_1205, %c2_1206, %c0_1207] : memref<32x11x32xf32, #tpu.memory_space<vmem>>, vector<1x1x32xf32>
    %1900 = vector.shape_cast %1899 : vector<1x1x32xf32> to vector<1x32xf32>
    %1901 = vector.shape_cast %1898 : vector<1x32xf32> to vector<1x1x32xf32>
    tpu.vector_store %arg9[%c26_1205, %c2_1206, %c0_1207], %1901 {strides = array<i32>} : memref<32x11x32xf32, #tpu.memory_space<vmem>>, vector<1x1x32xf32>,
    %c208_i32_1208 = arith.constant 208 : i32
    %1902 = arith.addi %2, %c208_i32_1208 : i32
    %c3_i32_1209 = arith.constant 3 : i32
    %1903 = arith.addi %1902, %c3_i32_1209 : i32
    %1904 = arith.index_cast %1903 : i32 to index
    %1905 = memref.load %arg1[%1904] : memref<512xi32, #tpu.memory_space<smem>>
    %1906 = arith.index_cast %1905 : i32 to index
    %c0_1210 = arith.constant 0 : index
    %1907 = vector.load %arg2[%1906, %c0_1210] : memref<50x32xf32, #tpu.memory_space<vmem>>, vector<1x32xf32>
    %c26_1211 = arith.constant 26 : index
    %c3_1212 = arith.constant 3 : index
    %c0_1213 = arith.constant 0 : index
    %1908 = vector.load %arg9[%c26_1211, %c3_1212, %c0_1213] : memref<32x11x32xf32, #tpu.memory_space<vmem>>, vector<1x1x32xf32>
    %1909 = vector.shape_cast %1908 : vector<1x1x32xf32> to vector<1x32xf32>
    %1910 = vector.shape_cast %1907 : vector<1x32xf32> to vector<1x1x32xf32>
    tpu.vector_store %arg9[%c26_1211, %c3_1212, %c0_1213], %1910 {strides = array<i32>} : memref<32x11x32xf32, #tpu.memory_space<vmem>>, vector<1x1x32xf32>,
    %c208_i32_1214 = arith.constant 208 : i32
    %1911 = arith.addi %2, %c208_i32_1214 : i32
    %c4_i32_1215 = arith.constant 4 : i32
    %1912 = arith.addi %1911, %c4_i32_1215 : i32
    %1913 = arith.index_cast %1912 : i32 to index
    %1914 = memref.load %arg1[%1913] : memref<512xi32, #tpu.memory_space<smem>>
    %1915 = arith.index_cast %1914 : i32 to index
    %c0_1216 = arith.constant 0 : index
    %1916 = vector.load %arg2[%1915, %c0_1216] : memref<50x32xf32, #tpu.memory_space<vmem>>, vector<1x32xf32>
    %c26_1217 = arith.constant 26 : index
    %c4_1218 = arith.constant 4 : index
    %c0_1219 = arith.constant 0 : index
    %1917 = vector.load %arg9[%c26_1217, %c4_1218, %c0_1219] : memref<32x11x32xf32, #tpu.memory_space<vmem>>, vector<1x1x32xf32>
    %1918 = vector.shape_cast %1917 : vector<1x1x32xf32> to vector<1x32xf32>
    %1919 = vector.shape_cast %1916 : vector<1x32xf32> to vector<1x1x32xf32>
    tpu.vector_store %arg9[%c26_1217, %c4_1218, %c0_1219], %1919 {strides = array<i32>} : memref<32x11x32xf32, #tpu.memory_space<vmem>>, vector<1x1x32xf32>,
    %c208_i32_1220 = arith.constant 208 : i32
    %1920 = arith.addi %2, %c208_i32_1220 : i32
    %c5_i32_1221 = arith.constant 5 : i32
    %1921 = arith.addi %1920, %c5_i32_1221 : i32
    %1922 = arith.index_cast %1921 : i32 to index
    %1923 = memref.load %arg1[%1922] : memref<512xi32, #tpu.memory_space<smem>>
    %1924 = arith.index_cast %1923 : i32 to index
    %c0_1222 = arith.constant 0 : index
    %1925 = vector.load %arg2[%1924, %c0_1222] : memref<50x32xf32, #tpu.memory_space<vmem>>, vector<1x32xf32>
    %c26_1223 = arith.constant 26 : index
    %c5_1224 = arith.constant 5 : index
    %c0_1225 = arith.constant 0 : index
    %1926 = vector.load %arg9[%c26_1223, %c5_1224, %c0_1225] : memref<32x11x32xf32, #tpu.memory_space<vmem>>, vector<1x1x32xf32>
    %1927 = vector.shape_cast %1926 : vector<1x1x32xf32> to vector<1x32xf32>
    %1928 = vector.shape_cast %1925 : vector<1x32xf32> to vector<1x1x32xf32>
    tpu.vector_store %arg9[%c26_1223, %c5_1224, %c0_1225], %1928 {strides = array<i32>} : memref<32x11x32xf32, #tpu.memory_space<vmem>>, vector<1x1x32xf32>,
    %c208_i32_1226 = arith.constant 208 : i32
    %1929 = arith.addi %2, %c208_i32_1226 : i32
    %c6_i32_1227 = arith.constant 6 : i32
    %1930 = arith.addi %1929, %c6_i32_1227 : i32
    %1931 = arith.index_cast %1930 : i32 to index
    %1932 = memref.load %arg1[%1931] : memref<512xi32, #tpu.memory_space<smem>>
    %1933 = arith.index_cast %1932 : i32 to index
    %c0_1228 = arith.constant 0 : index
    %1934 = vector.load %arg2[%1933, %c0_1228] : memref<50x32xf32, #tpu.memory_space<vmem>>, vector<1x32xf32>
    %c26_1229 = arith.constant 26 : index
    %c6_1230 = arith.constant 6 : index
    %c0_1231 = arith.constant 0 : index
    %1935 = vector.load %arg9[%c26_1229, %c6_1230, %c0_1231] : memref<32x11x32xf32, #tpu.memory_space<vmem>>, vector<1x1x32xf32>
    %1936 = vector.shape_cast %1935 : vector<1x1x32xf32> to vector<1x32xf32>
    %1937 = vector.shape_cast %1934 : vector<1x32xf32> to vector<1x1x32xf32>
    tpu.vector_store %arg9[%c26_1229, %c6_1230, %c0_1231], %1937 {strides = array<i32>} : memref<32x11x32xf32, #tpu.memory_space<vmem>>, vector<1x1x32xf32>,
    %c208_i32_1232 = arith.constant 208 : i32
    %1938 = arith.addi %2, %c208_i32_1232 : i32
    %c7_i32_1233 = arith.constant 7 : i32
    %1939 = arith.addi %1938, %c7_i32_1233 : i32
    %1940 = arith.index_cast %1939 : i32 to index
    %1941 = memref.load %arg1[%1940] : memref<512xi32, #tpu.memory_space<smem>>
    %1942 = arith.index_cast %1941 : i32 to index
    %c0_1234 = arith.constant 0 : index
    %1943 = vector.load %arg2[%1942, %c0_1234] : memref<50x32xf32, #tpu.memory_space<vmem>>, vector<1x32xf32>
    %c26_1235 = arith.constant 26 : index
    %c7_1236 = arith.constant 7 : index
    %c0_1237 = arith.constant 0 : index
    %1944 = vector.load %arg9[%c26_1235, %c7_1236, %c0_1237] : memref<32x11x32xf32, #tpu.memory_space<vmem>>, vector<1x1x32xf32>
    %1945 = vector.shape_cast %1944 : vector<1x1x32xf32> to vector<1x32xf32>
    %1946 = vector.shape_cast %1943 : vector<1x32xf32> to vector<1x1x32xf32>
    tpu.vector_store %arg9[%c26_1235, %c7_1236, %c0_1237], %1946 {strides = array<i32>} : memref<32x11x32xf32, #tpu.memory_space<vmem>>, vector<1x1x32xf32>,
    %c216_i32 = arith.constant 216 : i32
    %1947 = arith.addi %2, %c216_i32 : i32
    %c0_i32_1238 = arith.constant 0 : i32
    %1948 = arith.addi %1947, %c0_i32_1238 : i32
    %1949 = arith.index_cast %1948 : i32 to index
    %1950 = memref.load %arg1[%1949] : memref<512xi32, #tpu.memory_space<smem>>
    %1951 = arith.index_cast %1950 : i32 to index
    %c0_1239 = arith.constant 0 : index
    %1952 = vector.load %arg2[%1951, %c0_1239] : memref<50x32xf32, #tpu.memory_space<vmem>>, vector<1x32xf32>
    %c27 = arith.constant 27 : index
    %c0_1240 = arith.constant 0 : index
    %c0_1241 = arith.constant 0 : index
    %1953 = vector.load %arg9[%c27, %c0_1240, %c0_1241] : memref<32x11x32xf32, #tpu.memory_space<vmem>>, vector<1x1x32xf32>
    %1954 = vector.shape_cast %1953 : vector<1x1x32xf32> to vector<1x32xf32>
    %1955 = vector.shape_cast %1952 : vector<1x32xf32> to vector<1x1x32xf32>
    tpu.vector_store %arg9[%c27, %c0_1240, %c0_1241], %1955 {strides = array<i32>} : memref<32x11x32xf32, #tpu.memory_space<vmem>>, vector<1x1x32xf32>,
    %c216_i32_1242 = arith.constant 216 : i32
    %1956 = arith.addi %2, %c216_i32_1242 : i32
    %c1_i32_1243 = arith.constant 1 : i32
    %1957 = arith.addi %1956, %c1_i32_1243 : i32
    %1958 = arith.index_cast %1957 : i32 to index
    %1959 = memref.load %arg1[%1958] : memref<512xi32, #tpu.memory_space<smem>>
    %1960 = arith.index_cast %1959 : i32 to index
    %c0_1244 = arith.constant 0 : index
    %1961 = vector.load %arg2[%1960, %c0_1244] : memref<50x32xf32, #tpu.memory_space<vmem>>, vector<1x32xf32>
    %c27_1245 = arith.constant 27 : index
    %c1_1246 = arith.constant 1 : index
    %c0_1247 = arith.constant 0 : index
    %1962 = vector.load %arg9[%c27_1245, %c1_1246, %c0_1247] : memref<32x11x32xf32, #tpu.memory_space<vmem>>, vector<1x1x32xf32>
    %1963 = vector.shape_cast %1962 : vector<1x1x32xf32> to vector<1x32xf32>
    %1964 = vector.shape_cast %1961 : vector<1x32xf32> to vector<1x1x32xf32>
    tpu.vector_store %arg9[%c27_1245, %c1_1246, %c0_1247], %1964 {strides = array<i32>} : memref<32x11x32xf32, #tpu.memory_space<vmem>>, vector<1x1x32xf32>,
    %c216_i32_1248 = arith.constant 216 : i32
    %1965 = arith.addi %2, %c216_i32_1248 : i32
    %c2_i32_1249 = arith.constant 2 : i32
    %1966 = arith.addi %1965, %c2_i32_1249 : i32
    %1967 = arith.index_cast %1966 : i32 to index
    %1968 = memref.load %arg1[%1967] : memref<512xi32, #tpu.memory_space<smem>>
    %1969 = arith.index_cast %1968 : i32 to index
    %c0_1250 = arith.constant 0 : index
    %1970 = vector.load %arg2[%1969, %c0_1250] : memref<50x32xf32, #tpu.memory_space<vmem>>, vector<1x32xf32>
    %c27_1251 = arith.constant 27 : index
    %c2_1252 = arith.constant 2 : index
    %c0_1253 = arith.constant 0 : index
    %1971 = vector.load %arg9[%c27_1251, %c2_1252, %c0_1253] : memref<32x11x32xf32, #tpu.memory_space<vmem>>, vector<1x1x32xf32>
    %1972 = vector.shape_cast %1971 : vector<1x1x32xf32> to vector<1x32xf32>
    %1973 = vector.shape_cast %1970 : vector<1x32xf32> to vector<1x1x32xf32>
    tpu.vector_store %arg9[%c27_1251, %c2_1252, %c0_1253], %1973 {strides = array<i32>} : memref<32x11x32xf32, #tpu.memory_space<vmem>>, vector<1x1x32xf32>,
    %c216_i32_1254 = arith.constant 216 : i32
    %1974 = arith.addi %2, %c216_i32_1254 : i32
    %c3_i32_1255 = arith.constant 3 : i32
    %1975 = arith.addi %1974, %c3_i32_1255 : i32
    %1976 = arith.index_cast %1975 : i32 to index
    %1977 = memref.load %arg1[%1976] : memref<512xi32, #tpu.memory_space<smem>>
    %1978 = arith.index_cast %1977 : i32 to index
    %c0_1256 = arith.constant 0 : index
    %1979 = vector.load %arg2[%1978, %c0_1256] : memref<50x32xf32, #tpu.memory_space<vmem>>, vector<1x32xf32>
    %c27_1257 = arith.constant 27 : index
    %c3_1258 = arith.constant 3 : index
    %c0_1259 = arith.constant 0 : index
    %1980 = vector.load %arg9[%c27_1257, %c3_1258, %c0_1259] : memref<32x11x32xf32, #tpu.memory_space<vmem>>, vector<1x1x32xf32>
    %1981 = vector.shape_cast %1980 : vector<1x1x32xf32> to vector<1x32xf32>
    %1982 = vector.shape_cast %1979 : vector<1x32xf32> to vector<1x1x32xf32>
    tpu.vector_store %arg9[%c27_1257, %c3_1258, %c0_1259], %1982 {strides = array<i32>} : memref<32x11x32xf32, #tpu.memory_space<vmem>>, vector<1x1x32xf32>,
    %c216_i32_1260 = arith.constant 216 : i32
    %1983 = arith.addi %2, %c216_i32_1260 : i32
    %c4_i32_1261 = arith.constant 4 : i32
    %1984 = arith.addi %1983, %c4_i32_1261 : i32
    %1985 = arith.index_cast %1984 : i32 to index
    %1986 = memref.load %arg1[%1985] : memref<512xi32, #tpu.memory_space<smem>>
    %1987 = arith.index_cast %1986 : i32 to index
    %c0_1262 = arith.constant 0 : index
    %1988 = vector.load %arg2[%1987, %c0_1262] : memref<50x32xf32, #tpu.memory_space<vmem>>, vector<1x32xf32>
    %c27_1263 = arith.constant 27 : index
    %c4_1264 = arith.constant 4 : index
    %c0_1265 = arith.constant 0 : index
    %1989 = vector.load %arg9[%c27_1263, %c4_1264, %c0_1265] : memref<32x11x32xf32, #tpu.memory_space<vmem>>, vector<1x1x32xf32>
    %1990 = vector.shape_cast %1989 : vector<1x1x32xf32> to vector<1x32xf32>
    %1991 = vector.shape_cast %1988 : vector<1x32xf32> to vector<1x1x32xf32>
    tpu.vector_store %arg9[%c27_1263, %c4_1264, %c0_1265], %1991 {strides = array<i32>} : memref<32x11x32xf32, #tpu.memory_space<vmem>>, vector<1x1x32xf32>,
    %c216_i32_1266 = arith.constant 216 : i32
    %1992 = arith.addi %2, %c216_i32_1266 : i32
    %c5_i32_1267 = arith.constant 5 : i32
    %1993 = arith.addi %1992, %c5_i32_1267 : i32
    %1994 = arith.index_cast %1993 : i32 to index
    %1995 = memref.load %arg1[%1994] : memref<512xi32, #tpu.memory_space<smem>>
    %1996 = arith.index_cast %1995 : i32 to index
    %c0_1268 = arith.constant 0 : index
    %1997 = vector.load %arg2[%1996, %c0_1268] : memref<50x32xf32, #tpu.memory_space<vmem>>, vector<1x32xf32>
    %c27_1269 = arith.constant 27 : index
    %c5_1270 = arith.constant 5 : index
    %c0_1271 = arith.constant 0 : index
    %1998 = vector.load %arg9[%c27_1269, %c5_1270, %c0_1271] : memref<32x11x32xf32, #tpu.memory_space<vmem>>, vector<1x1x32xf32>
    %1999 = vector.shape_cast %1998 : vector<1x1x32xf32> to vector<1x32xf32>
    %2000 = vector.shape_cast %1997 : vector<1x32xf32> to vector<1x1x32xf32>
    tpu.vector_store %arg9[%c27_1269, %c5_1270, %c0_1271], %2000 {strides = array<i32>} : memref<32x11x32xf32, #tpu.memory_space<vmem>>, vector<1x1x32xf32>,
    %c216_i32_1272 = arith.constant 216 : i32
    %2001 = arith.addi %2, %c216_i32_1272 : i32
    %c6_i32_1273 = arith.constant 6 : i32
    %2002 = arith.addi %2001, %c6_i32_1273 : i32
    %2003 = arith.index_cast %2002 : i32 to index
    %2004 = memref.load %arg1[%2003] : memref<512xi32, #tpu.memory_space<smem>>
    %2005 = arith.index_cast %2004 : i32 to index
    %c0_1274 = arith.constant 0 : index
    %2006 = vector.load %arg2[%2005, %c0_1274] : memref<50x32xf32, #tpu.memory_space<vmem>>, vector<1x32xf32>
    %c27_1275 = arith.constant 27 : index
    %c6_1276 = arith.constant 6 : index
    %c0_1277 = arith.constant 0 : index
    %2007 = vector.load %arg9[%c27_1275, %c6_1276, %c0_1277] : memref<32x11x32xf32, #tpu.memory_space<vmem>>, vector<1x1x32xf32>
    %2008 = vector.shape_cast %2007 : vector<1x1x32xf32> to vector<1x32xf32>
    %2009 = vector.shape_cast %2006 : vector<1x32xf32> to vector<1x1x32xf32>
    tpu.vector_store %arg9[%c27_1275, %c6_1276, %c0_1277], %2009 {strides = array<i32>} : memref<32x11x32xf32, #tpu.memory_space<vmem>>, vector<1x1x32xf32>,
    %c216_i32_1278 = arith.constant 216 : i32
    %2010 = arith.addi %2, %c216_i32_1278 : i32
    %c7_i32_1279 = arith.constant 7 : i32
    %2011 = arith.addi %2010, %c7_i32_1279 : i32
    %2012 = arith.index_cast %2011 : i32 to index
    %2013 = memref.load %arg1[%2012] : memref<512xi32, #tpu.memory_space<smem>>
    %2014 = arith.index_cast %2013 : i32 to index
    %c0_1280 = arith.constant 0 : index
    %2015 = vector.load %arg2[%2014, %c0_1280] : memref<50x32xf32, #tpu.memory_space<vmem>>, vector<1x32xf32>
    %c27_1281 = arith.constant 27 : index
    %c7_1282 = arith.constant 7 : index
    %c0_1283 = arith.constant 0 : index
    %2016 = vector.load %arg9[%c27_1281, %c7_1282, %c0_1283] : memref<32x11x32xf32, #tpu.memory_space<vmem>>, vector<1x1x32xf32>
    %2017 = vector.shape_cast %2016 : vector<1x1x32xf32> to vector<1x32xf32>
    %2018 = vector.shape_cast %2015 : vector<1x32xf32> to vector<1x1x32xf32>
    tpu.vector_store %arg9[%c27_1281, %c7_1282, %c0_1283], %2018 {strides = array<i32>} : memref<32x11x32xf32, #tpu.memory_space<vmem>>, vector<1x1x32xf32>,
    %c224_i32 = arith.constant 224 : i32
    %2019 = arith.addi %2, %c224_i32 : i32
    %c0_i32_1284 = arith.constant 0 : i32
    %2020 = arith.addi %2019, %c0_i32_1284 : i32
    %2021 = arith.index_cast %2020 : i32 to index
    %2022 = memref.load %arg1[%2021] : memref<512xi32, #tpu.memory_space<smem>>
    %2023 = arith.index_cast %2022 : i32 to index
    %c0_1285 = arith.constant 0 : index
    %2024 = vector.load %arg2[%2023, %c0_1285] : memref<50x32xf32, #tpu.memory_space<vmem>>, vector<1x32xf32>
    %c28 = arith.constant 28 : index
    %c0_1286 = arith.constant 0 : index
    %c0_1287 = arith.constant 0 : index
    %2025 = vector.load %arg9[%c28, %c0_1286, %c0_1287] : memref<32x11x32xf32, #tpu.memory_space<vmem>>, vector<1x1x32xf32>
    %2026 = vector.shape_cast %2025 : vector<1x1x32xf32> to vector<1x32xf32>
    %2027 = vector.shape_cast %2024 : vector<1x32xf32> to vector<1x1x32xf32>
    tpu.vector_store %arg9[%c28, %c0_1286, %c0_1287], %2027 {strides = array<i32>} : memref<32x11x32xf32, #tpu.memory_space<vmem>>, vector<1x1x32xf32>,
    %c224_i32_1288 = arith.constant 224 : i32
    %2028 = arith.addi %2, %c224_i32_1288 : i32
    %c1_i32_1289 = arith.constant 1 : i32
    %2029 = arith.addi %2028, %c1_i32_1289 : i32
    %2030 = arith.index_cast %2029 : i32 to index
    %2031 = memref.load %arg1[%2030] : memref<512xi32, #tpu.memory_space<smem>>
    %2032 = arith.index_cast %2031 : i32 to index
    %c0_1290 = arith.constant 0 : index
    %2033 = vector.load %arg2[%2032, %c0_1290] : memref<50x32xf32, #tpu.memory_space<vmem>>, vector<1x32xf32>
    %c28_1291 = arith.constant 28 : index
    %c1_1292 = arith.constant 1 : index
    %c0_1293 = arith.constant 0 : index
    %2034 = vector.load %arg9[%c28_1291, %c1_1292, %c0_1293] : memref<32x11x32xf32, #tpu.memory_space<vmem>>, vector<1x1x32xf32>
    %2035 = vector.shape_cast %2034 : vector<1x1x32xf32> to vector<1x32xf32>
    %2036 = vector.shape_cast %2033 : vector<1x32xf32> to vector<1x1x32xf32>
    tpu.vector_store %arg9[%c28_1291, %c1_1292, %c0_1293], %2036 {strides = array<i32>} : memref<32x11x32xf32, #tpu.memory_space<vmem>>, vector<1x1x32xf32>,
    %c224_i32_1294 = arith.constant 224 : i32
    %2037 = arith.addi %2, %c224_i32_1294 : i32
    %c2_i32_1295 = arith.constant 2 : i32
    %2038 = arith.addi %2037, %c2_i32_1295 : i32
    %2039 = arith.index_cast %2038 : i32 to index
    %2040 = memref.load %arg1[%2039] : memref<512xi32, #tpu.memory_space<smem>>
    %2041 = arith.index_cast %2040 : i32 to index
    %c0_1296 = arith.constant 0 : index
    %2042 = vector.load %arg2[%2041, %c0_1296] : memref<50x32xf32, #tpu.memory_space<vmem>>, vector<1x32xf32>
    %c28_1297 = arith.constant 28 : index
    %c2_1298 = arith.constant 2 : index
    %c0_1299 = arith.constant 0 : index
    %2043 = vector.load %arg9[%c28_1297, %c2_1298, %c0_1299] : memref<32x11x32xf32, #tpu.memory_space<vmem>>, vector<1x1x32xf32>
    %2044 = vector.shape_cast %2043 : vector<1x1x32xf32> to vector<1x32xf32>
    %2045 = vector.shape_cast %2042 : vector<1x32xf32> to vector<1x1x32xf32>
    tpu.vector_store %arg9[%c28_1297, %c2_1298, %c0_1299], %2045 {strides = array<i32>} : memref<32x11x32xf32, #tpu.memory_space<vmem>>, vector<1x1x32xf32>,
    %c224_i32_1300 = arith.constant 224 : i32
    %2046 = arith.addi %2, %c224_i32_1300 : i32
    %c3_i32_1301 = arith.constant 3 : i32
    %2047 = arith.addi %2046, %c3_i32_1301 : i32
    %2048 = arith.index_cast %2047 : i32 to index
    %2049 = memref.load %arg1[%2048] : memref<512xi32, #tpu.memory_space<smem>>
    %2050 = arith.index_cast %2049 : i32 to index
    %c0_1302 = arith.constant 0 : index
    %2051 = vector.load %arg2[%2050, %c0_1302] : memref<50x32xf32, #tpu.memory_space<vmem>>, vector<1x32xf32>
    %c28_1303 = arith.constant 28 : index
    %c3_1304 = arith.constant 3 : index
    %c0_1305 = arith.constant 0 : index
    %2052 = vector.load %arg9[%c28_1303, %c3_1304, %c0_1305] : memref<32x11x32xf32, #tpu.memory_space<vmem>>, vector<1x1x32xf32>
    %2053 = vector.shape_cast %2052 : vector<1x1x32xf32> to vector<1x32xf32>
    %2054 = vector.shape_cast %2051 : vector<1x32xf32> to vector<1x1x32xf32>
    tpu.vector_store %arg9[%c28_1303, %c3_1304, %c0_1305], %2054 {strides = array<i32>} : memref<32x11x32xf32, #tpu.memory_space<vmem>>, vector<1x1x32xf32>,
    %c224_i32_1306 = arith.constant 224 : i32
    %2055 = arith.addi %2, %c224_i32_1306 : i32
    %c4_i32_1307 = arith.constant 4 : i32
    %2056 = arith.addi %2055, %c4_i32_1307 : i32
    %2057 = arith.index_cast %2056 : i32 to index
    %2058 = memref.load %arg1[%2057] : memref<512xi32, #tpu.memory_space<smem>>
    %2059 = arith.index_cast %2058 : i32 to index
    %c0_1308 = arith.constant 0 : index
    %2060 = vector.load %arg2[%2059, %c0_1308] : memref<50x32xf32, #tpu.memory_space<vmem>>, vector<1x32xf32>
    %c28_1309 = arith.constant 28 : index
    %c4_1310 = arith.constant 4 : index
    %c0_1311 = arith.constant 0 : index
    %2061 = vector.load %arg9[%c28_1309, %c4_1310, %c0_1311] : memref<32x11x32xf32, #tpu.memory_space<vmem>>, vector<1x1x32xf32>
    %2062 = vector.shape_cast %2061 : vector<1x1x32xf32> to vector<1x32xf32>
    %2063 = vector.shape_cast %2060 : vector<1x32xf32> to vector<1x1x32xf32>
    tpu.vector_store %arg9[%c28_1309, %c4_1310, %c0_1311], %2063 {strides = array<i32>} : memref<32x11x32xf32, #tpu.memory_space<vmem>>, vector<1x1x32xf32>,
    %c224_i32_1312 = arith.constant 224 : i32
    %2064 = arith.addi %2, %c224_i32_1312 : i32
    %c5_i32_1313 = arith.constant 5 : i32
    %2065 = arith.addi %2064, %c5_i32_1313 : i32
    %2066 = arith.index_cast %2065 : i32 to index
    %2067 = memref.load %arg1[%2066] : memref<512xi32, #tpu.memory_space<smem>>
    %2068 = arith.index_cast %2067 : i32 to index
    %c0_1314 = arith.constant 0 : index
    %2069 = vector.load %arg2[%2068, %c0_1314] : memref<50x32xf32, #tpu.memory_space<vmem>>, vector<1x32xf32>
    %c28_1315 = arith.constant 28 : index
    %c5_1316 = arith.constant 5 : index
    %c0_1317 = arith.constant 0 : index
    %2070 = vector.load %arg9[%c28_1315, %c5_1316, %c0_1317] : memref<32x11x32xf32, #tpu.memory_space<vmem>>, vector<1x1x32xf32>
    %2071 = vector.shape_cast %2070 : vector<1x1x32xf32> to vector<1x32xf32>
    %2072 = vector.shape_cast %2069 : vector<1x32xf32> to vector<1x1x32xf32>
    tpu.vector_store %arg9[%c28_1315, %c5_1316, %c0_1317], %2072 {strides = array<i32>} : memref<32x11x32xf32, #tpu.memory_space<vmem>>, vector<1x1x32xf32>,
    %c224_i32_1318 = arith.constant 224 : i32
    %2073 = arith.addi %2, %c224_i32_1318 : i32
    %c6_i32_1319 = arith.constant 6 : i32
    %2074 = arith.addi %2073, %c6_i32_1319 : i32
    %2075 = arith.index_cast %2074 : i32 to index
    %2076 = memref.load %arg1[%2075] : memref<512xi32, #tpu.memory_space<smem>>
    %2077 = arith.index_cast %2076 : i32 to index
    %c0_1320 = arith.constant 0 : index
    %2078 = vector.load %arg2[%2077, %c0_1320] : memref<50x32xf32, #tpu.memory_space<vmem>>, vector<1x32xf32>
    %c28_1321 = arith.constant 28 : index
    %c6_1322 = arith.constant 6 : index
    %c0_1323 = arith.constant 0 : index
    %2079 = vector.load %arg9[%c28_1321, %c6_1322, %c0_1323] : memref<32x11x32xf32, #tpu.memory_space<vmem>>, vector<1x1x32xf32>
    %2080 = vector.shape_cast %2079 : vector<1x1x32xf32> to vector<1x32xf32>
    %2081 = vector.shape_cast %2078 : vector<1x32xf32> to vector<1x1x32xf32>
    tpu.vector_store %arg9[%c28_1321, %c6_1322, %c0_1323], %2081 {strides = array<i32>} : memref<32x11x32xf32, #tpu.memory_space<vmem>>, vector<1x1x32xf32>,
    %c224_i32_1324 = arith.constant 224 : i32
    %2082 = arith.addi %2, %c224_i32_1324 : i32
    %c7_i32_1325 = arith.constant 7 : i32
    %2083 = arith.addi %2082, %c7_i32_1325 : i32
    %2084 = arith.index_cast %2083 : i32 to index
    %2085 = memref.load %arg1[%2084] : memref<512xi32, #tpu.memory_space<smem>>
    %2086 = arith.index_cast %2085 : i32 to index
    %c0_1326 = arith.constant 0 : index
    %2087 = vector.load %arg2[%2086, %c0_1326] : memref<50x32xf32, #tpu.memory_space<vmem>>, vector<1x32xf32>
    %c28_1327 = arith.constant 28 : index
    %c7_1328 = arith.constant 7 : index
    %c0_1329 = arith.constant 0 : index
    %2088 = vector.load %arg9[%c28_1327, %c7_1328, %c0_1329] : memref<32x11x32xf32, #tpu.memory_space<vmem>>, vector<1x1x32xf32>
    %2089 = vector.shape_cast %2088 : vector<1x1x32xf32> to vector<1x32xf32>
    %2090 = vector.shape_cast %2087 : vector<1x32xf32> to vector<1x1x32xf32>
    tpu.vector_store %arg9[%c28_1327, %c7_1328, %c0_1329], %2090 {strides = array<i32>} : memref<32x11x32xf32, #tpu.memory_space<vmem>>, vector<1x1x32xf32>,
    %c232_i32 = arith.constant 232 : i32
    %2091 = arith.addi %2, %c232_i32 : i32
    %c0_i32_1330 = arith.constant 0 : i32
    %2092 = arith.addi %2091, %c0_i32_1330 : i32
    %2093 = arith.index_cast %2092 : i32 to index
    %2094 = memref.load %arg1[%2093] : memref<512xi32, #tpu.memory_space<smem>>
    %2095 = arith.index_cast %2094 : i32 to index
    %c0_1331 = arith.constant 0 : index
    %2096 = vector.load %arg2[%2095, %c0_1331] : memref<50x32xf32, #tpu.memory_space<vmem>>, vector<1x32xf32>
    %c29 = arith.constant 29 : index
    %c0_1332 = arith.constant 0 : index
    %c0_1333 = arith.constant 0 : index
    %2097 = vector.load %arg9[%c29, %c0_1332, %c0_1333] : memref<32x11x32xf32, #tpu.memory_space<vmem>>, vector<1x1x32xf32>
    %2098 = vector.shape_cast %2097 : vector<1x1x32xf32> to vector<1x32xf32>
    %2099 = vector.shape_cast %2096 : vector<1x32xf32> to vector<1x1x32xf32>
    tpu.vector_store %arg9[%c29, %c0_1332, %c0_1333], %2099 {strides = array<i32>} : memref<32x11x32xf32, #tpu.memory_space<vmem>>, vector<1x1x32xf32>,
    %c232_i32_1334 = arith.constant 232 : i32
    %2100 = arith.addi %2, %c232_i32_1334 : i32
    %c1_i32_1335 = arith.constant 1 : i32
    %2101 = arith.addi %2100, %c1_i32_1335 : i32
    %2102 = arith.index_cast %2101 : i32 to index
    %2103 = memref.load %arg1[%2102] : memref<512xi32, #tpu.memory_space<smem>>
    %2104 = arith.index_cast %2103 : i32 to index
    %c0_1336 = arith.constant 0 : index
    %2105 = vector.load %arg2[%2104, %c0_1336] : memref<50x32xf32, #tpu.memory_space<vmem>>, vector<1x32xf32>
    %c29_1337 = arith.constant 29 : index
    %c1_1338 = arith.constant 1 : index
    %c0_1339 = arith.constant 0 : index
    %2106 = vector.load %arg9[%c29_1337, %c1_1338, %c0_1339] : memref<32x11x32xf32, #tpu.memory_space<vmem>>, vector<1x1x32xf32>
    %2107 = vector.shape_cast %2106 : vector<1x1x32xf32> to vector<1x32xf32>
    %2108 = vector.shape_cast %2105 : vector<1x32xf32> to vector<1x1x32xf32>
    tpu.vector_store %arg9[%c29_1337, %c1_1338, %c0_1339], %2108 {strides = array<i32>} : memref<32x11x32xf32, #tpu.memory_space<vmem>>, vector<1x1x32xf32>,
    %c232_i32_1340 = arith.constant 232 : i32
    %2109 = arith.addi %2, %c232_i32_1340 : i32
    %c2_i32_1341 = arith.constant 2 : i32
    %2110 = arith.addi %2109, %c2_i32_1341 : i32
    %2111 = arith.index_cast %2110 : i32 to index
    %2112 = memref.load %arg1[%2111] : memref<512xi32, #tpu.memory_space<smem>>
    %2113 = arith.index_cast %2112 : i32 to index
    %c0_1342 = arith.constant 0 : index
    %2114 = vector.load %arg2[%2113, %c0_1342] : memref<50x32xf32, #tpu.memory_space<vmem>>, vector<1x32xf32>
    %c29_1343 = arith.constant 29 : index
    %c2_1344 = arith.constant 2 : index
    %c0_1345 = arith.constant 0 : index
    %2115 = vector.load %arg9[%c29_1343, %c2_1344, %c0_1345] : memref<32x11x32xf32, #tpu.memory_space<vmem>>, vector<1x1x32xf32>
    %2116 = vector.shape_cast %2115 : vector<1x1x32xf32> to vector<1x32xf32>
    %2117 = vector.shape_cast %2114 : vector<1x32xf32> to vector<1x1x32xf32>
    tpu.vector_store %arg9[%c29_1343, %c2_1344, %c0_1345], %2117 {strides = array<i32>} : memref<32x11x32xf32, #tpu.memory_space<vmem>>, vector<1x1x32xf32>,
    %c232_i32_1346 = arith.constant 232 : i32
    %2118 = arith.addi %2, %c232_i32_1346 : i32
    %c3_i32_1347 = arith.constant 3 : i32
    %2119 = arith.addi %2118, %c3_i32_1347 : i32
    %2120 = arith.index_cast %2119 : i32 to index
    %2121 = memref.load %arg1[%2120] : memref<512xi32, #tpu.memory_space<smem>>
    %2122 = arith.index_cast %2121 : i32 to index
    %c0_1348 = arith.constant 0 : index
    %2123 = vector.load %arg2[%2122, %c0_1348] : memref<50x32xf32, #tpu.memory_space<vmem>>, vector<1x32xf32>
    %c29_1349 = arith.constant 29 : index
    %c3_1350 = arith.constant 3 : index
    %c0_1351 = arith.constant 0 : index
    %2124 = vector.load %arg9[%c29_1349, %c3_1350, %c0_1351] : memref<32x11x32xf32, #tpu.memory_space<vmem>>, vector<1x1x32xf32>
    %2125 = vector.shape_cast %2124 : vector<1x1x32xf32> to vector<1x32xf32>
    %2126 = vector.shape_cast %2123 : vector<1x32xf32> to vector<1x1x32xf32>
    tpu.vector_store %arg9[%c29_1349, %c3_1350, %c0_1351], %2126 {strides = array<i32>} : memref<32x11x32xf32, #tpu.memory_space<vmem>>, vector<1x1x32xf32>,
    %c232_i32_1352 = arith.constant 232 : i32
    %2127 = arith.addi %2, %c232_i32_1352 : i32
    %c4_i32_1353 = arith.constant 4 : i32
    %2128 = arith.addi %2127, %c4_i32_1353 : i32
    %2129 = arith.index_cast %2128 : i32 to index
    %2130 = memref.load %arg1[%2129] : memref<512xi32, #tpu.memory_space<smem>>
    %2131 = arith.index_cast %2130 : i32 to index
    %c0_1354 = arith.constant 0 : index
    %2132 = vector.load %arg2[%2131, %c0_1354] : memref<50x32xf32, #tpu.memory_space<vmem>>, vector<1x32xf32>
    %c29_1355 = arith.constant 29 : index
    %c4_1356 = arith.constant 4 : index
    %c0_1357 = arith.constant 0 : index
    %2133 = vector.load %arg9[%c29_1355, %c4_1356, %c0_1357] : memref<32x11x32xf32, #tpu.memory_space<vmem>>, vector<1x1x32xf32>
    %2134 = vector.shape_cast %2133 : vector<1x1x32xf32> to vector<1x32xf32>
    %2135 = vector.shape_cast %2132 : vector<1x32xf32> to vector<1x1x32xf32>
    tpu.vector_store %arg9[%c29_1355, %c4_1356, %c0_1357], %2135 {strides = array<i32>} : memref<32x11x32xf32, #tpu.memory_space<vmem>>, vector<1x1x32xf32>,
    %c232_i32_1358 = arith.constant 232 : i32
    %2136 = arith.addi %2, %c232_i32_1358 : i32
    %c5_i32_1359 = arith.constant 5 : i32
    %2137 = arith.addi %2136, %c5_i32_1359 : i32
    %2138 = arith.index_cast %2137 : i32 to index
    %2139 = memref.load %arg1[%2138] : memref<512xi32, #tpu.memory_space<smem>>
    %2140 = arith.index_cast %2139 : i32 to index
    %c0_1360 = arith.constant 0 : index
    %2141 = vector.load %arg2[%2140, %c0_1360] : memref<50x32xf32, #tpu.memory_space<vmem>>, vector<1x32xf32>
    %c29_1361 = arith.constant 29 : index
    %c5_1362 = arith.constant 5 : index
    %c0_1363 = arith.constant 0 : index
    %2142 = vector.load %arg9[%c29_1361, %c5_1362, %c0_1363] : memref<32x11x32xf32, #tpu.memory_space<vmem>>, vector<1x1x32xf32>
    %2143 = vector.shape_cast %2142 : vector<1x1x32xf32> to vector<1x32xf32>
    %2144 = vector.shape_cast %2141 : vector<1x32xf32> to vector<1x1x32xf32>
    tpu.vector_store %arg9[%c29_1361, %c5_1362, %c0_1363], %2144 {strides = array<i32>} : memref<32x11x32xf32, #tpu.memory_space<vmem>>, vector<1x1x32xf32>,
    %c232_i32_1364 = arith.constant 232 : i32
    %2145 = arith.addi %2, %c232_i32_1364 : i32
    %c6_i32_1365 = arith.constant 6 : i32
    %2146 = arith.addi %2145, %c6_i32_1365 : i32
    %2147 = arith.index_cast %2146 : i32 to index
    %2148 = memref.load %arg1[%2147] : memref<512xi32, #tpu.memory_space<smem>>
    %2149 = arith.index_cast %2148 : i32 to index
    %c0_1366 = arith.constant 0 : index
    %2150 = vector.load %arg2[%2149, %c0_1366] : memref<50x32xf32, #tpu.memory_space<vmem>>, vector<1x32xf32>
    %c29_1367 = arith.constant 29 : index
    %c6_1368 = arith.constant 6 : index
    %c0_1369 = arith.constant 0 : index
    %2151 = vector.load %arg9[%c29_1367, %c6_1368, %c0_1369] : memref<32x11x32xf32, #tpu.memory_space<vmem>>, vector<1x1x32xf32>
    %2152 = vector.shape_cast %2151 : vector<1x1x32xf32> to vector<1x32xf32>
    %2153 = vector.shape_cast %2150 : vector<1x32xf32> to vector<1x1x32xf32>
    tpu.vector_store %arg9[%c29_1367, %c6_1368, %c0_1369], %2153 {strides = array<i32>} : memref<32x11x32xf32, #tpu.memory_space<vmem>>, vector<1x1x32xf32>,
    %c232_i32_1370 = arith.constant 232 : i32
    %2154 = arith.addi %2, %c232_i32_1370 : i32
    %c7_i32_1371 = arith.constant 7 : i32
    %2155 = arith.addi %2154, %c7_i32_1371 : i32
    %2156 = arith.index_cast %2155 : i32 to index
    %2157 = memref.load %arg1[%2156] : memref<512xi32, #tpu.memory_space<smem>>
    %2158 = arith.index_cast %2157 : i32 to index
    %c0_1372 = arith.constant 0 : index
    %2159 = vector.load %arg2[%2158, %c0_1372] : memref<50x32xf32, #tpu.memory_space<vmem>>, vector<1x32xf32>
    %c29_1373 = arith.constant 29 : index
    %c7_1374 = arith.constant 7 : index
    %c0_1375 = arith.constant 0 : index
    %2160 = vector.load %arg9[%c29_1373, %c7_1374, %c0_1375] : memref<32x11x32xf32, #tpu.memory_space<vmem>>, vector<1x1x32xf32>
    %2161 = vector.shape_cast %2160 : vector<1x1x32xf32> to vector<1x32xf32>
    %2162 = vector.shape_cast %2159 : vector<1x32xf32> to vector<1x1x32xf32>
    tpu.vector_store %arg9[%c29_1373, %c7_1374, %c0_1375], %2162 {strides = array<i32>} : memref<32x11x32xf32, #tpu.memory_space<vmem>>, vector<1x1x32xf32>,
    %c240_i32 = arith.constant 240 : i32
    %2163 = arith.addi %2, %c240_i32 : i32
    %c0_i32_1376 = arith.constant 0 : i32
    %2164 = arith.addi %2163, %c0_i32_1376 : i32
    %2165 = arith.index_cast %2164 : i32 to index
    %2166 = memref.load %arg1[%2165] : memref<512xi32, #tpu.memory_space<smem>>
    %2167 = arith.index_cast %2166 : i32 to index
    %c0_1377 = arith.constant 0 : index
    %2168 = vector.load %arg2[%2167, %c0_1377] : memref<50x32xf32, #tpu.memory_space<vmem>>, vector<1x32xf32>
    %c30 = arith.constant 30 : index
    %c0_1378 = arith.constant 0 : index
    %c0_1379 = arith.constant 0 : index
    %2169 = vector.load %arg9[%c30, %c0_1378, %c0_1379] : memref<32x11x32xf32, #tpu.memory_space<vmem>>, vector<1x1x32xf32>
    %2170 = vector.shape_cast %2169 : vector<1x1x32xf32> to vector<1x32xf32>
    %2171 = vector.shape_cast %2168 : vector<1x32xf32> to vector<1x1x32xf32>
    tpu.vector_store %arg9[%c30, %c0_1378, %c0_1379], %2171 {strides = array<i32>} : memref<32x11x32xf32, #tpu.memory_space<vmem>>, vector<1x1x32xf32>,
    %c240_i32_1380 = arith.constant 240 : i32
    %2172 = arith.addi %2, %c240_i32_1380 : i32
    %c1_i32_1381 = arith.constant 1 : i32
    %2173 = arith.addi %2172, %c1_i32_1381 : i32
    %2174 = arith.index_cast %2173 : i32 to index
    %2175 = memref.load %arg1[%2174] : memref<512xi32, #tpu.memory_space<smem>>
    %2176 = arith.index_cast %2175 : i32 to index
    %c0_1382 = arith.constant 0 : index
    %2177 = vector.load %arg2[%2176, %c0_1382] : memref<50x32xf32, #tpu.memory_space<vmem>>, vector<1x32xf32>
    %c30_1383 = arith.constant 30 : index
    %c1_1384 = arith.constant 1 : index
    %c0_1385 = arith.constant 0 : index
    %2178 = vector.load %arg9[%c30_1383, %c1_1384, %c0_1385] : memref<32x11x32xf32, #tpu.memory_space<vmem>>, vector<1x1x32xf32>
    %2179 = vector.shape_cast %2178 : vector<1x1x32xf32> to vector<1x32xf32>
    %2180 = vector.shape_cast %2177 : vector<1x32xf32> to vector<1x1x32xf32>
    tpu.vector_store %arg9[%c30_1383, %c1_1384, %c0_1385], %2180 {strides = array<i32>} : memref<32x11x32xf32, #tpu.memory_space<vmem>>, vector<1x1x32xf32>,
    %c240_i32_1386 = arith.constant 240 : i32
    %2181 = arith.addi %2, %c240_i32_1386 : i32
    %c2_i32_1387 = arith.constant 2 : i32
    %2182 = arith.addi %2181, %c2_i32_1387 : i32
    %2183 = arith.index_cast %2182 : i32 to index
    %2184 = memref.load %arg1[%2183] : memref<512xi32, #tpu.memory_space<smem>>
    %2185 = arith.index_cast %2184 : i32 to index
    %c0_1388 = arith.constant 0 : index
    %2186 = vector.load %arg2[%2185, %c0_1388] : memref<50x32xf32, #tpu.memory_space<vmem>>, vector<1x32xf32>
    %c30_1389 = arith.constant 30 : index
    %c2_1390 = arith.constant 2 : index
    %c0_1391 = arith.constant 0 : index
    %2187 = vector.load %arg9[%c30_1389, %c2_1390, %c0_1391] : memref<32x11x32xf32, #tpu.memory_space<vmem>>, vector<1x1x32xf32>
    %2188 = vector.shape_cast %2187 : vector<1x1x32xf32> to vector<1x32xf32>
    %2189 = vector.shape_cast %2186 : vector<1x32xf32> to vector<1x1x32xf32>
    tpu.vector_store %arg9[%c30_1389, %c2_1390, %c0_1391], %2189 {strides = array<i32>} : memref<32x11x32xf32, #tpu.memory_space<vmem>>, vector<1x1x32xf32>,
    %c240_i32_1392 = arith.constant 240 : i32
    %2190 = arith.addi %2, %c240_i32_1392 : i32
    %c3_i32_1393 = arith.constant 3 : i32
    %2191 = arith.addi %2190, %c3_i32_1393 : i32
    %2192 = arith.index_cast %2191 : i32 to index
    %2193 = memref.load %arg1[%2192] : memref<512xi32, #tpu.memory_space<smem>>
    %2194 = arith.index_cast %2193 : i32 to index
    %c0_1394 = arith.constant 0 : index
    %2195 = vector.load %arg2[%2194, %c0_1394] : memref<50x32xf32, #tpu.memory_space<vmem>>, vector<1x32xf32>
    %c30_1395 = arith.constant 30 : index
    %c3_1396 = arith.constant 3 : index
    %c0_1397 = arith.constant 0 : index
    %2196 = vector.load %arg9[%c30_1395, %c3_1396, %c0_1397] : memref<32x11x32xf32, #tpu.memory_space<vmem>>, vector<1x1x32xf32>
    %2197 = vector.shape_cast %2196 : vector<1x1x32xf32> to vector<1x32xf32>
    %2198 = vector.shape_cast %2195 : vector<1x32xf32> to vector<1x1x32xf32>
    tpu.vector_store %arg9[%c30_1395, %c3_1396, %c0_1397], %2198 {strides = array<i32>} : memref<32x11x32xf32, #tpu.memory_space<vmem>>, vector<1x1x32xf32>,
    %c240_i32_1398 = arith.constant 240 : i32
    %2199 = arith.addi %2, %c240_i32_1398 : i32
    %c4_i32_1399 = arith.constant 4 : i32
    %2200 = arith.addi %2199, %c4_i32_1399 : i32
    %2201 = arith.index_cast %2200 : i32 to index
    %2202 = memref.load %arg1[%2201] : memref<512xi32, #tpu.memory_space<smem>>
    %2203 = arith.index_cast %2202 : i32 to index
    %c0_1400 = arith.constant 0 : index
    %2204 = vector.load %arg2[%2203, %c0_1400] : memref<50x32xf32, #tpu.memory_space<vmem>>, vector<1x32xf32>
    %c30_1401 = arith.constant 30 : index
    %c4_1402 = arith.constant 4 : index
    %c0_1403 = arith.constant 0 : index
    %2205 = vector.load %arg9[%c30_1401, %c4_1402, %c0_1403] : memref<32x11x32xf32, #tpu.memory_space<vmem>>, vector<1x1x32xf32>
    %2206 = vector.shape_cast %2205 : vector<1x1x32xf32> to vector<1x32xf32>
    %2207 = vector.shape_cast %2204 : vector<1x32xf32> to vector<1x1x32xf32>
    tpu.vector_store %arg9[%c30_1401, %c4_1402, %c0_1403], %2207 {strides = array<i32>} : memref<32x11x32xf32, #tpu.memory_space<vmem>>, vector<1x1x32xf32>,
    %c240_i32_1404 = arith.constant 240 : i32
    %2208 = arith.addi %2, %c240_i32_1404 : i32
    %c5_i32_1405 = arith.constant 5 : i32
    %2209 = arith.addi %2208, %c5_i32_1405 : i32
    %2210 = arith.index_cast %2209 : i32 to index
    %2211 = memref.load %arg1[%2210] : memref<512xi32, #tpu.memory_space<smem>>
    %2212 = arith.index_cast %2211 : i32 to index
    %c0_1406 = arith.constant 0 : index
    %2213 = vector.load %arg2[%2212, %c0_1406] : memref<50x32xf32, #tpu.memory_space<vmem>>, vector<1x32xf32>
    %c30_1407 = arith.constant 30 : index
    %c5_1408 = arith.constant 5 : index
    %c0_1409 = arith.constant 0 : index
    %2214 = vector.load %arg9[%c30_1407, %c5_1408, %c0_1409] : memref<32x11x32xf32, #tpu.memory_space<vmem>>, vector<1x1x32xf32>
    %2215 = vector.shape_cast %2214 : vector<1x1x32xf32> to vector<1x32xf32>
    %2216 = vector.shape_cast %2213 : vector<1x32xf32> to vector<1x1x32xf32>
    tpu.vector_store %arg9[%c30_1407, %c5_1408, %c0_1409], %2216 {strides = array<i32>} : memref<32x11x32xf32, #tpu.memory_space<vmem>>, vector<1x1x32xf32>,
    %c240_i32_1410 = arith.constant 240 : i32
    %2217 = arith.addi %2, %c240_i32_1410 : i32
    %c6_i32_1411 = arith.constant 6 : i32
    %2218 = arith.addi %2217, %c6_i32_1411 : i32
    %2219 = arith.index_cast %2218 : i32 to index
    %2220 = memref.load %arg1[%2219] : memref<512xi32, #tpu.memory_space<smem>>
    %2221 = arith.index_cast %2220 : i32 to index
    %c0_1412 = arith.constant 0 : index
    %2222 = vector.load %arg2[%2221, %c0_1412] : memref<50x32xf32, #tpu.memory_space<vmem>>, vector<1x32xf32>
    %c30_1413 = arith.constant 30 : index
    %c6_1414 = arith.constant 6 : index
    %c0_1415 = arith.constant 0 : index
    %2223 = vector.load %arg9[%c30_1413, %c6_1414, %c0_1415] : memref<32x11x32xf32, #tpu.memory_space<vmem>>, vector<1x1x32xf32>
    %2224 = vector.shape_cast %2223 : vector<1x1x32xf32> to vector<1x32xf32>
    %2225 = vector.shape_cast %2222 : vector<1x32xf32> to vector<1x1x32xf32>
    tpu.vector_store %arg9[%c30_1413, %c6_1414, %c0_1415], %2225 {strides = array<i32>} : memref<32x11x32xf32, #tpu.memory_space<vmem>>, vector<1x1x32xf32>,
    %c240_i32_1416 = arith.constant 240 : i32
    %2226 = arith.addi %2, %c240_i32_1416 : i32
    %c7_i32_1417 = arith.constant 7 : i32
    %2227 = arith.addi %2226, %c7_i32_1417 : i32
    %2228 = arith.index_cast %2227 : i32 to index
    %2229 = memref.load %arg1[%2228] : memref<512xi32, #tpu.memory_space<smem>>
    %2230 = arith.index_cast %2229 : i32 to index
    %c0_1418 = arith.constant 0 : index
    %2231 = vector.load %arg2[%2230, %c0_1418] : memref<50x32xf32, #tpu.memory_space<vmem>>, vector<1x32xf32>
    %c30_1419 = arith.constant 30 : index
    %c7_1420 = arith.constant 7 : index
    %c0_1421 = arith.constant 0 : index
    %2232 = vector.load %arg9[%c30_1419, %c7_1420, %c0_1421] : memref<32x11x32xf32, #tpu.memory_space<vmem>>, vector<1x1x32xf32>
    %2233 = vector.shape_cast %2232 : vector<1x1x32xf32> to vector<1x32xf32>
    %2234 = vector.shape_cast %2231 : vector<1x32xf32> to vector<1x1x32xf32>
    tpu.vector_store %arg9[%c30_1419, %c7_1420, %c0_1421], %2234 {strides = array<i32>} : memref<32x11x32xf32, #tpu.memory_space<vmem>>, vector<1x1x32xf32>,
    %c248_i32 = arith.constant 248 : i32
    %2235 = arith.addi %2, %c248_i32 : i32
    %c0_i32_1422 = arith.constant 0 : i32
    %2236 = arith.addi %2235, %c0_i32_1422 : i32
    %2237 = arith.index_cast %2236 : i32 to index
    %2238 = memref.load %arg1[%2237] : memref<512xi32, #tpu.memory_space<smem>>
    %2239 = arith.index_cast %2238 : i32 to index
    %c0_1423 = arith.constant 0 : index
    %2240 = vector.load %arg2[%2239, %c0_1423] : memref<50x32xf32, #tpu.memory_space<vmem>>, vector<1x32xf32>
    %c31 = arith.constant 31 : index
    %c0_1424 = arith.constant 0 : index
    %c0_1425 = arith.constant 0 : index
    %2241 = vector.load %arg9[%c31, %c0_1424, %c0_1425] : memref<32x11x32xf32, #tpu.memory_space<vmem>>, vector<1x1x32xf32>
    %2242 = vector.shape_cast %2241 : vector<1x1x32xf32> to vector<1x32xf32>
    %2243 = vector.shape_cast %2240 : vector<1x32xf32> to vector<1x1x32xf32>
    tpu.vector_store %arg9[%c31, %c0_1424, %c0_1425], %2243 {strides = array<i32>} : memref<32x11x32xf32, #tpu.memory_space<vmem>>, vector<1x1x32xf32>,
    %c248_i32_1426 = arith.constant 248 : i32
    %2244 = arith.addi %2, %c248_i32_1426 : i32
    %c1_i32_1427 = arith.constant 1 : i32
    %2245 = arith.addi %2244, %c1_i32_1427 : i32
    %2246 = arith.index_cast %2245 : i32 to index
    %2247 = memref.load %arg1[%2246] : memref<512xi32, #tpu.memory_space<smem>>
    %2248 = arith.index_cast %2247 : i32 to index
    %c0_1428 = arith.constant 0 : index
    %2249 = vector.load %arg2[%2248, %c0_1428] : memref<50x32xf32, #tpu.memory_space<vmem>>, vector<1x32xf32>
    %c31_1429 = arith.constant 31 : index
    %c1_1430 = arith.constant 1 : index
    %c0_1431 = arith.constant 0 : index
    %2250 = vector.load %arg9[%c31_1429, %c1_1430, %c0_1431] : memref<32x11x32xf32, #tpu.memory_space<vmem>>, vector<1x1x32xf32>
    %2251 = vector.shape_cast %2250 : vector<1x1x32xf32> to vector<1x32xf32>
    %2252 = vector.shape_cast %2249 : vector<1x32xf32> to vector<1x1x32xf32>
    tpu.vector_store %arg9[%c31_1429, %c1_1430, %c0_1431], %2252 {strides = array<i32>} : memref<32x11x32xf32, #tpu.memory_space<vmem>>, vector<1x1x32xf32>,
    %c248_i32_1432 = arith.constant 248 : i32
    %2253 = arith.addi %2, %c248_i32_1432 : i32
    %c2_i32_1433 = arith.constant 2 : i32
    %2254 = arith.addi %2253, %c2_i32_1433 : i32
    %2255 = arith.index_cast %2254 : i32 to index
    %2256 = memref.load %arg1[%2255] : memref<512xi32, #tpu.memory_space<smem>>
    %2257 = arith.index_cast %2256 : i32 to index
    %c0_1434 = arith.constant 0 : index
    %2258 = vector.load %arg2[%2257, %c0_1434] : memref<50x32xf32, #tpu.memory_space<vmem>>, vector<1x32xf32>
    %c31_1435 = arith.constant 31 : index
    %c2_1436 = arith.constant 2 : index
    %c0_1437 = arith.constant 0 : index
    %2259 = vector.load %arg9[%c31_1435, %c2_1436, %c0_1437] : memref<32x11x32xf32, #tpu.memory_space<vmem>>, vector<1x1x32xf32>
    %2260 = vector.shape_cast %2259 : vector<1x1x32xf32> to vector<1x32xf32>
    %2261 = vector.shape_cast %2258 : vector<1x32xf32> to vector<1x1x32xf32>
    tpu.vector_store %arg9[%c31_1435, %c2_1436, %c0_1437], %2261 {strides = array<i32>} : memref<32x11x32xf32, #tpu.memory_space<vmem>>, vector<1x1x32xf32>,
    %c248_i32_1438 = arith.constant 248 : i32
    %2262 = arith.addi %2, %c248_i32_1438 : i32
    %c3_i32_1439 = arith.constant 3 : i32
    %2263 = arith.addi %2262, %c3_i32_1439 : i32
    %2264 = arith.index_cast %2263 : i32 to index
    %2265 = memref.load %arg1[%2264] : memref<512xi32, #tpu.memory_space<smem>>
    %2266 = arith.index_cast %2265 : i32 to index
    %c0_1440 = arith.constant 0 : index
    %2267 = vector.load %arg2[%2266, %c0_1440] : memref<50x32xf32, #tpu.memory_space<vmem>>, vector<1x32xf32>
    %c31_1441 = arith.constant 31 : index
    %c3_1442 = arith.constant 3 : index
    %c0_1443 = arith.constant 0 : index
    %2268 = vector.load %arg9[%c31_1441, %c3_1442, %c0_1443] : memref<32x11x32xf32, #tpu.memory_space<vmem>>, vector<1x1x32xf32>
    %2269 = vector.shape_cast %2268 : vector<1x1x32xf32> to vector<1x32xf32>
    %2270 = vector.shape_cast %2267 : vector<1x32xf32> to vector<1x1x32xf32>
    tpu.vector_store %arg9[%c31_1441, %c3_1442, %c0_1443], %2270 {strides = array<i32>} : memref<32x11x32xf32, #tpu.memory_space<vmem>>, vector<1x1x32xf32>,
    %c248_i32_1444 = arith.constant 248 : i32
    %2271 = arith.addi %2, %c248_i32_1444 : i32
    %c4_i32_1445 = arith.constant 4 : i32
    %2272 = arith.addi %2271, %c4_i32_1445 : i32
    %2273 = arith.index_cast %2272 : i32 to index
    %2274 = memref.load %arg1[%2273] : memref<512xi32, #tpu.memory_space<smem>>
    %2275 = arith.index_cast %2274 : i32 to index
    %c0_1446 = arith.constant 0 : index
    %2276 = vector.load %arg2[%2275, %c0_1446] : memref<50x32xf32, #tpu.memory_space<vmem>>, vector<1x32xf32>
    %c31_1447 = arith.constant 31 : index
    %c4_1448 = arith.constant 4 : index
    %c0_1449 = arith.constant 0 : index
    %2277 = vector.load %arg9[%c31_1447, %c4_1448, %c0_1449] : memref<32x11x32xf32, #tpu.memory_space<vmem>>, vector<1x1x32xf32>
    %2278 = vector.shape_cast %2277 : vector<1x1x32xf32> to vector<1x32xf32>
    %2279 = vector.shape_cast %2276 : vector<1x32xf32> to vector<1x1x32xf32>
    tpu.vector_store %arg9[%c31_1447, %c4_1448, %c0_1449], %2279 {strides = array<i32>} : memref<32x11x32xf32, #tpu.memory_space<vmem>>, vector<1x1x32xf32>,
    %c248_i32_1450 = arith.constant 248 : i32
    %2280 = arith.addi %2, %c248_i32_1450 : i32
    %c5_i32_1451 = arith.constant 5 : i32
    %2281 = arith.addi %2280, %c5_i32_1451 : i32
    %2282 = arith.index_cast %2281 : i32 to index
    %2283 = memref.load %arg1[%2282] : memref<512xi32, #tpu.memory_space<smem>>
    %2284 = arith.index_cast %2283 : i32 to index
    %c0_1452 = arith.constant 0 : index
    %2285 = vector.load %arg2[%2284, %c0_1452] : memref<50x32xf32, #tpu.memory_space<vmem>>, vector<1x32xf32>
    %c31_1453 = arith.constant 31 : index
    %c5_1454 = arith.constant 5 : index
    %c0_1455 = arith.constant 0 : index
    %2286 = vector.load %arg9[%c31_1453, %c5_1454, %c0_1455] : memref<32x11x32xf32, #tpu.memory_space<vmem>>, vector<1x1x32xf32>
    %2287 = vector.shape_cast %2286 : vector<1x1x32xf32> to vector<1x32xf32>
    %2288 = vector.shape_cast %2285 : vector<1x32xf32> to vector<1x1x32xf32>
    tpu.vector_store %arg9[%c31_1453, %c5_1454, %c0_1455], %2288 {strides = array<i32>} : memref<32x11x32xf32, #tpu.memory_space<vmem>>, vector<1x1x32xf32>,
    %c248_i32_1456 = arith.constant 248 : i32
    %2289 = arith.addi %2, %c248_i32_1456 : i32
    %c6_i32_1457 = arith.constant 6 : i32
    %2290 = arith.addi %2289, %c6_i32_1457 : i32
    %2291 = arith.index_cast %2290 : i32 to index
    %2292 = memref.load %arg1[%2291] : memref<512xi32, #tpu.memory_space<smem>>
    %2293 = arith.index_cast %2292 : i32 to index
    %c0_1458 = arith.constant 0 : index
    %2294 = vector.load %arg2[%2293, %c0_1458] : memref<50x32xf32, #tpu.memory_space<vmem>>, vector<1x32xf32>
    %c31_1459 = arith.constant 31 : index
    %c6_1460 = arith.constant 6 : index
    %c0_1461 = arith.constant 0 : index
    %2295 = vector.load %arg9[%c31_1459, %c6_1460, %c0_1461] : memref<32x11x32xf32, #tpu.memory_space<vmem>>, vector<1x1x32xf32>
    %2296 = vector.shape_cast %2295 : vector<1x1x32xf32> to vector<1x32xf32>
    %2297 = vector.shape_cast %2294 : vector<1x32xf32> to vector<1x1x32xf32>
    tpu.vector_store %arg9[%c31_1459, %c6_1460, %c0_1461], %2297 {strides = array<i32>} : memref<32x11x32xf32, #tpu.memory_space<vmem>>, vector<1x1x32xf32>,
    %c248_i32_1462 = arith.constant 248 : i32
    %2298 = arith.addi %2, %c248_i32_1462 : i32
    %c7_i32_1463 = arith.constant 7 : i32
    %2299 = arith.addi %2298, %c7_i32_1463 : i32
    %2300 = arith.index_cast %2299 : i32 to index
    %2301 = memref.load %arg1[%2300] : memref<512xi32, #tpu.memory_space<smem>>
    %2302 = arith.index_cast %2301 : i32 to index
    %c0_1464 = arith.constant 0 : index
    %2303 = vector.load %arg2[%2302, %c0_1464] : memref<50x32xf32, #tpu.memory_space<vmem>>, vector<1x32xf32>
    %c31_1465 = arith.constant 31 : index
    %c7_1466 = arith.constant 7 : index
    %c0_1467 = arith.constant 0 : index
    %2304 = vector.load %arg9[%c31_1465, %c7_1466, %c0_1467] : memref<32x11x32xf32, #tpu.memory_space<vmem>>, vector<1x1x32xf32>
    %2305 = vector.shape_cast %2304 : vector<1x1x32xf32> to vector<1x32xf32>
    %2306 = vector.shape_cast %2303 : vector<1x32xf32> to vector<1x1x32xf32>
    tpu.vector_store %arg9[%c31_1465, %c7_1466, %c0_1467], %2306 {strides = array<i32>} : memref<32x11x32xf32, #tpu.memory_space<vmem>>, vector<1x1x32xf32>,
    %c0_1468 = arith.constant 0 : index
    %c0_1469 = arith.constant 0 : index
    %c0_1470 = arith.constant 0 : index
    %2307 = vector.load %arg9[%c0_1468, %c0_1469, %c0_1470] : memref<32x11x32xf32, #tpu.memory_space<vmem>>, vector<32x11x32xf32>
    %2308 = arith.truncf %2307 : vector<32x11x32xf32> to vector<32x11x32xbf16>
    %2309 = vector.extract_strided_slice %2308 {offsets = [0, 0, 0], sizes = [32, 8, 32], strides = [1, 1, 1]} : vector<32x11x32xbf16> to vector<32x8x32xbf16>
    %2310 = vector.extract_strided_slice %2308 {offsets = [0, 1, 0], sizes = [32, 8, 32], strides = [1, 1, 1]} : vector<32x11x32xbf16> to vector<32x8x32xbf16>
    %2311 = vector.extract_strided_slice %2308 {offsets = [0, 2, 0], sizes = [32, 8, 32], strides = [1, 1, 1]} : vector<32x11x32xbf16> to vector<32x8x32xbf16>
    %2312 = vector.extract_strided_slice %2308 {offsets = [0, 3, 0], sizes = [32, 8, 32], strides = [1, 1, 1]} : vector<32x11x32xbf16> to vector<32x8x32xbf16>
    %2313 = tpu.concatenate %2309, %2310, %2311, %2312 in 2 : vector<32x8x32xbf16>, vector<32x8x32xbf16>, vector<32x8x32xbf16>, vector<32x8x32xbf16> -> vector<32x8x128xbf16>
    %2314 = vector.shape_cast %2313 : vector<32x8x128xbf16> to vector<256x128xbf16>
    %c0_1471 = arith.constant 0 : index
    %c0_1472 = arith.constant 0 : index
    %2315 = vector.load %arg3[%c0_1471, %c0_1472] : memref<128x16xbf16, #tpu.memory_space<vmem>>, vector<128x16xbf16>
    %cst_1473 = arith.constant dense<0.000000e+00> : vector<256x16xf32>
    %2316 = tpu.matmul %2314, %2315, %cst_1473 {dimension_numbers = #tpu.dot_dimension_numbers<[1], [0], [0], [1], [0, 0, 1, 1], [], []>} : vector<256x128xbf16>, vector<128x16xbf16>, vector<256x16xf32> -> vector<256x16xf32>
    %c0_1474 = arith.constant 0 : index
    %c0_1475 = arith.constant 0 : index
    %2317 = vector.load %arg4[%c0_1474, %c0_1475] : memref<1x16xf32, #tpu.memory_space<vmem>>, vector<1x16xf32>
    %2318 = vector.broadcast %2317 : vector<1x16xf32> to vector<256x16xf32>
    %2319 = arith.addf %2316, %2318 : vector<256x16xf32>
    %cst_1476 = arith.constant 0.000000e+00 : f32
    %2320 = vector.broadcast %cst_1476 : f32 to vector<256x16xf32>
    %2321 = arith.maximumf %2319, %2320 : vector<256x16xf32>
    %2322 = vector.shape_cast %2321 : vector<256x16xf32> to vector<32x8x16xf32>
    %c0_1477 = arith.constant 0 : index
    %c0_1478 = arith.constant 0 : index
    %c0_1479 = arith.constant 0 : index
    %2323 = vector.load %arg5[%c0_1477, %c0_1478, %c0_1479] : memref<1x8x16xf32, #tpu.memory_space<vmem>>, vector<1x8x16xf32>
    %2324 = vector.broadcast %2323 : vector<1x8x16xf32> to vector<32x8x16xf32>
    %2325 = arith.mulf %2322, %2324 : vector<32x8x16xf32>
    %cst_1480 = arith.constant dense<0xFF800000> : vector<32x16xf32>
    %2326 = vector.multi_reduction <maximumf>, %2325, %cst_1480 [1] : vector<32x8x16xf32> to vector<32x16xf32>
    %c0_1481 = arith.constant 0 : index
    %c0_1482 = arith.constant 0 : index
    %2327 = vector.load %arg6[%c0_1481, %c0_1482] : memref<1x16xf32, #tpu.memory_space<vmem>>, vector<1x16xf32>
    %2328 = vector.broadcast %2327 : vector<1x16xf32> to vector<32x16xf32>
    %2329 = arith.mulf %2326, %2328 : vector<32x16xf32>
    %cst_1483 = arith.constant dense<0.000000e+00> : vector<32xf32>
    %2330 = vector.multi_reduction <add>, %2329, %cst_1483 [1] : vector<32x16xf32> to vector<32xf32>
    %c0_1484 = arith.constant 0 : index
    %c0_1485 = arith.constant 0 : index
    %2331 = memref.load %arg7[%c0_1484, %c0_1485] : memref<1x1xf32, #tpu.memory_space<smem>>
    %2332 = vector.broadcast %2331 : f32 to vector<32xf32>
    %2333 = arith.addf %2330, %2332 : vector<32xf32>
    %2334 = arith.negf %2333 : vector<32xf32>
    %2335 = math.exp %2334 : vector<32xf32>
    %cst_1486 = arith.constant 1.000000e+00 : f32
    %2336 = vector.broadcast %cst_1486 : f32 to vector<32xf32>
    %2337 = arith.addf %2336, %2335 : vector<32xf32>
    %2338 = arith.divf %2336, %2337 : vector<32xf32>
    %2339 = vector.shape_cast %2338 : vector<32xf32> to vector<1x1x32xf32>
    %c0_1487 = arith.constant 0 : index
    %c0_1488 = arith.constant 0 : index
    %c0_1489 = arith.constant 0 : index
    %2340 = vector.load %arg8[%c0_1487, %c0_1488, %c0_1489] : memref<1x1x32xf32, #tpu.memory_space<vmem>>, vector<1x1x32xf32>
    tpu.vector_store %arg8[%c0_1487, %c0_1488, %c0_1489], %2339 {strides = array<i32>} : memref<1x1x32xf32, #tpu.memory_space<vmem>>, vector<1x1x32xf32>,
    return
  }
  func.func @transform_0(%arg0: i32) -> i32 {
    %c0_i32 = arith.constant 0 : i32
    %c0_i32_0 = arith.constant 0 : i32
    return %c0_i32 : i32
  }
  func.func @transform_1(%arg0: i32) -> (i32, i32) {
    %c0_i32 = arith.constant 0 : i32
    %c0_i32_0 = arith.constant 0 : i32
    %c0_i32_1 = arith.constant 0 : i32
    return %c0_i32, %c0_i32_0 : i32, i32
  }
  func.func @transform_2(%arg0: i32) -> (i32, i32) {
    %c0_i32 = arith.constant 0 : i32
    %c0_i32_0 = arith.constant 0 : i32
    %c0_i32_1 = arith.constant 0 : i32
    return %c0_i32, %c0_i32_0 : i32, i32
  }
  func.func @transform_3(%arg0: i32) -> (i32, i32) {
    %c0_i32 = arith.constant 0 : i32
    %c0_i32_0 = arith.constant 0 : i32
    %c0_i32_1 = arith.constant 0 : i32
    return %c0_i32, %c0_i32_0 : i32, i32
  }
  func.func @transform_4(%arg0: i32) -> (i32, i32, i32) {
    %c0_i32 = arith.constant 0 : i32
    %c0_i32_0 = arith.constant 0 : i32
    %c0_i32_1 = arith.constant 0 : i32
    %c0_i32_2 = arith.constant 0 : i32
    return %c0_i32, %c0_i32_0, %c0_i32_1 : i32, i32, i32
  }
  func.func @transform_5(%arg0: i32) -> (i32, i32) {
    %c0_i32 = arith.constant 0 : i32
    %c0_i32_0 = arith.constant 0 : i32
    %c0_i32_1 = arith.constant 0 : i32
    return %c0_i32, %c0_i32_0 : i32, i32
  }
  func.func @transform_6(%arg0: i32) -> (i32, i32) {
    %c0_i32 = arith.constant 0 : i32
    %c0_i32_0 = arith.constant 0 : i32
    %c0_i32_1 = arith.constant 0 : i32
    return %c0_i32, %c0_i32_0 : i32, i32
  }
  func.func @transform_7(%arg0: i32) -> (i32, i32, i32) {
    %c0_i32 = arith.constant 0 : i32
    %c0_i32_0 = arith.constant 0 : i32
    %c0_i32_1 = arith.constant 0 : i32
    return %arg0, %c0_i32, %c0_i32_0 : i32, i32, i32
  }
}

</mosaic_0001>

<llo_original>
// kernel: cnn_forward.1
$region0: #{cnn_forward.1}
  #allocation0 [shape = 'u32[]', space=smem, size = 0x4, offset = 0x4, fixed_abs, tag = 'smem constant byte address 0x4 - core index']
  #allocation1 [shape = 'u32[72,128]{1,0:T(1,128)}', space=vmem, size = 0x9000, scoped, tag = 'internal scratch']
  #allocation2 [shape = 'f32[32,11,32]{2,1,0:T(8,128)}', space=vmem, size = 0x40000, scoped, tag = 'scratch operand']
  #allocation3 [shape = 'f32[1,1]{1,0:T(1,128)S(6)}', space=smem, size = 0x200, scoped, tag = 'scoped memory for cnn_forward.1']
  %s0 = inlined_call_operand.vmem [shape: s32[512], index: 0, kind: input, shape index: {}]
  %s1 = inlined_call_operand.vmem [shape: f32[50,32], index: 1, kind: input, shape index: {}]
  %s2 = inlined_call_operand.vmem [shape: bf16[128,16], index: 2, kind: input, shape index: {}]
  %s3 = inlined_call_operand.vmem [shape: f32[1,16], index: 3, kind: input, shape index: {}]
  %s4 = inlined_call_operand.vmem [shape: f32[1,8,16], index: 4, kind: input, shape index: {}]
  %s5 = inlined_call_operand.vmem [shape: f32[1,16], index: 5, kind: input, shape index: {}]
  %s6 = inlined_call_operand.<no memory space> [shape: f32[1,1], index: 6, kind: input, shape index: {}]
  %s7 = inlined_call_operand.vmem [shape: f32[2,1,32], index: 7, kind: output, shape index: {}]
  %s8 = sld [smem:[#allocation0]]
  $region65: #{cnn_forward.1} parent=0
    _
  %s10 = ssub.s32 1, %s8
  %s11 = scalar_select 0, %s10, %s8
  %12 = sst [smem:[#allocation3]] %s6
  $region1: #{cnn_forward.1} parent=0
    #allocation4 [shape = 'u8[2048]{0}', space=smem, size = 0x800, scoped, tag = 'input window, operand 0, single buffered']
    #allocation5 [shape = 's32[2]{0}', space=sflag, size = 0x8, scoped, tag = 'scoped memory for cnn_forward.1']
    %13 = vsyncpa [#allocation5], 0
    loop: start=0, step=1, limit=4
    $region2: #{cnn_forward.1} parent=1 // loop_pre_header
      _
    $region3: #{cnn_forward.1} parent=1 // loop_header
      %s15 = sphi 0, %s19
      %p16 = scmp.ge.s32.totalorder %s15, 4
      %s23 = sphi 0, %s23
      %s25 = sphi 0, %s23
      %s26 = sphi 0, %s25
      %s40 = sphi 0, %s26
      %s44 = sphi 0, %s44
      %s46 = sphi 0, %s44
      %s47 = sphi 0, %s46
      %s61 = sphi 0, %s47
      %s65 = sphi 0, %s65
      %s67 = sphi 0, %s65
      %s68 = sphi 0, %s67
      %s82 = sphi 0, %s68
      %s86 = sphi 0, %s86
      %s88 = sphi 0, %s86
      %s89 = sphi 0, %s88
      %s103 = sphi 0, %s89
      %s107 = sphi 0, %s107
      %s109 = sphi 0, %s107
      %s110 = sphi 0, %s109
      %s124 = sphi 0, %s110
      %s128 = sphi 0, %s128
      %s130 = sphi 0, %s128
      %s131 = sphi 0, %s130
      %s145 = sphi 0, %s131
      %s149 = sphi 0, %s149
      %s151 = sphi 0, %s149
      %s152 = sphi 0, %s151
      %s166 = sphi 0, %s152
      %s172 = sphi 0, %s174
      %s175 = sphi 0, %s172
      %s176 = sphi 0, %s175
      %s192 = sphi 0, %s176
    $region4: #{cnn_forward.1} parent=1 // loop_header_branch
      %18 = sbr.rel (%p16) target = $region8
    $region5: #{cnn_forward.1} parent=1 // loop_body
      %s20 = ssub.s32 %s15, 1
      %s21 = ssub.s32 %s15, 2
      %s22 = sadd.s32 %s15, 1
      %s24 = sadd.s32 %s23, 1
      %p27 = scmp.eq.s32.totalorder %s15, 1
      %p28 = scmp.ne.s32.totalorder %s23, %s25
      %p29 = scmp.eq.s32.totalorder %s15, 0
      %p30 = por %p28, %p29
      %p31 = scmp.ne.s32.totalorder %s23, %s25
      %p32 = scmp.eq.s32.totalorder %s20, 1
      %p33 = por %p31, %p32
      %p34 = scmp.ne.s32.totalorder %s25, %s26
      %p35 = scmp.eq.s32.totalorder %s20, 0
      %p36 = por %p34, %p35
      %p37 = scmp.ne.s32.totalorder %s25, %s26
      %p38 = scmp.eq.s32.totalorder %s21, 1
      %p39 = por %p37, %p38
      %p41 = scmp.ne.s32.totalorder %s26, %s40
      %p42 = scmp.eq.s32.totalorder %s21, 0
      %p43 = por %p41, %p42
      %s45 = sadd.s32 %s44, 1
      %p48 = scmp.eq.s32.totalorder %s15, 1
      %p49 = scmp.ne.s32.totalorder %s44, %s46
      %p50 = scmp.eq.s32.totalorder %s15, 0
      %p51 = por %p49, %p50
      %p52 = scmp.ne.s32.totalorder %s44, %s46
      %p53 = scmp.eq.s32.totalorder %s20, 1
      %p54 = por %p52, %p53
      %p55 = scmp.ne.s32.totalorder %s46, %s47
      %p56 = scmp.eq.s32.totalorder %s20, 0
      %p57 = por %p55, %p56
      %p58 = scmp.ne.s32.totalorder %s46, %s47
      %p59 = scmp.eq.s32.totalorder %s21, 1
      %p60 = por %p58, %p59
      %p62 = scmp.ne.s32.totalorder %s47, %s61
      %p63 = scmp.eq.s32.totalorder %s21, 0
      %p64 = por %p62, %p63
      %s66 = sadd.s32 %s65, 1
      %p69 = scmp.eq.s32.totalorder %s15, 1
      %p70 = scmp.ne.s32.totalorder %s65, %s67
      %p71 = scmp.eq.s32.totalorder %s15, 0
      %p72 = por %p70, %p71
      %p73 = scmp.ne.s32.totalorder %s65, %s67
      %p74 = scmp.eq.s32.totalorder %s20, 1
      %p75 = por %p73, %p74
      %p76 = scmp.ne.s32.totalorder %s67, %s68
      %p77 = scmp.eq.s32.totalorder %s20, 0
      %p78 = por %p76, %p77
      %p79 = scmp.ne.s32.totalorder %s67, %s68
      %p80 = scmp.eq.s32.totalorder %s21, 1
      %p81 = por %p79, %p80
      %p83 = scmp.ne.s32.totalorder %s68, %s82
      %p84 = scmp.eq.s32.totalorder %s21, 0
      %p85 = por %p83, %p84
      %s87 = sadd.s32 %s86, 1
      %p90 = scmp.eq.s32.totalorder %s15, 1
      %p91 = scmp.ne.s32.totalorder %s86, %s88
      %p92 = scmp.eq.s32.totalorder %s15, 0
      %p93 = por %p91, %p92
      %p94 = scmp.ne.s32.totalorder %s86, %s88
      %p95 = scmp.eq.s32.totalorder %s20, 1
      %p96 = por %p94, %p95
      %p97 = scmp.ne.s32.totalorder %s88, %s89
      %p98 = scmp.eq.s32.totalorder %s20, 0
      %p99 = por %p97, %p98
      %p100 = scmp.ne.s32.totalorder %s88, %s89
      %p101 = scmp.eq.s32.totalorder %s21, 1
      %p102 = por %p100, %p101
      %p104 = scmp.ne.s32.totalorder %s89, %s103
      %p105 = scmp.eq.s32.totalorder %s21, 0
      %p106 = por %p104, %p105
      %s108 = sadd.s32 %s107, 1
      %p111 = scmp.eq.s32.totalorder %s15, 1
      %p112 = scmp.ne.s32.totalorder %s107, %s109
      %p113 = scmp.eq.s32.totalorder %s15, 0
      %p114 = por %p112, %p113
      %p115 = scmp.ne.s32.totalorder %s107, %s109
      %p116 = scmp.eq.s32.totalorder %s20, 1
      %p117 = por %p115, %p116
      %p118 = scmp.ne.s32.totalorder %s109, %s110
      %p119 = scmp.eq.s32.totalorder %s20, 0
      %p120 = por %p118, %p119
      %p121 = scmp.ne.s32.totalorder %s109, %s110
      %p122 = scmp.eq.s32.totalorder %s21, 1
      %p123 = por %p121, %p122
      %p125 = scmp.ne.s32.totalorder %s110, %s124
      %p126 = scmp.eq.s32.totalorder %s21, 0
      %p127 = por %p125, %p126
      %s129 = sadd.s32 %s128, 1
      %p132 = scmp.eq.s32.totalorder %s15, 1
      %p133 = scmp.ne.s32.totalorder %s128, %s130
      %p134 = scmp.eq.s32.totalorder %s15, 0
      %p135 = por %p133, %p134
      %p136 = scmp.ne.s32.totalorder %s128, %s130
      %p137 = scmp.eq.s32.totalorder %s20, 1
      %p138 = por %p136, %p137
      %p139 = scmp.ne.s32.totalorder %s130, %s131
      %p140 = scmp.eq.s32.totalorder %s20, 0
      %p141 = por %p139, %p140
      %p142 = scmp.ne.s32.totalorder %s130, %s131
      %p143 = scmp.eq.s32.totalorder %s21, 1
      %p144 = por %p142, %p143
      %p146 = scmp.ne.s32.totalorder %s131, %s145
      %p147 = scmp.eq.s32.totalorder %s21, 0
      %p148 = por %p146, %p147
      %s150 = sadd.s32 %s149, 1
      %p153 = scmp.eq.s32.totalorder %s15, 1
      %p154 = scmp.ne.s32.totalorder %s149, %s151
      %p155 = scmp.eq.s32.totalorder %s15, 0
      %p156 = por %p154, %p155
      %p157 = scmp.ne.s32.totalorder %s149, %s151
      %p158 = scmp.eq.s32.totalorder %s20, 1
      %p159 = por %p157, %p158
      %p160 = scmp.ne.s32.totalorder %s151, %s152
      %p161 = scmp.eq.s32.totalorder %s20, 0
      %p162 = por %p160, %p161
      %p163 = scmp.ne.s32.totalorder %s151, %s152
      %p164 = scmp.eq.s32.totalorder %s21, 1
      %p165 = por %p163, %p164
      %p167 = scmp.ne.s32.totalorder %s152, %s166
      %p168 = scmp.eq.s32.totalorder %s21, 0
      %p169 = por %p167, %p168
      %s170 = ssub.s32 %s15, %s22
      %p171 = scmp.eq.s32.totalorder %s170, 0
      %s173 = sadd.s32 %s172, 1
      %s174 = scalar_select %p171, %s172, %s173
      %p177 = pneg %p171
      %p178 = scmp.eq.s32.totalorder %s15, 1
      %p179 = por %p177, %p178
      %p180 = scmp.ne.s32.totalorder %s172, %s175
      %p181 = scmp.eq.s32.totalorder %s15, 0
      %p182 = por %p180, %p181
      %p183 = scmp.ne.s32.totalorder %s172, %s175
      %p184 = scmp.eq.s32.totalorder %s20, 1
      %p185 = por %p183, %p184
      %p186 = scmp.ne.s32.totalorder %s175, %s176
      %p187 = scmp.eq.s32.totalorder %s20, 0
      %p188 = por %p186, %p187
      %p189 = scmp.ne.s32.totalorder %s175, %s176
      %p190 = scmp.eq.s32.totalorder %s21, 1
      %p191 = por %p189, %p190
      %p193 = scmp.ne.s32.totalorder %s176, %s192
      %p194 = scmp.eq.s32.totalorder %s21, 0
      %p195 = por %p193, %p194
      %p196 = scmp.le.s32.totalorder 1, %s15
      %p197 = scmp.lt.s32.totalorder %s15, 3
      %p198 = pnand %p196, %p197
      %p199 = pneg %p198
      // Predicated region
      $region9: #{cnn_forward.1} parent=5 // pred_check
        _
      $region10: #{cnn_forward.1} parent=5 // pred_check_branch
        %201 = sbr.rel (%p198) target = $region12
      $region11: #{cnn_forward.1} parent=5 // pred_region
        %s202 = ssub.s32 %s15, 1
        // Predicated region
        $region13: #{cnn_forward.1} parent=11 // pred_check
          %p203 = pneg %p36
        $region14: #{cnn_forward.1} parent=11 // pred_check_branch
          %205 = sbr.rel (%p203) target = $region16
        $region15: #{cnn_forward.1} parent=11 // pred_region
          %207 = vsyncadd [#allocation5], 0
          %s209 = sshll.u32 %s0, 4
          %s210 = int_to_ptr.vmem [resolvable:$true] %s209
          %212 = dma.vmem_to_smem %s210, 64, [#allocation4], [#allocation5]
        $region16: #{cnn_forward.1} parent=11 // pred_fallthru
          _
        // Predicated region
        $region17: #{cnn_forward.1} parent=11 // pred_check
          %p213 = pneg %p57
        $region18: #{cnn_forward.1} parent=11 // pred_check_branch
          %215 = sbr.rel (%p213) target = $region20
        $region19: #{cnn_forward.1} parent=11 // pred_region
          _
        $region20: #{cnn_forward.1} parent=11 // pred_fallthru
          _
        // Predicated region
        $region21: #{cnn_forward.1} parent=11 // pred_check
          %p216 = pneg %p78
        $region22: #{cnn_forward.1} parent=11 // pred_check_branch
          %218 = sbr.rel (%p216) target = $region24
        $region23: #{cnn_forward.1} parent=11 // pred_region
          _
        $region24: #{cnn_forward.1} parent=11 // pred_fallthru
          _
        // Predicated region
        $region25: #{cnn_forward.1} parent=11 // pred_check
          %p219 = pneg %p99
        $region26: #{cnn_forward.1} parent=11 // pred_check_branch
          %221 = sbr.rel (%p219) target = $region28
        $region27: #{cnn_forward.1} parent=11 // pred_region
          _
        $region28: #{cnn_forward.1} parent=11 // pred_fallthru
          _
        // Predicated region
        $region29: #{cnn_forward.1} parent=11 // pred_check
          %p222 = pneg %p120
        $region30: #{cnn_forward.1} parent=11 // pred_check_branch
          %224 = sbr.rel (%p222) target = $region32
        $region31: #{cnn_forward.1} parent=11 // pred_region
          _
        $region32: #{cnn_forward.1} parent=11 // pred_fallthru
          _
        // Predicated region
        $region33: #{cnn_forward.1} parent=11 // pred_check
          %p225 = pneg %p141
        $region34: #{cnn_forward.1} parent=11 // pred_check_branch
          %227 = sbr.rel (%p225) target = $region36
        $region35: #{cnn_forward.1} parent=11 // pred_region
          _
        $region36: #{cnn_forward.1} parent=11 // pred_fallthru
          _
        // Predicated region
        $region37: #{cnn_forward.1} parent=11 // pred_check
          %p228 = pneg %p162
        $region38: #{cnn_forward.1} parent=11 // pred_check_branch
          %230 = sbr.rel (%p228) target = $region40
        $region39: #{cnn_forward.1} parent=11 // pred_region
          _
        $region40: #{cnn_forward.1} parent=11 // pred_fallthru
          _
      $region12: #{cnn_forward.1} parent=5 // pred_fallthru
        _
      %p231 = scmp.lt.s32.totalorder %s15, 2
      // Predicated region
      $region41: #{cnn_forward.1} parent=5 // pred_check
        %p232 = pneg %p231
      $region42: #{cnn_forward.1} parent=5 // pred_check_branch
        %234 = sbr.rel (%p232) target = $region44
      $region43: #{cnn_forward.1} parent=5 // pred_region
        _
      $region44: #{cnn_forward.1} parent=5 // pred_fallthru
        _
      %p235 = scmp.le.s32.totalorder 1, %s15
      %p236 = scmp.lt.s32.totalorder %s15, 3
      %p237 = pnand %p235, %p236
      %p238 = pneg %p237
      // Predicated region
      $region45: #{cnn_forward.1} parent=5 // pred_check
        _
      $region46: #{cnn_forward.1} parent=5 // pred_check_branch
        %240 = sbr.rel (%p237) target = $region48
      $region47: #{cnn_forward.1} parent=5 // pred_region
        %s241 = ssub.s32 %s15, 1
        // Predicated region
        $region49: #{cnn_forward.1} parent=47 // pred_check
          %p242 = pneg %p36
        $region50: #{cnn_forward.1} parent=47 // pred_check_branch
          %244 = sbr.rel (%p242) target = $region52
        $region51: #{cnn_forward.1} parent=47 // pred_region
          %246 = dma.done [#allocation5], 64
        $region52: #{cnn_forward.1} parent=47 // pred_fallthru
          _
        %247 = sfence
        %p248 = pneg %p36
        %p249 = pneg %p33
        %p250 = pneg %p57
        %p251 = pneg %p54
        %p252 = pneg %p78
        %p253 = pneg %p75
        %p254 = pneg %p99
        %p255 = pneg %p96
        %p256 = pneg %p120
        %p257 = pneg %p117
        %p258 = pneg %p141
        %p259 = pneg %p138
        %p260 = pneg %p162
        %p261 = pneg %p159
        %p262 = pneg %p188
        %p263 = pneg %p185
        %p264 = scmp.lt.s32.totalorder %s20, 1
        %s265 = scalar_select %p264, %s20, 1
        %s266 = scalar_lea.vmem %s7, %s265
        %p267 = scmp.lt.s32.totalorder %s20, 1
        %s268 = scalar_select %p267, %s20, 1
        %s269 = scalar_lea.vmem %s7, %s268
        %vm270 = vcmask 261120
        %271 = vst.msk [vmem:[#allocation2] sm:$0xff] %vm270, 0.0
        %vm272 = vcmask 256000
        %273 = vst.msk [vmem:[#allocation2 + $0x8] sm:$0x7] %vm272, 0.0
        %274 = vst.msk [vmem:[#allocation2 + $0x10] sm:$0xff] %vm270, 0.0
        %275 = vst.msk [vmem:[#allocation2 + $0x18] sm:$0x7] %vm272, 0.0
        %276 = vst.msk [vmem:[#allocation2 + $0x20] sm:$0xff] %vm270, 0.0
        %277 = vst.msk [vmem:[#allocation2 + $0x28] sm:$0x7] %vm272, 0.0
        %278 = vst.msk [vmem:[#allocation2 + $0x30] sm:$0xff] %vm270, 0.0
        %279 = vst.msk [vmem:[#allocation2 + $0x38] sm:$0x7] %vm272, 0.0
        %280 = vst.msk [vmem:[#allocation2 + $0x40] sm:$0xff] %vm270, 0.0
        %281 = vst.msk [vmem:[#allocation2 + $0x48] sm:$0x7] %vm272, 0.0
        %282 = vst.msk [vmem:[#allocation2 + $0x50] sm:$0xff] %vm270, 0.0
        %283 = vst.msk [vmem:[#allocation2 + $0x58] sm:$0x7] %vm272, 0.0
        %284 = vst.msk [vmem:[#allocation2 + $0x60] sm:$0xff] %vm270, 0.0
        %285 = vst.msk [vmem:[#allocation2 + $0x68] sm:$0x7] %vm272, 0.0
        %286 = vst.msk [vmem:[#allocation2 + $0x70] sm:$0xff] %vm270, 0.0
        %287 = vst.msk [vmem:[#allocation2 + $0x78] sm:$0x7] %vm272, 0.0
        %288 = vst.msk [vmem:[#allocation2 + $0x80] sm:$0xff] %vm270, 0.0
        %289 = vst.msk [vmem:[#allocation2 + $0x88] sm:$0x7] %vm272, 0.0
        %290 = vst.msk [vmem:[#allocation2 + $0x90] sm:$0xff] %vm270, 0.0
        %291 = vst.msk [vmem:[#allocation2 + $0x98] sm:$0x7] %vm272, 0.0
        %292 = vst.msk [vmem:[#allocation2 + $0xa0] sm:$0xff] %vm270, 0.0
        %293 = vst.msk [vmem:[#allocation2 + $0xa8] sm:$0x7] %vm272, 0.0
        %294 = vst.msk [vmem:[#allocation2 + $0xb0] sm:$0xff] %vm270, 0.0
        %295 = vst.msk [vmem:[#allocation2 + $0xb8] sm:$0x7] %vm272, 0.0
        %296 = vst.msk [vmem:[#allocation2 + $0xc0] sm:$0xff] %vm270, 0.0
        %297 = vst.msk [vmem:[#allocation2 + $0xc8] sm:$0x7] %vm272, 0.0
        %298 = vst.msk [vmem:[#allocation2 + $0xd0] sm:$0xff] %vm270, 0.0
        %299 = vst.msk [vmem:[#allocation2 + $0xd8] sm:$0x7] %vm272, 0.0
        %300 = vst.msk [vmem:[#allocation2 + $0xe0] sm:$0xff] %vm270, 0.0
        %301 = vst.msk [vmem:[#allocation2 + $0xe8] sm:$0x7] %vm272, 0.0
        %302 = vst.msk [vmem:[#allocation2 + $0xf0] sm:$0xff] %vm270, 0.0
        %303 = vst.msk [vmem:[#allocation2 + $0xf8] sm:$0x7] %vm272, 0.0
        %304 = vst.msk [vmem:[#allocation2 + $0x100] sm:$0xff] %vm270, 0.0
        %305 = vst.msk [vmem:[#allocation2 + $0x108] sm:$0x7] %vm272, 0.0
        %306 = vst.msk [vmem:[#allocation2 + $0x110] sm:$0xff] %vm270, 0.0
        %307 = vst.msk [vmem:[#allocation2 + $0x118] sm:$0x7] %vm272, 0.0
        %308 = vst.msk [vmem:[#allocation2 + $0x120] sm:$0xff] %vm270, 0.0
        %309 = vst.msk [vmem:[#allocation2 + $0x128] sm:$0x7] %vm272, 0.0
        %310 = vst.msk [vmem:[#allocation2 + $0x130] sm:$0xff] %vm270, 0.0
        %311 = vst.msk [vmem:[#allocation2 + $0x138] sm:$0x7] %vm272, 0.0
        %312 = vst.msk [vmem:[#allocation2 + $0x140] sm:$0xff] %vm270, 0.0
        %313 = vst.msk [vmem:[#allocation2 + $0x148] sm:$0x7] %vm272, 0.0
        %314 = vst.msk [vmem:[#allocation2 + $0x150] sm:$0xff] %vm270, 0.0
        %315 = vst.msk [vmem:[#allocation2 + $0x158] sm:$0x7] %vm272, 0.0
        %316 = vst.msk [vmem:[#allocation2 + $0x160] sm:$0xff] %vm270, 0.0
        %317 = vst.msk [vmem:[#allocation2 + $0x168] sm:$0x7] %vm272, 0.0
        %318 = vst.msk [vmem:[#allocation2 + $0x170] sm:$0xff] %vm270, 0.0
        %319 = vst.msk [vmem:[#allocation2 + $0x178] sm:$0x7] %vm272, 0.0
        %320 = vst.msk [vmem:[#allocation2 + $0x180] sm:$0xff] %vm270, 0.0
        %321 = vst.msk [vmem:[#allocation2 + $0x188] sm:$0x7] %vm272, 0.0
        %322 = vst.msk [vmem:[#allocation2 + $0x190] sm:$0xff] %vm270, 0.0
        %323 = vst.msk [vmem:[#allocation2 + $0x198] sm:$0x7] %vm272, 0.0
        %324 = vst.msk [vmem:[#allocation2 + $0x1a0] sm:$0xff] %vm270, 0.0
        %325 = vst.msk [vmem:[#allocation2 + $0x1a8] sm:$0x7] %vm272, 0.0
        %326 = vst.msk [vmem:[#allocation2 + $0x1b0] sm:$0xff] %vm270, 0.0
        %327 = vst.msk [vmem:[#allocation2 + $0x1b8] sm:$0x7] %vm272, 0.0
        %328 = vst.msk [vmem:[#allocation2 + $0x1c0] sm:$0xff] %vm270, 0.0
        %329 = vst.msk [vmem:[#allocation2 + $0x1c8] sm:$0x7] %vm272, 0.0
        %330 = vst.msk [vmem:[#allocation2 + $0x1d0] sm:$0xff] %vm270, 0.0
        %331 = vst.msk [vmem:[#allocation2 + $0x1d8] sm:$0x7] %vm272, 0.0
        %332 = vst.msk [vmem:[#allocation2 + $0x1e0] sm:$0xff] %vm270, 0.0
        %333 = vst.msk [vmem:[#allocation2 + $0x1e8] sm:$0x7] %vm272, 0.0
        %334 = vst.msk [vmem:[#allocation2 + $0x1f0] sm:$0xff] %vm270, 0.0
        %335 = vst.msk [vmem:[#allocation2 + $0x1f8] sm:$0x7] %vm272, 0.0
        %s336 = smul.u32 %s20, 256
        %s337 = sld [smem:[#allocation4 + %s336]]
        %s338 = scalar_lea.vmem %s1, %s337
        %v339 = vld [vmem:[%s338] sm:$0x1]
        %vm340 = vcmask 253952
        %341 = vst.msk [vmem:[#allocation2] sm:$0x1] %vm340, %v339
        %s342 = sadd.s32 %s336, 1
        %s343 = sld [smem:[#allocation4 + %s342]]
        %s344 = scalar_lea.vmem %s1, %s343
        %v345 = vld [vmem:[%s344] sm:$0x1]
        %346 = vst.msk [vmem:[#allocation2 + $0x1] sm:$0x1] %vm340, %v345
        %s347 = sadd.s32 %s336, 2
        %s348 = sld [smem:[#allocation4 + %s347]]
        %s349 = scalar_lea.vmem %s1, %s348
        %v350 = vld [vmem:[%s349] sm:$0x1]
        %351 = vst.msk [vmem:[#allocation2 + $0x2] sm:$0x1] %vm340, %v350
        %s352 = sadd.s32 %s336, 3
        %s353 = sld [smem:[#allocation4 + %s352]]
        %s354 = scalar_lea.vmem %s1, %s353
        %v355 = vld [vmem:[%s354] sm:$0x1]
        %356 = vst.msk [vmem:[#allocation2 + $0x3] sm:$0x1] %vm340, %v355
        %s357 = sadd.s32 %s336, 4
        %s358 = sld [smem:[#allocation4 + %s357]]
        %s359 = scalar_lea.vmem %s1, %s358
        %v360 = vld [vmem:[%s359] sm:$0x1]
        %361 = vst.msk [vmem:[#allocation2 + $0x4] sm:$0x1] %vm340, %v360
        %s362 = sadd.s32 %s336, 5
        %s363 = sld [smem:[#allocation4 + %s362]]
        %s364 = scalar_lea.vmem %s1, %s363
        %v365 = vld [vmem:[%s364] sm:$0x1]
        %366 = vst.msk [vmem:[#allocation2 + $0x5] sm:$0x1] %vm340, %v365
        %s367 = sadd.s32 %s336, 6
        %s368 = sld [smem:[#allocation4 + %s367]]
        %s369 = scalar_lea.vmem %s1, %s368
        %v370 = vld [vmem:[%s369] sm:$0x1]
        %371 = vst.msk [vmem:[#allocation2 + $0x6] sm:$0x1] %vm340, %v370
        %s372 = sadd.s32 %s336, 7
        %s373 = sld [smem:[#allocation4 + %s372]]
        %s374 = scalar_lea.vmem %s1, %s373
        %v375 = vld [vmem:[%s374] sm:$0x1]
        %376 = vst.msk [vmem:[#allocation2 + $0x7] sm:$0x1] %vm340, %v375
        %s377 = sadd.s32 %s336, 8
        %s378 = sld [smem:[#allocation4 + %s377]]
        %s379 = scalar_lea.vmem %s1, %s378
        %v380 = vld [vmem:[%s379] sm:$0x1]
        %s381 = scalar_lea.vmem [#allocation2], 16
        %382 = vst.msk [vmem:[%s381] sm:$0x1] %vm340, %v380
        %s383 = sadd.s32 %s336, 9
        %s384 = sld [smem:[#allocation4 + %s383]]
        %s385 = scalar_lea.vmem %s1, %s384
        %v386 = vld [vmem:[%s385] sm:$0x1]
        %387 = vst.msk [vmem:[%s381 + $0x1] sm:$0x1] %vm340, %v386
        %s388 = sadd.s32 %s336, 10
        %s389 = sld [smem:[#allocation4 + %s388]]
        %s390 = scalar_lea.vmem %s1, %s389
        %v391 = vld [vmem:[%s390] sm:$0x1]
        %392 = vst.msk [vmem:[%s381 + $0x2] sm:$0x1] %vm340, %v391
        %s393 = sadd.s32 %s336, 11
        %s394 = sld [smem:[#allocation4 + %s393]]
        %s395 = scalar_lea.vmem %s1, %s394
        %v396 = vld [vmem:[%s395] sm:$0x1]
        %397 = vst.msk [vmem:[%s381 + $0x3] sm:$0x1] %vm340, %v396
        %s398 = sadd.s32 %s336, 12
        %s399 = sld [smem:[#allocation4 + %s398]]
        %s400 = scalar_lea.vmem %s1, %s399
        %v401 = vld [vmem:[%s400] sm:$0x1]
        %402 = vst.msk [vmem:[%s381 + $0x4] sm:$0x1] %vm340, %v401
        %s403 = sadd.s32 %s336, 13
        %s404 = sld [smem:[#allocation4 + %s403]]
        %s405 = scalar_lea.vmem %s1, %s404
        %v406 = vld [vmem:[%s405] sm:$0x1]
        %407 = vst.msk [vmem:[%s381 + $0x5] sm:$0x1] %vm340, %v406
        %s408 = sadd.s32 %s336, 14
        %s409 = sld [smem:[#allocation4 + %s408]]
        %s410 = scalar_lea.vmem %s1, %s409
        %v411 = vld [vmem:[%s410] sm:$0x1]
        %412 = vst.msk [vmem:[%s381 + $0x6] sm:$0x1] %vm340, %v411
        %s413 = sadd.s32 %s336, 15
        %s414 = sld [smem:[#allocation4 + %s413]]
        %s415 = scalar_lea.vmem %s1, %s414
        %v416 = vld [vmem:[%s415] sm:$0x1]
        %417 = vst.msk [vmem:[%s381 + $0x7] sm:$0x1] %vm340, %v416
        %s418 = sadd.s32 %s336, 16
        %s419 = sld [smem:[#allocation4 + %s418]]
        %s420 = scalar_lea.vmem %s1, %s419
        %v421 = vld [vmem:[%s420] sm:$0x1]
        %s422 = scalar_lea.vmem [#allocation2], 32
        %423 = vst.msk [vmem:[%s422] sm:$0x1] %vm340, %v421
        %s424 = sadd.s32 %s336, 17
        %s425 = sld [smem:[#allocation4 + %s424]]
        %s426 = scalar_lea.vmem %s1, %s425
        %v427 = vld [vmem:[%s426] sm:$0x1]
        %428 = vst.msk [vmem:[%s422 + $0x1] sm:$0x1] %vm340, %v427
        %s429 = sadd.s32 %s336, 18
        %s430 = sld [smem:[#allocation4 + %s429]]
        %s431 = scalar_lea.vmem %s1, %s430
        %v432 = vld [vmem:[%s431] sm:$0x1]
        %433 = vst.msk [vmem:[%s422 + $0x2] sm:$0x1] %vm340, %v432
        %s434 = sadd.s32 %s336, 19
        %s435 = sld [smem:[#allocation4 + %s434]]
        %s436 = scalar_lea.vmem %s1, %s435
        %v437 = vld [vmem:[%s436] sm:$0x1]
        %438 = vst.msk [vmem:[%s422 + $0x3] sm:$0x1] %vm340, %v437
        %s439 = sadd.s32 %s336, 20
        %s440 = sld [smem:[#allocation4 + %s439]]
        %s441 = scalar_lea.vmem %s1, %s440
        %v442 = vld [vmem:[%s441] sm:$0x1]
        %443 = vst.msk [vmem:[%s422 + $0x4] sm:$0x1] %vm340, %v442
        %s444 = sadd.s32 %s336, 21
        %s445 = sld [smem:[#allocation4 + %s444]]
        %s446 = scalar_lea.vmem %s1, %s445
        %v447 = vld [vmem:[%s446] sm:$0x1]
        %448 = vst.msk [vmem:[%s422 + $0x5] sm:$0x1] %vm340, %v447
        %s449 = sadd.s32 %s336, 22
        %s450 = sld [smem:[#allocation4 + %s449]]
        %s451 = scalar_lea.vmem %s1, %s450
        %v452 = vld [vmem:[%s451] sm:$0x1]
        %453 = vst.msk [vmem:[%s422 + $0x6] sm:$0x1] %vm340, %v452
        %s454 = sadd.s32 %s336, 23
        %s455 = sld [smem:[#allocation4 + %s454]]
        %s456 = scalar_lea.vmem %s1, %s455
        %v457 = vld [vmem:[%s456] sm:$0x1]
        %458 = vst.msk [vmem:[%s422 + $0x7] sm:$0x1] %vm340, %v457
        %s459 = sadd.s32 %s336, 24
        %s460 = sld [smem:[#allocation4 + %s459]]
        %s461 = scalar_lea.vmem %s1, %s460
        %v462 = vld [vmem:[%s461] sm:$0x1]
        %s463 = scalar_lea.vmem [#allocation2], 48
        %464 = vst.msk [vmem:[%s463] sm:$0x1] %vm340, %v462
        %s465 = sadd.s32 %s336, 25
        %s466 = sld [smem:[#allocation4 + %s465]]
        %s467 = scalar_lea.vmem %s1, %s466
        %v468 = vld [vmem:[%s467] sm:$0x1]
        %469 = vst.msk [vmem:[%s463 + $0x1] sm:$0x1] %vm340, %v468
        %s470 = sadd.s32 %s336, 26
        %s471 = sld [smem:[#allocation4 + %s470]]
        %s472 = scalar_lea.vmem %s1, %s471
        %v473 = vld [vmem:[%s472] sm:$0x1]
        %474 = vst.msk [vmem:[%s463 + $0x2] sm:$0x1] %vm340, %v473
        %s475 = sadd.s32 %s336, 27
        %s476 = sld [smem:[#allocation4 + %s475]]
        %s477 = scalar_lea.vmem %s1, %s476
        %v478 = vld [vmem:[%s477] sm:$0x1]
        %479 = vst.msk [vmem:[%s463 + $0x3] sm:$0x1] %vm340, %v478
        %s480 = sadd.s32 %s336, 28
        %s481 = sld [smem:[#allocation4 + %s480]]
        %s482 = scalar_lea.vmem %s1, %s481
        %v483 = vld [vmem:[%s482] sm:$0x1]
        %484 = vst.msk [vmem:[%s463 + $0x4] sm:$0x1] %vm340, %v483
        %s485 = sadd.s32 %s336, 29
        %s486 = sld [smem:[#allocation4 + %s485]]
        %s487 = scalar_lea.vmem %s1, %s486
        %v488 = vld [vmem:[%s487] sm:$0x1]
        %489 = vst.msk [vmem:[%s463 + $0x5] sm:$0x1] %vm340, %v488
        %s490 = sadd.s32 %s336, 30
        %s491 = sld [smem:[#allocation4 + %s490]]
        %s492 = scalar_lea.vmem %s1, %s491
        %v493 = vld [vmem:[%s492] sm:$0x1]
        %494 = vst.msk [vmem:[%s463 + $0x6] sm:$0x1] %vm340, %v493
        %s495 = sadd.s32 %s336, 31
        %s496 = sld [smem:[#allocation4 + %s495]]
        %s497 = scalar_lea.vmem %s1, %s496
        %v498 = vld [vmem:[%s497] sm:$0x1]
        %499 = vst.msk [vmem:[%s463 + $0x7] sm:$0x1] %vm340, %v498
        %s500 = sadd.s32 %s336, 32
        %s501 = sld [smem:[#allocation4 + %s500]]
        %s502 = scalar_lea.vmem %s1, %s501
        %v503 = vld [vmem:[%s502] sm:$0x1]
        %s504 = scalar_lea.vmem [#allocation2], 64
        %505 = vst.msk [vmem:[%s504] sm:$0x1] %vm340, %v503
        %s506 = sadd.s32 %s336, 33
        %s507 = sld [smem:[#allocation4 + %s506]]
        %s508 = scalar_lea.vmem %s1, %s507
        %v509 = vld [vmem:[%s508] sm:$0x1]
        %510 = vst.msk [vmem:[%s504 + $0x1] sm:$0x1] %vm340, %v509
        %s511 = sadd.s32 %s336, 34
        %s512 = sld [smem:[#allocation4 + %s511]]
        %s513 = scalar_lea.vmem %s1, %s512
        %v514 = vld [vmem:[%s513] sm:$0x1]
        %515 = vst.msk [vmem:[%s504 + $0x2] sm:$0x1] %vm340, %v514
        %s516 = sadd.s32 %s336, 35
        %s517 = sld [smem:[#allocation4 + %s516]]
        %s518 = scalar_lea.vmem %s1, %s517
        %v519 = vld [vmem:[%s518] sm:$0x1]
        %520 = vst.msk [vmem:[%s504 + $0x3] sm:$0x1] %vm340, %v519
        %s521 = sadd.s32 %s336, 36
        %s522 = sld [smem:[#allocation4 + %s521]]
        %s523 = scalar_lea.vmem %s1, %s522
        %v524 = vld [vmem:[%s523] sm:$0x1]
        %525 = vst.msk [vmem:[%s504 + $0x4] sm:$0x1] %vm340, %v524
        %s526 = sadd.s32 %s336, 37
        %s527 = sld [smem:[#allocation4 + %s526]]
        %s528 = scalar_lea.vmem %s1, %s527
        %v529 = vld [vmem:[%s528] sm:$0x1]
        %530 = vst.msk [vmem:[%s504 + $0x5] sm:$0x1] %vm340, %v529
        %s531 = sadd.s32 %s336, 38
        %s532 = sld [smem:[#allocation4 + %s531]]
        %s533 = scalar_lea.vmem %s1, %s532
        %v534 = vld [vmem:[%s533] sm:$0x1]
        %535 = vst.msk [vmem:[%s504 + $0x6] sm:$0x1] %vm340, %v534
        %s536 = sadd.s32 %s336, 39
        %s537 = sld [smem:[#allocation4 + %s536]]
        %s538 = scalar_lea.vmem %s1, %s537
        %v539 = vld [vmem:[%s538] sm:$0x1]
        %540 = vst.msk [vmem:[%s504 + $0x7] sm:$0x1] %vm340, %v539
        %s541 = sadd.s32 %s336, 40
        %s542 = sld [smem:[#allocation4 + %s541]]
        %s543 = scalar_lea.vmem %s1, %s542
        %v544 = vld [vmem:[%s543] sm:$0x1]
        %s545 = scalar_lea.vmem [#allocation2], 80
        %546 = vst.msk [vmem:[%s545] sm:$0x1] %vm340, %v544
        %s547 = sadd.s32 %s336, 41
        %s548 = sld [smem:[#allocation4 + %s547]]
        %s549 = scalar_lea.vmem %s1, %s548
        %v550 = vld [vmem:[%s549] sm:$0x1]
        %551 = vst.msk [vmem:[%s545 + $0x1] sm:$0x1] %vm340, %v550
        %s552 = sadd.s32 %s336, 42
        %s553 = sld [smem:[#allocation4 + %s552]]
        %s554 = scalar_lea.vmem %s1, %s553
        %v555 = vld [vmem:[%s554] sm:$0x1]
        %556 = vst.msk [vmem:[%s545 + $0x2] sm:$0x1] %vm340, %v555
        %s557 = sadd.s32 %s336, 43
        %s558 = sld [smem:[#allocation4 + %s557]]
        %s559 = scalar_lea.vmem %s1, %s558
        %v560 = vld [vmem:[%s559] sm:$0x1]
        %561 = vst.msk [vmem:[%s545 + $0x3] sm:$0x1] %vm340, %v560
        %s562 = sadd.s32 %s336, 44
        %s563 = sld [smem:[#allocation4 + %s562]]
        %s564 = scalar_lea.vmem %s1, %s563
        %v565 = vld [vmem:[%s564] sm:$0x1]
        %566 = vst.msk [vmem:[%s545 + $0x4] sm:$0x1] %vm340, %v565
        %s567 = sadd.s32 %s336, 45
        %s568 = sld [smem:[#allocation4 + %s567]]
        %s569 = scalar_lea.vmem %s1, %s568
        %v570 = vld [vmem:[%s569] sm:$0x1]
        %571 = vst.msk [vmem:[%s545 + $0x5] sm:$0x1] %vm340, %v570
        %s572 = sadd.s32 %s336, 46
        %s573 = sld [smem:[#allocation4 + %s572]]
        %s574 = scalar_lea.vmem %s1, %s573
        %v575 = vld [vmem:[%s574] sm:$0x1]
        %576 = vst.msk [vmem:[%s545 + $0x6] sm:$0x1] %vm340, %v575
        %s577 = sadd.s32 %s336, 47
        %s578 = sld [smem:[#allocation4 + %s577]]
        %s579 = scalar_lea.vmem %s1, %s578
        %v580 = vld [vmem:[%s579] sm:$0x1]
        %581 = vst.msk [vmem:[%s545 + $0x7] sm:$0x1] %vm340, %v580
        %s582 = sadd.s32 %s336, 48
        %s583 = sld [smem:[#allocation4 + %s582]]
        %s584 = scalar_lea.vmem %s1, %s583
        %v585 = vld [vmem:[%s584] sm:$0x1]
        %s586 = scalar_lea.vmem [#allocation2], 96
        %587 = vst.msk [vmem:[%s586] sm:$0x1] %vm340, %v585
        %s588 = sadd.s32 %s336, 49
        %s589 = sld [smem:[#allocation4 + %s588]]
        %s590 = scalar_lea.vmem %s1, %s589
        %v591 = vld [vmem:[%s590] sm:$0x1]
        %592 = vst.msk [vmem:[%s586 + $0x1] sm:$0x1] %vm340, %v591
        %s593 = sadd.s32 %s336, 50
        %s594 = sld [smem:[#allocation4 + %s593]]
        %s595 = scalar_lea.vmem %s1, %s594
        %v596 = vld [vmem:[%s595] sm:$0x1]
        %597 = vst.msk [vmem:[%s586 + $0x2] sm:$0x1] %vm340, %v596
        %s598 = sadd.s32 %s336, 51
        %s599 = sld [smem:[#allocation4 + %s598]]
        %s600 = scalar_lea.vmem %s1, %s599
        %v601 = vld [vmem:[%s600] sm:$0x1]
        %602 = vst.msk [vmem:[%s586 + $0x3] sm:$0x1] %vm340, %v601
        %s603 = sadd.s32 %s336, 52
        %s604 = sld [smem:[#allocation4 + %s603]]
        %s605 = scalar_lea.vmem %s1, %s604
        %v606 = vld [vmem:[%s605] sm:$0x1]
        %607 = vst.msk [vmem:[%s586 + $0x4] sm:$0x1] %vm340, %v606
        %s608 = sadd.s32 %s336, 53
        %s609 = sld [smem:[#allocation4 + %s608]]
        %s610 = scalar_lea.vmem %s1, %s609
        %v611 = vld [vmem:[%s610] sm:$0x1]
        %612 = vst.msk [vmem:[%s586 + $0x5] sm:$0x1] %vm340, %v611
        %s613 = sadd.s32 %s336, 54
        %s614 = sld [smem:[#allocation4 + %s613]]
        %s615 = scalar_lea.vmem %s1, %s614
        %v616 = vld [vmem:[%s615] sm:$0x1]
        %617 = vst.msk [vmem:[%s586 + $0x6] sm:$0x1] %vm340, %v616
        %s618 = sadd.s32 %s336, 55
        %s619 = sld [smem:[#allocation4 + %s618]]
        %s620 = scalar_lea.vmem %s1, %s619
        %v621 = vld [vmem:[%s620] sm:$0x1]
        %622 = vst.msk [vmem:[%s586 + $0x7] sm:$0x1] %vm340, %v621
        %s623 = sadd.s32 %s336, 56
        %s624 = sld [smem:[#allocation4 + %s623]]
        %s625 = scalar_lea.vmem %s1, %s624
        %v626 = vld [vmem:[%s625] sm:$0x1]
        %s627 = scalar_lea.vmem [#allocation2], 112
        %628 = vst.msk [vmem:[%s627] sm:$0x1] %vm340, %v626
        %s629 = sadd.s32 %s336, 57
        %s630 = sld [smem:[#allocation4 + %s629]]
        %s631 = scalar_lea.vmem %s1, %s630
        %v632 = vld [vmem:[%s631] sm:$0x1]
        %633 = vst.msk [vmem:[%s627 + $0x1] sm:$0x1] %vm340, %v632
        %s634 = sadd.s32 %s336, 58
        %s635 = sld [smem:[#allocation4 + %s634]]
        %s636 = scalar_lea.vmem %s1, %s635
        %v637 = vld [vmem:[%s636] sm:$0x1]
        %638 = vst.msk [vmem:[%s627 + $0x2] sm:$0x1] %vm340, %v637
        %s639 = sadd.s32 %s336, 59
        %s640 = sld [smem:[#allocation4 + %s639]]
        %s641 = scalar_lea.vmem %s1, %s640
        %v642 = vld [vmem:[%s641] sm:$0x1]
        %643 = vst.msk [vmem:[%s627 + $0x3] sm:$0x1] %vm340, %v642
        %s644 = sadd.s32 %s336, 60
        %s645 = sld [smem:[#allocation4 + %s644]]
        %s646 = scalar_lea.vmem %s1, %s645
        %v647 = vld [vmem:[%s646] sm:$0x1]
        %648 = vst.msk [vmem:[%s627 + $0x4] sm:$0x1] %vm340, %v647
        %s649 = sadd.s32 %s336, 61
        %s650 = sld [smem:[#allocation4 + %s649]]
        %s651 = scalar_lea.vmem %s1, %s650
        %v652 = vld [vmem:[%s651] sm:$0x1]
        %653 = vst.msk [vmem:[%s627 + $0x5] sm:$0x1] %vm340, %v652
        %s654 = sadd.s32 %s336, 62
        %s655 = sld [smem:[#allocation4 + %s654]]
        %s656 = scalar_lea.vmem %s1, %s655
        %v657 = vld [vmem:[%s656] sm:$0x1]
        %658 = vst.msk [vmem:[%s627 + $0x6] sm:$0x1] %vm340, %v657
        %s659 = sadd.s32 %s336, 63
        %s660 = sld [smem:[#allocation4 + %s659]]
        %s661 = scalar_lea.vmem %s1, %s660
        %v662 = vld [vmem:[%s661] sm:$0x1]
        %663 = vst.msk [vmem:[%s627 + $0x7] sm:$0x1] %vm340, %v662
        %s664 = sadd.s32 %s336, 64
        %s665 = sld [smem:[#allocation4 + %s664]]
        %s666 = scalar_lea.vmem %s1, %s665
        %v667 = vld [vmem:[%s666] sm:$0x1]
        %s668 = scalar_lea.vmem [#allocation2], 128
        %669 = vst.msk [vmem:[%s668] sm:$0x1] %vm340, %v667
        %s670 = sadd.s32 %s336, 65
        %s671 = sld [smem:[#allocation4 + %s670]]
        %s672 = scalar_lea.vmem %s1, %s671
        %v673 = vld [vmem:[%s672] sm:$0x1]
        %674 = vst.msk [vmem:[%s668 + $0x1] sm:$0x1] %vm340, %v673
        %s675 = sadd.s32 %s336, 66
        %s676 = sld [smem:[#allocation4 + %s675]]
        %s677 = scalar_lea.vmem %s1, %s676
        %v678 = vld [vmem:[%s677] sm:$0x1]
        %679 = vst.msk [vmem:[%s668 + $0x2] sm:$0x1] %vm340, %v678
        %s680 = sadd.s32 %s336, 67
        %s681 = sld [smem:[#allocation4 + %s680]]
        %s682 = scalar_lea.vmem %s1, %s681
        %v683 = vld [vmem:[%s682] sm:$0x1]
        %684 = vst.msk [vmem:[%s668 + $0x3] sm:$0x1] %vm340, %v683
        %s685 = sadd.s32 %s336, 68
        %s686 = sld [smem:[#allocation4 + %s685]]
        %s687 = scalar_lea.vmem %s1, %s686
        %v688 = vld [vmem:[%s687] sm:$0x1]
        %689 = vst.msk [vmem:[%s668 + $0x4] sm:$0x1] %vm340, %v688
        %s690 = sadd.s32 %s336, 69
        %s691 = sld [smem:[#allocation4 + %s690]]
        %s692 = scalar_lea.vmem %s1, %s691
        %v693 = vld [vmem:[%s692] sm:$0x1]
        %694 = vst.msk [vmem:[%s668 + $0x5] sm:$0x1] %vm340, %v693
        %s695 = sadd.s32 %s336, 70
        %s696 = sld [smem:[#allocation4 + %s695]]
        %s697 = scalar_lea.vmem %s1, %s696
        %v698 = vld [vmem:[%s697] sm:$0x1]
        %699 = vst.msk [vmem:[%s668 + $0x6] sm:$0x1] %vm340, %v698
        %s700 = sadd.s32 %s336, 71
        %s701 = sld [smem:[#allocation4 + %s700]]
        %s702 = scalar_lea.vmem %s1, %s701
        %v703 = vld [vmem:[%s702] sm:$0x1]
        %704 = vst.msk [vmem:[%s668 + $0x7] sm:$0x1] %vm340, %v703
        %s705 = sadd.s32 %s336, 72
        %s706 = sld [smem:[#allocation4 + %s705]]
        %s707 = scalar_lea.vmem %s1, %s706
        %v708 = vld [vmem:[%s707] sm:$0x1]
        %s709 = scalar_lea.vmem [#allocation2], 144
        %710 = vst.msk [vmem:[%s709] sm:$0x1] %vm340, %v708
        %s711 = sadd.s32 %s336, 73
        %s712 = sld [smem:[#allocation4 + %s711]]
        %s713 = scalar_lea.vmem %s1, %s712
        %v714 = vld [vmem:[%s713] sm:$0x1]
        %715 = vst.msk [vmem:[%s709 + $0x1] sm:$0x1] %vm340, %v714
        %s716 = sadd.s32 %s336, 74
        %s717 = sld [smem:[#allocation4 + %s716]]
        %s718 = scalar_lea.vmem %s1, %s717
        %v719 = vld [vmem:[%s718] sm:$0x1]
        %720 = vst.msk [vmem:[%s709 + $0x2] sm:$0x1] %vm340, %v719
        %s721 = sadd.s32 %s336, 75
        %s722 = sld [smem:[#allocation4 + %s721]]
        %s723 = scalar_lea.vmem %s1, %s722
        %v724 = vld [vmem:[%s723] sm:$0x1]
        %725 = vst.msk [vmem:[%s709 + $0x3] sm:$0x1] %vm340, %v724
        %s726 = sadd.s32 %s336, 76
        %s727 = sld [smem:[#allocation4 + %s726]]
        %s728 = scalar_lea.vmem %s1, %s727
        %v729 = vld [vmem:[%s728] sm:$0x1]
        %730 = vst.msk [vmem:[%s709 + $0x4] sm:$0x1] %vm340, %v729
        %s731 = sadd.s32 %s336, 77
        %s732 = sld [smem:[#allocation4 + %s731]]
        %s733 = scalar_lea.vmem %s1, %s732
        %v734 = vld [vmem:[%s733] sm:$0x1]
        %735 = vst.msk [vmem:[%s709 + $0x5] sm:$0x1] %vm340, %v734
        %s736 = sadd.s32 %s336, 78
        %s737 = sld [smem:[#allocation4 + %s736]]
        %s738 = scalar_lea.vmem %s1, %s737
        %v739 = vld [vmem:[%s738] sm:$0x1]
        %740 = vst.msk [vmem:[%s709 + $0x6] sm:$0x1] %vm340, %v739
        %s741 = sadd.s32 %s336, 79
        %s742 = sld [smem:[#allocation4 + %s741]]
        %s743 = scalar_lea.vmem %s1, %s742
        %v744 = vld [vmem:[%s743] sm:$0x1]
        %745 = vst.msk [vmem:[%s709 + $0x7] sm:$0x1] %vm340, %v744
        %s746 = sadd.s32 %s336, 80
        %s747 = sld [smem:[#allocation4 + %s746]]
        %s748 = scalar_lea.vmem %s1, %s747
        %v749 = vld [vmem:[%s748] sm:$0x1]
        %s750 = scalar_lea.vmem [#allocation2], 160
        %751 = vst.msk [vmem:[%s750] sm:$0x1] %vm340, %v749
        %s752 = sadd.s32 %s336, 81
        %s753 = sld [smem:[#allocation4 + %s752]]
        %s754 = scalar_lea.vmem %s1, %s753
        %v755 = vld [vmem:[%s754] sm:$0x1]
        %756 = vst.msk [vmem:[%s750 + $0x1] sm:$0x1] %vm340, %v755
        %s757 = sadd.s32 %s336, 82
        %s758 = sld [smem:[#allocation4 + %s757]]
        %s759 = scalar_lea.vmem %s1, %s758
        %v760 = vld [vmem:[%s759] sm:$0x1]
        %761 = vst.msk [vmem:[%s750 + $0x2] sm:$0x1] %vm340, %v760
        %s762 = sadd.s32 %s336, 83
        %s763 = sld [smem:[#allocation4 + %s762]]
        %s764 = scalar_lea.vmem %s1, %s763
        %v765 = vld [vmem:[%s764] sm:$0x1]
        %766 = vst.msk [vmem:[%s750 + $0x3] sm:$0x1] %vm340, %v765
        %s767 = sadd.s32 %s336, 84
        %s768 = sld [smem:[#allocation4 + %s767]]
        %s769 = scalar_lea.vmem %s1, %s768
        %v770 = vld [vmem:[%s769] sm:$0x1]
        %771 = vst.msk [vmem:[%s750 + $0x4] sm:$0x1] %vm340, %v770
        %s772 = sadd.s32 %s336, 85
        %s773 = sld [smem:[#allocation4 + %s772]]
        %s774 = scalar_lea.vmem %s1, %s773
        %v775 = vld [vmem:[%s774] sm:$0x1]
        %776 = vst.msk [vmem:[%s750 + $0x5] sm:$0x1] %vm340, %v775
        %s777 = sadd.s32 %s336, 86
        %s778 = sld [smem:[#allocation4 + %s777]]
        %s779 = scalar_lea.vmem %s1, %s778
        %v780 = vld [vmem:[%s779] sm:$0x1]
        %781 = vst.msk [vmem:[%s750 + $0x6] sm:$0x1] %vm340, %v780
        %s782 = sadd.s32 %s336, 87
        %s783 = sld [smem:[#allocation4 + %s782]]
        %s784 = scalar_lea.vmem %s1, %s783
        %v785 = vld [vmem:[%s784] sm:$0x1]
        %786 = vst.msk [vmem:[%s750 + $0x7] sm:$0x1] %vm340, %v785
        %s787 = sadd.s32 %s336, 88
        %s788 = sld [smem:[#allocation4 + %s787]]
        %s789 = scalar_lea.vmem %s1, %s788
        %v790 = vld [vmem:[%s789] sm:$0x1]
        %s791 = scalar_lea.vmem [#allocation2], 176
        %792 = vst.msk [vmem:[%s791] sm:$0x1] %vm340, %v790
        %s793 = sadd.s32 %s336, 89
        %s794 = sld [smem:[#allocation4 + %s793]]
        %s795 = scalar_lea.vmem %s1, %s794
        %v796 = vld [vmem:[%s795] sm:$0x1]
        %797 = vst.msk [vmem:[%s791 + $0x1] sm:$0x1] %vm340, %v796
        %s798 = sadd.s32 %s336, 90
        %s799 = sld [smem:[#allocation4 + %s798]]
        %s800 = scalar_lea.vmem %s1, %s799
        %v801 = vld [vmem:[%s800] sm:$0x1]
        %802 = vst.msk [vmem:[%s791 + $0x2] sm:$0x1] %vm340, %v801
        %s803 = sadd.s32 %s336, 91
        %s804 = sld [smem:[#allocation4 + %s803]]
        %s805 = scalar_lea.vmem %s1, %s804
        %v806 = vld [vmem:[%s805] sm:$0x1]
        %807 = vst.msk [vmem:[%s791 + $0x3] sm:$0x1] %vm340, %v806
        %s808 = sadd.s32 %s336, 92
        %s809 = sld [smem:[#allocation4 + %s808]]
        %s810 = scalar_lea.vmem %s1, %s809
        %v811 = vld [vmem:[%s810] sm:$0x1]
        %812 = vst.msk [vmem:[%s791 + $0x4] sm:$0x1] %vm340, %v811
        %s813 = sadd.s32 %s336, 93
        %s814 = sld [smem:[#allocation4 + %s813]]
        %s815 = scalar_lea.vmem %s1, %s814
        %v816 = vld [vmem:[%s815] sm:$0x1]
        %817 = vst.msk [vmem:[%s791 + $0x5] sm:$0x1] %vm340, %v816
        %s818 = sadd.s32 %s336, 94
        %s819 = sld [smem:[#allocation4 + %s818]]
        %s820 = scalar_lea.vmem %s1, %s819
        %v821 = vld [vmem:[%s820] sm:$0x1]
        %822 = vst.msk [vmem:[%s791 + $0x6] sm:$0x1] %vm340, %v821
        %s823 = sadd.s32 %s336, 95
        %s824 = sld [smem:[#allocation4 + %s823]]
        %s825 = scalar_lea.vmem %s1, %s824
        %v826 = vld [vmem:[%s825] sm:$0x1]
        %827 = vst.msk [vmem:[%s791 + $0x7] sm:$0x1] %vm340, %v826
        %s828 = sadd.s32 %s336, 96
        %s829 = sld [smem:[#allocation4 + %s828]]
        %s830 = scalar_lea.vmem %s1, %s829
        %v831 = vld [vmem:[%s830] sm:$0x1]
        %s832 = scalar_lea.vmem [#allocation2], 192
        %833 = vst.msk [vmem:[%s832] sm:$0x1] %vm340, %v831
        %s834 = sadd.s32 %s336, 97
        %s835 = sld [smem:[#allocation4 + %s834]]
        %s836 = scalar_lea.vmem %s1, %s835
        %v837 = vld [vmem:[%s836] sm:$0x1]
        %838 = vst.msk [vmem:[%s832 + $0x1] sm:$0x1] %vm340, %v837
        %s839 = sadd.s32 %s336, 98
        %s840 = sld [smem:[#allocation4 + %s839]]
        %s841 = scalar_lea.vmem %s1, %s840
        %v842 = vld [vmem:[%s841] sm:$0x1]
        %843 = vst.msk [vmem:[%s832 + $0x2] sm:$0x1] %vm340, %v842
        %s844 = sadd.s32 %s336, 99
        %s845 = sld [smem:[#allocation4 + %s844]]
        %s846 = scalar_lea.vmem %s1, %s845
        %v847 = vld [vmem:[%s846] sm:$0x1]
        %848 = vst.msk [vmem:[%s832 + $0x3] sm:$0x1] %vm340, %v847
        %s849 = sadd.s32 %s336, 100
        %s850 = sld [smem:[#allocation4 + %s849]]
        %s851 = scalar_lea.vmem %s1, %s850
        %v852 = vld [vmem:[%s851] sm:$0x1]
        %853 = vst.msk [vmem:[%s832 + $0x4] sm:$0x1] %vm340, %v852
        %s854 = sadd.s32 %s336, 101
        %s855 = sld [smem:[#allocation4 + %s854]]
        %s856 = scalar_lea.vmem %s1, %s855
        %v857 = vld [vmem:[%s856] sm:$0x1]
        %858 = vst.msk [vmem:[%s832 + $0x5] sm:$0x1] %vm340, %v857
        %s859 = sadd.s32 %s336, 102
        %s860 = sld [smem:[#allocation4 + %s859]]
        %s861 = scalar_lea.vmem %s1, %s860
        %v862 = vld [vmem:[%s861] sm:$0x1]
        %863 = vst.msk [vmem:[%s832 + $0x6] sm:$0x1] %vm340, %v862
        %s864 = sadd.s32 %s336, 103
        %s865 = sld [smem:[#allocation4 + %s864]]
        %s866 = scalar_lea.vmem %s1, %s865
        %v867 = vld [vmem:[%s866] sm:$0x1]
        %868 = vst.msk [vmem:[%s832 + $0x7] sm:$0x1] %vm340, %v867
        %s869 = sadd.s32 %s336, 104
        %s870 = sld [smem:[#allocation4 + %s869]]
        %s871 = scalar_lea.vmem %s1, %s870
        %v872 = vld [vmem:[%s871] sm:$0x1]
        %s873 = scalar_lea.vmem [#allocation2], 208
        %874 = vst.msk [vmem:[%s873] sm:$0x1] %vm340, %v872
        %s875 = sadd.s32 %s336, 105
        %s876 = sld [smem:[#allocation4 + %s875]]
        %s877 = scalar_lea.vmem %s1, %s876
        %v878 = vld [vmem:[%s877] sm:$0x1]
        %879 = vst.msk [vmem:[%s873 + $0x1] sm:$0x1] %vm340, %v878
        %s880 = sadd.s32 %s336, 106
        %s881 = sld [smem:[#allocation4 + %s880]]
        %s882 = scalar_lea.vmem %s1, %s881
        %v883 = vld [vmem:[%s882] sm:$0x1]
        %884 = vst.msk [vmem:[%s873 + $0x2] sm:$0x1] %vm340, %v883
        %s885 = sadd.s32 %s336, 107
        %s886 = sld [smem:[#allocation4 + %s885]]
        %s887 = scalar_lea.vmem %s1, %s886
        %v888 = vld [vmem:[%s887] sm:$0x1]
        %889 = vst.msk [vmem:[%s873 + $0x3] sm:$0x1] %vm340, %v888
        %s890 = sadd.s32 %s336, 108
        %s891 = sld [smem:[#allocation4 + %s890]]
        %s892 = scalar_lea.vmem %s1, %s891
        %v893 = vld [vmem:[%s892] sm:$0x1]
        %894 = vst.msk [vmem:[%s873 + $0x4] sm:$0x1] %vm340, %v893
        %s895 = sadd.s32 %s336, 109
        %s896 = sld [smem:[#allocation4 + %s895]]
        %s897 = scalar_lea.vmem %s1, %s896
        %v898 = vld [vmem:[%s897] sm:$0x1]
        %899 = vst.msk [vmem:[%s873 + $0x5] sm:$0x1] %vm340, %v898
        %s900 = sadd.s32 %s336, 110
        %s901 = sld [smem:[#allocation4 + %s900]]
        %s902 = scalar_lea.vmem %s1, %s901
        %v903 = vld [vmem:[%s902] sm:$0x1]
        %904 = vst.msk [vmem:[%s873 + $0x6] sm:$0x1] %vm340, %v903
        %s905 = sadd.s32 %s336, 111
        %s906 = sld [smem:[#allocation4 + %s905]]
        %s907 = scalar_lea.vmem %s1, %s906
        %v908 = vld [vmem:[%s907] sm:$0x1]
        %909 = vst.msk [vmem:[%s873 + $0x7] sm:$0x1] %vm340, %v908
        %s910 = sadd.s32 %s336, 112
        %s911 = sld [smem:[#allocation4 + %s910]]
        %s912 = scalar_lea.vmem %s1, %s911
        %v913 = vld [vmem:[%s912] sm:$0x1]
        %s914 = scalar_lea.vmem [#allocation2], 224
        %915 = vst.msk [vmem:[%s914] sm:$0x1] %vm340, %v913
        %s916 = sadd.s32 %s336, 113
        %s917 = sld [smem:[#allocation4 + %s916]]
        %s918 = scalar_lea.vmem %s1, %s917
        %v919 = vld [vmem:[%s918] sm:$0x1]
        %920 = vst.msk [vmem:[%s914 + $0x1] sm:$0x1] %vm340, %v919
        %s921 = sadd.s32 %s336, 114
        %s922 = sld [smem:[#allocation4 + %s921]]
        %s923 = scalar_lea.vmem %s1, %s922
        %v924 = vld [vmem:[%s923] sm:$0x1]
        %925 = vst.msk [vmem:[%s914 + $0x2] sm:$0x1] %vm340, %v924
        %s926 = sadd.s32 %s336, 115
        %s927 = sld [smem:[#allocation4 + %s926]]
        %s928 = scalar_lea.vmem %s1, %s927
        %v929 = vld [vmem:[%s928] sm:$0x1]
        %930 = vst.msk [vmem:[%s914 + $0x3] sm:$0x1] %vm340, %v929
        %s931 = sadd.s32 %s336, 116
        %s932 = sld [smem:[#allocation4 + %s931]]
        %s933 = scalar_lea.vmem %s1, %s932
        %v934 = vld [vmem:[%s933] sm:$0x1]
        %935 = vst.msk [vmem:[%s914 + $0x4] sm:$0x1] %vm340, %v934
        %s936 = sadd.s32 %s336, 117
        %s937 = sld [smem:[#allocation4 + %s936]]
        %s938 = scalar_lea.vmem %s1, %s937
        %v939 = vld [vmem:[%s938] sm:$0x1]
        %940 = vst.msk [vmem:[%s914 + $0x5] sm:$0x1] %vm340, %v939
        %s941 = sadd.s32 %s336, 118
        %s942 = sld [smem:[#allocation4 + %s941]]
        %s943 = scalar_lea.vmem %s1, %s942
        %v944 = vld [vmem:[%s943] sm:$0x1]
        %945 = vst.msk [vmem:[%s914 + $0x6] sm:$0x1] %vm340, %v944
        %s946 = sadd.s32 %s336, 119
        %s947 = sld [smem:[#allocation4 + %s946]]
        %s948 = scalar_lea.vmem %s1, %s947
        %v949 = vld [vmem:[%s948] sm:$0x1]
        %950 = vst.msk [vmem:[%s914 + $0x7] sm:$0x1] %vm340, %v949
        %s951 = sadd.s32 %s336, 120
        %s952 = sld [smem:[#allocation4 + %s951]]
        %s953 = scalar_lea.vmem %s1, %s952
        %v954 = vld [vmem:[%s953] sm:$0x1]
        %s955 = scalar_lea.vmem [#allocation2], 240
        %956 = vst.msk [vmem:[%s955] sm:$0x1] %vm340, %v954
        %s957 = sadd.s32 %s336, 121
        %s958 = sld [smem:[#allocation4 + %s957]]
        %s959 = scalar_lea.vmem %s1, %s958
        %v960 = vld [vmem:[%s959] sm:$0x1]
        %961 = vst.msk [vmem:[%s955 + $0x1] sm:$0x1] %vm340, %v960
        %s962 = sadd.s32 %s336, 122
        %s963 = sld [smem:[#allocation4 + %s962]]
        %s964 = scalar_lea.vmem %s1, %s963
        %v965 = vld [vmem:[%s964] sm:$0x1]
        %966 = vst.msk [vmem:[%s955 + $0x2] sm:$0x1] %vm340, %v965
        %s967 = sadd.s32 %s336, 123
        %s968 = sld [smem:[#allocation4 + %s967]]
        %s969 = scalar_lea.vmem %s1, %s968
        %v970 = vld [vmem:[%s969] sm:$0x1]
        %971 = vst.msk [vmem:[%s955 + $0x3] sm:$0x1] %vm340, %v970
        %s972 = sadd.s32 %s336, 124
        %s973 = sld [smem:[#allocation4 + %s972]]
        %s974 = scalar_lea.vmem %s1, %s973
        %v975 = vld [vmem:[%s974] sm:$0x1]
        %976 = vst.msk [vmem:[%s955 + $0x4] sm:$0x1] %vm340, %v975
        %s977 = sadd.s32 %s336, 125
        %s978 = sld [smem:[#allocation4 + %s977]]
        %s979 = scalar_lea.vmem %s1, %s978
        %v980 = vld [vmem:[%s979] sm:$0x1]
        %981 = vst.msk [vmem:[%s955 + $0x5] sm:$0x1] %vm340, %v980
        %s982 = sadd.s32 %s336, 126
        %s983 = sld [smem:[#allocation4 + %s982]]
        %s984 = scalar_lea.vmem %s1, %s983
        %v985 = vld [vmem:[%s984] sm:$0x1]
        %986 = vst.msk [vmem:[%s955 + $0x6] sm:$0x1] %vm340, %v985
        %s987 = sadd.s32 %s336, 127
        %s988 = sld [smem:[#allocation4 + %s987]]
        %s989 = scalar_lea.vmem %s1, %s988
        %v990 = vld [vmem:[%s989] sm:$0x1]
        %991 = vst.msk [vmem:[%s955 + $0x7] sm:$0x1] %vm340, %v990
        %s992 = sadd.s32 %s336, 128
        %s993 = sld [smem:[#allocation4 + %s992]]
        %s994 = scalar_lea.vmem %s1, %s993
        %v995 = vld [vmem:[%s994] sm:$0x1]
        %s996 = scalar_lea.vmem [#allocation2], 256
        %997 = vst.msk [vmem:[%s996] sm:$0x1] %vm340, %v995
        %s998 = sadd.s32 %s336, 129
        %s999 = sld [smem:[#allocation4 + %s998]]
        %s1000 = scalar_lea.vmem %s1, %s999
        %v1001 = vld [vmem:[%s1000] sm:$0x1]
        %1002 = vst.msk [vmem:[%s996 + $0x1] sm:$0x1] %vm340, %v1001
        %s1003 = sadd.s32 %s336, 130
        %s1004 = sld [smem:[#allocation4 + %s1003]]
        %s1005 = scalar_lea.vmem %s1, %s1004
        %v1006 = vld [vmem:[%s1005] sm:$0x1]
        %1007 = vst.msk [vmem:[%s996 + $0x2] sm:$0x1] %vm340, %v1006
        %s1008 = sadd.s32 %s336, 131
        %s1009 = sld [smem:[#allocation4 + %s1008]]
        %s1010 = scalar_lea.vmem %s1, %s1009
        %v1011 = vld [vmem:[%s1010] sm:$0x1]
        %1012 = vst.msk [vmem:[%s996 + $0x3] sm:$0x1] %vm340, %v1011
        %s1013 = sadd.s32 %s336, 132
        %s1014 = sld [smem:[#allocation4 + %s1013]]
        %s1015 = scalar_lea.vmem %s1, %s1014
        %v1016 = vld [vmem:[%s1015] sm:$0x1]
        %1017 = vst.msk [vmem:[%s996 + $0x4] sm:$0x1] %vm340, %v1016
        %s1018 = sadd.s32 %s336, 133
        %s1019 = sld [smem:[#allocation4 + %s1018]]
        %s1020 = scalar_lea.vmem %s1, %s1019
        %v1021 = vld [vmem:[%s1020] sm:$0x1]
        %1022 = vst.msk [vmem:[%s996 + $0x5] sm:$0x1] %vm340, %v1021
        %s1023 = sadd.s32 %s336, 134
        %s1024 = sld [smem:[#allocation4 + %s1023]]
        %s1025 = scalar_lea.vmem %s1, %s1024
        %v1026 = vld [vmem:[%s1025] sm:$0x1]
        %1027 = vst.msk [vmem:[%s996 + $0x6] sm:$0x1] %vm340, %v1026
        %s1028 = sadd.s32 %s336, 135
        %s1029 = sld [smem:[#allocation4 + %s1028]]
        %s1030 = scalar_lea.vmem %s1, %s1029
        %v1031 = vld [vmem:[%s1030] sm:$0x1]
        %1032 = vst.msk [vmem:[%s996 + $0x7] sm:$0x1] %vm340, %v1031
        %s1033 = sadd.s32 %s336, 136
        %s1034 = sld [smem:[#allocation4 + %s1033]]
        %s1035 = scalar_lea.vmem %s1, %s1034
        %v1036 = vld [vmem:[%s1035] sm:$0x1]
        %s1037 = scalar_lea.vmem [#allocation2], 272
        %1038 = vst.msk [vmem:[%s1037] sm:$0x1] %vm340, %v1036
        %s1039 = sadd.s32 %s336, 137
        %s1040 = sld [smem:[#allocation4 + %s1039]]
        %s1041 = scalar_lea.vmem %s1, %s1040
        %v1042 = vld [vmem:[%s1041] sm:$0x1]
        %1043 = vst.msk [vmem:[%s1037 + $0x1] sm:$0x1] %vm340, %v1042
        %s1044 = sadd.s32 %s336, 138
        %s1045 = sld [smem:[#allocation4 + %s1044]]
        %s1046 = scalar_lea.vmem %s1, %s1045
        %v1047 = vld [vmem:[%s1046] sm:$0x1]
        %1048 = vst.msk [vmem:[%s1037 + $0x2] sm:$0x1] %vm340, %v1047
        %s1049 = sadd.s32 %s336, 139
        %s1050 = sld [smem:[#allocation4 + %s1049]]
        %s1051 = scalar_lea.vmem %s1, %s1050
        %v1052 = vld [vmem:[%s1051] sm:$0x1]
        %1053 = vst.msk [vmem:[%s1037 + $0x3] sm:$0x1] %vm340, %v1052
        %s1054 = sadd.s32 %s336, 140
        %s1055 = sld [smem:[#allocation4 + %s1054]]
        %s1056 = scalar_lea.vmem %s1, %s1055
        %v1057 = vld [vmem:[%s1056] sm:$0x1]
        %1058 = vst.msk [vmem:[%s1037 + $0x4] sm:$0x1] %vm340, %v1057
        %s1059 = sadd.s32 %s336, 141
        %s1060 = sld [smem:[#allocation4 + %s1059]]
        %s1061 = scalar_lea.vmem %s1, %s1060
        %v1062 = vld [vmem:[%s1061] sm:$0x1]
        %1063 = vst.msk [vmem:[%s1037 + $0x5] sm:$0x1] %vm340, %v1062
        %s1064 = sadd.s32 %s336, 142
        %s1065 = sld [smem:[#allocation4 + %s1064]]
        %s1066 = scalar_lea.vmem %s1, %s1065
        %v1067 = vld [vmem:[%s1066] sm:$0x1]
        %1068 = vst.msk [vmem:[%s1037 + $0x6] sm:$0x1] %vm340, %v1067
        %s1069 = sadd.s32 %s336, 143
        %s1070 = sld [smem:[#allocation4 + %s1069]]
        %s1071 = scalar_lea.vmem %s1, %s1070
        %v1072 = vld [vmem:[%s1071] sm:$0x1]
        %1073 = vst.msk [vmem:[%s1037 + $0x7] sm:$0x1] %vm340, %v1072
        %s1074 = sadd.s32 %s336, 144
        %s1075 = sld [smem:[#allocation4 + %s1074]]
        %s1076 = scalar_lea.vmem %s1, %s1075
        %v1077 = vld [vmem:[%s1076] sm:$0x1]
        %s1078 = scalar_lea.vmem [#allocation2], 288
        %1079 = vst.msk [vmem:[%s1078] sm:$0x1] %vm340, %v1077
        %s1080 = sadd.s32 %s336, 145
        %s1081 = sld [smem:[#allocation4 + %s1080]]
        %s1082 = scalar_lea.vmem %s1, %s1081
        %v1083 = vld [vmem:[%s1082] sm:$0x1]
        %1084 = vst.msk [vmem:[%s1078 + $0x1] sm:$0x1] %vm340, %v1083
        %s1085 = sadd.s32 %s336, 146
        %s1086 = sld [smem:[#allocation4 + %s1085]]
        %s1087 = scalar_lea.vmem %s1, %s1086
        %v1088 = vld [vmem:[%s1087] sm:$0x1]
        %1089 = vst.msk [vmem:[%s1078 + $0x2] sm:$0x1] %vm340, %v1088
        %s1090 = sadd.s32 %s336, 147
        %s1091 = sld [smem:[#allocation4 + %s1090]]
        %s1092 = scalar_lea.vmem %s1, %s1091
        %v1093 = vld [vmem:[%s1092] sm:$0x1]
        %1094 = vst.msk [vmem:[%s1078 + $0x3] sm:$0x1] %vm340, %v1093
        %s1095 = sadd.s32 %s336, 148
        %s1096 = sld [smem:[#allocation4 + %s1095]]
        %s1097 = scalar_lea.vmem %s1, %s1096
        %v1098 = vld [vmem:[%s1097] sm:$0x1]
        %1099 = vst.msk [vmem:[%s1078 + $0x4] sm:$0x1] %vm340, %v1098
        %s1100 = sadd.s32 %s336, 149
        %s1101 = sld [smem:[#allocation4 + %s1100]]
        %s1102 = scalar_lea.vmem %s1, %s1101
        %v1103 = vld [vmem:[%s1102] sm:$0x1]
        %1104 = vst.msk [vmem:[%s1078 + $0x5] sm:$0x1] %vm340, %v1103
        %s1105 = sadd.s32 %s336, 150
        %s1106 = sld [smem:[#allocation4 + %s1105]]
        %s1107 = scalar_lea.vmem %s1, %s1106
        %v1108 = vld [vmem:[%s1107] sm:$0x1]
        %1109 = vst.msk [vmem:[%s1078 + $0x6] sm:$0x1] %vm340, %v1108
        %s1110 = sadd.s32 %s336, 151
        %s1111 = sld [smem:[#allocation4 + %s1110]]
        %s1112 = scalar_lea.vmem %s1, %s1111
        %v1113 = vld [vmem:[%s1112] sm:$0x1]
        %1114 = vst.msk [vmem:[%s1078 + $0x7] sm:$0x1] %vm340, %v1113
        %s1115 = sadd.s32 %s336, 152
        %s1116 = sld [smem:[#allocation4 + %s1115]]
        %s1117 = scalar_lea.vmem %s1, %s1116
        %v1118 = vld [vmem:[%s1117] sm:$0x1]
        %s1119 = scalar_lea.vmem [#allocation2], 304
        %1120 = vst.msk [vmem:[%s1119] sm:$0x1] %vm340, %v1118
        %s1121 = sadd.s32 %s336, 153
        %s1122 = sld [smem:[#allocation4 + %s1121]]
        %s1123 = scalar_lea.vmem %s1, %s1122
        %v1124 = vld [vmem:[%s1123] sm:$0x1]
        %1125 = vst.msk [vmem:[%s1119 + $0x1] sm:$0x1] %vm340, %v1124
        %s1126 = sadd.s32 %s336, 154
        %s1127 = sld [smem:[#allocation4 + %s1126]]
        %s1128 = scalar_lea.vmem %s1, %s1127
        %v1129 = vld [vmem:[%s1128] sm:$0x1]
        %1130 = vst.msk [vmem:[%s1119 + $0x2] sm:$0x1] %vm340, %v1129
        %s1131 = sadd.s32 %s336, 155
        %s1132 = sld [smem:[#allocation4 + %s1131]]
        %s1133 = scalar_lea.vmem %s1, %s1132
        %v1134 = vld [vmem:[%s1133] sm:$0x1]
        %1135 = vst.msk [vmem:[%s1119 + $0x3] sm:$0x1] %vm340, %v1134
        %s1136 = sadd.s32 %s336, 156
        %s1137 = sld [smem:[#allocation4 + %s1136]]
        %s1138 = scalar_lea.vmem %s1, %s1137
        %v1139 = vld [vmem:[%s1138] sm:$0x1]
        %1140 = vst.msk [vmem:[%s1119 + $0x4] sm:$0x1] %vm340, %v1139
        %s1141 = sadd.s32 %s336, 157
        %s1142 = sld [smem:[#allocation4 + %s1141]]
        %s1143 = scalar_lea.vmem %s1, %s1142
        %v1144 = vld [vmem:[%s1143] sm:$0x1]
        %1145 = vst.msk [vmem:[%s1119 + $0x5] sm:$0x1] %vm340, %v1144
        %s1146 = sadd.s32 %s336, 158
        %s1147 = sld [smem:[#allocation4 + %s1146]]
        %s1148 = scalar_lea.vmem %s1, %s1147
        %v1149 = vld [vmem:[%s1148] sm:$0x1]
        %1150 = vst.msk [vmem:[%s1119 + $0x6] sm:$0x1] %vm340, %v1149
        %s1151 = sadd.s32 %s336, 159
        %s1152 = sld [smem:[#allocation4 + %s1151]]
        %s1153 = scalar_lea.vmem %s1, %s1152
        %v1154 = vld [vmem:[%s1153] sm:$0x1]
        %1155 = vst.msk [vmem:[%s1119 + $0x7] sm:$0x1] %vm340, %v1154
        %s1156 = sadd.s32 %s336, 160
        %s1157 = sld [smem:[#allocation4 + %s1156]]
        %s1158 = scalar_lea.vmem %s1, %s1157
        %v1159 = vld [vmem:[%s1158] sm:$0x1]
        %s1160 = scalar_lea.vmem [#allocation2], 320
        %1161 = vst.msk [vmem:[%s1160] sm:$0x1] %vm340, %v1159
        %s1162 = sadd.s32 %s336, 161
        %s1163 = sld [smem:[#allocation4 + %s1162]]
        %s1164 = scalar_lea.vmem %s1, %s1163
        %v1165 = vld [vmem:[%s1164] sm:$0x1]
        %1166 = vst.msk [vmem:[%s1160 + $0x1] sm:$0x1] %vm340, %v1165
        %s1167 = sadd.s32 %s336, 162
        %s1168 = sld [smem:[#allocation4 + %s1167]]
        %s1169 = scalar_lea.vmem %s1, %s1168
        %v1170 = vld [vmem:[%s1169] sm:$0x1]
        %1171 = vst.msk [vmem:[%s1160 + $0x2] sm:$0x1] %vm340, %v1170
        %s1172 = sadd.s32 %s336, 163
        %s1173 = sld [smem:[#allocation4 + %s1172]]
        %s1174 = scalar_lea.vmem %s1, %s1173
        %v1175 = vld [vmem:[%s1174] sm:$0x1]
        %1176 = vst.msk [vmem:[%s1160 + $0x3] sm:$0x1] %vm340, %v1175
        %s1177 = sadd.s32 %s336, 164
        %s1178 = sld [smem:[#allocation4 + %s1177]]
        %s1179 = scalar_lea.vmem %s1, %s1178
        %v1180 = vld [vmem:[%s1179] sm:$0x1]
        %1181 = vst.msk [vmem:[%s1160 + $0x4] sm:$0x1] %vm340, %v1180
        %s1182 = sadd.s32 %s336, 165
        %s1183 = sld [smem:[#allocation4 + %s1182]]
        %s1184 = scalar_lea.vmem %s1, %s1183
        %v1185 = vld [vmem:[%s1184] sm:$0x1]
        %1186 = vst.msk [vmem:[%s1160 + $0x5] sm:$0x1] %vm340, %v1185
        %s1187 = sadd.s32 %s336, 166
        %s1188 = sld [smem:[#allocation4 + %s1187]]
        %s1189 = scalar_lea.vmem %s1, %s1188
        %v1190 = vld [vmem:[%s1189] sm:$0x1]
        %1191 = vst.msk [vmem:[%s1160 + $0x6] sm:$0x1] %vm340, %v1190
        %s1192 = sadd.s32 %s336, 167
        %s1193 = sld [smem:[#allocation4 + %s1192]]
        %s1194 = scalar_lea.vmem %s1, %s1193
        %v1195 = vld [vmem:[%s1194] sm:$0x1]
        %1196 = vst.msk [vmem:[%s1160 + $0x7] sm:$0x1] %vm340, %v1195
        %s1197 = sadd.s32 %s336, 168
        %s1198 = sld [smem:[#allocation4 + %s1197]]
        %s1199 = scalar_lea.vmem %s1, %s1198
        %v1200 = vld [vmem:[%s1199] sm:$0x1]
        %s1201 = scalar_lea.vmem [#allocation2], 336
        %1202 = vst.msk [vmem:[%s1201] sm:$0x1] %vm340, %v1200
        %s1203 = sadd.s32 %s336, 169
        %s1204 = sld [smem:[#allocation4 + %s1203]]
        %s1205 = scalar_lea.vmem %s1, %s1204
        %v1206 = vld [vmem:[%s1205] sm:$0x1]
        %1207 = vst.msk [vmem:[%s1201 + $0x1] sm:$0x1] %vm340, %v1206
        %s1208 = sadd.s32 %s336, 170
        %s1209 = sld [smem:[#allocation4 + %s1208]]
        %s1210 = scalar_lea.vmem %s1, %s1209
        %v1211 = vld [vmem:[%s1210] sm:$0x1]
        %1212 = vst.msk [vmem:[%s1201 + $0x2] sm:$0x1] %vm340, %v1211
        %s1213 = sadd.s32 %s336, 171
        %s1214 = sld [smem:[#allocation4 + %s1213]]
        %s1215 = scalar_lea.vmem %s1, %s1214
        %v1216 = vld [vmem:[%s1215] sm:$0x1]
        %1217 = vst.msk [vmem:[%s1201 + $0x3] sm:$0x1] %vm340, %v1216
        %s1218 = sadd.s32 %s336, 172
        %s1219 = sld [smem:[#allocation4 + %s1218]]
        %s1220 = scalar_lea.vmem %s1, %s1219
        %v1221 = vld [vmem:[%s1220] sm:$0x1]
        %1222 = vst.msk [vmem:[%s1201 + $0x4] sm:$0x1] %vm340, %v1221
        %s1223 = sadd.s32 %s336, 173
        %s1224 = sld [smem:[#allocation4 + %s1223]]
        %s1225 = scalar_lea.vmem %s1, %s1224
        %v1226 = vld [vmem:[%s1225] sm:$0x1]
        %1227 = vst.msk [vmem:[%s1201 + $0x5] sm:$0x1] %vm340, %v1226
        %s1228 = sadd.s32 %s336, 174
        %s1229 = sld [smem:[#allocation4 + %s1228]]
        %s1230 = scalar_lea.vmem %s1, %s1229
        %v1231 = vld [vmem:[%s1230] sm:$0x1]
        %1232 = vst.msk [vmem:[%s1201 + $0x6] sm:$0x1] %vm340, %v1231
        %s1233 = sadd.s32 %s336, 175
        %s1234 = sld [smem:[#allocation4 + %s1233]]
        %s1235 = scalar_lea.vmem %s1, %s1234
        %v1236 = vld [vmem:[%s1235] sm:$0x1]
        %1237 = vst.msk [vmem:[%s1201 + $0x7] sm:$0x1] %vm340, %v1236
        %s1238 = sadd.s32 %s336, 176
        %s1239 = sld [smem:[#allocation4 + %s1238]]
        %s1240 = scalar_lea.vmem %s1, %s1239
        %v1241 = vld [vmem:[%s1240] sm:$0x1]
        %s1242 = scalar_lea.vmem [#allocation2], 352
        %1243 = vst.msk [vmem:[%s1242] sm:$0x1] %vm340, %v1241
        %s1244 = sadd.s32 %s336, 177
        %s1245 = sld [smem:[#allocation4 + %s1244]]
        %s1246 = scalar_lea.vmem %s1, %s1245
        %v1247 = vld [vmem:[%s1246] sm:$0x1]
        %1248 = vst.msk [vmem:[%s1242 + $0x1] sm:$0x1] %vm340, %v1247
        %s1249 = sadd.s32 %s336, 178
        %s1250 = sld [smem:[#allocation4 + %s1249]]
        %s1251 = scalar_lea.vmem %s1, %s1250
        %v1252 = vld [vmem:[%s1251] sm:$0x1]
        %1253 = vst.msk [vmem:[%s1242 + $0x2] sm:$0x1] %vm340, %v1252
        %s1254 = sadd.s32 %s336, 179
        %s1255 = sld [smem:[#allocation4 + %s1254]]
        %s1256 = scalar_lea.vmem %s1, %s1255
        %v1257 = vld [vmem:[%s1256] sm:$0x1]
        %1258 = vst.msk [vmem:[%s1242 + $0x3] sm:$0x1] %vm340, %v1257
        %s1259 = sadd.s32 %s336, 180
        %s1260 = sld [smem:[#allocation4 + %s1259]]
        %s1261 = scalar_lea.vmem %s1, %s1260
        %v1262 = vld [vmem:[%s1261] sm:$0x1]
        %1263 = vst.msk [vmem:[%s1242 + $0x4] sm:$0x1] %vm340, %v1262
        %s1264 = sadd.s32 %s336, 181
        %s1265 = sld [smem:[#allocation4 + %s1264]]
        %s1266 = scalar_lea.vmem %s1, %s1265
        %v1267 = vld [vmem:[%s1266] sm:$0x1]
        %1268 = vst.msk [vmem:[%s1242 + $0x5] sm:$0x1] %vm340, %v1267
        %s1269 = sadd.s32 %s336, 182
        %s1270 = sld [smem:[#allocation4 + %s1269]]
        %s1271 = scalar_lea.vmem %s1, %s1270
        %v1272 = vld [vmem:[%s1271] sm:$0x1]
        %1273 = vst.msk [vmem:[%s1242 + $0x6] sm:$0x1] %vm340, %v1272
        %s1274 = sadd.s32 %s336, 183
        %s1275 = sld [smem:[#allocation4 + %s1274]]
        %s1276 = scalar_lea.vmem %s1, %s1275
        %v1277 = vld [vmem:[%s1276] sm:$0x1]
        %1278 = vst.msk [vmem:[%s1242 + $0x7] sm:$0x1] %vm340, %v1277
        %s1279 = sadd.s32 %s336, 184
        %s1280 = sld [smem:[#allocation4 + %s1279]]
        %s1281 = scalar_lea.vmem %s1, %s1280
        %v1282 = vld [vmem:[%s1281] sm:$0x1]
        %s1283 = scalar_lea.vmem [#allocation2], 368
        %1284 = vst.msk [vmem:[%s1283] sm:$0x1] %vm340, %v1282
        %s1285 = sadd.s32 %s336, 185
        %s1286 = sld [smem:[#allocation4 + %s1285]]
        %s1287 = scalar_lea.vmem %s1, %s1286
        %v1288 = vld [vmem:[%s1287] sm:$0x1]
        %1289 = vst.msk [vmem:[%s1283 + $0x1] sm:$0x1] %vm340, %v1288
        %s1290 = sadd.s32 %s336, 186
        %s1291 = sld [smem:[#allocation4 + %s1290]]
        %s1292 = scalar_lea.vmem %s1, %s1291
        %v1293 = vld [vmem:[%s1292] sm:$0x1]
        %1294 = vst.msk [vmem:[%s1283 + $0x2] sm:$0x1] %vm340, %v1293
        %s1295 = sadd.s32 %s336, 187
        %s1296 = sld [smem:[#allocation4 + %s1295]]
        %s1297 = scalar_lea.vmem %s1, %s1296
        %v1298 = vld [vmem:[%s1297] sm:$0x1]
        %1299 = vst.msk [vmem:[%s1283 + $0x3] sm:$0x1] %vm340, %v1298
        %s1300 = sadd.s32 %s336, 188
        %s1301 = sld [smem:[#allocation4 + %s1300]]
        %s1302 = scalar_lea.vmem %s1, %s1301
        %v1303 = vld [vmem:[%s1302] sm:$0x1]
        %1304 = vst.msk [vmem:[%s1283 + $0x4] sm:$0x1] %vm340, %v1303
        %s1305 = sadd.s32 %s336, 189
        %s1306 = sld [smem:[#allocation4 + %s1305]]
        %s1307 = scalar_lea.vmem %s1, %s1306
        %v1308 = vld [vmem:[%s1307] sm:$0x1]
        %1309 = vst.msk [vmem:[%s1283 + $0x5] sm:$0x1] %vm340, %v1308
        %s1310 = sadd.s32 %s336, 190
        %s1311 = sld [smem:[#allocation4 + %s1310]]
        %s1312 = scalar_lea.vmem %s1, %s1311
        %v1313 = vld [vmem:[%s1312] sm:$0x1]
        %1314 = vst.msk [vmem:[%s1283 + $0x6] sm:$0x1] %vm340, %v1313
        %s1315 = sadd.s32 %s336, 191
        %s1316 = sld [smem:[#allocation4 + %s1315]]
        %s1317 = scalar_lea.vmem %s1, %s1316
        %v1318 = vld [vmem:[%s1317] sm:$0x1]
        %1319 = vst.msk [vmem:[%s1283 + $0x7] sm:$0x1] %vm340, %v1318
        %s1320 = sadd.s32 %s336, 192
        %s1321 = sld [smem:[#allocation4 + %s1320]]
        %s1322 = scalar_lea.vmem %s1, %s1321
        %v1323 = vld [vmem:[%s1322] sm:$0x1]
        %s1324 = scalar_lea.vmem [#allocation2], 384
        %1325 = vst.msk [vmem:[%s1324] sm:$0x1] %vm340, %v1323
        %s1326 = sadd.s32 %s336, 193
        %s1327 = sld [smem:[#allocation4 + %s1326]]
        %s1328 = scalar_lea.vmem %s1, %s1327
        %v1329 = vld [vmem:[%s1328] sm:$0x1]
        %1330 = vst.msk [vmem:[%s1324 + $0x1] sm:$0x1] %vm340, %v1329
        %s1331 = sadd.s32 %s336, 194
        %s1332 = sld [smem:[#allocation4 + %s1331]]
        %s1333 = scalar_lea.vmem %s1, %s1332
        %v1334 = vld [vmem:[%s1333] sm:$0x1]
        %1335 = vst.msk [vmem:[%s1324 + $0x2] sm:$0x1] %vm340, %v1334
        %s1336 = sadd.s32 %s336, 195
        %s1337 = sld [smem:[#allocation4 + %s1336]]
        %s1338 = scalar_lea.vmem %s1, %s1337
        %v1339 = vld [vmem:[%s1338] sm:$0x1]
        %1340 = vst.msk [vmem:[%s1324 + $0x3] sm:$0x1] %vm340, %v1339
        %s1341 = sadd.s32 %s336, 196
        %s1342 = sld [smem:[#allocation4 + %s1341]]
        %s1343 = scalar_lea.vmem %s1, %s1342
        %v1344 = vld [vmem:[%s1343] sm:$0x1]
        %1345 = vst.msk [vmem:[%s1324 + $0x4] sm:$0x1] %vm340, %v1344
        %s1346 = sadd.s32 %s336, 197
        %s1347 = sld [smem:[#allocation4 + %s1346]]
        %s1348 = scalar_lea.vmem %s1, %s1347
        %v1349 = vld [vmem:[%s1348] sm:$0x1]
        %1350 = vst.msk [vmem:[%s1324 + $0x5] sm:$0x1] %vm340, %v1349
        %s1351 = sadd.s32 %s336, 198
        %s1352 = sld [smem:[#allocation4 + %s1351]]
        %s1353 = scalar_lea.vmem %s1, %s1352
        %v1354 = vld [vmem:[%s1353] sm:$0x1]
        %1355 = vst.msk [vmem:[%s1324 + $0x6] sm:$0x1] %vm340, %v1354
        %s1356 = sadd.s32 %s336, 199
        %s1357 = sld [smem:[#allocation4 + %s1356]]
        %s1358 = scalar_lea.vmem %s1, %s1357
        %v1359 = vld [vmem:[%s1358] sm:$0x1]
        %1360 = vst.msk [vmem:[%s1324 + $0x7] sm:$0x1] %vm340, %v1359
        %s1361 = sadd.s32 %s336, 200
        %s1362 = sld [smem:[#allocation4 + %s1361]]
        %s1363 = scalar_lea.vmem %s1, %s1362
        %v1364 = vld [vmem:[%s1363] sm:$0x1]
        %s1365 = scalar_lea.vmem [#allocation2], 400
        %1366 = vst.msk [vmem:[%s1365] sm:$0x1] %vm340, %v1364
        %s1367 = sadd.s32 %s336, 201
        %s1368 = sld [smem:[#allocation4 + %s1367]]
        %s1369 = scalar_lea.vmem %s1, %s1368
        %v1370 = vld [vmem:[%s1369] sm:$0x1]
        %1371 = vst.msk [vmem:[%s1365 + $0x1] sm:$0x1] %vm340, %v1370
        %s1372 = sadd.s32 %s336, 202
        %s1373 = sld [smem:[#allocation4 + %s1372]]
        %s1374 = scalar_lea.vmem %s1, %s1373
        %v1375 = vld [vmem:[%s1374] sm:$0x1]
        %1376 = vst.msk [vmem:[%s1365 + $0x2] sm:$0x1] %vm340, %v1375
        %s1377 = sadd.s32 %s336, 203
        %s1378 = sld [smem:[#allocation4 + %s1377]]
        %s1379 = scalar_lea.vmem %s1, %s1378
        %v1380 = vld [vmem:[%s1379] sm:$0x1]
        %1381 = vst.msk [vmem:[%s1365 + $0x3] sm:$0x1] %vm340, %v1380
        %s1382 = sadd.s32 %s336, 204
        %s1383 = sld [smem:[#allocation4 + %s1382]]
        %s1384 = scalar_lea.vmem %s1, %s1383
        %v1385 = vld [vmem:[%s1384] sm:$0x1]
        %1386 = vst.msk [vmem:[%s1365 + $0x4] sm:$0x1] %vm340, %v1385
        %s1387 = sadd.s32 %s336, 205
        %s1388 = sld [smem:[#allocation4 + %s1387]]
        %s1389 = scalar_lea.vmem %s1, %s1388
        %v1390 = vld [vmem:[%s1389] sm:$0x1]
        %1391 = vst.msk [vmem:[%s1365 + $0x5] sm:$0x1] %vm340, %v1390
        %s1392 = sadd.s32 %s336, 206
        %s1393 = sld [smem:[#allocation4 + %s1392]]
        %s1394 = scalar_lea.vmem %s1, %s1393
        %v1395 = vld [vmem:[%s1394] sm:$0x1]
        %1396 = vst.msk [vmem:[%s1365 + $0x6] sm:$0x1] %vm340, %v1395
        %s1397 = sadd.s32 %s336, 207
        %s1398 = sld [smem:[#allocation4 + %s1397]]
        %s1399 = scalar_lea.vmem %s1, %s1398
        %v1400 = vld [vmem:[%s1399] sm:$0x1]
        %1401 = vst.msk [vmem:[%s1365 + $0x7] sm:$0x1] %vm340, %v1400
        %s1402 = sadd.s32 %s336, 208
        %s1403 = sld [smem:[#allocation4 + %s1402]]
        %s1404 = scalar_lea.vmem %s1, %s1403
        %v1405 = vld [vmem:[%s1404] sm:$0x1]
        %s1406 = scalar_lea.vmem [#allocation2], 416
        %1407 = vst.msk [vmem:[%s1406] sm:$0x1] %vm340, %v1405
        %s1408 = sadd.s32 %s336, 209
        %s1409 = sld [smem:[#allocation4 + %s1408]]
        %s1410 = scalar_lea.vmem %s1, %s1409
        %v1411 = vld [vmem:[%s1410] sm:$0x1]
        %1412 = vst.msk [vmem:[%s1406 + $0x1] sm:$0x1] %vm340, %v1411
        %s1413 = sadd.s32 %s336, 210
        %s1414 = sld [smem:[#allocation4 + %s1413]]
        %s1415 = scalar_lea.vmem %s1, %s1414
        %v1416 = vld [vmem:[%s1415] sm:$0x1]
        %1417 = vst.msk [vmem:[%s1406 + $0x2] sm:$0x1] %vm340, %v1416
        %s1418 = sadd.s32 %s336, 211
        %s1419 = sld [smem:[#allocation4 + %s1418]]
        %s1420 = scalar_lea.vmem %s1, %s1419
        %v1421 = vld [vmem:[%s1420] sm:$0x1]
        %1422 = vst.msk [vmem:[%s1406 + $0x3] sm:$0x1] %vm340, %v1421
        %s1423 = sadd.s32 %s336, 212
        %s1424 = sld [smem:[#allocation4 + %s1423]]
        %s1425 = scalar_lea.vmem %s1, %s1424
        %v1426 = vld [vmem:[%s1425] sm:$0x1]
        %1427 = vst.msk [vmem:[%s1406 + $0x4] sm:$0x1] %vm340, %v1426
        %s1428 = sadd.s32 %s336, 213
        %s1429 = sld [smem:[#allocation4 + %s1428]]
        %s1430 = scalar_lea.vmem %s1, %s1429
        %v1431 = vld [vmem:[%s1430] sm:$0x1]
        %1432 = vst.msk [vmem:[%s1406 + $0x5] sm:$0x1] %vm340, %v1431
        %s1433 = sadd.s32 %s336, 214
        %s1434 = sld [smem:[#allocation4 + %s1433]]
        %s1435 = scalar_lea.vmem %s1, %s1434
        %v1436 = vld [vmem:[%s1435] sm:$0x1]
        %1437 = vst.msk [vmem:[%s1406 + $0x6] sm:$0x1] %vm340, %v1436
        %s1438 = sadd.s32 %s336, 215
        %s1439 = sld [smem:[#allocation4 + %s1438]]
        %s1440 = scalar_lea.vmem %s1, %s1439
        %v1441 = vld [vmem:[%s1440] sm:$0x1]
        %1442 = vst.msk [vmem:[%s1406 + $0x7] sm:$0x1] %vm340, %v1441
        %s1443 = sadd.s32 %s336, 216
        %s1444 = sld [smem:[#allocation4 + %s1443]]
        %s1445 = scalar_lea.vmem %s1, %s1444
        %v1446 = vld [vmem:[%s1445] sm:$0x1]
        %s1447 = scalar_lea.vmem [#allocation2], 432
        %1448 = vst.msk [vmem:[%s1447] sm:$0x1] %vm340, %v1446
        %s1449 = sadd.s32 %s336, 217
        %s1450 = sld [smem:[#allocation4 + %s1449]]
        %s1451 = scalar_lea.vmem %s1, %s1450
        %v1452 = vld [vmem:[%s1451] sm:$0x1]
        %1453 = vst.msk [vmem:[%s1447 + $0x1] sm:$0x1] %vm340, %v1452
        %s1454 = sadd.s32 %s336, 218
        %s1455 = sld [smem:[#allocation4 + %s1454]]
        %s1456 = scalar_lea.vmem %s1, %s1455
        %v1457 = vld [vmem:[%s1456] sm:$0x1]
        %1458 = vst.msk [vmem:[%s1447 + $0x2] sm:$0x1] %vm340, %v1457
        %s1459 = sadd.s32 %s336, 219
        %s1460 = sld [smem:[#allocation4 + %s1459]]
        %s1461 = scalar_lea.vmem %s1, %s1460
        %v1462 = vld [vmem:[%s1461] sm:$0x1]
        %1463 = vst.msk [vmem:[%s1447 + $0x3] sm:$0x1] %vm340, %v1462
        %s1464 = sadd.s32 %s336, 220
        %s1465 = sld [smem:[#allocation4 + %s1464]]
        %s1466 = scalar_lea.vmem %s1, %s1465
        %v1467 = vld [vmem:[%s1466] sm:$0x1]
        %1468 = vst.msk [vmem:[%s1447 + $0x4] sm:$0x1] %vm340, %v1467
        %s1469 = sadd.s32 %s336, 221
        %s1470 = sld [smem:[#allocation4 + %s1469]]
        %s1471 = scalar_lea.vmem %s1, %s1470
        %v1472 = vld [vmem:[%s1471] sm:$0x1]
        %1473 = vst.msk [vmem:[%s1447 + $0x5] sm:$0x1] %vm340, %v1472
        %s1474 = sadd.s32 %s336, 222
        %s1475 = sld [smem:[#allocation4 + %s1474]]
        %s1476 = scalar_lea.vmem %s1, %s1475
        %v1477 = vld [vmem:[%s1476] sm:$0x1]
        %1478 = vst.msk [vmem:[%s1447 + $0x6] sm:$0x1] %vm340, %v1477
        %s1479 = sadd.s32 %s336, 223
        %s1480 = sld [smem:[#allocation4 + %s1479]]
        %s1481 = scalar_lea.vmem %s1, %s1480
        %v1482 = vld [vmem:[%s1481] sm:$0x1]
        %1483 = vst.msk [vmem:[%s1447 + $0x7] sm:$0x1] %vm340, %v1482
        %s1484 = sadd.s32 %s336, 224
        %s1485 = sld [smem:[#allocation4 + %s1484]]
        %s1486 = scalar_lea.vmem %s1, %s1485
        %v1487 = vld [vmem:[%s1486] sm:$0x1]
        %s1488 = scalar_lea.vmem [#allocation2], 448
        %1489 = vst.msk [vmem:[%s1488] sm:$0x1] %vm340, %v1487
        %s1490 = sadd.s32 %s336, 225
        %s1491 = sld [smem:[#allocation4 + %s1490]]
        %s1492 = scalar_lea.vmem %s1, %s1491
        %v1493 = vld [vmem:[%s1492] sm:$0x1]
        %1494 = vst.msk [vmem:[%s1488 + $0x1] sm:$0x1] %vm340, %v1493
        %s1495 = sadd.s32 %s336, 226
        %s1496 = sld [smem:[#allocation4 + %s1495]]
        %s1497 = scalar_lea.vmem %s1, %s1496
        %v1498 = vld [vmem:[%s1497] sm:$0x1]
        %1499 = vst.msk [vmem:[%s1488 + $0x2] sm:$0x1] %vm340, %v1498
        %s1500 = sadd.s32 %s336, 227
        %s1501 = sld [smem:[#allocation4 + %s1500]]
        %s1502 = scalar_lea.vmem %s1, %s1501
        %v1503 = vld [vmem:[%s1502] sm:$0x1]
        %1504 = vst.msk [vmem:[%s1488 + $0x3] sm:$0x1] %vm340, %v1503
        %s1505 = sadd.s32 %s336, 228
        %s1506 = sld [smem:[#allocation4 + %s1505]]
        %s1507 = scalar_lea.vmem %s1, %s1506
        %v1508 = vld [vmem:[%s1507] sm:$0x1]
        %1509 = vst.msk [vmem:[%s1488 + $0x4] sm:$0x1] %vm340, %v1508
        %s1510 = sadd.s32 %s336, 229
        %s1511 = sld [smem:[#allocation4 + %s1510]]
        %s1512 = scalar_lea.vmem %s1, %s1511
        %v1513 = vld [vmem:[%s1512] sm:$0x1]
        %1514 = vst.msk [vmem:[%s1488 + $0x5] sm:$0x1] %vm340, %v1513
        %s1515 = sadd.s32 %s336, 230
        %s1516 = sld [smem:[#allocation4 + %s1515]]
        %s1517 = scalar_lea.vmem %s1, %s1516
        %v1518 = vld [vmem:[%s1517] sm:$0x1]
        %1519 = vst.msk [vmem:[%s1488 + $0x6] sm:$0x1] %vm340, %v1518
        %s1520 = sadd.s32 %s336, 231
        %s1521 = sld [smem:[#allocation4 + %s1520]]
        %s1522 = scalar_lea.vmem %s1, %s1521
        %v1523 = vld [vmem:[%s1522] sm:$0x1]
        %1524 = vst.msk [vmem:[%s1488 + $0x7] sm:$0x1] %vm340, %v1523
        %s1525 = sadd.s32 %s336, 232
        %s1526 = sld [smem:[#allocation4 + %s1525]]
        %s1527 = scalar_lea.vmem %s1, %s1526
        %v1528 = vld [vmem:[%s1527] sm:$0x1]
        %s1529 = scalar_lea.vmem [#allocation2], 464
        %1530 = vst.msk [vmem:[%s1529] sm:$0x1] %vm340, %v1528
        %s1531 = sadd.s32 %s336, 233
        %s1532 = sld [smem:[#allocation4 + %s1531]]
        %s1533 = scalar_lea.vmem %s1, %s1532
        %v1534 = vld [vmem:[%s1533] sm:$0x1]
        %1535 = vst.msk [vmem:[%s1529 + $0x1] sm:$0x1] %vm340, %v1534
        %s1536 = sadd.s32 %s336, 234
        %s1537 = sld [smem:[#allocation4 + %s1536]]
        %s1538 = scalar_lea.vmem %s1, %s1537
        %v1539 = vld [vmem:[%s1538] sm:$0x1]
        %1540 = vst.msk [vmem:[%s1529 + $0x2] sm:$0x1] %vm340, %v1539
        %s1541 = sadd.s32 %s336, 235
        %s1542 = sld [smem:[#allocation4 + %s1541]]
        %s1543 = scalar_lea.vmem %s1, %s1542
        %v1544 = vld [vmem:[%s1543] sm:$0x1]
        %1545 = vst.msk [vmem:[%s1529 + $0x3] sm:$0x1] %vm340, %v1544
        %s1546 = sadd.s32 %s336, 236
        %s1547 = sld [smem:[#allocation4 + %s1546]]
        %s1548 = scalar_lea.vmem %s1, %s1547
        %v1549 = vld [vmem:[%s1548] sm:$0x1]
        %1550 = vst.msk [vmem:[%s1529 + $0x4] sm:$0x1] %vm340, %v1549
        %s1551 = sadd.s32 %s336, 237
        %s1552 = sld [smem:[#allocation4 + %s1551]]
        %s1553 = scalar_lea.vmem %s1, %s1552
        %v1554 = vld [vmem:[%s1553] sm:$0x1]
        %1555 = vst.msk [vmem:[%s1529 + $0x5] sm:$0x1] %vm340, %v1554
        %s1556 = sadd.s32 %s336, 238
        %s1557 = sld [smem:[#allocation4 + %s1556]]
        %s1558 = scalar_lea.vmem %s1, %s1557
        %v1559 = vld [vmem:[%s1558] sm:$0x1]
        %1560 = vst.msk [vmem:[%s1529 + $0x6] sm:$0x1] %vm340, %v1559
        %s1561 = sadd.s32 %s336, 239
        %s1562 = sld [smem:[#allocation4 + %s1561]]
        %s1563 = scalar_lea.vmem %s1, %s1562
        %v1564 = vld [vmem:[%s1563] sm:$0x1]
        %1565 = vst.msk [vmem:[%s1529 + $0x7] sm:$0x1] %vm340, %v1564
        %s1566 = sadd.s32 %s336, 240
        %s1567 = sld [smem:[#allocation4 + %s1566]]
        %s1568 = scalar_lea.vmem %s1, %s1567
        %v1569 = vld [vmem:[%s1568] sm:$0x1]
        %s1570 = scalar_lea.vmem [#allocation2], 480
        %1571 = vst.msk [vmem:[%s1570] sm:$0x1] %vm340, %v1569
        %s1572 = sadd.s32 %s336, 241
        %s1573 = sld [smem:[#allocation4 + %s1572]]
        %s1574 = scalar_lea.vmem %s1, %s1573
        %v1575 = vld [vmem:[%s1574] sm:$0x1]
        %1576 = vst.msk [vmem:[%s1570 + $0x1] sm:$0x1] %vm340, %v1575
        %s1577 = sadd.s32 %s336, 242
        %s1578 = sld [smem:[#allocation4 + %s1577]]
        %s1579 = scalar_lea.vmem %s1, %s1578
        %v1580 = vld [vmem:[%s1579] sm:$0x1]
        %1581 = vst.msk [vmem:[%s1570 + $0x2] sm:$0x1] %vm340, %v1580
        %s1582 = sadd.s32 %s336, 243
        %s1583 = sld [smem:[#allocation4 + %s1582]]
        %s1584 = scalar_lea.vmem %s1, %s1583
        %v1585 = vld [vmem:[%s1584] sm:$0x1]
        %1586 = vst.msk [vmem:[%s1570 + $0x3] sm:$0x1] %vm340, %v1585
        %s1587 = sadd.s32 %s336, 244
        %s1588 = sld [smem:[#allocation4 + %s1587]]
        %s1589 = scalar_lea.vmem %s1, %s1588
        %v1590 = vld [vmem:[%s1589] sm:$0x1]
        %1591 = vst.msk [vmem:[%s1570 + $0x4] sm:$0x1] %vm340, %v1590
        %s1592 = sadd.s32 %s336, 245
        %s1593 = sld [smem:[#allocation4 + %s1592]]
        %s1594 = scalar_lea.vmem %s1, %s1593
        %v1595 = vld [vmem:[%s1594] sm:$0x1]
        %1596 = vst.msk [vmem:[%s1570 + $0x5] sm:$0x1] %vm340, %v1595
        %s1597 = sadd.s32 %s336, 246
        %s1598 = sld [smem:[#allocation4 + %s1597]]
        %s1599 = scalar_lea.vmem %s1, %s1598
        %v1600 = vld [vmem:[%s1599] sm:$0x1]
        %1601 = vst.msk [vmem:[%s1570 + $0x6] sm:$0x1] %vm340, %v1600
        %s1602 = sadd.s32 %s336, 247
        %s1603 = sld [smem:[#allocation4 + %s1602]]
        %s1604 = scalar_lea.vmem %s1, %s1603
        %v1605 = vld [vmem:[%s1604] sm:$0x1]
        %1606 = vst.msk [vmem:[%s1570 + $0x7] sm:$0x1] %vm340, %v1605
        %s1607 = sadd.s32 %s336, 248
        %s1608 = sld [smem:[#allocation4 + %s1607]]
        %s1609 = scalar_lea.vmem %s1, %s1608
        %v1610 = vld [vmem:[%s1609] sm:$0x1]
        %s1611 = scalar_lea.vmem [#allocation2], 496
        %1612 = vst.msk [vmem:[%s1611] sm:$0x1] %vm340, %v1610
        %s1613 = sadd.s32 %s336, 249
        %s1614 = sld [smem:[#allocation4 + %s1613]]
        %s1615 = scalar_lea.vmem %s1, %s1614
        %v1616 = vld [vmem:[%s1615] sm:$0x1]
        %1617 = vst.msk [vmem:[%s1611 + $0x1] sm:$0x1] %vm340, %v1616
        %s1618 = sadd.s32 %s336, 250
        %s1619 = sld [smem:[#allocation4 + %s1618]]
        %s1620 = scalar_lea.vmem %s1, %s1619
        %v1621 = vld [vmem:[%s1620] sm:$0x1]
        %1622 = vst.msk [vmem:[%s1611 + $0x2] sm:$0x1] %vm340, %v1621
        %s1623 = sadd.s32 %s336, 251
        %s1624 = sld [smem:[#allocation4 + %s1623]]
        %s1625 = scalar_lea.vmem %s1, %s1624
        %v1626 = vld [vmem:[%s1625] sm:$0x1]
        %1627 = vst.msk [vmem:[%s1611 + $0x3] sm:$0x1] %vm340, %v1626
        %s1628 = sadd.s32 %s336, 252
        %s1629 = sld [smem:[#allocation4 + %s1628]]
        %s1630 = scalar_lea.vmem %s1, %s1629
        %v1631 = vld [vmem:[%s1630] sm:$0x1]
        %1632 = vst.msk [vmem:[%s1611 + $0x4] sm:$0x1] %vm340, %v1631
        %s1633 = sadd.s32 %s336, 253
        %s1634 = sld [smem:[#allocation4 + %s1633]]
        %s1635 = scalar_lea.vmem %s1, %s1634
        %v1636 = vld [vmem:[%s1635] sm:$0x1]
        %1637 = vst.msk [vmem:[%s1611 + $0x5] sm:$0x1] %vm340, %v1636
        %s1638 = sadd.s32 %s336, 254
        %s1639 = sld [smem:[#allocation4 + %s1638]]
        %s1640 = scalar_lea.vmem %s1, %s1639
        %v1641 = vld [vmem:[%s1640] sm:$0x1]
        %1642 = vst.msk [vmem:[%s1611 + $0x6] sm:$0x1] %vm340, %v1641
        %s1643 = sadd.s32 %s336, 255
        %s1644 = sld [smem:[#allocation4 + %s1643]]
        %s1645 = scalar_lea.vmem %s1, %s1644
        %v1646 = vld [vmem:[%s1645] sm:$0x1]
        %1647 = vst.msk [vmem:[%s1611 + $0x7] sm:$0x1] %vm340, %v1646
        %v1648 = vld [vmem:[#allocation2] sm:$0xff]
        %v1649 = vld [vmem:[#allocation2 + $0x8] sm:$0x7]
        %v1650 = vld [vmem:[#allocation2 + $0x10] sm:$0xff]
        %v1651 = vld [vmem:[#allocation2 + $0x18] sm:$0x7]
        %v1652 = vld [vmem:[#allocation2 + $0x20] sm:$0xff]
        %v1653 = vld [vmem:[#allocation2 + $0x28] sm:$0x7]
        %v1654 = vld [vmem:[#allocation2 + $0x30] sm:$0xff]
        %v1655 = vld [vmem:[#allocation2 + $0x38] sm:$0x7]
        %v1656 = vld [vmem:[#allocation2 + $0x40] sm:$0xff]
        %v1657 = vld [vmem:[#allocation2 + $0x48] sm:$0x7]
        %v1658 = vld [vmem:[#allocation2 + $0x50] sm:$0xff]
        %v1659 = vld [vmem:[#allocation2 + $0x58] sm:$0x7]
        %v1660 = vld [vmem:[#allocation2 + $0x60] sm:$0xff]
        %v1661 = vld [vmem:[#allocation2 + $0x68] sm:$0x7]
        %v1662 = vld [vmem:[#allocation2 + $0x70] sm:$0xff]
        %v1663 = vld [vmem:[#allocation2 + $0x78] sm:$0x7]
        %v1664 = vld [vmem:[#allocation2 + $0x80] sm:$0xff]
        %v1665 = vld [vmem:[#allocation2 + $0x88] sm:$0x7]
        %v1666 = vld [vmem:[#allocation2 + $0x90] sm:$0xff]
        %v1667 = vld [vmem:[#allocation2 + $0x98] sm:$0x7]
        %v1668 = vld [vmem:[#allocation2 + $0xa0] sm:$0xff]
        %v1669 = vld [vmem:[#allocation2 + $0xa8] sm:$0x7]
        %v1670 = vld [vmem:[#allocation2 + $0xb0] sm:$0xff]
        %v1671 = vld [vmem:[#allocation2 + $0xb8] sm:$0x7]
        %v1672 = vld [vmem:[#allocation2 + $0xc0] sm:$0xff]
        %v1673 = vld [vmem:[#allocation2 + $0xc8] sm:$0x7]
        %v1674 = vld [vmem:[#allocation2 + $0xd0] sm:$0xff]
        %v1675 = vld [vmem:[#allocation2 + $0xd8] sm:$0x7]
        %v1676 = vld [vmem:[#allocation2 + $0xe0] sm:$0xff]
        %v1677 = vld [vmem:[#allocation2 + $0xe8] sm:$0x7]
        %v1678 = vld [vmem:[#allocation2 + $0xf0] sm:$0xff]
        %v1679 = vld [vmem:[#allocation2 + $0xf8] sm:$0x7]
        %v1680 = vld [vmem:[#allocation2 + $0x100] sm:$0xff]
        %v1681 = vld [vmem:[#allocation2 + $0x108] sm:$0x7]
        %v1682 = vld [vmem:[#allocation2 + $0x110] sm:$0xff]
        %v1683 = vld [vmem:[#allocation2 + $0x118] sm:$0x7]
        %v1684 = vld [vmem:[#allocation2 + $0x120] sm:$0xff]
        %v1685 = vld [vmem:[#allocation2 + $0x128] sm:$0x7]
        %v1686 = vld [vmem:[#allocation2 + $0x130] sm:$0xff]
        %v1687 = vld [vmem:[#allocation2 + $0x138] sm:$0x7]
        %v1688 = vld [vmem:[#allocation2 + $0x140] sm:$0xff]
        %v1689 = vld [vmem:[#allocation2 + $0x148] sm:$0x7]
        %v1690 = vld [vmem:[#allocation2 + $0x150] sm:$0xff]
        %v1691 = vld [vmem:[#allocation2 + $0x158] sm:$0x7]
        %v1692 = vld [vmem:[#allocation2 + $0x160] sm:$0xff]
        %v1693 = vld [vmem:[#allocation2 + $0x168] sm:$0x7]
        %v1694 = vld [vmem:[#allocation2 + $0x170] sm:$0xff]
        %v1695 = vld [vmem:[#allocation2 + $0x178] sm:$0x7]
        %v1696 = vld [vmem:[#allocation2 + $0x180] sm:$0xff]
        %v1697 = vld [vmem:[#allocation2 + $0x188] sm:$0x7]
        %v1698 = vld [vmem:[#allocation2 + $0x190] sm:$0xff]
        %v1699 = vld [vmem:[#allocation2 + $0x198] sm:$0x7]
        %v1700 = vld [vmem:[#allocation2 + $0x1a0] sm:$0xff]
        %v1701 = vld [vmem:[#allocation2 + $0x1a8] sm:$0x7]
        %v1702 = vld [vmem:[#allocation2 + $0x1b0] sm:$0xff]
        %v1703 = vld [vmem:[#allocation2 + $0x1b8] sm:$0x7]
        %v1704 = vld [vmem:[#allocation2 + $0x1c0] sm:$0xff]
        %v1705 = vld [vmem:[#allocation2 + $0x1c8] sm:$0x7]
        %v1706 = vld [vmem:[#allocation2 + $0x1d0] sm:$0xff]
        %v1707 = vld [vmem:[#allocation2 + $0x1d8] sm:$0x7]
        %v1708 = vld [vmem:[#allocation2 + $0x1e0] sm:$0xff]
        %v1709 = vld [vmem:[#allocation2 + $0x1e8] sm:$0x7]
        %v1710 = vld [vmem:[#allocation2 + $0x1f0] sm:$0xff]
        %v1711 = vld [vmem:[#allocation2 + $0x1f8] sm:$0x7]
        %v1712 = vpack.c.bf16 %v1648, %v1648
        %v1713 = vpack.c.bf16 %v1649, %v1649
        %v1714 = vpack.c.bf16 %v1650, %v1650
        %v1715 = vpack.c.bf16 %v1651, %v1651
        %v1716 = vpack.c.bf16 %v1652, %v1652
        %v1717 = vpack.c.bf16 %v1653, %v1653
        %v1718 = vpack.c.bf16 %v1654, %v1654
        %v1719 = vpack.c.bf16 %v1655, %v1655
        %v1720 = vpack.c.bf16 %v1656, %v1656
        %v1721 = vpack.c.bf16 %v1657, %v1657
        %v1722 = vpack.c.bf16 %v1658, %v1658
        %v1723 = vpack.c.bf16 %v1659, %v1659
        %v1724 = vpack.c.bf16 %v1660, %v1660
        %v1725 = vpack.c.bf16 %v1661, %v1661
        %v1726 = vpack.c.bf16 %v1662, %v1662
        %v1727 = vpack.c.bf16 %v1663, %v1663
        %v1728 = vpack.c.bf16 %v1664, %v1664
        %v1729 = vpack.c.bf16 %v1665, %v1665
        %v1730 = vpack.c.bf16 %v1666, %v1666
        %v1731 = vpack.c.bf16 %v1667, %v1667
        %v1732 = vpack.c.bf16 %v1668, %v1668
        %v1733 = vpack.c.bf16 %v1669, %v1669
        %v1734 = vpack.c.bf16 %v1670, %v1670
        %v1735 = vpack.c.bf16 %v1671, %v1671
        %v1736 = vpack.c.bf16 %v1672, %v1672
        %v1737 = vpack.c.bf16 %v1673, %v1673
        %v1738 = vpack.c.bf16 %v1674, %v1674
        %v1739 = vpack.c.bf16 %v1675, %v1675
        %v1740 = vpack.c.bf16 %v1676, %v1676
        %v1741 = vpack.c.bf16 %v1677, %v1677
        %v1742 = vpack.c.bf16 %v1678, %v1678
        %v1743 = vpack.c.bf16 %v1679, %v1679
        %v1744 = vpack.c.bf16 %v1680, %v1680
        %v1745 = vpack.c.bf16 %v1681, %v1681
        %v1746 = vpack.c.bf16 %v1682, %v1682
        %v1747 = vpack.c.bf16 %v1683, %v1683
        %v1748 = vpack.c.bf16 %v1684, %v1684
        %v1749 = vpack.c.bf16 %v1685, %v1685
        %v1750 = vpack.c.bf16 %v1686, %v1686
        %v1751 = vpack.c.bf16 %v1687, %v1687
        %v1752 = vpack.c.bf16 %v1688, %v1688
        %v1753 = vpack.c.bf16 %v1689, %v1689
        %v1754 = vpack.c.bf16 %v1690, %v1690
        %v1755 = vpack.c.bf16 %v1691, %v1691
        %v1756 = vpack.c.bf16 %v1692, %v1692
        %v1757 = vpack.c.bf16 %v1693, %v1693
        %v1758 = vpack.c.bf16 %v1694, %v1694
        %v1759 = vpack.c.bf16 %v1695, %v1695
        %v1760 = vpack.c.bf16 %v1696, %v1696
        %v1761 = vpack.c.bf16 %v1697, %v1697
        %v1762 = vpack.c.bf16 %v1698, %v1698
        %v1763 = vpack.c.bf16 %v1699, %v1699
        %v1764 = vpack.c.bf16 %v1700, %v1700
        %v1765 = vpack.c.bf16 %v1701, %v1701
        %v1766 = vpack.c.bf16 %v1702, %v1702
        %v1767 = vpack.c.bf16 %v1703, %v1703
        %v1768 = vpack.c.bf16 %v1704, %v1704
        %v1769 = vpack.c.bf16 %v1705, %v1705
        %v1770 = vpack.c.bf16 %v1706, %v1706
        %v1771 = vpack.c.bf16 %v1707, %v1707
        %v1772 = vpack.c.bf16 %v1708, %v1708
        %v1773 = vpack.c.bf16 %v1709, %v1709
        %v1774 = vpack.c.bf16 %v1710, %v1710
        %v1775 = vpack.c.bf16 %v1711, %v1711
        %v1840 = vunpack.c.l.b16 %v1712
        %v1841 = vunpack.c.l.b16 %v1713
        %v1842 = vunpack.c.l.b16 %v1714
        %v1843 = vunpack.c.l.b16 %v1715
        %v1844 = vunpack.c.l.b16 %v1716
        %v1845 = vunpack.c.l.b16 %v1717
        %v1846 = vunpack.c.l.b16 %v1718
        %v1847 = vunpack.c.l.b16 %v1719
        %v1848 = vunpack.c.l.b16 %v1720
        %v1849 = vunpack.c.l.b16 %v1721
        %v1850 = vunpack.c.l.b16 %v1722
        %v1851 = vunpack.c.l.b16 %v1723
        %v1852 = vunpack.c.l.b16 %v1724
        %v1853 = vunpack.c.l.b16 %v1725
        %v1854 = vunpack.c.l.b16 %v1726
        %v1855 = vunpack.c.l.b16 %v1727
        %v1856 = vunpack.c.l.b16 %v1728
        %v1857 = vunpack.c.l.b16 %v1729
        %v1858 = vunpack.c.l.b16 %v1730
        %v1859 = vunpack.c.l.b16 %v1731
        %v1860 = vunpack.c.l.b16 %v1732
        %v1861 = vunpack.c.l.b16 %v1733
        %v1862 = vunpack.c.l.b16 %v1734
        %v1863 = vunpack.c.l.b16 %v1735
        %v1864 = vunpack.c.l.b16 %v1736
        %v1865 = vunpack.c.l.b16 %v1737
        %v1866 = vunpack.c.l.b16 %v1738
        %v1867 = vunpack.c.l.b16 %v1739
        %v1868 = vunpack.c.l.b16 %v1740
        %v1869 = vunpack.c.l.b16 %v1741
        %v1870 = vunpack.c.l.b16 %v1742
        %v1871 = vunpack.c.l.b16 %v1743
        %v1872 = vunpack.c.l.b16 %v1744
        %v1873 = vunpack.c.l.b16 %v1745
        %v1874 = vunpack.c.l.b16 %v1746
        %v1875 = vunpack.c.l.b16 %v1747
        %v1876 = vunpack.c.l.b16 %v1748
        %v1877 = vunpack.c.l.b16 %v1749
        %v1878 = vunpack.c.l.b16 %v1750
        %v1879 = vunpack.c.l.b16 %v1751
        %v1880 = vunpack.c.l.b16 %v1752
        %v1881 = vunpack.c.l.b16 %v1753
        %v1882 = vunpack.c.l.b16 %v1754
        %v1883 = vunpack.c.l.b16 %v1755
        %v1884 = vunpack.c.l.b16 %v1756
        %v1885 = vunpack.c.l.b16 %v1757
        %v1886 = vunpack.c.l.b16 %v1758
        %v1887 = vunpack.c.l.b16 %v1759
        %v1888 = vunpack.c.l.b16 %v1760
        %v1889 = vunpack.c.l.b16 %v1761
        %v1890 = vunpack.c.l.b16 %v1762
        %v1891 = vunpack.c.l.b16 %v1763
        %v1892 = vunpack.c.l.b16 %v1764
        %v1893 = vunpack.c.l.b16 %v1765
        %v1894 = vunpack.c.l.b16 %v1766
        %v1895 = vunpack.c.l.b16 %v1767
        %v1896 = vunpack.c.l.b16 %v1768
        %v1897 = vunpack.c.l.b16 %v1769
        %v1898 = vunpack.c.l.b16 %v1770
        %v1899 = vunpack.c.l.b16 %v1771
        %v1900 = vunpack.c.l.b16 %v1772
        %v1901 = vunpack.c.l.b16 %v1773
        %v1902 = vunpack.c.l.b16 %v1774
        %v1903 = vunpack.c.l.b16 %v1775
        %v1904 = vpack.c.b16 %v1841, %v1840
        %v1905 = vpack.c.b16 %v1843, %v1842
        %v1906 = vpack.c.b16 %v1845, %v1844
        %v1907 = vpack.c.b16 %v1847, %v1846
        %v1908 = vpack.c.b16 %v1849, %v1848
        %v1909 = vpack.c.b16 %v1851, %v1850
        %v1910 = vpack.c.b16 %v1853, %v1852
        %v1911 = vpack.c.b16 %v1855, %v1854
        %v1912 = vpack.c.b16 %v1857, %v1856
        %v1913 = vpack.c.b16 %v1859, %v1858
        %v1914 = vpack.c.b16 %v1861, %v1860
        %v1915 = vpack.c.b16 %v1863, %v1862
        %v1916 = vpack.c.b16 %v1865, %v1864
        %v1917 = vpack.c.b16 %v1867, %v1866
        %v1918 = vpack.c.b16 %v1869, %v1868
        %v1919 = vpack.c.b16 %v1871, %v1870
        %v1920 = vpack.c.b16 %v1873, %v1872
        %v1921 = vpack.c.b16 %v1875, %v1874
        %v1922 = vpack.c.b16 %v1877, %v1876
        %v1923 = vpack.c.b16 %v1879, %v1878
        %v1924 = vpack.c.b16 %v1881, %v1880
        %v1925 = vpack.c.b16 %v1883, %v1882
        %v1926 = vpack.c.b16 %v1885, %v1884
        %v1927 = vpack.c.b16 %v1887, %v1886
        %v1928 = vpack.c.b16 %v1889, %v1888
        %v1929 = vpack.c.b16 %v1891, %v1890
        %v1930 = vpack.c.b16 %v1893, %v1892
        %v1931 = vpack.c.b16 %v1895, %v1894
        %v1932 = vpack.c.b16 %v1897, %v1896
        %v1933 = vpack.c.b16 %v1899, %v1898
        %v1934 = vpack.c.b16 %v1901, %v1900
        %v1935 = vpack.c.b16 %v1903, %v1902
        %v1937 = vshrl.u32 %v1904, 16
        %v1939 = vshll.u32 %v1904, 16
        %v1941 = vrot.slane %v1939, 1
        %v1942 = vor.u32 %v1937, %v1941
        %v1944 = vshrl.u32 %v1905, 16
        %v1946 = vshll.u32 %v1905, 16
        %v1948 = vrot.slane %v1946, 1
        %v1949 = vor.u32 %v1944, %v1948
        %v1951 = vshrl.u32 %v1906, 16
        %v1953 = vshll.u32 %v1906, 16
        %v1955 = vrot.slane %v1953, 1
        %v1956 = vor.u32 %v1951, %v1955
        %v1958 = vshrl.u32 %v1907, 16
        %v1960 = vshll.u32 %v1907, 16
        %v1962 = vrot.slane %v1960, 1
        %v1963 = vor.u32 %v1958, %v1962
        %v1965 = vshrl.u32 %v1908, 16
        %v1967 = vshll.u32 %v1908, 16
        %v1969 = vrot.slane %v1967, 1
        %v1970 = vor.u32 %v1965, %v1969
        %v1972 = vshrl.u32 %v1909, 16
        %v1974 = vshll.u32 %v1909, 16
        %v1976 = vrot.slane %v1974, 1
        %v1977 = vor.u32 %v1972, %v1976
        %v1979 = vshrl.u32 %v1910, 16
        %v1981 = vshll.u32 %v1910, 16
        %v1983 = vrot.slane %v1981, 1
        %v1984 = vor.u32 %v1979, %v1983
        %v1986 = vshrl.u32 %v1911, 16
        %v1988 = vshll.u32 %v1911, 16
        %v1990 = vrot.slane %v1988, 1
        %v1991 = vor.u32 %v1986, %v1990
        %v1993 = vshrl.u32 %v1912, 16
        %v1995 = vshll.u32 %v1912, 16
        %v1997 = vrot.slane %v1995, 1
        %v1998 = vor.u32 %v1993, %v1997
        %v2000 = vshrl.u32 %v1913, 16
        %v2002 = vshll.u32 %v1913, 16
        %v2004 = vrot.slane %v2002, 1
        %v2005 = vor.u32 %v2000, %v2004
        %v2007 = vshrl.u32 %v1914, 16
        %v2009 = vshll.u32 %v1914, 16
        %v2011 = vrot.slane %v2009, 1
        %v2012 = vor.u32 %v2007, %v2011
        %v2014 = vshrl.u32 %v1915, 16
        %v2016 = vshll.u32 %v1915, 16
        %v2018 = vrot.slane %v2016, 1
        %v2019 = vor.u32 %v2014, %v2018
        %v2021 = vshrl.u32 %v1916, 16
        %v2023 = vshll.u32 %v1916, 16
        %v2025 = vrot.slane %v2023, 1
        %v2026 = vor.u32 %v2021, %v2025
        %v2028 = vshrl.u32 %v1917, 16
        %v2030 = vshll.u32 %v1917, 16
        %v2032 = vrot.slane %v2030, 1
        %v2033 = vor.u32 %v2028, %v2032
        %v2035 = vshrl.u32 %v1918, 16
        %v2037 = vshll.u32 %v1918, 16
        %v2039 = vrot.slane %v2037, 1
        %v2040 = vor.u32 %v2035, %v2039
        %v2042 = vshrl.u32 %v1919, 16
        %v2044 = vshll.u32 %v1919, 16
        %v2046 = vrot.slane %v2044, 1
        %v2047 = vor.u32 %v2042, %v2046
        %v2049 = vshrl.u32 %v1920, 16
        %v2051 = vshll.u32 %v1920, 16
        %v2053 = vrot.slane %v2051, 1
        %v2054 = vor.u32 %v2049, %v2053
        %v2056 = vshrl.u32 %v1921, 16
        %v2058 = vshll.u32 %v1921, 16
        %v2060 = vrot.slane %v2058, 1
        %v2061 = vor.u32 %v2056, %v2060
        %v2063 = vshrl.u32 %v1922, 16
        %v2065 = vshll.u32 %v1922, 16
        %v2067 = vrot.slane %v2065, 1
        %v2068 = vor.u32 %v2063, %v2067
        %v2070 = vshrl.u32 %v1923, 16
        %v2072 = vshll.u32 %v1923, 16
        %v2074 = vrot.slane %v2072, 1
        %v2075 = vor.u32 %v2070, %v2074
        %v2077 = vshrl.u32 %v1924, 16
        %v2079 = vshll.u32 %v1924, 16
        %v2081 = vrot.slane %v2079, 1
        %v2082 = vor.u32 %v2077, %v2081
        %v2084 = vshrl.u32 %v1925, 16
        %v2086 = vshll.u32 %v1925, 16
        %v2088 = vrot.slane %v2086, 1
        %v2089 = vor.u32 %v2084, %v2088
        %v2091 = vshrl.u32 %v1926, 16
        %v2093 = vshll.u32 %v1926, 16
        %v2095 = vrot.slane %v2093, 1
        %v2096 = vor.u32 %v2091, %v2095
        %v2098 = vshrl.u32 %v1927, 16
        %v2100 = vshll.u32 %v1927, 16
        %v2102 = vrot.slane %v2100, 1
        %v2103 = vor.u32 %v2098, %v2102
        %v2105 = vshrl.u32 %v1928, 16
        %v2107 = vshll.u32 %v1928, 16
        %v2109 = vrot.slane %v2107, 1
        %v2110 = vor.u32 %v2105, %v2109
        %v2112 = vshrl.u32 %v1929, 16
        %v2114 = vshll.u32 %v1929, 16
        %v2116 = vrot.slane %v2114, 1
        %v2117 = vor.u32 %v2112, %v2116
        %v2119 = vshrl.u32 %v1930, 16
        %v2121 = vshll.u32 %v1930, 16
        %v2123 = vrot.slane %v2121, 1
        %v2124 = vor.u32 %v2119, %v2123
        %v2126 = vshrl.u32 %v1931, 16
        %v2128 = vshll.u32 %v1931, 16
        %v2130 = vrot.slane %v2128, 1
        %v2131 = vor.u32 %v2126, %v2130
        %v2133 = vshrl.u32 %v1932, 16
        %v2135 = vshll.u32 %v1932, 16
        %v2137 = vrot.slane %v2135, 1
        %v2138 = vor.u32 %v2133, %v2137
        %v2140 = vshrl.u32 %v1933, 16
        %v2142 = vshll.u32 %v1933, 16
        %v2144 = vrot.slane %v2142, 1
        %v2145 = vor.u32 %v2140, %v2144
        %v2147 = vshrl.u32 %v1934, 16
        %v2149 = vshll.u32 %v1934, 16
        %v2151 = vrot.slane %v2149, 1
        %v2152 = vor.u32 %v2147, %v2151
        %v2154 = vshrl.u32 %v1935, 16
        %v2156 = vshll.u32 %v1935, 16
        %v2158 = vrot.slane %v2156, 1
        %v2159 = vor.u32 %v2154, %v2158
        %2160 = vrot.lane.b32.xlu0 %v1942, 32
        %v2161 = vpop.permute.xlu0 %2160
        %2162 = vrot.lane.b32.xlu0 %v1949, 32
        %v2163 = vpop.permute.xlu0 %2162
        %2164 = vrot.lane.b32.xlu0 %v1956, 32
        %v2165 = vpop.permute.xlu0 %2164
        %2166 = vrot.lane.b32.xlu0 %v1963, 32
        %v2167 = vpop.permute.xlu0 %2166
        %2168 = vrot.lane.b32.xlu0 %v1970, 32
        %v2169 = vpop.permute.xlu0 %2168
        %2170 = vrot.lane.b32.xlu0 %v1977, 32
        %v2171 = vpop.permute.xlu0 %2170
        %2172 = vrot.lane.b32.xlu0 %v1984, 32
        %v2173 = vpop.permute.xlu0 %2172
        %2174 = vrot.lane.b32.xlu0 %v1991, 32
        %v2175 = vpop.permute.xlu0 %2174
        %2176 = vrot.lane.b32.xlu0 %v1998, 32
        %v2177 = vpop.permute.xlu0 %2176
        %2178 = vrot.lane.b32.xlu0 %v2005, 32
        %v2179 = vpop.permute.xlu0 %2178
        %2180 = vrot.lane.b32.xlu0 %v2012, 32
        %v2181 = vpop.permute.xlu0 %2180
        %2182 = vrot.lane.b32.xlu0 %v2019, 32
        %v2183 = vpop.permute.xlu0 %2182
        %2184 = vrot.lane.b32.xlu0 %v2026, 32
        %v2185 = vpop.permute.xlu0 %2184
        %2186 = vrot.lane.b32.xlu0 %v2033, 32
        %v2187 = vpop.permute.xlu0 %2186
        %2188 = vrot.lane.b32.xlu0 %v2040, 32
        %v2189 = vpop.permute.xlu0 %2188
        %2190 = vrot.lane.b32.xlu0 %v2047, 32
        %v2191 = vpop.permute.xlu0 %2190
        %2192 = vrot.lane.b32.xlu0 %v2054, 32
        %v2193 = vpop.permute.xlu0 %2192
        %2194 = vrot.lane.b32.xlu0 %v2061, 32
        %v2195 = vpop.permute.xlu0 %2194
        %2196 = vrot.lane.b32.xlu0 %v2068, 32
        %v2197 = vpop.permute.xlu0 %2196
        %2198 = vrot.lane.b32.xlu0 %v2075, 32
        %v2199 = vpop.permute.xlu0 %2198
        %2200 = vrot.lane.b32.xlu0 %v2082, 32
        %v2201 = vpop.permute.xlu0 %2200
        %2202 = vrot.lane.b32.xlu0 %v2089, 32
        %v2203 = vpop.permute.xlu0 %2202
        %2204 = vrot.lane.b32.xlu0 %v2096, 32
        %v2205 = vpop.permute.xlu0 %2204
        %2206 = vrot.lane.b32.xlu0 %v2103, 32
        %v2207 = vpop.permute.xlu0 %2206
        %2208 = vrot.lane.b32.xlu0 %v2110, 32
        %v2209 = vpop.permute.xlu0 %2208
        %2210 = vrot.lane.b32.xlu0 %v2117, 32
        %v2211 = vpop.permute.xlu0 %2210
        %2212 = vrot.lane.b32.xlu0 %v2124, 32
        %v2213 = vpop.permute.xlu0 %2212
        %2214 = vrot.lane.b32.xlu0 %v2131, 32
        %v2215 = vpop.permute.xlu0 %2214
        %2216 = vrot.lane.b32.xlu0 %v2138, 32
        %v2217 = vpop.permute.xlu0 %2216
        %2218 = vrot.lane.b32.xlu0 %v2145, 32
        %v2219 = vpop.permute.xlu0 %2218
        %2220 = vrot.lane.b32.xlu0 %v2152, 32
        %v2221 = vpop.permute.xlu0 %2220
        %2222 = vrot.lane.b32.xlu0 %v2159, 32
        %v2223 = vpop.permute.xlu0 %2222
        %v2224 = vrot.slane %v1904, 1
        %v2225 = vrot.slane %v1905, 1
        %v2226 = vrot.slane %v1906, 1
        %v2227 = vrot.slane %v1907, 1
        %v2228 = vrot.slane %v1908, 1
        %v2229 = vrot.slane %v1909, 1
        %v2230 = vrot.slane %v1910, 1
        %v2231 = vrot.slane %v1911, 1
        %v2232 = vrot.slane %v1912, 1
        %v2233 = vrot.slane %v1913, 1
        %v2234 = vrot.slane %v1914, 1
        %v2235 = vrot.slane %v1915, 1
        %v2236 = vrot.slane %v1916, 1
        %v2237 = vrot.slane %v1917, 1
        %v2238 = vrot.slane %v1918, 1
        %v2239 = vrot.slane %v1919, 1
        %v2240 = vrot.slane %v1920, 1
        %v2241 = vrot.slane %v1921, 1
        %v2242 = vrot.slane %v1922, 1
        %v2243 = vrot.slane %v1923, 1
        %v2244 = vrot.slane %v1924, 1
        %v2245 = vrot.slane %v1925, 1
        %v2246 = vrot.slane %v1926, 1
        %v2247 = vrot.slane %v1927, 1
        %v2248 = vrot.slane %v1928, 1
        %v2249 = vrot.slane %v1929, 1
        %v2250 = vrot.slane %v1930, 1
        %v2251 = vrot.slane %v1931, 1
        %v2252 = vrot.slane %v1932, 1
        %v2253 = vrot.slane %v1933, 1
        %v2254 = vrot.slane %v1934, 1
        %v2255 = vrot.slane %v1935, 1
        %2256 = vrot.lane.b32.xlu0 %v2224, 64
        %v2257 = vpop.permute.xlu0 %2256
        %2258 = vrot.lane.b32.xlu0 %v2225, 64
        %v2259 = vpop.permute.xlu0 %2258
        %2260 = vrot.lane.b32.xlu0 %v2226, 64
        %v2261 = vpop.permute.xlu0 %2260
        %2262 = vrot.lane.b32.xlu0 %v2227, 64
        %v2263 = vpop.permute.xlu0 %2262
        %2264 = vrot.lane.b32.xlu0 %v2228, 64
        %v2265 = vpop.permute.xlu0 %2264
        %2266 = vrot.lane.b32.xlu0 %v2229, 64
        %v2267 = vpop.permute.xlu0 %2266
        %2268 = vrot.lane.b32.xlu0 %v2230, 64
        %v2269 = vpop.permute.xlu0 %2268
        %2270 = vrot.lane.b32.xlu0 %v2231, 64
        %v2271 = vpop.permute.xlu0 %2270
        %2272 = vrot.lane.b32.xlu0 %v2232, 64
        %v2273 = vpop.permute.xlu0 %2272
        %2274 = vrot.lane.b32.xlu0 %v2233, 64
        %v2275 = vpop.permute.xlu0 %2274
        %2276 = vrot.lane.b32.xlu0 %v2234, 64
        %v2277 = vpop.permute.xlu0 %2276
        %2278 = vrot.lane.b32.xlu0 %v2235, 64
        %v2279 = vpop.permute.xlu0 %2278
        %2280 = vrot.lane.b32.xlu0 %v2236, 64
        %v2281 = vpop.permute.xlu0 %2280
        %2282 = vrot.lane.b32.xlu0 %v2237, 64
        %v2283 = vpop.permute.xlu0 %2282
        %2284 = vrot.lane.b32.xlu0 %v2238, 64
        %v2285 = vpop.permute.xlu0 %2284
        %2286 = vrot.lane.b32.xlu0 %v2239, 64
        %v2287 = vpop.permute.xlu0 %2286
        %2288 = vrot.lane.b32.xlu0 %v2240, 64
        %v2289 = vpop.permute.xlu0 %2288
        %2290 = vrot.lane.b32.xlu0 %v2241, 64
        %v2291 = vpop.permute.xlu0 %2290
        %2292 = vrot.lane.b32.xlu0 %v2242, 64
        %v2293 = vpop.permute.xlu0 %2292
        %2294 = vrot.lane.b32.xlu0 %v2243, 64
        %v2295 = vpop.permute.xlu0 %2294
        %2296 = vrot.lane.b32.xlu0 %v2244, 64
        %v2297 = vpop.permute.xlu0 %2296
        %2298 = vrot.lane.b32.xlu0 %v2245, 64
        %v2299 = vpop.permute.xlu0 %2298
        %2300 = vrot.lane.b32.xlu0 %v2246, 64
        %v2301 = vpop.permute.xlu0 %2300
        %2302 = vrot.lane.b32.xlu0 %v2247, 64
        %v2303 = vpop.permute.xlu0 %2302
        %2304 = vrot.lane.b32.xlu0 %v2248, 64
        %v2305 = vpop.permute.xlu0 %2304
        %2306 = vrot.lane.b32.xlu0 %v2249, 64
        %v2307 = vpop.permute.xlu0 %2306
        %2308 = vrot.lane.b32.xlu0 %v2250, 64
        %v2309 = vpop.permute.xlu0 %2308
        %2310 = vrot.lane.b32.xlu0 %v2251, 64
        %v2311 = vpop.permute.xlu0 %2310
        %2312 = vrot.lane.b32.xlu0 %v2252, 64
        %v2313 = vpop.permute.xlu0 %2312
        %2314 = vrot.lane.b32.xlu0 %v2253, 64
        %v2315 = vpop.permute.xlu0 %2314
        %2316 = vrot.lane.b32.xlu0 %v2254, 64
        %v2317 = vpop.permute.xlu0 %2316
        %2318 = vrot.lane.b32.xlu0 %v2255, 64
        %v2319 = vpop.permute.xlu0 %2318
        %v2320 = vrot.slane %v1937, 1
        %v2321 = vrot.slane %v1939, 2
        %v2322 = vor.u32 %v2320, %v2321
        %v2323 = vrot.slane %v1944, 1
        %v2324 = vrot.slane %v1946, 2
        %v2325 = vor.u32 %v2323, %v2324
        %v2326 = vrot.slane %v1951, 1
        %v2327 = vrot.slane %v1953, 2
        %v2328 = vor.u32 %v2326, %v2327
        %v2329 = vrot.slane %v1958, 1
        %v2330 = vrot.slane %v1960, 2
        %v2331 = vor.u32 %v2329, %v2330
        %v2332 = vrot.slane %v1965, 1
        %v2333 = vrot.slane %v1967, 2
        %v2334 = vor.u32 %v2332, %v2333
        %v2335 = vrot.slane %v1972, 1
        %v2336 = vrot.slane %v1974, 2
        %v2337 = vor.u32 %v2335, %v2336
        %v2338 = vrot.slane %v1979, 1
        %v2339 = vrot.slane %v1981, 2
        %v2340 = vor.u32 %v2338, %v2339
        %v2341 = vrot.slane %v1986, 1
        %v2342 = vrot.slane %v1988, 2
        %v2343 = vor.u32 %v2341, %v2342
        %v2344 = vrot.slane %v1993, 1
        %v2345 = vrot.slane %v1995, 2
        %v2346 = vor.u32 %v2344, %v2345
        %v2347 = vrot.slane %v2000, 1
        %v2348 = vrot.slane %v2002, 2
        %v2349 = vor.u32 %v2347, %v2348
        %v2350 = vrot.slane %v2007, 1
        %v2351 = vrot.slane %v2009, 2
        %v2352 = vor.u32 %v2350, %v2351
        %v2353 = vrot.slane %v2014, 1
        %v2354 = vrot.slane %v2016, 2
        %v2355 = vor.u32 %v2353, %v2354
        %v2356 = vrot.slane %v2021, 1
        %v2357 = vrot.slane %v2023, 2
        %v2358 = vor.u32 %v2356, %v2357
        %v2359 = vrot.slane %v2028, 1
        %v2360 = vrot.slane %v2030, 2
        %v2361 = vor.u32 %v2359, %v2360
        %v2362 = vrot.slane %v2035, 1
        %v2363 = vrot.slane %v2037, 2
        %v2364 = vor.u32 %v2362, %v2363
        %v2365 = vrot.slane %v2042, 1
        %v2366 = vrot.slane %v2044, 2
        %v2367 = vor.u32 %v2365, %v2366
        %v2368 = vrot.slane %v2049, 1
        %v2369 = vrot.slane %v2051, 2
        %v2370 = vor.u32 %v2368, %v2369
        %v2371 = vrot.slane %v2056, 1
        %v2372 = vrot.slane %v2058, 2
        %v2373 = vor.u32 %v2371, %v2372
        %v2374 = vrot.slane %v2063, 1
        %v2375 = vrot.slane %v2065, 2
        %v2376 = vor.u32 %v2374, %v2375
        %v2377 = vrot.slane %v2070, 1
        %v2378 = vrot.slane %v2072, 2
        %v2379 = vor.u32 %v2377, %v2378
        %v2380 = vrot.slane %v2077, 1
        %v2381 = vrot.slane %v2079, 2
        %v2382 = vor.u32 %v2380, %v2381
        %v2383 = vrot.slane %v2084, 1
        %v2384 = vrot.slane %v2086, 2
        %v2385 = vor.u32 %v2383, %v2384
        %v2386 = vrot.slane %v2091, 1
        %v2387 = vrot.slane %v2093, 2
        %v2388 = vor.u32 %v2386, %v2387
        %v2389 = vrot.slane %v2098, 1
        %v2390 = vrot.slane %v2100, 2
        %v2391 = vor.u32 %v2389, %v2390
        %v2392 = vrot.slane %v2105, 1
        %v2393 = vrot.slane %v2107, 2
        %v2394 = vor.u32 %v2392, %v2393
        %v2395 = vrot.slane %v2112, 1
        %v2396 = vrot.slane %v2114, 2
        %v2397 = vor.u32 %v2395, %v2396
        %v2398 = vrot.slane %v2119, 1
        %v2399 = vrot.slane %v2121, 2
        %v2400 = vor.u32 %v2398, %v2399
        %v2401 = vrot.slane %v2126, 1
        %v2402 = vrot.slane %v2128, 2
        %v2403 = vor.u32 %v2401, %v2402
        %v2404 = vrot.slane %v2133, 1
        %v2405 = vrot.slane %v2135, 2
        %v2406 = vor.u32 %v2404, %v2405
        %v2407 = vrot.slane %v2140, 1
        %v2408 = vrot.slane %v2142, 2
        %v2409 = vor.u32 %v2407, %v2408
        %v2410 = vrot.slane %v2147, 1
        %v2411 = vrot.slane %v2149, 2
        %v2412 = vor.u32 %v2410, %v2411
        %v2413 = vrot.slane %v2154, 1
        %v2414 = vrot.slane %v2156, 2
        %v2415 = vor.u32 %v2413, %v2414
        %2416 = vrot.lane.b32.xlu0 %v2322, 96
        %v2417 = vpop.permute.xlu0 %2416
        %2418 = vrot.lane.b32.xlu0 %v2325, 96
        %v2419 = vpop.permute.xlu0 %2418
        %2420 = vrot.lane.b32.xlu0 %v2328, 96
        %v2421 = vpop.permute.xlu0 %2420
        %2422 = vrot.lane.b32.xlu0 %v2331, 96
        %v2423 = vpop.permute.xlu0 %2422
        %2424 = vrot.lane.b32.xlu0 %v2334, 96
        %v2425 = vpop.permute.xlu0 %2424
        %2426 = vrot.lane.b32.xlu0 %v2337, 96
        %v2427 = vpop.permute.xlu0 %2426
        %2428 = vrot.lane.b32.xlu0 %v2340, 96
        %v2429 = vpop.permute.xlu0 %2428
        %2430 = vrot.lane.b32.xlu0 %v2343, 96
        %v2431 = vpop.permute.xlu0 %2430
        %2432 = vrot.lane.b32.xlu0 %v2346, 96
        %v2433 = vpop.permute.xlu0 %2432
        %2434 = vrot.lane.b32.xlu0 %v2349, 96
        %v2435 = vpop.permute.xlu0 %2434
        %2436 = vrot.lane.b32.xlu0 %v2352, 96
        %v2437 = vpop.permute.xlu0 %2436
        %2438 = vrot.lane.b32.xlu0 %v2355, 96
        %v2439 = vpop.permute.xlu0 %2438
        %2440 = vrot.lane.b32.xlu0 %v2358, 96
        %v2441 = vpop.permute.xlu0 %2440
        %2442 = vrot.lane.b32.xlu0 %v2361, 96
        %v2443 = vpop.permute.xlu0 %2442
        %2444 = vrot.lane.b32.xlu0 %v2364, 96
        %v2445 = vpop.permute.xlu0 %2444
        %2446 = vrot.lane.b32.xlu0 %v2367, 96
        %v2447 = vpop.permute.xlu0 %2446
        %2448 = vrot.lane.b32.xlu0 %v2370, 96
        %v2449 = vpop.permute.xlu0 %2448
        %2450 = vrot.lane.b32.xlu0 %v2373, 96
        %v2451 = vpop.permute.xlu0 %2450
        %2452 = vrot.lane.b32.xlu0 %v2376, 96
        %v2453 = vpop.permute.xlu0 %2452
        %2454 = vrot.lane.b32.xlu0 %v2379, 96
        %v2455 = vpop.permute.xlu0 %2454
        %2456 = vrot.lane.b32.xlu0 %v2382, 96
        %v2457 = vpop.permute.xlu0 %2456
        %2458 = vrot.lane.b32.xlu0 %v2385, 96
        %v2459 = vpop.permute.xlu0 %2458
        %2460 = vrot.lane.b32.xlu0 %v2388, 96
        %v2461 = vpop.permute.xlu0 %2460
        %2462 = vrot.lane.b32.xlu0 %v2391, 96
        %v2463 = vpop.permute.xlu0 %2462
        %2464 = vrot.lane.b32.xlu0 %v2394, 96
        %v2465 = vpop.permute.xlu0 %2464
        %2466 = vrot.lane.b32.xlu0 %v2397, 96
        %v2467 = vpop.permute.xlu0 %2466
        %2468 = vrot.lane.b32.xlu0 %v2400, 96
        %v2469 = vpop.permute.xlu0 %2468
        %2470 = vrot.lane.b32.xlu0 %v2403, 96
        %v2471 = vpop.permute.xlu0 %2470
        %2472 = vrot.lane.b32.xlu0 %v2406, 96
        %v2473 = vpop.permute.xlu0 %2472
        %2474 = vrot.lane.b32.xlu0 %v2409, 96
        %v2475 = vpop.permute.xlu0 %2474
        %2476 = vrot.lane.b32.xlu0 %v2412, 96
        %v2477 = vpop.permute.xlu0 %2476
        %2478 = vrot.lane.b32.xlu0 %v2415, 96
        %v2479 = vpop.permute.xlu0 %2478
        %v2482 = vsel %vm270, %v1712, %v2161
        %v2485 = vsel %vm270, %v1714, %v2163
        %v2488 = vsel %vm270, %v1716, %v2165
        %v2491 = vsel %vm270, %v1718, %v2167
        %v2494 = vsel %vm270, %v1720, %v2169
        %v2497 = vsel %vm270, %v1722, %v2171
        %v2500 = vsel %vm270, %v1724, %v2173
        %v2503 = vsel %vm270, %v1726, %v2175
        %v2506 = vsel %vm270, %v1728, %v2177
        %v2509 = vsel %vm270, %v1730, %v2179
        %v2512 = vsel %vm270, %v1732, %v2181
        %v2515 = vsel %vm270, %v1734, %v2183
        %v2518 = vsel %vm270, %v1736, %v2185
        %v2521 = vsel %vm270, %v1738, %v2187
        %v2524 = vsel %vm270, %v1740, %v2189
        %v2527 = vsel %vm270, %v1742, %v2191
        %v2530 = vsel %vm270, %v1744, %v2193
        %v2533 = vsel %vm270, %v1746, %v2195
        %v2536 = vsel %vm270, %v1748, %v2197
        %v2539 = vsel %vm270, %v1750, %v2199
        %v2542 = vsel %vm270, %v1752, %v2201
        %v2545 = vsel %vm270, %v1754, %v2203
        %v2548 = vsel %vm270, %v1756, %v2205
        %v2551 = vsel %vm270, %v1758, %v2207
        %v2554 = vsel %vm270, %v1760, %v2209
        %v2557 = vsel %vm270, %v1762, %v2211
        %v2560 = vsel %vm270, %v1764, %v2213
        %v2563 = vsel %vm270, %v1766, %v2215
        %v2566 = vsel %vm270, %v1768, %v2217
        %v2569 = vsel %vm270, %v1770, %v2219
        %v2572 = vsel %vm270, %v1772, %v2221
        %v2575 = vsel %vm270, %v1774, %v2223
        %vm2576 = vcmask 523264
        %v2578 = vsel %vm2576, %v2482, %v2257
        %v2580 = vsel %vm2576, %v2485, %v2259
        %v2582 = vsel %vm2576, %v2488, %v2261
        %v2584 = vsel %vm2576, %v2491, %v2263
        %v2586 = vsel %vm2576, %v2494, %v2265
        %v2588 = vsel %vm2576, %v2497, %v2267
        %v2590 = vsel %vm2576, %v2500, %v2269
        %v2592 = vsel %vm2576, %v2503, %v2271
        %v2594 = vsel %vm2576, %v2506, %v2273
        %v2596 = vsel %vm2576, %v2509, %v2275
        %v2598 = vsel %vm2576, %v2512, %v2277
        %v2600 = vsel %vm2576, %v2515, %v2279
        %v2602 = vsel %vm2576, %v2518, %v2281
        %v2604 = vsel %vm2576, %v2521, %v2283
        %v2606 = vsel %vm2576, %v2524, %v2285
        %v2608 = vsel %vm2576, %v2527, %v2287
        %v2610 = vsel %vm2576, %v2530, %v2289
        %v2612 = vsel %vm2576, %v2533, %v2291
        %v2614 = vsel %vm2576, %v2536, %v2293
        %v2616 = vsel %vm2576, %v2539, %v2295
        %v2618 = vsel %vm2576, %v2542, %v2297
        %v2620 = vsel %vm2576, %v2545, %v2299
        %v2622 = vsel %vm2576, %v2548, %v2301
        %v2624 = vsel %vm2576, %v2551, %v2303
        %v2626 = vsel %vm2576, %v2554, %v2305
        %v2628 = vsel %vm2576, %v2557, %v2307
        %v2630 = vsel %vm2576, %v2560, %v2309
        %v2632 = vsel %vm2576, %v2563, %v2311
        %v2634 = vsel %vm2576, %v2566, %v2313
        %v2636 = vsel %vm2576, %v2569, %v2315
        %v2638 = vsel %vm2576, %v2572, %v2317
        %v2640 = vsel %vm2576, %v2575, %v2319
        %vm2641 = vcmask 785408
        %v2643 = vsel %vm2641, %v2578, %v2417
        %v2645 = vsel %vm2641, %v2580, %v2419
        %v2647 = vsel %vm2641, %v2582, %v2421
        %v2649 = vsel %vm2641, %v2584, %v2423
        %v2651 = vsel %vm2641, %v2586, %v2425
        %v2653 = vsel %vm2641, %v2588, %v2427
        %v2655 = vsel %vm2641, %v2590, %v2429
        %v2657 = vsel %vm2641, %v2592, %v2431
        %v2659 = vsel %vm2641, %v2594, %v2433
        %v2661 = vsel %vm2641, %v2596, %v2435
        %v2663 = vsel %vm2641, %v2598, %v2437
        %v2665 = vsel %vm2641, %v2600, %v2439
        %v2667 = vsel %vm2641, %v2602, %v2441
        %v2669 = vsel %vm2641, %v2604, %v2443
        %v2671 = vsel %vm2641, %v2606, %v2445
        %v2673 = vsel %vm2641, %v2608, %v2447
        %v2675 = vsel %vm2641, %v2610, %v2449
        %v2677 = vsel %vm2641, %v2612, %v2451
        %v2679 = vsel %vm2641, %v2614, %v2453
        %v2681 = vsel %vm2641, %v2616, %v2455
        %v2683 = vsel %vm2641, %v2618, %v2457
        %v2685 = vsel %vm2641, %v2620, %v2459
        %v2687 = vsel %vm2641, %v2622, %v2461
        %v2689 = vsel %vm2641, %v2624, %v2463
        %v2691 = vsel %vm2641, %v2626, %v2465
        %v2693 = vsel %vm2641, %v2628, %v2467
        %v2695 = vsel %vm2641, %v2630, %v2469
        %v2697 = vsel %vm2641, %v2632, %v2471
        %v2699 = vsel %vm2641, %v2634, %v2473
        %v2701 = vsel %vm2641, %v2636, %v2475
        %v2703 = vsel %vm2641, %v2638, %v2477
        %v2705 = vsel %vm2641, %v2640, %v2479
        %v2706 = vld [vmem:[%s2] sm:$0xf]
        %v2707 = vld [vmem:[%s2 + $0x4] sm:$0xf]
        %v2708 = vld [vmem:[%s2 + $0x8] sm:$0xf]
        %v2709 = vld [vmem:[%s2 + $0xc] sm:$0xf]
        %v2710 = vld [vmem:[%s2 + $0x10] sm:$0xf]
        %v2711 = vld [vmem:[%s2 + $0x14] sm:$0xf]
        %v2712 = vld [vmem:[%s2 + $0x18] sm:$0xf]
        %v2713 = vld [vmem:[%s2 + $0x1c] sm:$0xf]
        %v2714 = vld [vmem:[%s2 + $0x20] sm:$0xf]
        %v2715 = vld [vmem:[%s2 + $0x24] sm:$0xf]
        %v2716 = vld [vmem:[%s2 + $0x28] sm:$0xf]
        %v2717 = vld [vmem:[%s2 + $0x2c] sm:$0xf]
        %v2718 = vld [vmem:[%s2 + $0x30] sm:$0xf]
        %v2719 = vld [vmem:[%s2 + $0x34] sm:$0xf]
        %v2720 = vld [vmem:[%s2 + $0x38] sm:$0xf]
        %v2721 = vld [vmem:[%s2 + $0x3c] sm:$0xf]
        %v2722 = vld [vmem:[%s3] sm:$0x1]
        %v2724 = vperm.slane %v2722, 0
        %v2758 = vunpack.c.l.b16 %v2643
        %v2759 = vunpack.c.l.b16 %v2645
        %v2760 = vunpack.c.l.b16 %v2647
        %v2761 = vunpack.c.l.b16 %v2649
        %v2762 = vunpack.c.l.b16 %v2651
        %v2763 = vunpack.c.l.b16 %v2653
        %v2764 = vunpack.c.l.b16 %v2655
        %v2765 = vunpack.c.l.b16 %v2657
        %v2766 = vunpack.c.l.b16 %v2659
        %v2767 = vunpack.c.l.b16 %v2661
        %v2768 = vunpack.c.l.b16 %v2663
        %v2769 = vunpack.c.l.b16 %v2665
        %v2770 = vunpack.c.l.b16 %v2667
        %v2771 = vunpack.c.l.b16 %v2669
        %v2772 = vunpack.c.l.b16 %v2671
        %v2773 = vunpack.c.l.b16 %v2673
        %v2774 = vunpack.c.l.b16 %v2675
        %v2775 = vunpack.c.l.b16 %v2677
        %v2776 = vunpack.c.l.b16 %v2679
        %v2777 = vunpack.c.l.b16 %v2681
        %v2778 = vunpack.c.l.b16 %v2683
        %v2779 = vunpack.c.l.b16 %v2685
        %v2780 = vunpack.c.l.b16 %v2687
        %v2781 = vunpack.c.l.b16 %v2689
        %v2782 = vunpack.c.l.b16 %v2691
        %v2783 = vunpack.c.l.b16 %v2693
        %v2784 = vunpack.c.l.b16 %v2695
        %v2785 = vunpack.c.l.b16 %v2697
        %v2786 = vunpack.c.l.b16 %v2699
        %v2787 = vunpack.c.l.b16 %v2701
        %v2788 = vunpack.c.l.b16 %v2703
        %v2789 = vunpack.c.l.b16 %v2705
        %v2790 = vpack.c.b16 %v2759, %v2758
        %v2791 = vpack.c.b16 %v2761, %v2760
        %v2792 = vpack.c.b16 %v2763, %v2762
        %v2793 = vpack.c.b16 %v2765, %v2764
        %v2794 = vpack.c.b16 %v2767, %v2766
        %v2795 = vpack.c.b16 %v2769, %v2768
        %v2796 = vpack.c.b16 %v2771, %v2770
        %v2797 = vpack.c.b16 %v2773, %v2772
        %v2798 = vpack.c.b16 %v2775, %v2774
        %v2799 = vpack.c.b16 %v2777, %v2776
        %v2800 = vpack.c.b16 %v2779, %v2778
        %v2801 = vpack.c.b16 %v2781, %v2780
        %v2802 = vpack.c.b16 %v2783, %v2782
        %v2803 = vpack.c.b16 %v2785, %v2784
        %v2804 = vpack.c.b16 %v2787, %v2786
        %v2805 = vpack.c.b16 %v2789, %v2788
        %v2838 = vunpack.c.l.b16 %v2706
        %v2839 = vunpack.c.l.b16 %v2707
        %v2840 = vunpack.c.l.b16 %v2708
        %v2841 = vunpack.c.l.b16 %v2709
        %v2842 = vunpack.c.l.b16 %v2710
        %v2843 = vunpack.c.l.b16 %v2711
        %v2844 = vunpack.c.l.b16 %v2712
        %v2845 = vunpack.c.l.b16 %v2713
        %v2846 = vunpack.c.l.b16 %v2714
        %v2847 = vunpack.c.l.b16 %v2715
        %v2848 = vunpack.c.l.b16 %v2716
        %v2849 = vunpack.c.l.b16 %v2717
        %v2850 = vunpack.c.l.b16 %v2718
        %v2851 = vunpack.c.l.b16 %v2719
        %v2852 = vunpack.c.l.b16 %v2720
        %v2853 = vunpack.c.l.b16 %v2721
        %v2854 = vpack.c.b16 %v2839, %v2838
        %v2855 = vpack.c.b16 %v2841, %v2840
        %v2856 = vpack.c.b16 %v2843, %v2842
        %v2857 = vpack.c.b16 %v2845, %v2844
        %v2858 = vpack.c.b16 %v2847, %v2846
        %v2859 = vpack.c.b16 %v2849, %v2848
        %v2860 = vpack.c.b16 %v2851, %v2850
        %v2861 = vpack.c.b16 %v2853, %v2852
        %2870 = vmatpush.bf16.msra.mxu0 %v2861
        %2871 = vmatpush.bf16.msra.mxu0 %v2860
        %2872 = vmatpush.bf16.msra.mxu0 %v2859
        %2873 = vmatpush.bf16.msra.mxu0 %v2858
        %2874 = vmatpush.bf16.msra.mxu0 %v2857
        %2875 = vmatpush.bf16.msra.mxu0 %v2856
        %2876 = vmatpush.bf16.msra.mxu0 %v2855
        %2877 = vmatpush.bf16.msra.mxu0 %v2854
        %2878 = vmatmul.bf16.gmra.mxu0 %v2790
        %v2879 = vpop.f32.mrf.mxu0
        %v2880 = vadd.f32 %v2724, %v2879
        %v2881 = vpop.f32.mrf.mxu0
        %v2882 = vadd.f32 %v2724, %v2881
        %2883 = vmatmul.bf16.gmra.mxu0 %v2791
        %v2884 = vpop.f32.mrf.mxu0
        %v2885 = vadd.f32 %v2724, %v2884
        %v2886 = vpop.f32.mrf.mxu0
        %v2887 = vadd.f32 %v2724, %v2886
        %2888 = vmatmul.bf16.gmra.mxu0 %v2792
        %v2889 = vpop.f32.mrf.mxu0
        %v2890 = vadd.f32 %v2724, %v2889
        %v2891 = vpop.f32.mrf.mxu0
        %v2892 = vadd.f32 %v2724, %v2891
        %2893 = vmatmul.bf16.gmra.mxu0 %v2793
        %v2894 = vpop.f32.mrf.mxu0
        %v2895 = vadd.f32 %v2724, %v2894
        %v2896 = vpop.f32.mrf.mxu0
        %v2897 = vadd.f32 %v2724, %v2896
        %2898 = vmatmul.bf16.gmra.mxu0 %v2794
        %v2899 = vpop.f32.mrf.mxu0
        %v2900 = vadd.f32 %v2724, %v2899
        %v2901 = vpop.f32.mrf.mxu0
        %v2902 = vadd.f32 %v2724, %v2901
        %2903 = vmatmul.bf16.gmra.mxu0 %v2795
        %v2904 = vpop.f32.mrf.mxu0
        %v2905 = vadd.f32 %v2724, %v2904
        %v2906 = vpop.f32.mrf.mxu0
        %v2907 = vadd.f32 %v2724, %v2906
        %2908 = vmatmul.bf16.gmra.mxu0 %v2796
        %v2909 = vpop.f32.mrf.mxu0
        %v2910 = vadd.f32 %v2724, %v2909
        %v2911 = vpop.f32.mrf.mxu0
        %v2912 = vadd.f32 %v2724, %v2911
        %2913 = vmatmul.bf16.gmra.mxu0 %v2797
        %v2914 = vpop.f32.mrf.mxu0
        %v2915 = vadd.f32 %v2724, %v2914
        %v2916 = vpop.f32.mrf.mxu0
        %v2917 = vadd.f32 %v2724, %v2916
        %2918 = vmatmul.bf16.gmra.mxu0 %v2798
        %v2919 = vpop.f32.mrf.mxu0
        %v2920 = vadd.f32 %v2724, %v2919
        %v2921 = vpop.f32.mrf.mxu0
        %v2922 = vadd.f32 %v2724, %v2921
        %2923 = vmatmul.bf16.gmra.mxu0 %v2799
        %v2924 = vpop.f32.mrf.mxu0
        %v2925 = vadd.f32 %v2724, %v2924
        %v2926 = vpop.f32.mrf.mxu0
        %v2927 = vadd.f32 %v2724, %v2926
        %2928 = vmatmul.bf16.gmra.mxu0 %v2800
        %v2929 = vpop.f32.mrf.mxu0
        %v2930 = vadd.f32 %v2724, %v2929
        %v2931 = vpop.f32.mrf.mxu0
        %v2932 = vadd.f32 %v2724, %v2931
        %2933 = vmatmul.bf16.gmra.mxu0 %v2801
        %v2934 = vpop.f32.mrf.mxu0
        %v2935 = vadd.f32 %v2724, %v2934
        %v2936 = vpop.f32.mrf.mxu0
        %v2937 = vadd.f32 %v2724, %v2936
        %2938 = vmatmul.bf16.gmra.mxu0 %v2802
        %v2939 = vpop.f32.mrf.mxu0
        %v2940 = vadd.f32 %v2724, %v2939
        %v2941 = vpop.f32.mrf.mxu0
        %v2942 = vadd.f32 %v2724, %v2941
        %2943 = vmatmul.bf16.gmra.mxu0 %v2803
        %v2944 = vpop.f32.mrf.mxu0
        %v2945 = vadd.f32 %v2724, %v2944
        %v2946 = vpop.f32.mrf.mxu0
        %v2947 = vadd.f32 %v2724, %v2946
        %2948 = vmatmul.bf16.gmra.mxu0 %v2804
        %v2949 = vpop.f32.mrf.mxu0
        %v2950 = vadd.f32 %v2724, %v2949
        %v2951 = vpop.f32.mrf.mxu0
        %v2952 = vadd.f32 %v2724, %v2951
        %2953 = vmatmul.bf16.gmra.mxu0 %v2805
        %v2954 = vpop.f32.mrf.mxu0
        %v2955 = vadd.f32 %v2724, %v2954
        %v2956 = vpop.f32.mrf.mxu0
        %v2957 = vadd.f32 %v2724, %v2956
        %2958 = vdwg.mxu0
        %v2959 = vmax.f32 %v2880, 0.0
        %v2960 = vmax.f32 %v2882, 0.0
        %v2961 = vmax.f32 %v2885, 0.0
        %v2962 = vmax.f32 %v2887, 0.0
        %v2963 = vmax.f32 %v2890, 0.0
        %v2964 = vmax.f32 %v2892, 0.0
        %v2965 = vmax.f32 %v2895, 0.0
        %v2966 = vmax.f32 %v2897, 0.0
        %v2967 = vmax.f32 %v2900, 0.0
        %v2968 = vmax.f32 %v2902, 0.0
        %v2969 = vmax.f32 %v2905, 0.0
        %v2970 = vmax.f32 %v2907, 0.0
        %v2971 = vmax.f32 %v2910, 0.0
        %v2972 = vmax.f32 %v2912, 0.0
        %v2973 = vmax.f32 %v2915, 0.0
        %v2974 = vmax.f32 %v2917, 0.0
        %v2975 = vmax.f32 %v2920, 0.0
        %v2976 = vmax.f32 %v2922, 0.0
        %v2977 = vmax.f32 %v2925, 0.0
        %v2978 = vmax.f32 %v2927, 0.0
        %v2979 = vmax.f32 %v2930, 0.0
        %v2980 = vmax.f32 %v2932, 0.0
        %v2981 = vmax.f32 %v2935, 0.0
        %v2982 = vmax.f32 %v2937, 0.0
        %v2983 = vmax.f32 %v2940, 0.0
        %v2984 = vmax.f32 %v2942, 0.0
        %v2985 = vmax.f32 %v2945, 0.0
        %v2986 = vmax.f32 %v2947, 0.0
        %v2987 = vmax.f32 %v2950, 0.0
        %v2988 = vmax.f32 %v2952, 0.0
        %v2989 = vmax.f32 %v2955, 0.0
        %v2990 = vmax.f32 %v2957, 0.0
        %v2991 = vld [vmem:[%s4] sm:$0xff]
        %v2992 = vmul.f32 %v2959, %v2991
        %v2993 = vmul.f32 %v2960, %v2991
        %v2994 = vmul.f32 %v2961, %v2991
        %v2995 = vmul.f32 %v2962, %v2991
        %v2996 = vmul.f32 %v2963, %v2991
        %v2997 = vmul.f32 %v2964, %v2991
        %v2998 = vmul.f32 %v2965, %v2991
        %v2999 = vmul.f32 %v2966, %v2991
        %v3000 = vmul.f32 %v2967, %v2991
        %v3001 = vmul.f32 %v2968, %v2991
        %v3002 = vmul.f32 %v2969, %v2991
        %v3003 = vmul.f32 %v2970, %v2991
        %v3004 = vmul.f32 %v2971, %v2991
        %v3005 = vmul.f32 %v2972, %v2991
        %v3006 = vmul.f32 %v2973, %v2991
        %v3007 = vmul.f32 %v2974, %v2991
        %v3008 = vmul.f32 %v2975, %v2991
        %v3009 = vmul.f32 %v2976, %v2991
        %v3010 = vmul.f32 %v2977, %v2991
        %v3011 = vmul.f32 %v2978, %v2991
        %v3012 = vmul.f32 %v2979, %v2991
        %v3013 = vmul.f32 %v2980, %v2991
        %v3014 = vmul.f32 %v2981, %v2991
        %v3015 = vmul.f32 %v2982, %v2991
        %v3016 = vmul.f32 %v2983, %v2991
        %v3017 = vmul.f32 %v2984, %v2991
        %v3018 = vmul.f32 %v2985, %v2991
        %v3019 = vmul.f32 %v2986, %v2991
        %v3020 = vmul.f32 %v2987, %v2991
        %v3021 = vmul.f32 %v2988, %v2991
        %v3022 = vmul.f32 %v2989, %v2991
        %v3023 = vmul.f32 %v2990, %v2991
        %vm3024 = vcmask 130048
        %v3025 = vsel %vm3024, %v2992, -inf
        %v3026 = vrot.slane %v3025, 4
        %v3027 = vmax.f32 %v3025, %v3026
        %v3028 = vrot.slane %v3027, 2
        %v3029 = vmax.f32 %v3027, %v3028
        %v3030 = vrot.slane %v3029, 1
        %v3031 = vmax.f32 %v3029, %v3030
        %v3032 = vsel %vm3024, %v2993, -inf
        %v3033 = vrot.slane %v3032, 4
        %v3034 = vmax.f32 %v3032, %v3033
        %v3035 = vrot.slane %v3034, 2
        %v3036 = vmax.f32 %v3034, %v3035
        %v3037 = vrot.slane %v3036, 1
        %v3038 = vmax.f32 %v3036, %v3037
        %v3039 = vsel %vm3024, %v2994, -inf
        %v3040 = vrot.slane %v3039, 4
        %v3041 = vmax.f32 %v3039, %v3040
        %v3042 = vrot.slane %v3041, 2
        %v3043 = vmax.f32 %v3041, %v3042
        %v3044 = vrot.slane %v3043, 1
        %v3045 = vmax.f32 %v3043, %v3044
        %v3046 = vsel %vm3024, %v2995, -inf
        %v3047 = vrot.slane %v3046, 4
        %v3048 = vmax.f32 %v3046, %v3047
        %v3049 = vrot.slane %v3048, 2
        %v3050 = vmax.f32 %v3048, %v3049
        %v3051 = vrot.slane %v3050, 1
        %v3052 = vmax.f32 %v3050, %v3051
        %v3053 = vsel %vm3024, %v2996, -inf
        %v3054 = vrot.slane %v3053, 4
        %v3055 = vmax.f32 %v3053, %v3054
        %v3056 = vrot.slane %v3055, 2
        %v3057 = vmax.f32 %v3055, %v3056
        %v3058 = vrot.slane %v3057, 1
        %v3059 = vmax.f32 %v3057, %v3058
        %v3060 = vsel %vm3024, %v2997, -inf
        %v3061 = vrot.slane %v3060, 4
        %v3062 = vmax.f32 %v3060, %v3061
        %v3063 = vrot.slane %v3062, 2
        %v3064 = vmax.f32 %v3062, %v3063
        %v3065 = vrot.slane %v3064, 1
        %v3066 = vmax.f32 %v3064, %v3065
        %v3067 = vsel %vm3024, %v2998, -inf
        %v3068 = vrot.slane %v3067, 4
        %v3069 = vmax.f32 %v3067, %v3068
        %v3070 = vrot.slane %v3069, 2
        %v3071 = vmax.f32 %v3069, %v3070
        %v3072 = vrot.slane %v3071, 1
        %v3073 = vmax.f32 %v3071, %v3072
        %v3074 = vsel %vm3024, %v2999, -inf
        %v3075 = vrot.slane %v3074, 4
        %v3076 = vmax.f32 %v3074, %v3075
        %v3077 = vrot.slane %v3076, 2
        %v3078 = vmax.f32 %v3076, %v3077
        %v3079 = vrot.slane %v3078, 1
        %v3080 = vmax.f32 %v3078, %v3079
        %v3081 = vsel %vm3024, %v3000, -inf
        %v3082 = vrot.slane %v3081, 4
        %v3083 = vmax.f32 %v3081, %v3082
        %v3084 = vrot.slane %v3083, 2
        %v3085 = vmax.f32 %v3083, %v3084
        %v3086 = vrot.slane %v3085, 1
        %v3087 = vmax.f32 %v3085, %v3086
        %v3088 = vsel %vm3024, %v3001, -inf
        %v3089 = vrot.slane %v3088, 4
        %v3090 = vmax.f32 %v3088, %v3089
        %v3091 = vrot.slane %v3090, 2
        %v3092 = vmax.f32 %v3090, %v3091
        %v3093 = vrot.slane %v3092, 1
        %v3094 = vmax.f32 %v3092, %v3093
        %v3095 = vsel %vm3024, %v3002, -inf
        %v3096 = vrot.slane %v3095, 4
        %v3097 = vmax.f32 %v3095, %v3096
        %v3098 = vrot.slane %v3097, 2
        %v3099 = vmax.f32 %v3097, %v3098
        %v3100 = vrot.slane %v3099, 1
        %v3101 = vmax.f32 %v3099, %v3100
        %v3102 = vsel %vm3024, %v3003, -inf
        %v3103 = vrot.slane %v3102, 4
        %v3104 = vmax.f32 %v3102, %v3103
        %v3105 = vrot.slane %v3104, 2
        %v3106 = vmax.f32 %v3104, %v3105
        %v3107 = vrot.slane %v3106, 1
        %v3108 = vmax.f32 %v3106, %v3107
        %v3109 = vsel %vm3024, %v3004, -inf
        %v3110 = vrot.slane %v3109, 4
        %v3111 = vmax.f32 %v3109, %v3110
        %v3112 = vrot.slane %v3111, 2
        %v3113 = vmax.f32 %v3111, %v3112
        %v3114 = vrot.slane %v3113, 1
        %v3115 = vmax.f32 %v3113, %v3114
        %v3116 = vsel %vm3024, %v3005, -inf
        %v3117 = vrot.slane %v3116, 4
        %v3118 = vmax.f32 %v3116, %v3117
        %v3119 = vrot.slane %v3118, 2
        %v3120 = vmax.f32 %v3118, %v3119
        %v3121 = vrot.slane %v3120, 1
        %v3122 = vmax.f32 %v3120, %v3121
        %v3123 = vsel %vm3024, %v3006, -inf
        %v3124 = vrot.slane %v3123, 4
        %v3125 = vmax.f32 %v3123, %v3124
        %v3126 = vrot.slane %v3125, 2
        %v3127 = vmax.f32 %v3125, %v3126
        %v3128 = vrot.slane %v3127, 1
        %v3129 = vmax.f32 %v3127, %v3128
        %v3130 = vsel %vm3024, %v3007, -inf
        %v3131 = vrot.slane %v3130, 4
        %v3132 = vmax.f32 %v3130, %v3131
        %v3133 = vrot.slane %v3132, 2
        %v3134 = vmax.f32 %v3132, %v3133
        %v3135 = vrot.slane %v3134, 1
        %v3136 = vmax.f32 %v3134, %v3135
        %v3137 = vsel %vm3024, %v3008, -inf
        %v3138 = vrot.slane %v3137, 4
        %v3139 = vmax.f32 %v3137, %v3138
        %v3140 = vrot.slane %v3139, 2
        %v3141 = vmax.f32 %v3139, %v3140
        %v3142 = vrot.slane %v3141, 1
        %v3143 = vmax.f32 %v3141, %v3142
        %v3144 = vsel %vm3024, %v3009, -inf
        %v3145 = vrot.slane %v3144, 4
        %v3146 = vmax.f32 %v3144, %v3145
        %v3147 = vrot.slane %v3146, 2
        %v3148 = vmax.f32 %v3146, %v3147
        %v3149 = vrot.slane %v3148, 1
        %v3150 = vmax.f32 %v3148, %v3149
        %v3151 = vsel %vm3024, %v3010, -inf
        %v3152 = vrot.slane %v3151, 4
        %v3153 = vmax.f32 %v3151, %v3152
        %v3154 = vrot.slane %v3153, 2
        %v3155 = vmax.f32 %v3153, %v3154
        %v3156 = vrot.slane %v3155, 1
        %v3157 = vmax.f32 %v3155, %v3156
        %v3158 = vsel %vm3024, %v3011, -inf
        %v3159 = vrot.slane %v3158, 4
        %v3160 = vmax.f32 %v3158, %v3159
        %v3161 = vrot.slane %v3160, 2
        %v3162 = vmax.f32 %v3160, %v3161
        %v3163 = vrot.slane %v3162, 1
        %v3164 = vmax.f32 %v3162, %v3163
        %v3165 = vsel %vm3024, %v3012, -inf
        %v3166 = vrot.slane %v3165, 4
        %v3167 = vmax.f32 %v3165, %v3166
        %v3168 = vrot.slane %v3167, 2
        %v3169 = vmax.f32 %v3167, %v3168
        %v3170 = vrot.slane %v3169, 1
        %v3171 = vmax.f32 %v3169, %v3170
        %v3172 = vsel %vm3024, %v3013, -inf
        %v3173 = vrot.slane %v3172, 4
        %v3174 = vmax.f32 %v3172, %v3173
        %v3175 = vrot.slane %v3174, 2
        %v3176 = vmax.f32 %v3174, %v3175
        %v3177 = vrot.slane %v3176, 1
        %v3178 = vmax.f32 %v3176, %v3177
        %v3179 = vsel %vm3024, %v3014, -inf
        %v3180 = vrot.slane %v3179, 4
        %v3181 = vmax.f32 %v3179, %v3180
        %v3182 = vrot.slane %v3181, 2
        %v3183 = vmax.f32 %v3181, %v3182
        %v3184 = vrot.slane %v3183, 1
        %v3185 = vmax.f32 %v3183, %v3184
        %v3186 = vsel %vm3024, %v3015, -inf
        %v3187 = vrot.slane %v3186, 4
        %v3188 = vmax.f32 %v3186, %v3187
        %v3189 = vrot.slane %v3188, 2
        %v3190 = vmax.f32 %v3188, %v3189
        %v3191 = vrot.slane %v3190, 1
        %v3192 = vmax.f32 %v3190, %v3191
        %v3193 = vsel %vm3024, %v3016, -inf
        %v3194 = vrot.slane %v3193, 4
        %v3195 = vmax.f32 %v3193, %v3194
        %v3196 = vrot.slane %v3195, 2
        %v3197 = vmax.f32 %v3195, %v3196
        %v3198 = vrot.slane %v3197, 1
        %v3199 = vmax.f32 %v3197, %v3198
        %v3200 = vsel %vm3024, %v3017, -inf
        %v3201 = vrot.slane %v3200, 4
        %v3202 = vmax.f32 %v3200, %v3201
        %v3203 = vrot.slane %v3202, 2
        %v3204 = vmax.f32 %v3202, %v3203
        %v3205 = vrot.slane %v3204, 1
        %v3206 = vmax.f32 %v3204, %v3205
        %v3207 = vsel %vm3024, %v3018, -inf
        %v3208 = vrot.slane %v3207, 4
        %v3209 = vmax.f32 %v3207, %v3208
        %v3210 = vrot.slane %v3209, 2
        %v3211 = vmax.f32 %v3209, %v3210
        %v3212 = vrot.slane %v3211, 1
        %v3213 = vmax.f32 %v3211, %v3212
        %v3214 = vsel %vm3024, %v3019, -inf
        %v3215 = vrot.slane %v3214, 4
        %v3216 = vmax.f32 %v3214, %v3215
        %v3217 = vrot.slane %v3216, 2
        %v3218 = vmax.f32 %v3216, %v3217
        %v3219 = vrot.slane %v3218, 1
        %v3220 = vmax.f32 %v3218, %v3219
        %v3221 = vsel %vm3024, %v3020, -inf
        %v3222 = vrot.slane %v3221, 4
        %v3223 = vmax.f32 %v3221, %v3222
        %v3224 = vrot.slane %v3223, 2
        %v3225 = vmax.f32 %v3223, %v3224
        %v3226 = vrot.slane %v3225, 1
        %v3227 = vmax.f32 %v3225, %v3226
        %v3228 = vsel %vm3024, %v3021, -inf
        %v3229 = vrot.slane %v3228, 4
        %v3230 = vmax.f32 %v3228, %v3229
        %v3231 = vrot.slane %v3230, 2
        %v3232 = vmax.f32 %v3230, %v3231
        %v3233 = vrot.slane %v3232, 1
        %v3234 = vmax.f32 %v3232, %v3233
        %v3235 = vsel %vm3024, %v3022, -inf
        %v3236 = vrot.slane %v3235, 4
        %v3237 = vmax.f32 %v3235, %v3236
        %v3238 = vrot.slane %v3237, 2
        %v3239 = vmax.f32 %v3237, %v3238
        %v3240 = vrot.slane %v3239, 1
        %v3241 = vmax.f32 %v3239, %v3240
        %v3242 = vsel %vm3024, %v3023, -inf
        %v3243 = vrot.slane %v3242, 4
        %v3244 = vmax.f32 %v3242, %v3243
        %v3245 = vrot.slane %v3244, 2
        %v3246 = vmax.f32 %v3244, %v3245
        %v3247 = vrot.slane %v3246, 1
        %v3248 = vmax.f32 %v3246, %v3247
        %v3249 = vld [vmem:[%s5] sm:$0x1]
        %v3251 = vperm.slane %v3249, 0
        %v3253 = vmul.f32 %v3031, %v3251
        %v3254 = vmul.f32 %v3038, %v3251
        %v3255 = vmul.f32 %v3045, %v3251
        %v3256 = vmul.f32 %v3052, %v3251
        %v3257 = vmul.f32 %v3059, %v3251
        %v3258 = vmul.f32 %v3066, %v3251
        %v3259 = vmul.f32 %v3073, %v3251
        %v3260 = vmul.f32 %v3080, %v3251
        %v3261 = vmul.f32 %v3087, %v3251
        %v3262 = vmul.f32 %v3094, %v3251
        %v3263 = vmul.f32 %v3101, %v3251
        %v3264 = vmul.f32 %v3108, %v3251
        %v3265 = vmul.f32 %v3115, %v3251
        %v3266 = vmul.f32 %v3122, %v3251
        %v3267 = vmul.f32 %v3129, %v3251
        %v3268 = vmul.f32 %v3136, %v3251
        %v3269 = vmul.f32 %v3143, %v3251
        %v3270 = vmul.f32 %v3150, %v3251
        %v3271 = vmul.f32 %v3157, %v3251
        %v3272 = vmul.f32 %v3164, %v3251
        %v3273 = vmul.f32 %v3171, %v3251
        %v3274 = vmul.f32 %v3178, %v3251
        %v3275 = vmul.f32 %v3185, %v3251
        %v3276 = vmul.f32 %v3192, %v3251
        %v3277 = vmul.f32 %v3199, %v3251
        %v3278 = vmul.f32 %v3206, %v3251
        %v3279 = vmul.f32 %v3213, %v3251
        %v3280 = vmul.f32 %v3220, %v3251
        %v3281 = vmul.f32 %v3227, %v3251
        %v3282 = vmul.f32 %v3234, %v3251
        %v3283 = vmul.f32 %v3241, %v3251
        %v3284 = vmul.f32 %v3248, %v3251
        %v3317 = vrot.slane %v3254, 7
        %vm3318 = vcmask 1041409
        %v3319 = vsel %vm3318, %v3317, %v3253
        %v3320 = vrot.slane %v3255, 6
        %vm3321 = vcmask 1042434
        %v3322 = vsel %vm3321, %v3320, %v3319
        %v3323 = vrot.slane %v3256, 5
        %vm3324 = vcmask 1043459
        %v3325 = vsel %vm3324, %v3323, %v3322
        %v3326 = vrot.slane %v3257, 4
        %vm3327 = vcmask 1044484
        %v3328 = vsel %vm3327, %v3326, %v3325
        %v3329 = vrot.slane %v3258, 3
        %vm3330 = vcmask 1045509
        %v3331 = vsel %vm3330, %v3329, %v3328
        %v3332 = vrot.slane %v3259, 2
        %vm3333 = vcmask 1046534
        %v3334 = vsel %vm3333, %v3332, %v3331
        %v3335 = vrot.slane %v3260, 1
        %vm3336 = vcmask 1047559
        %v3337 = vsel %vm3336, %v3335, %v3334
        %v3338 = vrot.slane %v3262, 7
        %v3339 = vsel %vm3318, %v3338, %v3261
        %v3340 = vrot.slane %v3263, 6
        %v3341 = vsel %vm3321, %v3340, %v3339
        %v3342 = vrot.slane %v3264, 5
        %v3343 = vsel %vm3324, %v3342, %v3341
        %v3344 = vrot.slane %v3265, 4
        %v3345 = vsel %vm3327, %v3344, %v3343
        %v3346 = vrot.slane %v3266, 3
        %v3347 = vsel %vm3330, %v3346, %v3345
        %v3348 = vrot.slane %v3267, 2
        %v3349 = vsel %vm3333, %v3348, %v3347
        %v3350 = vrot.slane %v3268, 1
        %v3351 = vsel %vm3336, %v3350, %v3349
        %v3352 = vrot.slane %v3270, 7
        %v3353 = vsel %vm3318, %v3352, %v3269
        %v3354 = vrot.slane %v3271, 6
        %v3355 = vsel %vm3321, %v3354, %v3353
        %v3356 = vrot.slane %v3272, 5
        %v3357 = vsel %vm3324, %v3356, %v3355
        %v3358 = vrot.slane %v3273, 4
        %v3359 = vsel %vm3327, %v3358, %v3357
        %v3360 = vrot.slane %v3274, 3
        %v3361 = vsel %vm3330, %v3360, %v3359
        %v3362 = vrot.slane %v3275, 2
        %v3363 = vsel %vm3333, %v3362, %v3361
        %v3364 = vrot.slane %v3276, 1
        %v3365 = vsel %vm3336, %v3364, %v3363
        %v3366 = vrot.slane %v3278, 7
        %v3367 = vsel %vm3318, %v3366, %v3277
        %v3368 = vrot.slane %v3279, 6
        %v3369 = vsel %vm3321, %v3368, %v3367
        %v3370 = vrot.slane %v3280, 5
        %v3371 = vsel %vm3324, %v3370, %v3369
        %v3372 = vrot.slane %v3281, 4
        %v3373 = vsel %vm3327, %v3372, %v3371
        %v3374 = vrot.slane %v3282, 3
        %v3375 = vsel %vm3330, %v3374, %v3373
        %v3376 = vrot.slane %v3283, 2
        %v3377 = vsel %vm3333, %v3376, %v3375
        %v3378 = vrot.slane %v3284, 1
        %v3379 = vsel %vm3336, %v3378, %v3377
        %v3384 = vsel %vm3024, %v3337, 0.0
        %3385 = vadd.xlane.f32.xlu0 %v3384
        %v3386 = vpop.xlane.xlu0 %3385
        %v3387 = vsel %vm3024, %v3351, 0.0
        %3388 = vadd.xlane.f32.xlu0 %v3387
        %v3389 = vpop.xlane.xlu0 %3388
        %v3390 = vsel %vm3024, %v3365, 0.0
        %3391 = vadd.xlane.f32.xlu0 %v3390
        %v3392 = vpop.xlane.xlu0 %3391
        %v3393 = vsel %vm3024, %v3379, 0.0
        %3394 = vadd.xlane.f32.xlu0 %v3393
        %v3395 = vpop.xlane.xlu0 %3394
        %s3396 = sld [smem:[#allocation3]]
        %v3397 = vstv %s3396
        %v3398 = vadd.f32 %v3386, %v3397
        %v3399 = vadd.f32 %v3389, %v3397
        %v3400 = vadd.f32 %v3392, %v3397
        %v3401 = vadd.f32 %v3395, %v3397
        %v3402 = vxor.u32 %v3398, 2147483648
        %v3403 = vxor.u32 %v3399, 2147483648
        %v3404 = vxor.u32 %v3400, 2147483648
        %v3405 = vxor.u32 %v3401, 2147483648
        %v3406 = vmul.f32 %v3402, 1.442695
        %v3407 = vpow.pop %v3406
        %v3408 = vmul.f32 %v3403, 1.442695
        %v3409 = vpow.pop %v3408
        %v3410 = vmul.f32 %v3404, 1.442695
        %v3411 = vpow.pop %v3410
        %v3412 = vmul.f32 %v3405, 1.442695
        %v3413 = vpow.pop %v3412
        %v3414 = vadd.f32 %v3407, 1.0
        %v3415 = vadd.f32 %v3409, 1.0
        %v3416 = vadd.f32 %v3411, 1.0
        %v3417 = vadd.f32 %v3413, 1.0
        %v3418 = vrcp.pop %v3414
        %v3419 = vmul.f32 %v3414, %v3418
        %v3420 = vsub.f32 1.0, %v3419
        %v3421 = vmul.f32 %v3418, %v3420
        %v3422 = vadd.f32 %v3418, %v3421
        %vm3423 = vweird.f32 %v3414
        %vm3424 = vweird.f32 %v3418
        %vm3425 = vmor %vm3423, %vm3424
        %v3426 = vsel %vm3425, %v3418, %v3422
        %v3427 = vand.u32 2147483647, %v3414
        %vm3428 = vcmp.eq.f32.partialorder %v3427, 8.507059e+37
        %v3429 = vand.u32 %v3414, 2147483648
        %v3430 = vor.u32 1.1754944e-38, %v3429
        %v3431 = vsel %vm3428, %v3430, %v3426
        %v3432 = vmul.f32 1.0, %v3431
        %v3433 = vrcp.pop %v3415
        %v3434 = vmul.f32 %v3415, %v3433
        %v3435 = vsub.f32 1.0, %v3434
        %v3436 = vmul.f32 %v3433, %v3435
        %v3437 = vadd.f32 %v3433, %v3436
        %vm3438 = vweird.f32 %v3415
        %vm3439 = vweird.f32 %v3433
        %vm3440 = vmor %vm3438, %vm3439
        %v3441 = vsel %vm3440, %v3433, %v3437
        %v3442 = vand.u32 2147483647, %v3415
        %vm3443 = vcmp.eq.f32.partialorder %v3442, 8.507059e+37
        %v3444 = vand.u32 %v3415, 2147483648
        %v3445 = vor.u32 1.1754944e-38, %v3444
        %v3446 = vsel %vm3443, %v3445, %v3441
        %v3447 = vmul.f32 1.0, %v3446
        %v3448 = vrcp.pop %v3416
        %v3449 = vmul.f32 %v3416, %v3448
        %v3450 = vsub.f32 1.0, %v3449
        %v3451 = vmul.f32 %v3448, %v3450
        %v3452 = vadd.f32 %v3448, %v3451
        %vm3453 = vweird.f32 %v3416
        %vm3454 = vweird.f32 %v3448
        %vm3455 = vmor %vm3453, %vm3454
        %v3456 = vsel %vm3455, %v3448, %v3452
        %v3457 = vand.u32 2147483647, %v3416
        %vm3458 = vcmp.eq.f32.partialorder %v3457, 8.507059e+37
        %v3459 = vand.u32 %v3416, 2147483648
        %v3460 = vor.u32 1.1754944e-38, %v3459
        %v3461 = vsel %vm3458, %v3460, %v3456
        %v3462 = vmul.f32 1.0, %v3461
        %v3463 = vrcp.pop %v3417
        %v3464 = vmul.f32 %v3417, %v3463
        %v3465 = vsub.f32 1.0, %v3464
        %v3466 = vmul.f32 %v3463, %v3465
        %v3467 = vadd.f32 %v3463, %v3466
        %vm3468 = vweird.f32 %v3417
        %vm3469 = vweird.f32 %v3463
        %vm3470 = vmor %vm3468, %vm3469
        %v3471 = vsel %vm3470, %v3463, %v3467
        %v3472 = vand.u32 2147483647, %v3417
        %vm3473 = vcmp.eq.f32.partialorder %v3472, 8.507059e+37
        %v3474 = vand.u32 %v3417, 2147483648
        %v3475 = vor.u32 1.1754944e-38, %v3474
        %v3476 = vsel %vm3473, %v3475, %v3471
        %v3477 = vmul.f32 1.0, %v3476
        %v3482 = vlaneseq
        %v3483 = vand.u32 %v3482, 127
        %v3484 = vperm.slane %v3432, %v3483
        %v3485 = vadd.s32 %v3483, 4294967288
        %v3486 = vperm.slane %v3447, %v3485
        %vm3487 = vcmask 130112
        %v3488 = vsel %vm3487, %v3486, %v3484
        %v3489 = vadd.s32 %v3483, 4294967280
        %v3490 = vperm.slane %v3462, %v3489
        %vm3491 = vcmask 195712
        %v3492 = vsel %vm3491, %v3490, %v3488
        %v3493 = vadd.s32 %v3483, 4294967272
        %v3494 = vperm.slane %v3477, %v3493
        %vm3495 = vcmask 261312
        %v3496 = vsel %vm3495, %v3494, %v3492
        %3498 = vst.msk [vmem:[%s269] sm:$0x1] %vm340, %v3496
        %p3499 = scmp.lt.s32.totalorder %s20, 1
        %s3500 = scalar_select %p3499, %s20, 1
        %s3501 = scalar_lea.vmem %s7, %s3500
        // Predicated region
        $region53: #{cnn_forward.1} parent=47 // pred_check
          %p3502 = pneg %p185
        $region54: #{cnn_forward.1} parent=47 // pred_check_branch
          %3504 = sbr.rel (%p3502) target = $region56
        $region55: #{cnn_forward.1} parent=47 // pred_region
          _
        $region56: #{cnn_forward.1} parent=47 // pred_fallthru
          _
      $region48: #{cnn_forward.1} parent=5 // pred_fallthru
        _
      %p3505 = scmp.le.s32.totalorder 2, %s15
      // Predicated region
      $region57: #{cnn_forward.1} parent=5 // pred_check
        %p3506 = pneg %p3505
      $region58: #{cnn_forward.1} parent=5 // pred_check_branch
        %3508 = sbr.rel (%p3506) target = $region60
      $region59: #{cnn_forward.1} parent=5 // pred_region
        %s3509 = ssub.s32 %s15, 2
        // Predicated region
        $region61: #{cnn_forward.1} parent=59 // pred_check
          %p3510 = pneg %p191
        $region62: #{cnn_forward.1} parent=59 // pred_check_branch
          %3512 = sbr.rel (%p3510) target = $region64
        $region63: #{cnn_forward.1} parent=59 // pred_region
          %p3513 = scmp.lt.s32.totalorder %s21, 1
          %s3514 = scalar_select %p3513, %s21, 1
          %s3515 = scalar_lea.vmem %s7, %s3514
        $region64: #{cnn_forward.1} parent=59 // pred_fallthru
          _
      $region60: #{cnn_forward.1} parent=5 // pred_fallthru
        _
    $region6: #{cnn_forward.1} parent=1 // loop_footer
      %s19 = sadd.s32 1, %s15
    $region7: #{cnn_forward.1} parent=1 // loop_footer_branch
      %14 = sbr.rel target = $region3
    $region8: #{cnn_forward.1} parent=1 // loop_exit
      _
    %3516 = vsyncpa [#allocation5], 1
    %s3517 = scalar_lea.sflag [#allocation5], 1
    %3518 = vsyncpa %s3517, 1

</llo_original>
